<compile_context>
chip_gen: v7x
topology: tpu7x:2x2x1
jax: 0.10.0
libtpu: 0.0.40
codegen_flags: <defaults>
</compile_context>

<pallas_src>
import functools

import jax
import jax.numpy as jnp
import numpy as np
from jax.experimental import pallas as pl
from jax.experimental.pallas import tpu as pltpu

_VMEM = pl.BlockSpec(memory_space=pltpu.MemorySpace.VMEM)
_NEG = -1e30
_ANCHORS_NP = np.array([[9.0, 14.0], [12.0, 17.0], [22.0, 21.0]], np.float32)

# ------------------- packed-parameter schemas (static) -------------------

# (name, cout, cin) for every matmul weight (conv1 uses its 27-wide im2col).
_PW_LAYERS = [
    ("1", 8, 27), ("2", 4, 8), ("3", 18, 4), ("4", 6, 18), ("5", 36, 6),
    ("6", 6, 36), ("7", 18, 6), ("8a", 24, 18), ("8b", 24, 18), ("9", 8, 24),
    ("10", 40, 8), ("11", 8, 40), ("12", 40, 8), ("13", 8, 40), ("14", 24, 8),
    ("15a", 40, 24), ("15b", 40, 24), ("16", 32, 40), ("17", 18, 32),
]
_PW_MAXCIN = max(cin for _, _, cin in _PW_LAYERS)

# (name, channels) for every depthwise 3x3 weight.
_DW_LAYERS = [("2", 8), ("4", 18), ("6", 36), ("9", 24), ("11", 40),
              ("13", 40), ("16", 40)]

# (name, channels) for every per-channel column vector.
_CV_ENTRIES = [
    ("b1", 8), ("bd2", 8), ("b2", 4), ("b3", 18), ("bd4", 18), ("b4", 6),
    ("b5", 36), ("bd6", 36), ("b6", 6), ("b7", 18), ("b8", 24),
    ("bd9", 24), ("b9", 8), ("b10", 40), ("bd11", 40), ("b11", 8),
    ("b12", 40), ("bd13", 40), ("b13", 8), ("b14", 24), ("b15", 40),
    ("bd16", 40), ("b16", 32), ("b17", 18),
    ("anc", 18), ("mxy", 18), ("mwh", 18), ("msig", 18),
]


def _build_offsets():
    pw_off, off = {}, 0
    for name, cout, cin in _PW_LAYERS:
        pw_off[name] = (off, cout, cin)
        off += cout
    pw_total = off
    dw_off, off = {}, 0
    for name, c in _DW_LAYERS:
        dw_off[name] = (off, c)
        off += c
    dw_total = off
    cv_off, off = {}, 0
    for name, c in _CV_ENTRIES:
        cv_off[name] = (off, c)
        off += c
    cv_total = off
    return pw_off, pw_total, dw_off, dw_total, cv_off, cv_total


_PW_OFF, _PW_TOTAL, _DW_OFF, _DW_TOTAL, _CV_OFF, _CV_TOTAL = _build_offsets()


# ------------------------------ fused kernel ------------------------------

def _yoloface_kernel(x1_ref, pw_ref, dw_ref, cv_ref,
                     dmask1_ref, dmask2_ref, dmask3_ref,
                     pmask1_ref, pmask2_ref,
                     down1_ref, down2_ref, ygrid_ref,
                     out_ref, *, sides, stride):
    s_a, s_b, s_c = sides                      # spatial sides at the 3 scales
    dmask = {s_a: dmask1_ref, s_b: dmask2_ref, s_c: dmask3_ref}

    def shift(x, delta):
        # y[:, q] = x[:, q + delta], zero-filled outside the flat range.
        c, p = x.shape
        if delta == 0:
            return x
        if delta > 0:
            return jnp.concatenate(
                [x[:, delta:], jnp.zeros((c, delta), x.dtype)], axis=1)
        return jnp.concatenate(
            [jnp.zeros((c, -delta), x.dtype), x[:, :p + delta]], axis=1)

    def leaky(y):
        return jnp.maximum(y, 0.1 * y)          # LeakyReLU(0.1) in one VALU op

    def colvec(name):
        off, c = _CV_OFF[name]
        return cv_ref[pl.ds(off, c), :]

    def pw_w(name):
        off, cout, cin = _PW_OFF[name]
        return pw_ref[pl.ds(off, cout), pl.ds(0, cin)]

    def dw_w(name):
        off, c = _DW_OFF[name]
        return dw_ref[pl.ds(off, c), :]

    def pwconv(name, x, act):
        y = jnp.dot(pw_w(name), x,
                    preferred_element_type=jnp.float32) + colvec("b" + name)
        return leaky(y) if act else y

    def dwconv(name, x, side, down_ref=None):
        # 3x3 depthwise conv (+ folded BN scale) as 9 shifted MACs; optional
        # stride-2 subsample via a 0/1 selection matmul; bias + LeakyReLU.
        wd = dw_w(name)
        mref = dmask[side]
        acc = wd[:, 4:5] * x                    # centre tap: no shift, no mask
        for ky in range(3):
            for kx in range(3):
                if ky == 1 and kx == 1:
                    continue
                t = ky * 3 + kx
                tap = shift(x, (ky - 1) * side + (kx - 1))
                if kx != 1:                     # kx==1 taps: zero-fill suffices
                    tap = tap * mref[pl.ds(t, 1), :]
                acc = acc + wd[:, t:t + 1] * tap
        if down_ref is not None:
            acc = jnp.dot(acc, down_ref[...], preferred_element_type=jnp.float32)
        return leaky(acc + colvec("bd" + name))

    def maxpool(x, pref, k, pad, side, down_ref):
        # Separable stride-1 max (columns then rows) with additive -1e30
        # boundary masks, then the stride-2 selection matmul.
        rowmax = None
        for kx in range(k):
            val = shift(x, kx - pad) + pref[pl.ds(kx, 1), :]
            rowmax = val if rowmax is None else jnp.maximum(rowmax, val)
        full = None
        for ky in range(k):
            val = shift(rowmax, (ky - pad) * side) + pref[pl.ds(k + ky, 1), :]
            full = val if full is None else jnp.maximum(full, val)
        return jnp.dot(full, down_ref[...], preferred_element_type=jnp.float32)

    # ----------------------------- network -----------------------------
    x1 = x1_ref[...]                                            # (27, P1)
    c1 = pwconv("1", x1, act=True)                              # (8,  P1)
    c2 = pwconv("2", dwconv("2", c1, s_a), act=False)           # (4,  P1)
    c3 = pwconv("3", c2, act=True)                              # (18, P1)
    c4 = pwconv("4", dwconv("4", c3, s_a, down1_ref), act=False)  # (6, P2)
    c5 = pwconv("5", c4, act=True)                              # (36, P2)
    c6 = pwconv("6", dwconv("6", c5, s_b), act=False) + c4      # fused residual
    c7 = pwconv("7", c6, act=True)                              # (18, P2)
    mp1 = maxpool(c3, pmask1_ref, 8, 3, s_a, down1_ref)         # (18, P2)
    # route1 = concat(mp1, c7) never materialised: split-weight matmuls.
    c8 = leaky(jnp.dot(pw_w("8a"), mp1, preferred_element_type=jnp.float32)
               + jnp.dot(pw_w("8b"), c7, preferred_element_type=jnp.float32)
               + colvec("b8"))                                  # (24, P2)
    c9 = pwconv("9", dwconv("9", c8, s_b, down2_ref), act=False)  # (8, P3)
    c10 = pwconv("10", c9, act=True)                            # (40, P3)
    c11 = pwconv("11", dwconv("11", c10, s_c), act=False) + c9
    c12 = pwconv("12", c11, act=True)
    c13 = pwconv("13", dwconv("13", c12, s_c), act=False) + c11
    c14 = pwconv("14", c13, act=True)                           # (24, P3)
    mp2 = maxpool(c8, pmask2_ref, 4, 1, s_b, down2_ref)         # (24, P3)
    c15 = leaky(jnp.dot(pw_w("15a"), mp2, preferred_element_type=jnp.float32)
                + jnp.dot(pw_w("15b"), c14, preferred_element_type=jnp.float32)
                + colvec("b15"))                                # (40, P3)
    c16 = pwconv("16", dwconv("16", c15, s_c), act=True)        # (32, P3)
    c17 = pwconv("17", c16, act=False)                          # (18, P3)

    # ------------------------- yolo decode -------------------------
    # rows = a*6 + o, columns = y*nx + x
    sig = 1.0 / (1.0 + jnp.exp(-c17))
    mwh = colvec("mwh")
    e = jnp.exp(jnp.where(mwh > 0, c17, 0.0))   # exp only where used -> no inf*0
    out_ref[...] = (colvec("mxy") * (sig + ygrid_ref[...]) * stride
                    + mwh * e * colvec("anc")
                    + colvec("msig") * sig)


# --------------------------- constants (numpy) ---------------------------

def _dw_tap_mask(side):
    hh, ww = np.meshgrid(np.arange(side), np.arange(side), indexing="ij")
    m = np.zeros((9, side * side), np.float32)
    for ky in range(3):
        for kx in range(3):
            ok = ((hh + ky - 1 >= 0) & (hh + ky - 1 < side)
                  & (ww + kx - 1 >= 0) & (ww + kx - 1 < side))
            m[ky * 3 + kx] = ok.reshape(-1).astype(np.float32)
    return m


def _pool_tap_mask(side, k, pad):
    hh, ww = np.meshgrid(np.arange(side), np.arange(side), indexing="ij")
    m = np.zeros((2 * k, side * side), np.float32)
    for kx in range(k):
        ok = (ww + kx - pad >= 0) & (ww + kx - pad < side)
        m[kx] = np.where(ok, 0.0, _NEG).reshape(-1)
    for ky in range(k):
        ok = (hh + ky - pad >= 0) & (hh + ky - pad < side)
        m[k + ky] = np.where(ok, 0.0, _NEG).reshape(-1)
    return m


def _downsample_matrix(side):
    half = side // 2
    d = np.zeros((side * side, half * half), np.float32)
    for y in range(half):
        for x in range(half):
            d[(2 * y) * side + 2 * x, y * half + x] = 1.0
    return d


def _yolo_constants(s_c):
    p = s_c * s_c
    ygrid = np.zeros((18, p), np.float32)
    anc = np.ones((18,), np.float32)
    mxy = np.zeros((18,), np.float32)
    mwh = np.zeros((18,), np.float32)
    msig = np.zeros((18,), np.float32)
    xs = (np.arange(p) % s_c).astype(np.float32)
    ys = (np.arange(p) // s_c).astype(np.float32)
    for a in range(3):
        ygrid[a * 6 + 0] = xs
        ygrid[a * 6 + 1] = ys
        anc[a * 6 + 2] = _ANCHORS_NP[a, 0]
        anc[a * 6 + 3] = _ANCHORS_NP[a, 1]
        mxy[a * 6 + 0] = 1.0
        mxy[a * 6 + 1] = 1.0
        mwh[a * 6 + 2] = 1.0
        mwh[a * 6 + 3] = 1.0
        msig[a * 6 + 4] = 1.0
        msig[a * 6 + 5] = 1.0
    return ygrid, anc, mxy, mwh, msig


# --------------------- one-time parameter preparation ---------------------

def prepare_params(params, img_size):
    """Fold BN (+ /255 prescale) into weights, split route weights, pack all
    weights/biases into 3 dense buffers and build the constant mask /
    selection matrices.  Run once, outside jit."""
    assert img_size % 8 == 0
    s_a, s_b, s_c = img_size // 2, img_size // 4, img_size // 8

    pw_pack = np.zeros((_PW_TOTAL, _PW_MAXCIN), np.float32)
    dw_pack = np.zeros((_DW_TOTAL, 9), np.float32)
    cv_pack = np.zeros((_CV_TOTAL, 1), np.float32)

    def put_pw(name, mat):
        off, cout, cin = _PW_OFF[name]
        mat = np.asarray(mat, np.float32)
        assert mat.shape == (cout, cin), (name, mat.shape)
        pw_pack[off:off + cout, :cin] = mat

    def put_dw(name, mat):
        off, c = _DW_OFF[name]
        mat = np.asarray(mat, np.float32)
        assert mat.shape == (c, 9), (name, mat.shape)
        dw_pack[off:off + c, :] = mat

    def put_cv(name, vec):
        off, c = _CV_OFF[name]
        vec = np.asarray(vec, np.float32).reshape(-1)
        assert vec.shape == (c,), (name, vec.shape)
        cv_pack[off:off + c, 0] = vec

    def pw_layer(src, dst):
        w, scale, b = (np.asarray(a, np.float32) for a in params[src])
        cout, cin = w.shape[0], w.shape[1]
        put_pw(dst, w.reshape(cout, cin) * scale[:, None])
        put_cv("b" + dst, b)

    def dw_layer(src, dst):
        w, scale, b = (np.asarray(a, np.float32) for a in params[src])
        c = w.shape[0]
        put_dw(dst, w[:, 0].reshape(c, 9) * scale[:, None])
        put_cv("bd" + dst, b)

    # conv1: fold BN scale AND the input / 255 prescale into the weights.
    w1, sc1, b1 = (np.asarray(a, np.float32) for a in params["conv1"])
    put_pw("1", (w1.reshape(8, 27) * sc1[:, None]) / 255.0)
    put_cv("b1", b1)

    dw_layer("conv2_dw", "2"); pw_layer("conv2_pw", "2")
    pw_layer("conv3", "3")
    dw_layer("conv4_dw", "4"); pw_layer("conv4_pw", "4")
    pw_layer("conv5", "5")
    dw_layer("conv6_dw", "6"); pw_layer("conv6_pw", "6")
    pw_layer("conv7", "7")
    w8, sc8, b8 = (np.asarray(a, np.float32) for a in params["conv8"])
    w8m = w8[:, :, 0, 0] * sc8[:, None]
    put_pw("8a", w8m[:, :18]); put_pw("8b", w8m[:, 18:]); put_cv("b8", b8)
    dw_layer("conv9_dw", "9"); pw_layer("conv9_pw", "9")
    pw_layer("conv10", "10")
    dw_layer("conv11_dw", "11"); pw_layer("conv11_pw", "11")
    pw_layer("conv12", "12")
    dw_layer("conv13_dw", "13"); pw_layer("conv13_pw", "13")
    pw_layer("conv14", "14")
    w15, sc15, b15 = (np.asarray(a, np.float32) for a in params["conv15"])
    w15m = w15[:, :, 0, 0] * sc15[:, None]
    put_pw("15a", w15m[:, :24]); put_pw("15b", w15m[:, 24:]); put_cv("b15", b15)
    dw_layer("conv16_dw", "16"); pw_layer("conv16_pw", "16")
    w17, b17 = (np.asarray(a, np.float32) for a in params["conv17"])
    put_pw("17", w17[:, :, 0, 0]); put_cv("b17", b17)

    # yolo decode constants
    ygrid, anc, mxy, mwh, msig = _yolo_constants(s_c)
    put_cv("anc", anc); put_cv("mxy", mxy); put_cv("mwh", mwh); put_cv("msig", msig)

    return {
        "pw": jnp.asarray(pw_pack),
        "dw": jnp.asarray(dw_pack),
        "cv": jnp.asarray(cv_pack),
        "dmask1": jnp.asarray(_dw_tap_mask(s_a)),
        "dmask2": jnp.asarray(_dw_tap_mask(s_b)),
        "dmask3": jnp.asarray(_dw_tap_mask(s_c)),
        "pmask1": jnp.asarray(_pool_tap_mask(s_a, 8, 3)),
        "pmask2": jnp.asarray(_pool_tap_mask(s_b, 4, 1)),
        "down1": jnp.asarray(_downsample_matrix(s_a)),
        "down2": jnp.asarray(_downsample_matrix(s_b)),
        "ygrid": jnp.asarray(ygrid),
    }


# ------------------------------ forward pass ------------------------------

def yoloface_forward(prepped, x_nchw):
    n, cin, h, w = x_nchw.shape
    assert n == 1 and cin == 3 and h == w and h % 8 == 0
    s_a, s_b, s_c = h // 2, h // 4, h // 8
    assert prepped["dmask1"].shape == (9, s_a * s_a)
    stride = h // s_c

    # conv1 im2col on the (3, H, W) input: the only data-movement glue on the
    # activation path (pure XLA reshuffle of the small network input).
    x0 = x_nchw[0].astype(jnp.float32)
    xp = jnp.pad(x0, ((0, 0), (1, 1), (1, 1)))
    cols = [xp[:, ky:ky + 2 * s_a:2, kx:kx + 2 * s_a:2]
            for ky in range(3) for kx in range(3)]
    x1 = jnp.stack(cols, axis=1).reshape(3 * 9, s_a * s_a)          # (27, H*W/4)

    args = [x1, prepped["pw"], prepped["dw"], prepped["cv"],
            prepped["dmask1"], prepped["dmask2"], prepped["dmask3"],
            prepped["pmask1"], prepped["pmask2"],
            prepped["down1"], prepped["down2"], prepped["ygrid"]]

    dec = pl.pallas_call(
        functools.partial(_yoloface_kernel,
                          sides=(s_a, s_b, s_c), stride=float(stride)),
        out_shape=jax.ShapeDtypeStruct((18, s_c * s_c), jnp.float32),
        in_specs=[_VMEM] * len(args),
        out_specs=_VMEM,
    )(*args)

    # (a*6+o, y*nx+x) -> (a*ny*nx + y*nx + x, o): same element order as the
    # PyTorch yolo_layer's view/permute/view.
    return dec.reshape(3, 6, s_c * s_c).transpose(0, 2, 1).reshape(3 * s_c * s_c, 6)


# --------------------------- deterministic params ---------------------------

def init_params(seed=0):
    key = jax.random.PRNGKey(seed)
    params = {}

    def conv_bn(name, cin, cout, k, groups=1):
        nonlocal key
        key, k1, k2, k3, k4, k5 = jax.random.split(key, 6)
        w = 0.1 * jax.random.normal(k1, (cout, cin // groups, k, k), jnp.float32)
        gamma = jax.random.uniform(k2, (cout,), jnp.float32, 0.5, 1.5)
        beta = 0.1 * jax.random.normal(k3, (cout,), jnp.float32)
        rmean = 0.1 * jax.random.normal(k4, (cout,), jnp.float32)
        rvar = jax.random.uniform(k5, (cout,), jnp.float32, 0.5, 1.5)
        scale = gamma / jnp.sqrt(rvar + 1e-5)   # BN folded (inference / running stats)
        bias = beta - rmean * scale
        params[name] = (w, scale, bias)

    conv_bn("conv1", 3, 8, 3)
    conv_bn("conv2_dw", 8, 8, 3, groups=8);    conv_bn("conv2_pw", 8, 4, 1)
    conv_bn("conv3", 4, 18, 1)
    conv_bn("conv4_dw", 18, 18, 3, groups=18); conv_bn("conv4_pw", 18, 6, 1)
    conv_bn("conv5", 6, 36, 1)
    conv_bn("conv6_dw", 36, 36, 3, groups=36); conv_bn("conv6_pw", 36, 6, 1)
    conv_bn("conv7", 6, 18, 1)
    conv_bn("conv8", 36, 24, 1)
    conv_bn("conv9_dw", 24, 24, 3, groups=24); conv_bn("conv9_pw", 24, 8, 1)
    conv_bn("conv10", 8, 40, 1)
    conv_bn("conv11_dw", 40, 40, 3, groups=40); conv_bn("conv11_pw", 40, 8, 1)
    conv_bn("conv12", 8, 40, 1)
    conv_bn("conv13_dw", 40, 40, 3, groups=40); conv_bn("conv13_pw", 40, 8, 1)
    conv_bn("conv14", 8, 24, 1)
    conv_bn("conv15", 48, 40, 1)
    conv_bn("conv16_dw", 40, 40, 3, groups=40); conv_bn("conv16_pw", 40, 32, 1)

    key, k1, k2 = jax.random.split(key, 3)
    w17 = 0.1 * jax.random.normal(k1, (18, 32, 1, 1), jnp.float32)
    b17 = 0.1 * jax.random.normal(k2, (18,), jnp.float32)
    params["conv17"] = (w17, b17)
    return params


if __name__ == "__main__":
    IMG = 64
    params = init_params(0)
    prepped = prepare_params(params, img_size=IMG)      # one-time weight prep
    # yolo_layer squeezes the batch dim -> batch must be 1; 3 input channels.
    x = jax.random.uniform(jax.random.PRNGKey(0), (1, 3, IMG, IMG),
                           jnp.float32, 0.0, 255.0)
    fwd = jax.jit(yoloface_forward)
    out = fwd(prepped, x)
    jax.block_until_ready(out)
    assert out.shape == (3 * (IMG // 8) ** 2, 6) and out.dtype == jnp.float32
    print("KERNEL_OK")
</pallas_src>

<mosaic_0001>
module attributes {stable_mosaic.version = 11 : i64} {
  func.func @_yoloface_kernel(%arg0: memref<27x1024xf32, #tpu.memory_space<vmem>>, %arg1: memref<402x40xf32, #tpu.memory_space<vmem>>, %arg2: memref<206x9xf32, #tpu.memory_space<vmem>>, %arg3: memref<616x1xf32, #tpu.memory_space<vmem>>, %arg4: memref<9x1024xf32, #tpu.memory_space<vmem>>, %arg5: memref<9x256xf32, #tpu.memory_space<vmem>>, %arg6: memref<9x64xf32, #tpu.memory_space<vmem>>, %arg7: memref<16x1024xf32, #tpu.memory_space<vmem>>, %arg8: memref<8x256xf32, #tpu.memory_space<vmem>>, %arg9: memref<1024x256xf32, #tpu.memory_space<vmem>>, %arg10: memref<256x64xf32, #tpu.memory_space<vmem>>, %arg11: memref<18x64xf32, #tpu.memory_space<vmem>>, %arg12: memref<18x64xf32, #tpu.memory_space<vmem>>) attributes {dimension_semantics = [], scalar_prefetch = 0 : i64, scratch_operands = 0 : i64, tpu.core_type = #tpu.core_type<tc>} {
    %c0 = arith.constant 0 : index
    %c0_0 = arith.constant 0 : index
    %0 = vector.load %arg0[%c0, %c0_0] : memref<27x1024xf32, #tpu.memory_space<vmem>>, vector<27x1024xf32>
    %c0_1 = arith.constant 0 : index
    %c0_2 = arith.constant 0 : index
    %1 = vector.load %arg1[%c0_1, %c0_2] : memref<402x40xf32, #tpu.memory_space<vmem>>, vector<8x27xf32>
    %cst = arith.constant dense<0.000000e+00> : vector<8x1024xf32>
    %2 = tpu.matmul %1, %0, %cst {dimension_numbers = #tpu.dot_dimension_numbers<[1], [0], [0], [1], [0, 0, 1, 1], [], []>} : vector<8x27xf32>, vector<27x1024xf32>, vector<8x1024xf32> -> vector<8x1024xf32>
    %c0_3 = arith.constant 0 : index
    %c0_4 = arith.constant 0 : index
    %3 = vector.load %arg3[%c0_3, %c0_4] : memref<616x1xf32, #tpu.memory_space<vmem>>, vector<8x1xf32>
    %4 = vector.broadcast %3 : vector<8x1xf32> to vector<8x1024xf32>
    %5 = arith.addf %2, %4 : vector<8x1024xf32>
    %cst_5 = arith.constant 1.000000e-01 : f32
    %6 = vector.broadcast %cst_5 : f32 to vector<8x1024xf32>
    %7 = arith.mulf %6, %5 : vector<8x1024xf32>
    %8 = arith.maximumf %5, %7 : vector<8x1024xf32>
    %c0_6 = arith.constant 0 : index
    %c0_7 = arith.constant 0 : index
    %9 = vector.load %arg2[%c0_6, %c0_7] : memref<206x9xf32, #tpu.memory_space<vmem>>, vector<8x9xf32>
    %10 = vector.extract_strided_slice %9 {offsets = [0, 4], sizes = [8, 1], strides = [1, 1]} : vector<8x9xf32> to vector<8x1xf32>
    %11 = vector.broadcast %10 : vector<8x1xf32> to vector<8x1024xf32>
    %12 = arith.mulf %11, %8 : vector<8x1024xf32>
    %cst_8 = arith.constant 0.000000e+00 : f32
    %13 = vector.broadcast %cst_8 : f32 to vector<8x33xf32>
    %14 = vector.extract_strided_slice %8 {offsets = [0, 0], sizes = [8, 991], strides = [1, 1]} : vector<8x1024xf32> to vector<8x991xf32>
    %15 = tpu.concatenate %13, %14 in 1 : vector<8x33xf32>, vector<8x991xf32> -> vector<8x1024xf32>
    %c0_9 = arith.constant 0 : index
    %c0_10 = arith.constant 0 : index
    %16 = vector.load %arg4[%c0_9, %c0_10] : memref<9x1024xf32, #tpu.memory_space<vmem>>, vector<1x1024xf32>
    %17 = vector.broadcast %16 : vector<1x1024xf32> to vector<8x1024xf32>
    %18 = arith.mulf %15, %17 : vector<8x1024xf32>
    %19 = vector.extract_strided_slice %9 {offsets = [0, 0], sizes = [8, 1], strides = [1, 1]} : vector<8x9xf32> to vector<8x1xf32>
    %20 = vector.broadcast %19 : vector<8x1xf32> to vector<8x1024xf32>
    %21 = arith.mulf %20, %18 : vector<8x1024xf32>
    %22 = arith.addf %12, %21 : vector<8x1024xf32>
    %cst_11 = arith.constant 0.000000e+00 : f32
    %23 = vector.broadcast %cst_11 : f32 to vector<8x32xf32>
    %24 = vector.extract_strided_slice %8 {offsets = [0, 0], sizes = [8, 992], strides = [1, 1]} : vector<8x1024xf32> to vector<8x992xf32>
    %25 = tpu.concatenate %23, %24 in 1 : vector<8x32xf32>, vector<8x992xf32> -> vector<8x1024xf32>
    %26 = vector.extract_strided_slice %9 {offsets = [0, 1], sizes = [8, 1], strides = [1, 1]} : vector<8x9xf32> to vector<8x1xf32>
    %27 = vector.broadcast %26 : vector<8x1xf32> to vector<8x1024xf32>
    %28 = arith.mulf %27, %25 : vector<8x1024xf32>
    %29 = arith.addf %22, %28 : vector<8x1024xf32>
    %cst_12 = arith.constant 0.000000e+00 : f32
    %30 = vector.broadcast %cst_12 : f32 to vector<8x31xf32>
    %31 = vector.extract_strided_slice %8 {offsets = [0, 0], sizes = [8, 993], strides = [1, 1]} : vector<8x1024xf32> to vector<8x993xf32>
    %32 = tpu.concatenate %30, %31 in 1 : vector<8x31xf32>, vector<8x993xf32> -> vector<8x1024xf32>
    %c2 = arith.constant 2 : index
    %c0_13 = arith.constant 0 : index
    %33 = vector.load %arg4[%c2, %c0_13] : memref<9x1024xf32, #tpu.memory_space<vmem>>, vector<1x1024xf32>
    %34 = vector.broadcast %33 : vector<1x1024xf32> to vector<8x1024xf32>
    %35 = arith.mulf %32, %34 : vector<8x1024xf32>
    %36 = vector.extract_strided_slice %9 {offsets = [0, 2], sizes = [8, 1], strides = [1, 1]} : vector<8x9xf32> to vector<8x1xf32>
    %37 = vector.broadcast %36 : vector<8x1xf32> to vector<8x1024xf32>
    %38 = arith.mulf %37, %35 : vector<8x1024xf32>
    %39 = arith.addf %29, %38 : vector<8x1024xf32>
    %cst_14 = arith.constant 0.000000e+00 : f32
    %40 = vector.broadcast %cst_14 : f32 to vector<8x1xf32>
    %41 = vector.extract_strided_slice %8 {offsets = [0, 0], sizes = [8, 1023], strides = [1, 1]} : vector<8x1024xf32> to vector<8x1023xf32>
    %42 = tpu.concatenate %40, %41 in 1 : vector<8x1xf32>, vector<8x1023xf32> -> vector<8x1024xf32>
    %c3 = arith.constant 3 : index
    %c0_15 = arith.constant 0 : index
    %43 = vector.load %arg4[%c3, %c0_15] : memref<9x1024xf32, #tpu.memory_space<vmem>>, vector<1x1024xf32>
    %44 = vector.broadcast %43 : vector<1x1024xf32> to vector<8x1024xf32>
    %45 = arith.mulf %42, %44 : vector<8x1024xf32>
    %46 = vector.extract_strided_slice %9 {offsets = [0, 3], sizes = [8, 1], strides = [1, 1]} : vector<8x9xf32> to vector<8x1xf32>
    %47 = vector.broadcast %46 : vector<8x1xf32> to vector<8x1024xf32>
    %48 = arith.mulf %47, %45 : vector<8x1024xf32>
    %49 = arith.addf %39, %48 : vector<8x1024xf32>
    %50 = vector.extract_strided_slice %8 {offsets = [0, 1], sizes = [8, 1023], strides = [1, 1]} : vector<8x1024xf32> to vector<8x1023xf32>
    %cst_16 = arith.constant 0.000000e+00 : f32
    %51 = vector.broadcast %cst_16 : f32 to vector<8x1xf32>
    %52 = tpu.concatenate %50, %51 in 1 : vector<8x1023xf32>, vector<8x1xf32> -> vector<8x1024xf32>
    %c5 = arith.constant 5 : index
    %c0_17 = arith.constant 0 : index
    %53 = vector.load %arg4[%c5, %c0_17] : memref<9x1024xf32, #tpu.memory_space<vmem>>, vector<1x1024xf32>
    %54 = vector.broadcast %53 : vector<1x1024xf32> to vector<8x1024xf32>
    %55 = arith.mulf %52, %54 : vector<8x1024xf32>
    %56 = vector.extract_strided_slice %9 {offsets = [0, 5], sizes = [8, 1], strides = [1, 1]} : vector<8x9xf32> to vector<8x1xf32>
    %57 = vector.broadcast %56 : vector<8x1xf32> to vector<8x1024xf32>
    %58 = arith.mulf %57, %55 : vector<8x1024xf32>
    %59 = arith.addf %49, %58 : vector<8x1024xf32>
    %60 = vector.extract_strided_slice %8 {offsets = [0, 31], sizes = [8, 993], strides = [1, 1]} : vector<8x1024xf32> to vector<8x993xf32>
    %cst_18 = arith.constant 0.000000e+00 : f32
    %61 = vector.broadcast %cst_18 : f32 to vector<8x31xf32>
    %62 = tpu.concatenate %60, %61 in 1 : vector<8x993xf32>, vector<8x31xf32> -> vector<8x1024xf32>
    %c6 = arith.constant 6 : index
    %c0_19 = arith.constant 0 : index
    %63 = vector.load %arg4[%c6, %c0_19] : memref<9x1024xf32, #tpu.memory_space<vmem>>, vector<1x1024xf32>
    %64 = vector.broadcast %63 : vector<1x1024xf32> to vector<8x1024xf32>
    %65 = arith.mulf %62, %64 : vector<8x1024xf32>
    %66 = vector.extract_strided_slice %9 {offsets = [0, 6], sizes = [8, 1], strides = [1, 1]} : vector<8x9xf32> to vector<8x1xf32>
    %67 = vector.broadcast %66 : vector<8x1xf32> to vector<8x1024xf32>
    %68 = arith.mulf %67, %65 : vector<8x1024xf32>
    %69 = arith.addf %59, %68 : vector<8x1024xf32>
    %70 = vector.extract_strided_slice %8 {offsets = [0, 32], sizes = [8, 992], strides = [1, 1]} : vector<8x1024xf32> to vector<8x992xf32>
    %cst_20 = arith.constant 0.000000e+00 : f32
    %71 = vector.broadcast %cst_20 : f32 to vector<8x32xf32>
    %72 = tpu.concatenate %70, %71 in 1 : vector<8x992xf32>, vector<8x32xf32> -> vector<8x1024xf32>
    %73 = vector.extract_strided_slice %9 {offsets = [0, 7], sizes = [8, 1], strides = [1, 1]} : vector<8x9xf32> to vector<8x1xf32>
    %74 = vector.broadcast %73 : vector<8x1xf32> to vector<8x1024xf32>
    %75 = arith.mulf %74, %72 : vector<8x1024xf32>
    %76 = arith.addf %69, %75 : vector<8x1024xf32>
    %77 = vector.extract_strided_slice %8 {offsets = [0, 33], sizes = [8, 991], strides = [1, 1]} : vector<8x1024xf32> to vector<8x991xf32>
    %cst_21 = arith.constant 0.000000e+00 : f32
    %78 = vector.broadcast %cst_21 : f32 to vector<8x33xf32>
    %79 = tpu.concatenate %77, %78 in 1 : vector<8x991xf32>, vector<8x33xf32> -> vector<8x1024xf32>
    %c8 = arith.constant 8 : index
    %c0_22 = arith.constant 0 : index
    %80 = vector.load %arg4[%c8, %c0_22] : memref<9x1024xf32, #tpu.memory_space<vmem>>, vector<1x1024xf32>
    %81 = vector.broadcast %80 : vector<1x1024xf32> to vector<8x1024xf32>
    %82 = arith.mulf %79, %81 : vector<8x1024xf32>
    %83 = vector.extract_strided_slice %9 {offsets = [0, 8], sizes = [8, 1], strides = [1, 1]} : vector<8x9xf32> to vector<8x1xf32>
    %84 = vector.broadcast %83 : vector<8x1xf32> to vector<8x1024xf32>
    %85 = arith.mulf %84, %82 : vector<8x1024xf32>
    %86 = arith.addf %76, %85 : vector<8x1024xf32>
    %c8_23 = arith.constant 8 : index
    %c0_24 = arith.constant 0 : index
    %87 = vector.load %arg3[%c8_23, %c0_24] : memref<616x1xf32, #tpu.memory_space<vmem>>, vector<8x1xf32>
    %88 = vector.broadcast %87 : vector<8x1xf32> to vector<8x1024xf32>
    %89 = arith.addf %86, %88 : vector<8x1024xf32>
    %cst_25 = arith.constant 1.000000e-01 : f32
    %90 = vector.broadcast %cst_25 : f32 to vector<8x1024xf32>
    %91 = arith.mulf %90, %89 : vector<8x1024xf32>
    %92 = arith.maximumf %89, %91 : vector<8x1024xf32>
    %c8_26 = arith.constant 8 : index
    %c0_27 = arith.constant 0 : index
    %93 = vector.load %arg1[%c8_26, %c0_27] : memref<402x40xf32, #tpu.memory_space<vmem>>, vector<4x8xf32>
    %cst_28 = arith.constant dense<0.000000e+00> : vector<4x1024xf32>
    %94 = tpu.matmul %93, %92, %cst_28 {dimension_numbers = #tpu.dot_dimension_numbers<[1], [0], [0], [1], [0, 0, 1, 1], [], []>} : vector<4x8xf32>, vector<8x1024xf32>, vector<4x1024xf32> -> vector<4x1024xf32>
    %c16 = arith.constant 16 : index
    %c0_29 = arith.constant 0 : index
    %95 = vector.load %arg3[%c16, %c0_29] : memref<616x1xf32, #tpu.memory_space<vmem>>, vector<4x1xf32>
    %96 = vector.broadcast %95 : vector<4x1xf32> to vector<4x1024xf32>
    %97 = arith.addf %94, %96 : vector<4x1024xf32>
    %c12 = arith.constant 12 : index
    %c0_30 = arith.constant 0 : index
    %98 = vector.load %arg1[%c12, %c0_30] : memref<402x40xf32, #tpu.memory_space<vmem>>, vector<18x4xf32>
    %cst_31 = arith.constant dense<0.000000e+00> : vector<18x1024xf32>
    %99 = tpu.matmul %98, %97, %cst_31 {dimension_numbers = #tpu.dot_dimension_numbers<[1], [0], [0], [1], [0, 0, 1, 1], [], []>} : vector<18x4xf32>, vector<4x1024xf32>, vector<18x1024xf32> -> vector<18x1024xf32>
    %c20 = arith.constant 20 : index
    %c0_32 = arith.constant 0 : index
    %100 = vector.load %arg3[%c20, %c0_32] : memref<616x1xf32, #tpu.memory_space<vmem>>, vector<18x1xf32>
    %101 = vector.broadcast %100 : vector<18x1xf32> to vector<18x1024xf32>
    %102 = arith.addf %99, %101 : vector<18x1024xf32>
    %cst_33 = arith.constant 1.000000e-01 : f32
    %103 = vector.broadcast %cst_33 : f32 to vector<18x1024xf32>
    %104 = arith.mulf %103, %102 : vector<18x1024xf32>
    %105 = arith.maximumf %102, %104 : vector<18x1024xf32>
    %c8_34 = arith.constant 8 : index
    %c0_35 = arith.constant 0 : index
    %106 = vector.load %arg2[%c8_34, %c0_35] : memref<206x9xf32, #tpu.memory_space<vmem>>, vector<18x9xf32>
    %107 = vector.extract_strided_slice %106 {offsets = [0, 4], sizes = [18, 1], strides = [1, 1]} : vector<18x9xf32> to vector<18x1xf32>
    %108 = vector.broadcast %107 : vector<18x1xf32> to vector<18x1024xf32>
    %109 = arith.mulf %108, %105 : vector<18x1024xf32>
    %cst_36 = arith.constant 0.000000e+00 : f32
    %110 = vector.broadcast %cst_36 : f32 to vector<18x33xf32>
    %111 = vector.extract_strided_slice %105 {offsets = [0, 0], sizes = [18, 991], strides = [1, 1]} : vector<18x1024xf32> to vector<18x991xf32>
    %112 = tpu.concatenate %110, %111 in 1 : vector<18x33xf32>, vector<18x991xf32> -> vector<18x1024xf32>
    %c0_37 = arith.constant 0 : index
    %c0_38 = arith.constant 0 : index
    %113 = vector.load %arg4[%c0_37, %c0_38] : memref<9x1024xf32, #tpu.memory_space<vmem>>, vector<1x1024xf32>
    %114 = vector.broadcast %113 : vector<1x1024xf32> to vector<18x1024xf32>
    %115 = arith.mulf %112, %114 : vector<18x1024xf32>
    %116 = vector.extract_strided_slice %106 {offsets = [0, 0], sizes = [18, 1], strides = [1, 1]} : vector<18x9xf32> to vector<18x1xf32>
    %117 = vector.broadcast %116 : vector<18x1xf32> to vector<18x1024xf32>
    %118 = arith.mulf %117, %115 : vector<18x1024xf32>
    %119 = arith.addf %109, %118 : vector<18x1024xf32>
    %cst_39 = arith.constant 0.000000e+00 : f32
    %120 = vector.broadcast %cst_39 : f32 to vector<18x32xf32>
    %121 = vector.extract_strided_slice %105 {offsets = [0, 0], sizes = [18, 992], strides = [1, 1]} : vector<18x1024xf32> to vector<18x992xf32>
    %122 = tpu.concatenate %120, %121 in 1 : vector<18x32xf32>, vector<18x992xf32> -> vector<18x1024xf32>
    %123 = vector.extract_strided_slice %106 {offsets = [0, 1], sizes = [18, 1], strides = [1, 1]} : vector<18x9xf32> to vector<18x1xf32>
    %124 = vector.broadcast %123 : vector<18x1xf32> to vector<18x1024xf32>
    %125 = arith.mulf %124, %122 : vector<18x1024xf32>
    %126 = arith.addf %119, %125 : vector<18x1024xf32>
    %cst_40 = arith.constant 0.000000e+00 : f32
    %127 = vector.broadcast %cst_40 : f32 to vector<18x31xf32>
    %128 = vector.extract_strided_slice %105 {offsets = [0, 0], sizes = [18, 993], strides = [1, 1]} : vector<18x1024xf32> to vector<18x993xf32>
    %129 = tpu.concatenate %127, %128 in 1 : vector<18x31xf32>, vector<18x993xf32> -> vector<18x1024xf32>
    %c2_41 = arith.constant 2 : index
    %c0_42 = arith.constant 0 : index
    %130 = vector.load %arg4[%c2_41, %c0_42] : memref<9x1024xf32, #tpu.memory_space<vmem>>, vector<1x1024xf32>
    %131 = vector.broadcast %130 : vector<1x1024xf32> to vector<18x1024xf32>
    %132 = arith.mulf %129, %131 : vector<18x1024xf32>
    %133 = vector.extract_strided_slice %106 {offsets = [0, 2], sizes = [18, 1], strides = [1, 1]} : vector<18x9xf32> to vector<18x1xf32>
    %134 = vector.broadcast %133 : vector<18x1xf32> to vector<18x1024xf32>
    %135 = arith.mulf %134, %132 : vector<18x1024xf32>
    %136 = arith.addf %126, %135 : vector<18x1024xf32>
    %cst_43 = arith.constant 0.000000e+00 : f32
    %137 = vector.broadcast %cst_43 : f32 to vector<18x1xf32>
    %138 = vector.extract_strided_slice %105 {offsets = [0, 0], sizes = [18, 1023], strides = [1, 1]} : vector<18x1024xf32> to vector<18x1023xf32>
    %139 = tpu.concatenate %137, %138 in 1 : vector<18x1xf32>, vector<18x1023xf32> -> vector<18x1024xf32>
    %c3_44 = arith.constant 3 : index
    %c0_45 = arith.constant 0 : index
    %140 = vector.load %arg4[%c3_44, %c0_45] : memref<9x1024xf32, #tpu.memory_space<vmem>>, vector<1x1024xf32>
    %141 = vector.broadcast %140 : vector<1x1024xf32> to vector<18x1024xf32>
    %142 = arith.mulf %139, %141 : vector<18x1024xf32>
    %143 = vector.extract_strided_slice %106 {offsets = [0, 3], sizes = [18, 1], strides = [1, 1]} : vector<18x9xf32> to vector<18x1xf32>
    %144 = vector.broadcast %143 : vector<18x1xf32> to vector<18x1024xf32>
    %145 = arith.mulf %144, %142 : vector<18x1024xf32>
    %146 = arith.addf %136, %145 : vector<18x1024xf32>
    %147 = vector.extract_strided_slice %105 {offsets = [0, 1], sizes = [18, 1023], strides = [1, 1]} : vector<18x1024xf32> to vector<18x1023xf32>
    %cst_46 = arith.constant 0.000000e+00 : f32
    %148 = vector.broadcast %cst_46 : f32 to vector<18x1xf32>
    %149 = tpu.concatenate %147, %148 in 1 : vector<18x1023xf32>, vector<18x1xf32> -> vector<18x1024xf32>
    %c5_47 = arith.constant 5 : index
    %c0_48 = arith.constant 0 : index
    %150 = vector.load %arg4[%c5_47, %c0_48] : memref<9x1024xf32, #tpu.memory_space<vmem>>, vector<1x1024xf32>
    %151 = vector.broadcast %150 : vector<1x1024xf32> to vector<18x1024xf32>
    %152 = arith.mulf %149, %151 : vector<18x1024xf32>
    %153 = vector.extract_strided_slice %106 {offsets = [0, 5], sizes = [18, 1], strides = [1, 1]} : vector<18x9xf32> to vector<18x1xf32>
    %154 = vector.broadcast %153 : vector<18x1xf32> to vector<18x1024xf32>
    %155 = arith.mulf %154, %152 : vector<18x1024xf32>
    %156 = arith.addf %146, %155 : vector<18x1024xf32>
    %157 = vector.extract_strided_slice %105 {offsets = [0, 31], sizes = [18, 993], strides = [1, 1]} : vector<18x1024xf32> to vector<18x993xf32>
    %cst_49 = arith.constant 0.000000e+00 : f32
    %158 = vector.broadcast %cst_49 : f32 to vector<18x31xf32>
    %159 = tpu.concatenate %157, %158 in 1 : vector<18x993xf32>, vector<18x31xf32> -> vector<18x1024xf32>
    %c6_50 = arith.constant 6 : index
    %c0_51 = arith.constant 0 : index
    %160 = vector.load %arg4[%c6_50, %c0_51] : memref<9x1024xf32, #tpu.memory_space<vmem>>, vector<1x1024xf32>
    %161 = vector.broadcast %160 : vector<1x1024xf32> to vector<18x1024xf32>
    %162 = arith.mulf %159, %161 : vector<18x1024xf32>
    %163 = vector.extract_strided_slice %106 {offsets = [0, 6], sizes = [18, 1], strides = [1, 1]} : vector<18x9xf32> to vector<18x1xf32>
    %164 = vector.broadcast %163 : vector<18x1xf32> to vector<18x1024xf32>
    %165 = arith.mulf %164, %162 : vector<18x1024xf32>
    %166 = arith.addf %156, %165 : vector<18x1024xf32>
    %167 = vector.extract_strided_slice %105 {offsets = [0, 32], sizes = [18, 992], strides = [1, 1]} : vector<18x1024xf32> to vector<18x992xf32>
    %cst_52 = arith.constant 0.000000e+00 : f32
    %168 = vector.broadcast %cst_52 : f32 to vector<18x32xf32>
    %169 = tpu.concatenate %167, %168 in 1 : vector<18x992xf32>, vector<18x32xf32> -> vector<18x1024xf32>
    %170 = vector.extract_strided_slice %106 {offsets = [0, 7], sizes = [18, 1], strides = [1, 1]} : vector<18x9xf32> to vector<18x1xf32>
    %171 = vector.broadcast %170 : vector<18x1xf32> to vector<18x1024xf32>
    %172 = arith.mulf %171, %169 : vector<18x1024xf32>
    %173 = arith.addf %166, %172 : vector<18x1024xf32>
    %174 = vector.extract_strided_slice %105 {offsets = [0, 33], sizes = [18, 991], strides = [1, 1]} : vector<18x1024xf32> to vector<18x991xf32>
    %cst_53 = arith.constant 0.000000e+00 : f32
    %175 = vector.broadcast %cst_53 : f32 to vector<18x33xf32>
    %176 = tpu.concatenate %174, %175 in 1 : vector<18x991xf32>, vector<18x33xf32> -> vector<18x1024xf32>
    %c8_54 = arith.constant 8 : index
    %c0_55 = arith.constant 0 : index
    %177 = vector.load %arg4[%c8_54, %c0_55] : memref<9x1024xf32, #tpu.memory_space<vmem>>, vector<1x1024xf32>
    %178 = vector.broadcast %177 : vector<1x1024xf32> to vector<18x1024xf32>
    %179 = arith.mulf %176, %178 : vector<18x1024xf32>
    %180 = vector.extract_strided_slice %106 {offsets = [0, 8], sizes = [18, 1], strides = [1, 1]} : vector<18x9xf32> to vector<18x1xf32>
    %181 = vector.broadcast %180 : vector<18x1xf32> to vector<18x1024xf32>
    %182 = arith.mulf %181, %179 : vector<18x1024xf32>
    %183 = arith.addf %173, %182 : vector<18x1024xf32>
    %c0_56 = arith.constant 0 : index
    %c0_57 = arith.constant 0 : index
    %184 = vector.load %arg9[%c0_56, %c0_57] : memref<1024x256xf32, #tpu.memory_space<vmem>>, vector<1024x256xf32>
    %cst_58 = arith.constant dense<0.000000e+00> : vector<18x256xf32>
    %185 = tpu.matmul %183, %184, %cst_58 {dimension_numbers = #tpu.dot_dimension_numbers<[1], [0], [0], [1], [0, 0, 1, 1], [], []>} : vector<18x1024xf32>, vector<1024x256xf32>, vector<18x256xf32> -> vector<18x256xf32>
    %c38 = arith.constant 38 : index
    %c0_59 = arith.constant 0 : index
    %186 = vector.load %arg3[%c38, %c0_59] : memref<616x1xf32, #tpu.memory_space<vmem>>, vector<18x1xf32>
    %187 = vector.broadcast %186 : vector<18x1xf32> to vector<18x256xf32>
    %188 = arith.addf %185, %187 : vector<18x256xf32>
    %cst_60 = arith.constant 1.000000e-01 : f32
    %189 = vector.broadcast %cst_60 : f32 to vector<18x256xf32>
    %190 = arith.mulf %189, %188 : vector<18x256xf32>
    %191 = arith.maximumf %188, %190 : vector<18x256xf32>
    %c30 = arith.constant 30 : index
    %c0_61 = arith.constant 0 : index
    %192 = vector.load %arg1[%c30, %c0_61] : memref<402x40xf32, #tpu.memory_space<vmem>>, vector<6x18xf32>
    %cst_62 = arith.constant dense<0.000000e+00> : vector<6x256xf32>
    %193 = tpu.matmul %192, %191, %cst_62 {dimension_numbers = #tpu.dot_dimension_numbers<[1], [0], [0], [1], [0, 0, 1, 1], [], []>} : vector<6x18xf32>, vector<18x256xf32>, vector<6x256xf32> -> vector<6x256xf32>
    %c56 = arith.constant 56 : index
    %c0_63 = arith.constant 0 : index
    %194 = vector.load %arg3[%c56, %c0_63] : memref<616x1xf32, #tpu.memory_space<vmem>>, vector<6x1xf32>
    %195 = vector.broadcast %194 : vector<6x1xf32> to vector<6x256xf32>
    %196 = arith.addf %193, %195 : vector<6x256xf32>
    %c36 = arith.constant 36 : index
    %c0_64 = arith.constant 0 : index
    %197 = vector.load %arg1[%c36, %c0_64] : memref<402x40xf32, #tpu.memory_space<vmem>>, vector<36x6xf32>
    %cst_65 = arith.constant dense<0.000000e+00> : vector<36x256xf32>
    %198 = tpu.matmul %197, %196, %cst_65 {dimension_numbers = #tpu.dot_dimension_numbers<[1], [0], [0], [1], [0, 0, 1, 1], [], []>} : vector<36x6xf32>, vector<6x256xf32>, vector<36x256xf32> -> vector<36x256xf32>
    %c62 = arith.constant 62 : index
    %c0_66 = arith.constant 0 : index
    %199 = vector.load %arg3[%c62, %c0_66] : memref<616x1xf32, #tpu.memory_space<vmem>>, vector<36x1xf32>
    %200 = vector.broadcast %199 : vector<36x1xf32> to vector<36x256xf32>
    %201 = arith.addf %198, %200 : vector<36x256xf32>
    %cst_67 = arith.constant 1.000000e-01 : f32
    %202 = vector.broadcast %cst_67 : f32 to vector<36x256xf32>
    %203 = arith.mulf %202, %201 : vector<36x256xf32>
    %204 = arith.maximumf %201, %203 : vector<36x256xf32>
    %c26 = arith.constant 26 : index
    %c0_68 = arith.constant 0 : index
    %205 = vector.load %arg2[%c26, %c0_68] : memref<206x9xf32, #tpu.memory_space<vmem>>, vector<36x9xf32>
    %206 = vector.extract_strided_slice %205 {offsets = [0, 4], sizes = [36, 1], strides = [1, 1]} : vector<36x9xf32> to vector<36x1xf32>
    %207 = vector.broadcast %206 : vector<36x1xf32> to vector<36x256xf32>
    %208 = arith.mulf %207, %204 : vector<36x256xf32>
    %cst_69 = arith.constant 0.000000e+00 : f32
    %209 = vector.broadcast %cst_69 : f32 to vector<36x17xf32>
    %210 = vector.extract_strided_slice %204 {offsets = [0, 0], sizes = [36, 239], strides = [1, 1]} : vector<36x256xf32> to vector<36x239xf32>
    %211 = tpu.concatenate %209, %210 in 1 : vector<36x17xf32>, vector<36x239xf32> -> vector<36x256xf32>
    %c0_70 = arith.constant 0 : index
    %c0_71 = arith.constant 0 : index
    %212 = vector.load %arg5[%c0_70, %c0_71] : memref<9x256xf32, #tpu.memory_space<vmem>>, vector<1x256xf32>
    %213 = vector.broadcast %212 : vector<1x256xf32> to vector<36x256xf32>
    %214 = arith.mulf %211, %213 : vector<36x256xf32>
    %215 = vector.extract_strided_slice %205 {offsets = [0, 0], sizes = [36, 1], strides = [1, 1]} : vector<36x9xf32> to vector<36x1xf32>
    %216 = vector.broadcast %215 : vector<36x1xf32> to vector<36x256xf32>
    %217 = arith.mulf %216, %214 : vector<36x256xf32>
    %218 = arith.addf %208, %217 : vector<36x256xf32>
    %cst_72 = arith.constant 0.000000e+00 : f32
    %219 = vector.broadcast %cst_72 : f32 to vector<36x16xf32>
    %220 = vector.extract_strided_slice %204 {offsets = [0, 0], sizes = [36, 240], strides = [1, 1]} : vector<36x256xf32> to vector<36x240xf32>
    %221 = tpu.concatenate %219, %220 in 1 : vector<36x16xf32>, vector<36x240xf32> -> vector<36x256xf32>
    %222 = vector.extract_strided_slice %205 {offsets = [0, 1], sizes = [36, 1], strides = [1, 1]} : vector<36x9xf32> to vector<36x1xf32>
    %223 = vector.broadcast %222 : vector<36x1xf32> to vector<36x256xf32>
    %224 = arith.mulf %223, %221 : vector<36x256xf32>
    %225 = arith.addf %218, %224 : vector<36x256xf32>
    %cst_73 = arith.constant 0.000000e+00 : f32
    %226 = vector.broadcast %cst_73 : f32 to vector<36x15xf32>
    %227 = vector.extract_strided_slice %204 {offsets = [0, 0], sizes = [36, 241], strides = [1, 1]} : vector<36x256xf32> to vector<36x241xf32>
    %228 = tpu.concatenate %226, %227 in 1 : vector<36x15xf32>, vector<36x241xf32> -> vector<36x256xf32>
    %c2_74 = arith.constant 2 : index
    %c0_75 = arith.constant 0 : index
    %229 = vector.load %arg5[%c2_74, %c0_75] : memref<9x256xf32, #tpu.memory_space<vmem>>, vector<1x256xf32>
    %230 = vector.broadcast %229 : vector<1x256xf32> to vector<36x256xf32>
    %231 = arith.mulf %228, %230 : vector<36x256xf32>
    %232 = vector.extract_strided_slice %205 {offsets = [0, 2], sizes = [36, 1], strides = [1, 1]} : vector<36x9xf32> to vector<36x1xf32>
    %233 = vector.broadcast %232 : vector<36x1xf32> to vector<36x256xf32>
    %234 = arith.mulf %233, %231 : vector<36x256xf32>
    %235 = arith.addf %225, %234 : vector<36x256xf32>
    %cst_76 = arith.constant 0.000000e+00 : f32
    %236 = vector.broadcast %cst_76 : f32 to vector<36x1xf32>
    %237 = vector.extract_strided_slice %204 {offsets = [0, 0], sizes = [36, 255], strides = [1, 1]} : vector<36x256xf32> to vector<36x255xf32>
    %238 = tpu.concatenate %236, %237 in 1 : vector<36x1xf32>, vector<36x255xf32> -> vector<36x256xf32>
    %c3_77 = arith.constant 3 : index
    %c0_78 = arith.constant 0 : index
    %239 = vector.load %arg5[%c3_77, %c0_78] : memref<9x256xf32, #tpu.memory_space<vmem>>, vector<1x256xf32>
    %240 = vector.broadcast %239 : vector<1x256xf32> to vector<36x256xf32>
    %241 = arith.mulf %238, %240 : vector<36x256xf32>
    %242 = vector.extract_strided_slice %205 {offsets = [0, 3], sizes = [36, 1], strides = [1, 1]} : vector<36x9xf32> to vector<36x1xf32>
    %243 = vector.broadcast %242 : vector<36x1xf32> to vector<36x256xf32>
    %244 = arith.mulf %243, %241 : vector<36x256xf32>
    %245 = arith.addf %235, %244 : vector<36x256xf32>
    %246 = vector.extract_strided_slice %204 {offsets = [0, 1], sizes = [36, 255], strides = [1, 1]} : vector<36x256xf32> to vector<36x255xf32>
    %cst_79 = arith.constant 0.000000e+00 : f32
    %247 = vector.broadcast %cst_79 : f32 to vector<36x1xf32>
    %248 = tpu.concatenate %246, %247 in 1 : vector<36x255xf32>, vector<36x1xf32> -> vector<36x256xf32>
    %c5_80 = arith.constant 5 : index
    %c0_81 = arith.constant 0 : index
    %249 = vector.load %arg5[%c5_80, %c0_81] : memref<9x256xf32, #tpu.memory_space<vmem>>, vector<1x256xf32>
    %250 = vector.broadcast %249 : vector<1x256xf32> to vector<36x256xf32>
    %251 = arith.mulf %248, %250 : vector<36x256xf32>
    %252 = vector.extract_strided_slice %205 {offsets = [0, 5], sizes = [36, 1], strides = [1, 1]} : vector<36x9xf32> to vector<36x1xf32>
    %253 = vector.broadcast %252 : vector<36x1xf32> to vector<36x256xf32>
    %254 = arith.mulf %253, %251 : vector<36x256xf32>
    %255 = arith.addf %245, %254 : vector<36x256xf32>
    %256 = vector.extract_strided_slice %204 {offsets = [0, 15], sizes = [36, 241], strides = [1, 1]} : vector<36x256xf32> to vector<36x241xf32>
    %cst_82 = arith.constant 0.000000e+00 : f32
    %257 = vector.broadcast %cst_82 : f32 to vector<36x15xf32>
    %258 = tpu.concatenate %256, %257 in 1 : vector<36x241xf32>, vector<36x15xf32> -> vector<36x256xf32>
    %c6_83 = arith.constant 6 : index
    %c0_84 = arith.constant 0 : index
    %259 = vector.load %arg5[%c6_83, %c0_84] : memref<9x256xf32, #tpu.memory_space<vmem>>, vector<1x256xf32>
    %260 = vector.broadcast %259 : vector<1x256xf32> to vector<36x256xf32>
    %261 = arith.mulf %258, %260 : vector<36x256xf32>
    %262 = vector.extract_strided_slice %205 {offsets = [0, 6], sizes = [36, 1], strides = [1, 1]} : vector<36x9xf32> to vector<36x1xf32>
    %263 = vector.broadcast %262 : vector<36x1xf32> to vector<36x256xf32>
    %264 = arith.mulf %263, %261 : vector<36x256xf32>
    %265 = arith.addf %255, %264 : vector<36x256xf32>
    %266 = vector.extract_strided_slice %204 {offsets = [0, 16], sizes = [36, 240], strides = [1, 1]} : vector<36x256xf32> to vector<36x240xf32>
    %cst_85 = arith.constant 0.000000e+00 : f32
    %267 = vector.broadcast %cst_85 : f32 to vector<36x16xf32>
    %268 = tpu.concatenate %266, %267 in 1 : vector<36x240xf32>, vector<36x16xf32> -> vector<36x256xf32>
    %269 = vector.extract_strided_slice %205 {offsets = [0, 7], sizes = [36, 1], strides = [1, 1]} : vector<36x9xf32> to vector<36x1xf32>
    %270 = vector.broadcast %269 : vector<36x1xf32> to vector<36x256xf32>
    %271 = arith.mulf %270, %268 : vector<36x256xf32>
    %272 = arith.addf %265, %271 : vector<36x256xf32>
    %273 = vector.extract_strided_slice %204 {offsets = [0, 17], sizes = [36, 239], strides = [1, 1]} : vector<36x256xf32> to vector<36x239xf32>
    %cst_86 = arith.constant 0.000000e+00 : f32
    %274 = vector.broadcast %cst_86 : f32 to vector<36x17xf32>
    %275 = tpu.concatenate %273, %274 in 1 : vector<36x239xf32>, vector<36x17xf32> -> vector<36x256xf32>
    %c8_87 = arith.constant 8 : index
    %c0_88 = arith.constant 0 : index
    %276 = vector.load %arg5[%c8_87, %c0_88] : memref<9x256xf32, #tpu.memory_space<vmem>>, vector<1x256xf32>
    %277 = vector.broadcast %276 : vector<1x256xf32> to vector<36x256xf32>
    %278 = arith.mulf %275, %277 : vector<36x256xf32>
    %279 = vector.extract_strided_slice %205 {offsets = [0, 8], sizes = [36, 1], strides = [1, 1]} : vector<36x9xf32> to vector<36x1xf32>
    %280 = vector.broadcast %279 : vector<36x1xf32> to vector<36x256xf32>
    %281 = arith.mulf %280, %278 : vector<36x256xf32>
    %282 = arith.addf %272, %281 : vector<36x256xf32>
    %c98 = arith.constant 98 : index
    %c0_89 = arith.constant 0 : index
    %283 = vector.load %arg3[%c98, %c0_89] : memref<616x1xf32, #tpu.memory_space<vmem>>, vector<36x1xf32>
    %284 = vector.broadcast %283 : vector<36x1xf32> to vector<36x256xf32>
    %285 = arith.addf %282, %284 : vector<36x256xf32>
    %cst_90 = arith.constant 1.000000e-01 : f32
    %286 = vector.broadcast %cst_90 : f32 to vector<36x256xf32>
    %287 = arith.mulf %286, %285 : vector<36x256xf32>
    %288 = arith.maximumf %285, %287 : vector<36x256xf32>
    %c72 = arith.constant 72 : index
    %c0_91 = arith.constant 0 : index
    %289 = vector.load %arg1[%c72, %c0_91] : memref<402x40xf32, #tpu.memory_space<vmem>>, vector<6x36xf32>
    %cst_92 = arith.constant dense<0.000000e+00> : vector<6x256xf32>
    %290 = tpu.matmul %289, %288, %cst_92 {dimension_numbers = #tpu.dot_dimension_numbers<[1], [0], [0], [1], [0, 0, 1, 1], [], []>} : vector<6x36xf32>, vector<36x256xf32>, vector<6x256xf32> -> vector<6x256xf32>
    %c134 = arith.constant 134 : index
    %c0_93 = arith.constant 0 : index
    %291 = vector.load %arg3[%c134, %c0_93] : memref<616x1xf32, #tpu.memory_space<vmem>>, vector<6x1xf32>
    %292 = vector.broadcast %291 : vector<6x1xf32> to vector<6x256xf32>
    %293 = arith.addf %290, %292 : vector<6x256xf32>
    %294 = arith.addf %293, %196 : vector<6x256xf32>
    %c78 = arith.constant 78 : index
    %c0_94 = arith.constant 0 : index
    %295 = vector.load %arg1[%c78, %c0_94] : memref<402x40xf32, #tpu.memory_space<vmem>>, vector<18x6xf32>
    %cst_95 = arith.constant dense<0.000000e+00> : vector<18x256xf32>
    %296 = tpu.matmul %295, %294, %cst_95 {dimension_numbers = #tpu.dot_dimension_numbers<[1], [0], [0], [1], [0, 0, 1, 1], [], []>} : vector<18x6xf32>, vector<6x256xf32>, vector<18x256xf32> -> vector<18x256xf32>
    %c140 = arith.constant 140 : index
    %c0_96 = arith.constant 0 : index
    %297 = vector.load %arg3[%c140, %c0_96] : memref<616x1xf32, #tpu.memory_space<vmem>>, vector<18x1xf32>
    %298 = vector.broadcast %297 : vector<18x1xf32> to vector<18x256xf32>
    %299 = arith.addf %296, %298 : vector<18x256xf32>
    %cst_97 = arith.constant 1.000000e-01 : f32
    %300 = vector.broadcast %cst_97 : f32 to vector<18x256xf32>
    %301 = arith.mulf %300, %299 : vector<18x256xf32>
    %302 = arith.maximumf %299, %301 : vector<18x256xf32>
    %cst_98 = arith.constant 0.000000e+00 : f32
    %303 = vector.broadcast %cst_98 : f32 to vector<18x3xf32>
    %304 = vector.extract_strided_slice %105 {offsets = [0, 0], sizes = [18, 1021], strides = [1, 1]} : vector<18x1024xf32> to vector<18x1021xf32>
    %305 = tpu.concatenate %303, %304 in 1 : vector<18x3xf32>, vector<18x1021xf32> -> vector<18x1024xf32>
    %c0_99 = arith.constant 0 : index
    %c0_100 = arith.constant 0 : index
    %306 = vector.load %arg7[%c0_99, %c0_100] : memref<16x1024xf32, #tpu.memory_space<vmem>>, vector<1x1024xf32>
    %307 = vector.broadcast %306 : vector<1x1024xf32> to vector<18x1024xf32>
    %308 = arith.addf %305, %307 : vector<18x1024xf32>
    %cst_101 = arith.constant 0.000000e+00 : f32
    %309 = vector.broadcast %cst_101 : f32 to vector<18x2xf32>
    %310 = vector.extract_strided_slice %105 {offsets = [0, 0], sizes = [18, 1022], strides = [1, 1]} : vector<18x1024xf32> to vector<18x1022xf32>
    %311 = tpu.concatenate %309, %310 in 1 : vector<18x2xf32>, vector<18x1022xf32> -> vector<18x1024xf32>
    %c1 = arith.constant 1 : index
    %c0_102 = arith.constant 0 : index
    %312 = vector.load %arg7[%c1, %c0_102] : memref<16x1024xf32, #tpu.memory_space<vmem>>, vector<1x1024xf32>
    %313 = vector.broadcast %312 : vector<1x1024xf32> to vector<18x1024xf32>
    %314 = arith.addf %311, %313 : vector<18x1024xf32>
    %315 = arith.maximumf %308, %314 : vector<18x1024xf32>
    %cst_103 = arith.constant 0.000000e+00 : f32
    %316 = vector.broadcast %cst_103 : f32 to vector<18x1xf32>
    %317 = vector.extract_strided_slice %105 {offsets = [0, 0], sizes = [18, 1023], strides = [1, 1]} : vector<18x1024xf32> to vector<18x1023xf32>
    %318 = tpu.concatenate %316, %317 in 1 : vector<18x1xf32>, vector<18x1023xf32> -> vector<18x1024xf32>
    %c2_104 = arith.constant 2 : index
    %c0_105 = arith.constant 0 : index
    %319 = vector.load %arg7[%c2_104, %c0_105] : memref<16x1024xf32, #tpu.memory_space<vmem>>, vector<1x1024xf32>
    %320 = vector.broadcast %319 : vector<1x1024xf32> to vector<18x1024xf32>
    %321 = arith.addf %318, %320 : vector<18x1024xf32>
    %322 = arith.maximumf %315, %321 : vector<18x1024xf32>
    %c3_106 = arith.constant 3 : index
    %c0_107 = arith.constant 0 : index
    %323 = vector.load %arg7[%c3_106, %c0_107] : memref<16x1024xf32, #tpu.memory_space<vmem>>, vector<1x1024xf32>
    %324 = vector.broadcast %323 : vector<1x1024xf32> to vector<18x1024xf32>
    %325 = arith.addf %105, %324 : vector<18x1024xf32>
    %326 = arith.maximumf %322, %325 : vector<18x1024xf32>
    %327 = vector.extract_strided_slice %105 {offsets = [0, 1], sizes = [18, 1023], strides = [1, 1]} : vector<18x1024xf32> to vector<18x1023xf32>
    %cst_108 = arith.constant 0.000000e+00 : f32
    %328 = vector.broadcast %cst_108 : f32 to vector<18x1xf32>
    %329 = tpu.concatenate %327, %328 in 1 : vector<18x1023xf32>, vector<18x1xf32> -> vector<18x1024xf32>
    %c4 = arith.constant 4 : index
    %c0_109 = arith.constant 0 : index
    %330 = vector.load %arg7[%c4, %c0_109] : memref<16x1024xf32, #tpu.memory_space<vmem>>, vector<1x1024xf32>
    %331 = vector.broadcast %330 : vector<1x1024xf32> to vector<18x1024xf32>
    %332 = arith.addf %329, %331 : vector<18x1024xf32>
    %333 = arith.maximumf %326, %332 : vector<18x1024xf32>
    %334 = vector.extract_strided_slice %105 {offsets = [0, 2], sizes = [18, 1022], strides = [1, 1]} : vector<18x1024xf32> to vector<18x1022xf32>
    %cst_110 = arith.constant 0.000000e+00 : f32
    %335 = vector.broadcast %cst_110 : f32 to vector<18x2xf32>
    %336 = tpu.concatenate %334, %335 in 1 : vector<18x1022xf32>, vector<18x2xf32> -> vector<18x1024xf32>
    %c5_111 = arith.constant 5 : index
    %c0_112 = arith.constant 0 : index
    %337 = vector.load %arg7[%c5_111, %c0_112] : memref<16x1024xf32, #tpu.memory_space<vmem>>, vector<1x1024xf32>
    %338 = vector.broadcast %337 : vector<1x1024xf32> to vector<18x1024xf32>
    %339 = arith.addf %336, %338 : vector<18x1024xf32>
    %340 = arith.maximumf %333, %339 : vector<18x1024xf32>
    %341 = vector.extract_strided_slice %105 {offsets = [0, 3], sizes = [18, 1021], strides = [1, 1]} : vector<18x1024xf32> to vector<18x1021xf32>
    %cst_113 = arith.constant 0.000000e+00 : f32
    %342 = vector.broadcast %cst_113 : f32 to vector<18x3xf32>
    %343 = tpu.concatenate %341, %342 in 1 : vector<18x1021xf32>, vector<18x3xf32> -> vector<18x1024xf32>
    %c6_114 = arith.constant 6 : index
    %c0_115 = arith.constant 0 : index
    %344 = vector.load %arg7[%c6_114, %c0_115] : memref<16x1024xf32, #tpu.memory_space<vmem>>, vector<1x1024xf32>
    %345 = vector.broadcast %344 : vector<1x1024xf32> to vector<18x1024xf32>
    %346 = arith.addf %343, %345 : vector<18x1024xf32>
    %347 = arith.maximumf %340, %346 : vector<18x1024xf32>
    %348 = vector.extract_strided_slice %105 {offsets = [0, 4], sizes = [18, 1020], strides = [1, 1]} : vector<18x1024xf32> to vector<18x1020xf32>
    %cst_116 = arith.constant 0.000000e+00 : f32
    %349 = vector.broadcast %cst_116 : f32 to vector<18x4xf32>
    %350 = tpu.concatenate %348, %349 in 1 : vector<18x1020xf32>, vector<18x4xf32> -> vector<18x1024xf32>
    %c7 = arith.constant 7 : index
    %c0_117 = arith.constant 0 : index
    %351 = vector.load %arg7[%c7, %c0_117] : memref<16x1024xf32, #tpu.memory_space<vmem>>, vector<1x1024xf32>
    %352 = vector.broadcast %351 : vector<1x1024xf32> to vector<18x1024xf32>
    %353 = arith.addf %350, %352 : vector<18x1024xf32>
    %354 = arith.maximumf %347, %353 : vector<18x1024xf32>
    %cst_118 = arith.constant 0.000000e+00 : f32
    %355 = vector.broadcast %cst_118 : f32 to vector<18x96xf32>
    %356 = vector.extract_strided_slice %354 {offsets = [0, 0], sizes = [18, 928], strides = [1, 1]} : vector<18x1024xf32> to vector<18x928xf32>
    %357 = tpu.concatenate %355, %356 in 1 : vector<18x96xf32>, vector<18x928xf32> -> vector<18x1024xf32>
    %c8_119 = arith.constant 8 : index
    %c0_120 = arith.constant 0 : index
    %358 = vector.load %arg7[%c8_119, %c0_120] : memref<16x1024xf32, #tpu.memory_space<vmem>>, vector<1x1024xf32>
    %359 = vector.broadcast %358 : vector<1x1024xf32> to vector<18x1024xf32>
    %360 = arith.addf %357, %359 : vector<18x1024xf32>
    %cst_121 = arith.constant 0.000000e+00 : f32
    %361 = vector.broadcast %cst_121 : f32 to vector<18x64xf32>
    %362 = vector.extract_strided_slice %354 {offsets = [0, 0], sizes = [18, 960], strides = [1, 1]} : vector<18x1024xf32> to vector<18x960xf32>
    %363 = tpu.concatenate %361, %362 in 1 : vector<18x64xf32>, vector<18x960xf32> -> vector<18x1024xf32>
    %c9 = arith.constant 9 : index
    %c0_122 = arith.constant 0 : index
    %364 = vector.load %arg7[%c9, %c0_122] : memref<16x1024xf32, #tpu.memory_space<vmem>>, vector<1x1024xf32>
    %365 = vector.broadcast %364 : vector<1x1024xf32> to vector<18x1024xf32>
    %366 = arith.addf %363, %365 : vector<18x1024xf32>
    %367 = arith.maximumf %360, %366 : vector<18x1024xf32>
    %cst_123 = arith.constant 0.000000e+00 : f32
    %368 = vector.broadcast %cst_123 : f32 to vector<18x32xf32>
    %369 = vector.extract_strided_slice %354 {offsets = [0, 0], sizes = [18, 992], strides = [1, 1]} : vector<18x1024xf32> to vector<18x992xf32>
    %370 = tpu.concatenate %368, %369 in 1 : vector<18x32xf32>, vector<18x992xf32> -> vector<18x1024xf32>
    %c10 = arith.constant 10 : index
    %c0_124 = arith.constant 0 : index
    %371 = vector.load %arg7[%c10, %c0_124] : memref<16x1024xf32, #tpu.memory_space<vmem>>, vector<1x1024xf32>
    %372 = vector.broadcast %371 : vector<1x1024xf32> to vector<18x1024xf32>
    %373 = arith.addf %370, %372 : vector<18x1024xf32>
    %374 = arith.maximumf %367, %373 : vector<18x1024xf32>
    %c11 = arith.constant 11 : index
    %c0_125 = arith.constant 0 : index
    %375 = vector.load %arg7[%c11, %c0_125] : memref<16x1024xf32, #tpu.memory_space<vmem>>, vector<1x1024xf32>
    %376 = vector.broadcast %375 : vector<1x1024xf32> to vector<18x1024xf32>
    %377 = arith.addf %354, %376 : vector<18x1024xf32>
    %378 = arith.maximumf %374, %377 : vector<18x1024xf32>
    %379 = vector.extract_strided_slice %354 {offsets = [0, 32], sizes = [18, 992], strides = [1, 1]} : vector<18x1024xf32> to vector<18x992xf32>
    %cst_126 = arith.constant 0.000000e+00 : f32
    %380 = vector.broadcast %cst_126 : f32 to vector<18x32xf32>
    %381 = tpu.concatenate %379, %380 in 1 : vector<18x992xf32>, vector<18x32xf32> -> vector<18x1024xf32>
    %c12_127 = arith.constant 12 : index
    %c0_128 = arith.constant 0 : index
    %382 = vector.load %arg7[%c12_127, %c0_128] : memref<16x1024xf32, #tpu.memory_space<vmem>>, vector<1x1024xf32>
    %383 = vector.broadcast %382 : vector<1x1024xf32> to vector<18x1024xf32>
    %384 = arith.addf %381, %383 : vector<18x1024xf32>
    %385 = arith.maximumf %378, %384 : vector<18x1024xf32>
    %386 = vector.extract_strided_slice %354 {offsets = [0, 64], sizes = [18, 960], strides = [1, 1]} : vector<18x1024xf32> to vector<18x960xf32>
    %cst_129 = arith.constant 0.000000e+00 : f32
    %387 = vector.broadcast %cst_129 : f32 to vector<18x64xf32>
    %388 = tpu.concatenate %386, %387 in 1 : vector<18x960xf32>, vector<18x64xf32> -> vector<18x1024xf32>
    %c13 = arith.constant 13 : index
    %c0_130 = arith.constant 0 : index
    %389 = vector.load %arg7[%c13, %c0_130] : memref<16x1024xf32, #tpu.memory_space<vmem>>, vector<1x1024xf32>
    %390 = vector.broadcast %389 : vector<1x1024xf32> to vector<18x1024xf32>
    %391 = arith.addf %388, %390 : vector<18x1024xf32>
    %392 = arith.maximumf %385, %391 : vector<18x1024xf32>
    %393 = vector.extract_strided_slice %354 {offsets = [0, 96], sizes = [18, 928], strides = [1, 1]} : vector<18x1024xf32> to vector<18x928xf32>
    %cst_131 = arith.constant 0.000000e+00 : f32
    %394 = vector.broadcast %cst_131 : f32 to vector<18x96xf32>
    %395 = tpu.concatenate %393, %394 in 1 : vector<18x928xf32>, vector<18x96xf32> -> vector<18x1024xf32>
    %c14 = arith.constant 14 : index
    %c0_132 = arith.constant 0 : index
    %396 = vector.load %arg7[%c14, %c0_132] : memref<16x1024xf32, #tpu.memory_space<vmem>>, vector<1x1024xf32>
    %397 = vector.broadcast %396 : vector<1x1024xf32> to vector<18x1024xf32>
    %398 = arith.addf %395, %397 : vector<18x1024xf32>
    %399 = arith.maximumf %392, %398 : vector<18x1024xf32>
    %400 = vector.extract_strided_slice %354 {offsets = [0, 128], sizes = [18, 896], strides = [1, 1]} : vector<18x1024xf32> to vector<18x896xf32>
    %cst_133 = arith.constant 0.000000e+00 : f32
    %401 = vector.broadcast %cst_133 : f32 to vector<18x128xf32>
    %402 = tpu.concatenate %400, %401 in 1 : vector<18x896xf32>, vector<18x128xf32> -> vector<18x1024xf32>
    %c15 = arith.constant 15 : index
    %c0_134 = arith.constant 0 : index
    %403 = vector.load %arg7[%c15, %c0_134] : memref<16x1024xf32, #tpu.memory_space<vmem>>, vector<1x1024xf32>
    %404 = vector.broadcast %403 : vector<1x1024xf32> to vector<18x1024xf32>
    %405 = arith.addf %402, %404 : vector<18x1024xf32>
    %406 = arith.maximumf %399, %405 : vector<18x1024xf32>
    %c0_135 = arith.constant 0 : index
    %c0_136 = arith.constant 0 : index
    %407 = vector.load %arg9[%c0_135, %c0_136] : memref<1024x256xf32, #tpu.memory_space<vmem>>, vector<1024x256xf32>
    %cst_137 = arith.constant dense<0.000000e+00> : vector<18x256xf32>
    %408 = tpu.matmul %406, %407, %cst_137 {dimension_numbers = #tpu.dot_dimension_numbers<[1], [0], [0], [1], [0, 0, 1, 1], [], []>} : vector<18x1024xf32>, vector<1024x256xf32>, vector<18x256xf32> -> vector<18x256xf32>
    %c96 = arith.constant 96 : index
    %c0_138 = arith.constant 0 : index
    %409 = vector.load %arg1[%c96, %c0_138] : memref<402x40xf32, #tpu.memory_space<vmem>>, vector<24x18xf32>
    %cst_139 = arith.constant dense<0.000000e+00> : vector<24x256xf32>
    %410 = tpu.matmul %409, %408, %cst_139 {dimension_numbers = #tpu.dot_dimension_numbers<[1], [0], [0], [1], [0, 0, 1, 1], [], []>} : vector<24x18xf32>, vector<18x256xf32>, vector<24x256xf32> -> vector<24x256xf32>
    %c120 = arith.constant 120 : index
    %c0_140 = arith.constant 0 : index
    %411 = vector.load %arg1[%c120, %c0_140] : memref<402x40xf32, #tpu.memory_space<vmem>>, vector<24x18xf32>
    %cst_141 = arith.constant dense<0.000000e+00> : vector<24x256xf32>
    %412 = tpu.matmul %411, %302, %cst_141 {dimension_numbers = #tpu.dot_dimension_numbers<[1], [0], [0], [1], [0, 0, 1, 1], [], []>} : vector<24x18xf32>, vector<18x256xf32>, vector<24x256xf32> -> vector<24x256xf32>
    %413 = arith.addf %410, %412 : vector<24x256xf32>
    %c158 = arith.constant 158 : index
    %c0_142 = arith.constant 0 : index
    %414 = vector.load %arg3[%c158, %c0_142] : memref<616x1xf32, #tpu.memory_space<vmem>>, vector<24x1xf32>
    %415 = vector.broadcast %414 : vector<24x1xf32> to vector<24x256xf32>
    %416 = arith.addf %413, %415 : vector<24x256xf32>
    %cst_143 = arith.constant 1.000000e-01 : f32
    %417 = vector.broadcast %cst_143 : f32 to vector<24x256xf32>
    %418 = arith.mulf %417, %416 : vector<24x256xf32>
    %419 = arith.maximumf %416, %418 : vector<24x256xf32>
    %c62_144 = arith.constant 62 : index
    %c0_145 = arith.constant 0 : index
    %420 = vector.load %arg2[%c62_144, %c0_145] : memref<206x9xf32, #tpu.memory_space<vmem>>, vector<24x9xf32>
    %421 = vector.extract_strided_slice %420 {offsets = [0, 4], sizes = [24, 1], strides = [1, 1]} : vector<24x9xf32> to vector<24x1xf32>
    %422 = vector.broadcast %421 : vector<24x1xf32> to vector<24x256xf32>
    %423 = arith.mulf %422, %419 : vector<24x256xf32>
    %cst_146 = arith.constant 0.000000e+00 : f32
    %424 = vector.broadcast %cst_146 : f32 to vector<24x17xf32>
    %425 = vector.extract_strided_slice %419 {offsets = [0, 0], sizes = [24, 239], strides = [1, 1]} : vector<24x256xf32> to vector<24x239xf32>
    %426 = tpu.concatenate %424, %425 in 1 : vector<24x17xf32>, vector<24x239xf32> -> vector<24x256xf32>
    %c0_147 = arith.constant 0 : index
    %c0_148 = arith.constant 0 : index
    %427 = vector.load %arg5[%c0_147, %c0_148] : memref<9x256xf32, #tpu.memory_space<vmem>>, vector<1x256xf32>
    %428 = vector.broadcast %427 : vector<1x256xf32> to vector<24x256xf32>
    %429 = arith.mulf %426, %428 : vector<24x256xf32>
    %430 = vector.extract_strided_slice %420 {offsets = [0, 0], sizes = [24, 1], strides = [1, 1]} : vector<24x9xf32> to vector<24x1xf32>
    %431 = vector.broadcast %430 : vector<24x1xf32> to vector<24x256xf32>
    %432 = arith.mulf %431, %429 : vector<24x256xf32>
    %433 = arith.addf %423, %432 : vector<24x256xf32>
    %cst_149 = arith.constant 0.000000e+00 : f32
    %434 = vector.broadcast %cst_149 : f32 to vector<24x16xf32>
    %435 = vector.extract_strided_slice %419 {offsets = [0, 0], sizes = [24, 240], strides = [1, 1]} : vector<24x256xf32> to vector<24x240xf32>
    %436 = tpu.concatenate %434, %435 in 1 : vector<24x16xf32>, vector<24x240xf32> -> vector<24x256xf32>
    %437 = vector.extract_strided_slice %420 {offsets = [0, 1], sizes = [24, 1], strides = [1, 1]} : vector<24x9xf32> to vector<24x1xf32>
    %438 = vector.broadcast %437 : vector<24x1xf32> to vector<24x256xf32>
    %439 = arith.mulf %438, %436 : vector<24x256xf32>
    %440 = arith.addf %433, %439 : vector<24x256xf32>
    %cst_150 = arith.constant 0.000000e+00 : f32
    %441 = vector.broadcast %cst_150 : f32 to vector<24x15xf32>
    %442 = vector.extract_strided_slice %419 {offsets = [0, 0], sizes = [24, 241], strides = [1, 1]} : vector<24x256xf32> to vector<24x241xf32>
    %443 = tpu.concatenate %441, %442 in 1 : vector<24x15xf32>, vector<24x241xf32> -> vector<24x256xf32>
    %c2_151 = arith.constant 2 : index
    %c0_152 = arith.constant 0 : index
    %444 = vector.load %arg5[%c2_151, %c0_152] : memref<9x256xf32, #tpu.memory_space<vmem>>, vector<1x256xf32>
    %445 = vector.broadcast %444 : vector<1x256xf32> to vector<24x256xf32>
    %446 = arith.mulf %443, %445 : vector<24x256xf32>
    %447 = vector.extract_strided_slice %420 {offsets = [0, 2], sizes = [24, 1], strides = [1, 1]} : vector<24x9xf32> to vector<24x1xf32>
    %448 = vector.broadcast %447 : vector<24x1xf32> to vector<24x256xf32>
    %449 = arith.mulf %448, %446 : vector<24x256xf32>
    %450 = arith.addf %440, %449 : vector<24x256xf32>
    %cst_153 = arith.constant 0.000000e+00 : f32
    %451 = vector.broadcast %cst_153 : f32 to vector<24x1xf32>
    %452 = vector.extract_strided_slice %419 {offsets = [0, 0], sizes = [24, 255], strides = [1, 1]} : vector<24x256xf32> to vector<24x255xf32>
    %453 = tpu.concatenate %451, %452 in 1 : vector<24x1xf32>, vector<24x255xf32> -> vector<24x256xf32>
    %c3_154 = arith.constant 3 : index
    %c0_155 = arith.constant 0 : index
    %454 = vector.load %arg5[%c3_154, %c0_155] : memref<9x256xf32, #tpu.memory_space<vmem>>, vector<1x256xf32>
    %455 = vector.broadcast %454 : vector<1x256xf32> to vector<24x256xf32>
    %456 = arith.mulf %453, %455 : vector<24x256xf32>
    %457 = vector.extract_strided_slice %420 {offsets = [0, 3], sizes = [24, 1], strides = [1, 1]} : vector<24x9xf32> to vector<24x1xf32>
    %458 = vector.broadcast %457 : vector<24x1xf32> to vector<24x256xf32>
    %459 = arith.mulf %458, %456 : vector<24x256xf32>
    %460 = arith.addf %450, %459 : vector<24x256xf32>
    %461 = vector.extract_strided_slice %419 {offsets = [0, 1], sizes = [24, 255], strides = [1, 1]} : vector<24x256xf32> to vector<24x255xf32>
    %cst_156 = arith.constant 0.000000e+00 : f32
    %462 = vector.broadcast %cst_156 : f32 to vector<24x1xf32>
    %463 = tpu.concatenate %461, %462 in 1 : vector<24x255xf32>, vector<24x1xf32> -> vector<24x256xf32>
    %c5_157 = arith.constant 5 : index
    %c0_158 = arith.constant 0 : index
    %464 = vector.load %arg5[%c5_157, %c0_158] : memref<9x256xf32, #tpu.memory_space<vmem>>, vector<1x256xf32>
    %465 = vector.broadcast %464 : vector<1x256xf32> to vector<24x256xf32>
    %466 = arith.mulf %463, %465 : vector<24x256xf32>
    %467 = vector.extract_strided_slice %420 {offsets = [0, 5], sizes = [24, 1], strides = [1, 1]} : vector<24x9xf32> to vector<24x1xf32>
    %468 = vector.broadcast %467 : vector<24x1xf32> to vector<24x256xf32>
    %469 = arith.mulf %468, %466 : vector<24x256xf32>
    %470 = arith.addf %460, %469 : vector<24x256xf32>
    %471 = vector.extract_strided_slice %419 {offsets = [0, 15], sizes = [24, 241], strides = [1, 1]} : vector<24x256xf32> to vector<24x241xf32>
    %cst_159 = arith.constant 0.000000e+00 : f32
    %472 = vector.broadcast %cst_159 : f32 to vector<24x15xf32>
    %473 = tpu.concatenate %471, %472 in 1 : vector<24x241xf32>, vector<24x15xf32> -> vector<24x256xf32>
    %c6_160 = arith.constant 6 : index
    %c0_161 = arith.constant 0 : index
    %474 = vector.load %arg5[%c6_160, %c0_161] : memref<9x256xf32, #tpu.memory_space<vmem>>, vector<1x256xf32>
    %475 = vector.broadcast %474 : vector<1x256xf32> to vector<24x256xf32>
    %476 = arith.mulf %473, %475 : vector<24x256xf32>
    %477 = vector.extract_strided_slice %420 {offsets = [0, 6], sizes = [24, 1], strides = [1, 1]} : vector<24x9xf32> to vector<24x1xf32>
    %478 = vector.broadcast %477 : vector<24x1xf32> to vector<24x256xf32>
    %479 = arith.mulf %478, %476 : vector<24x256xf32>
    %480 = arith.addf %470, %479 : vector<24x256xf32>
    %481 = vector.extract_strided_slice %419 {offsets = [0, 16], sizes = [24, 240], strides = [1, 1]} : vector<24x256xf32> to vector<24x240xf32>
    %cst_162 = arith.constant 0.000000e+00 : f32
    %482 = vector.broadcast %cst_162 : f32 to vector<24x16xf32>
    %483 = tpu.concatenate %481, %482 in 1 : vector<24x240xf32>, vector<24x16xf32> -> vector<24x256xf32>
    %484 = vector.extract_strided_slice %420 {offsets = [0, 7], sizes = [24, 1], strides = [1, 1]} : vector<24x9xf32> to vector<24x1xf32>
    %485 = vector.broadcast %484 : vector<24x1xf32> to vector<24x256xf32>
    %486 = arith.mulf %485, %483 : vector<24x256xf32>
    %487 = arith.addf %480, %486 : vector<24x256xf32>
    %488 = vector.extract_strided_slice %419 {offsets = [0, 17], sizes = [24, 239], strides = [1, 1]} : vector<24x256xf32> to vector<24x239xf32>
    %cst_163 = arith.constant 0.000000e+00 : f32
    %489 = vector.broadcast %cst_163 : f32 to vector<24x17xf32>
    %490 = tpu.concatenate %488, %489 in 1 : vector<24x239xf32>, vector<24x17xf32> -> vector<24x256xf32>
    %c8_164 = arith.constant 8 : index
    %c0_165 = arith.constant 0 : index
    %491 = vector.load %arg5[%c8_164, %c0_165] : memref<9x256xf32, #tpu.memory_space<vmem>>, vector<1x256xf32>
    %492 = vector.broadcast %491 : vector<1x256xf32> to vector<24x256xf32>
    %493 = arith.mulf %490, %492 : vector<24x256xf32>
    %494 = vector.extract_strided_slice %420 {offsets = [0, 8], sizes = [24, 1], strides = [1, 1]} : vector<24x9xf32> to vector<24x1xf32>
    %495 = vector.broadcast %494 : vector<24x1xf32> to vector<24x256xf32>
    %496 = arith.mulf %495, %493 : vector<24x256xf32>
    %497 = arith.addf %487, %496 : vector<24x256xf32>
    %c0_166 = arith.constant 0 : index
    %c0_167 = arith.constant 0 : index
    %498 = vector.load %arg10[%c0_166, %c0_167] : memref<256x64xf32, #tpu.memory_space<vmem>>, vector<256x64xf32>
    %cst_168 = arith.constant dense<0.000000e+00> : vector<24x64xf32>
    %499 = tpu.matmul %497, %498, %cst_168 {dimension_numbers = #tpu.dot_dimension_numbers<[1], [0], [0], [1], [0, 0, 1, 1], [], []>} : vector<24x256xf32>, vector<256x64xf32>, vector<24x64xf32> -> vector<24x64xf32>
    %c182 = arith.constant 182 : index
    %c0_169 = arith.constant 0 : index
    %500 = vector.load %arg3[%c182, %c0_169] : memref<616x1xf32, #tpu.memory_space<vmem>>, vector<24x1xf32>
    %501 = vector.broadcast %500 : vector<24x1xf32> to vector<24x64xf32>
    %502 = arith.addf %499, %501 : vector<24x64xf32>
    %cst_170 = arith.constant 1.000000e-01 : f32
    %503 = vector.broadcast %cst_170 : f32 to vector<24x64xf32>
    %504 = arith.mulf %503, %502 : vector<24x64xf32>
    %505 = arith.maximumf %502, %504 : vector<24x64xf32>
    %c144 = arith.constant 144 : index
    %c0_171 = arith.constant 0 : index
    %506 = vector.load %arg1[%c144, %c0_171] : memref<402x40xf32, #tpu.memory_space<vmem>>, vector<8x24xf32>
    %cst_172 = arith.constant dense<0.000000e+00> : vector<8x64xf32>
    %507 = tpu.matmul %506, %505, %cst_172 {dimension_numbers = #tpu.dot_dimension_numbers<[1], [0], [0], [1], [0, 0, 1, 1], [], []>} : vector<8x24xf32>, vector<24x64xf32>, vector<8x64xf32> -> vector<8x64xf32>
    %c206 = arith.constant 206 : index
    %c0_173 = arith.constant 0 : index
    %508 = vector.load %arg3[%c206, %c0_173] : memref<616x1xf32, #tpu.memory_space<vmem>>, vector<8x1xf32>
    %509 = vector.broadcast %508 : vector<8x1xf32> to vector<8x64xf32>
    %510 = arith.addf %507, %509 : vector<8x64xf32>
    %c152 = arith.constant 152 : index
    %c0_174 = arith.constant 0 : index
    %511 = vector.load %arg1[%c152, %c0_174] : memref<402x40xf32, #tpu.memory_space<vmem>>, vector<40x8xf32>
    %cst_175 = arith.constant dense<0.000000e+00> : vector<40x64xf32>
    %512 = tpu.matmul %511, %510, %cst_175 {dimension_numbers = #tpu.dot_dimension_numbers<[1], [0], [0], [1], [0, 0, 1, 1], [], []>} : vector<40x8xf32>, vector<8x64xf32>, vector<40x64xf32> -> vector<40x64xf32>
    %c214 = arith.constant 214 : index
    %c0_176 = arith.constant 0 : index
    %513 = vector.load %arg3[%c214, %c0_176] : memref<616x1xf32, #tpu.memory_space<vmem>>, vector<40x1xf32>
    %514 = vector.broadcast %513 : vector<40x1xf32> to vector<40x64xf32>
    %515 = arith.addf %512, %514 : vector<40x64xf32>
    %cst_177 = arith.constant 1.000000e-01 : f32
    %516 = vector.broadcast %cst_177 : f32 to vector<40x64xf32>
    %517 = arith.mulf %516, %515 : vector<40x64xf32>
    %518 = arith.maximumf %515, %517 : vector<40x64xf32>
    %c86 = arith.constant 86 : index
    %c0_178 = arith.constant 0 : index
    %519 = vector.load %arg2[%c86, %c0_178] : memref<206x9xf32, #tpu.memory_space<vmem>>, vector<40x9xf32>
    %520 = vector.extract_strided_slice %519 {offsets = [0, 4], sizes = [40, 1], strides = [1, 1]} : vector<40x9xf32> to vector<40x1xf32>
    %521 = vector.broadcast %520 : vector<40x1xf32> to vector<40x64xf32>
    %522 = arith.mulf %521, %518 : vector<40x64xf32>
    %cst_179 = arith.constant 0.000000e+00 : f32
    %523 = vector.broadcast %cst_179 : f32 to vector<40x9xf32>
    %524 = vector.extract_strided_slice %518 {offsets = [0, 0], sizes = [40, 55], strides = [1, 1]} : vector<40x64xf32> to vector<40x55xf32>
    %525 = tpu.concatenate %523, %524 in 1 : vector<40x9xf32>, vector<40x55xf32> -> vector<40x64xf32>
    %c0_180 = arith.constant 0 : index
    %c0_181 = arith.constant 0 : index
    %526 = vector.load %arg6[%c0_180, %c0_181] : memref<9x64xf32, #tpu.memory_space<vmem>>, vector<1x64xf32>
    %527 = vector.broadcast %526 : vector<1x64xf32> to vector<40x64xf32>
    %528 = arith.mulf %525, %527 : vector<40x64xf32>
    %529 = vector.extract_strided_slice %519 {offsets = [0, 0], sizes = [40, 1], strides = [1, 1]} : vector<40x9xf32> to vector<40x1xf32>
    %530 = vector.broadcast %529 : vector<40x1xf32> to vector<40x64xf32>
    %531 = arith.mulf %530, %528 : vector<40x64xf32>
    %532 = arith.addf %522, %531 : vector<40x64xf32>
    %cst_182 = arith.constant 0.000000e+00 : f32
    %533 = vector.broadcast %cst_182 : f32 to vector<40x8xf32>
    %534 = vector.extract_strided_slice %518 {offsets = [0, 0], sizes = [40, 56], strides = [1, 1]} : vector<40x64xf32> to vector<40x56xf32>
    %535 = tpu.concatenate %533, %534 in 1 : vector<40x8xf32>, vector<40x56xf32> -> vector<40x64xf32>
    %536 = vector.extract_strided_slice %519 {offsets = [0, 1], sizes = [40, 1], strides = [1, 1]} : vector<40x9xf32> to vector<40x1xf32>
    %537 = vector.broadcast %536 : vector<40x1xf32> to vector<40x64xf32>
    %538 = arith.mulf %537, %535 : vector<40x64xf32>
    %539 = arith.addf %532, %538 : vector<40x64xf32>
    %cst_183 = arith.constant 0.000000e+00 : f32
    %540 = vector.broadcast %cst_183 : f32 to vector<40x7xf32>
    %541 = vector.extract_strided_slice %518 {offsets = [0, 0], sizes = [40, 57], strides = [1, 1]} : vector<40x64xf32> to vector<40x57xf32>
    %542 = tpu.concatenate %540, %541 in 1 : vector<40x7xf32>, vector<40x57xf32> -> vector<40x64xf32>
    %c2_184 = arith.constant 2 : index
    %c0_185 = arith.constant 0 : index
    %543 = vector.load %arg6[%c2_184, %c0_185] : memref<9x64xf32, #tpu.memory_space<vmem>>, vector<1x64xf32>
    %544 = vector.broadcast %543 : vector<1x64xf32> to vector<40x64xf32>
    %545 = arith.mulf %542, %544 : vector<40x64xf32>
    %546 = vector.extract_strided_slice %519 {offsets = [0, 2], sizes = [40, 1], strides = [1, 1]} : vector<40x9xf32> to vector<40x1xf32>
    %547 = vector.broadcast %546 : vector<40x1xf32> to vector<40x64xf32>
    %548 = arith.mulf %547, %545 : vector<40x64xf32>
    %549 = arith.addf %539, %548 : vector<40x64xf32>
    %cst_186 = arith.constant 0.000000e+00 : f32
    %550 = vector.broadcast %cst_186 : f32 to vector<40x1xf32>
    %551 = vector.extract_strided_slice %518 {offsets = [0, 0], sizes = [40, 63], strides = [1, 1]} : vector<40x64xf32> to vector<40x63xf32>
    %552 = tpu.concatenate %550, %551 in 1 : vector<40x1xf32>, vector<40x63xf32> -> vector<40x64xf32>
    %c3_187 = arith.constant 3 : index
    %c0_188 = arith.constant 0 : index
    %553 = vector.load %arg6[%c3_187, %c0_188] : memref<9x64xf32, #tpu.memory_space<vmem>>, vector<1x64xf32>
    %554 = vector.broadcast %553 : vector<1x64xf32> to vector<40x64xf32>
    %555 = arith.mulf %552, %554 : vector<40x64xf32>
    %556 = vector.extract_strided_slice %519 {offsets = [0, 3], sizes = [40, 1], strides = [1, 1]} : vector<40x9xf32> to vector<40x1xf32>
    %557 = vector.broadcast %556 : vector<40x1xf32> to vector<40x64xf32>
    %558 = arith.mulf %557, %555 : vector<40x64xf32>
    %559 = arith.addf %549, %558 : vector<40x64xf32>
    %560 = vector.extract_strided_slice %518 {offsets = [0, 1], sizes = [40, 63], strides = [1, 1]} : vector<40x64xf32> to vector<40x63xf32>
    %cst_189 = arith.constant 0.000000e+00 : f32
    %561 = vector.broadcast %cst_189 : f32 to vector<40x1xf32>
    %562 = tpu.concatenate %560, %561 in 1 : vector<40x63xf32>, vector<40x1xf32> -> vector<40x64xf32>
    %c5_190 = arith.constant 5 : index
    %c0_191 = arith.constant 0 : index
    %563 = vector.load %arg6[%c5_190, %c0_191] : memref<9x64xf32, #tpu.memory_space<vmem>>, vector<1x64xf32>
    %564 = vector.broadcast %563 : vector<1x64xf32> to vector<40x64xf32>
    %565 = arith.mulf %562, %564 : vector<40x64xf32>
    %566 = vector.extract_strided_slice %519 {offsets = [0, 5], sizes = [40, 1], strides = [1, 1]} : vector<40x9xf32> to vector<40x1xf32>
    %567 = vector.broadcast %566 : vector<40x1xf32> to vector<40x64xf32>
    %568 = arith.mulf %567, %565 : vector<40x64xf32>
    %569 = arith.addf %559, %568 : vector<40x64xf32>
    %570 = vector.extract_strided_slice %518 {offsets = [0, 7], sizes = [40, 57], strides = [1, 1]} : vector<40x64xf32> to vector<40x57xf32>
    %cst_192 = arith.constant 0.000000e+00 : f32
    %571 = vector.broadcast %cst_192 : f32 to vector<40x7xf32>
    %572 = tpu.concatenate %570, %571 in 1 : vector<40x57xf32>, vector<40x7xf32> -> vector<40x64xf32>
    %c6_193 = arith.constant 6 : index
    %c0_194 = arith.constant 0 : index
    %573 = vector.load %arg6[%c6_193, %c0_194] : memref<9x64xf32, #tpu.memory_space<vmem>>, vector<1x64xf32>
    %574 = vector.broadcast %573 : vector<1x64xf32> to vector<40x64xf32>
    %575 = arith.mulf %572, %574 : vector<40x64xf32>
    %576 = vector.extract_strided_slice %519 {offsets = [0, 6], sizes = [40, 1], strides = [1, 1]} : vector<40x9xf32> to vector<40x1xf32>
    %577 = vector.broadcast %576 : vector<40x1xf32> to vector<40x64xf32>
    %578 = arith.mulf %577, %575 : vector<40x64xf32>
    %579 = arith.addf %569, %578 : vector<40x64xf32>
    %580 = vector.extract_strided_slice %518 {offsets = [0, 8], sizes = [40, 56], strides = [1, 1]} : vector<40x64xf32> to vector<40x56xf32>
    %cst_195 = arith.constant 0.000000e+00 : f32
    %581 = vector.broadcast %cst_195 : f32 to vector<40x8xf32>
    %582 = tpu.concatenate %580, %581 in 1 : vector<40x56xf32>, vector<40x8xf32> -> vector<40x64xf32>
    %583 = vector.extract_strided_slice %519 {offsets = [0, 7], sizes = [40, 1], strides = [1, 1]} : vector<40x9xf32> to vector<40x1xf32>
    %584 = vector.broadcast %583 : vector<40x1xf32> to vector<40x64xf32>
    %585 = arith.mulf %584, %582 : vector<40x64xf32>
    %586 = arith.addf %579, %585 : vector<40x64xf32>
    %587 = vector.extract_strided_slice %518 {offsets = [0, 9], sizes = [40, 55], strides = [1, 1]} : vector<40x64xf32> to vector<40x55xf32>
    %cst_196 = arith.constant 0.000000e+00 : f32
    %588 = vector.broadcast %cst_196 : f32 to vector<40x9xf32>
    %589 = tpu.concatenate %587, %588 in 1 : vector<40x55xf32>, vector<40x9xf32> -> vector<40x64xf32>
    %c8_197 = arith.constant 8 : index
    %c0_198 = arith.constant 0 : index
    %590 = vector.load %arg6[%c8_197, %c0_198] : memref<9x64xf32, #tpu.memory_space<vmem>>, vector<1x64xf32>
    %591 = vector.broadcast %590 : vector<1x64xf32> to vector<40x64xf32>
    %592 = arith.mulf %589, %591 : vector<40x64xf32>
    %593 = vector.extract_strided_slice %519 {offsets = [0, 8], sizes = [40, 1], strides = [1, 1]} : vector<40x9xf32> to vector<40x1xf32>
    %594 = vector.broadcast %593 : vector<40x1xf32> to vector<40x64xf32>
    %595 = arith.mulf %594, %592 : vector<40x64xf32>
    %596 = arith.addf %586, %595 : vector<40x64xf32>
    %c254 = arith.constant 254 : index
    %c0_199 = arith.constant 0 : index
    %597 = vector.load %arg3[%c254, %c0_199] : memref<616x1xf32, #tpu.memory_space<vmem>>, vector<40x1xf32>
    %598 = vector.broadcast %597 : vector<40x1xf32> to vector<40x64xf32>
    %599 = arith.addf %596, %598 : vector<40x64xf32>
    %cst_200 = arith.constant 1.000000e-01 : f32
    %600 = vector.broadcast %cst_200 : f32 to vector<40x64xf32>
    %601 = arith.mulf %600, %599 : vector<40x64xf32>
    %602 = arith.maximumf %599, %601 : vector<40x64xf32>
    %c192 = arith.constant 192 : index
    %c0_201 = arith.constant 0 : index
    %603 = vector.load %arg1[%c192, %c0_201] : memref<402x40xf32, #tpu.memory_space<vmem>>, vector<8x40xf32>
    %cst_202 = arith.constant dense<0.000000e+00> : vector<8x64xf32>
    %604 = tpu.matmul %603, %602, %cst_202 {dimension_numbers = #tpu.dot_dimension_numbers<[1], [0], [0], [1], [0, 0, 1, 1], [], []>} : vector<8x40xf32>, vector<40x64xf32>, vector<8x64xf32> -> vector<8x64xf32>
    %c294 = arith.constant 294 : index
    %c0_203 = arith.constant 0 : index
    %605 = vector.load %arg3[%c294, %c0_203] : memref<616x1xf32, #tpu.memory_space<vmem>>, vector<8x1xf32>
    %606 = vector.broadcast %605 : vector<8x1xf32> to vector<8x64xf32>
    %607 = arith.addf %604, %606 : vector<8x64xf32>
    %608 = arith.addf %607, %510 : vector<8x64xf32>
    %c200 = arith.constant 200 : index
    %c0_204 = arith.constant 0 : index
    %609 = vector.load %arg1[%c200, %c0_204] : memref<402x40xf32, #tpu.memory_space<vmem>>, vector<40x8xf32>
    %cst_205 = arith.constant dense<0.000000e+00> : vector<40x64xf32>
    %610 = tpu.matmul %609, %608, %cst_205 {dimension_numbers = #tpu.dot_dimension_numbers<[1], [0], [0], [1], [0, 0, 1, 1], [], []>} : vector<40x8xf32>, vector<8x64xf32>, vector<40x64xf32> -> vector<40x64xf32>
    %c302 = arith.constant 302 : index
    %c0_206 = arith.constant 0 : index
    %611 = vector.load %arg3[%c302, %c0_206] : memref<616x1xf32, #tpu.memory_space<vmem>>, vector<40x1xf32>
    %612 = vector.broadcast %611 : vector<40x1xf32> to vector<40x64xf32>
    %613 = arith.addf %610, %612 : vector<40x64xf32>
    %cst_207 = arith.constant 1.000000e-01 : f32
    %614 = vector.broadcast %cst_207 : f32 to vector<40x64xf32>
    %615 = arith.mulf %614, %613 : vector<40x64xf32>
    %616 = arith.maximumf %613, %615 : vector<40x64xf32>
    %c126 = arith.constant 126 : index
    %c0_208 = arith.constant 0 : index
    %617 = vector.load %arg2[%c126, %c0_208] : memref<206x9xf32, #tpu.memory_space<vmem>>, vector<40x9xf32>
    %618 = vector.extract_strided_slice %617 {offsets = [0, 4], sizes = [40, 1], strides = [1, 1]} : vector<40x9xf32> to vector<40x1xf32>
    %619 = vector.broadcast %618 : vector<40x1xf32> to vector<40x64xf32>
    %620 = arith.mulf %619, %616 : vector<40x64xf32>
    %cst_209 = arith.constant 0.000000e+00 : f32
    %621 = vector.broadcast %cst_209 : f32 to vector<40x9xf32>
    %622 = vector.extract_strided_slice %616 {offsets = [0, 0], sizes = [40, 55], strides = [1, 1]} : vector<40x64xf32> to vector<40x55xf32>
    %623 = tpu.concatenate %621, %622 in 1 : vector<40x9xf32>, vector<40x55xf32> -> vector<40x64xf32>
    %c0_210 = arith.constant 0 : index
    %c0_211 = arith.constant 0 : index
    %624 = vector.load %arg6[%c0_210, %c0_211] : memref<9x64xf32, #tpu.memory_space<vmem>>, vector<1x64xf32>
    %625 = vector.broadcast %624 : vector<1x64xf32> to vector<40x64xf32>
    %626 = arith.mulf %623, %625 : vector<40x64xf32>
    %627 = vector.extract_strided_slice %617 {offsets = [0, 0], sizes = [40, 1], strides = [1, 1]} : vector<40x9xf32> to vector<40x1xf32>
    %628 = vector.broadcast %627 : vector<40x1xf32> to vector<40x64xf32>
    %629 = arith.mulf %628, %626 : vector<40x64xf32>
    %630 = arith.addf %620, %629 : vector<40x64xf32>
    %cst_212 = arith.constant 0.000000e+00 : f32
    %631 = vector.broadcast %cst_212 : f32 to vector<40x8xf32>
    %632 = vector.extract_strided_slice %616 {offsets = [0, 0], sizes = [40, 56], strides = [1, 1]} : vector<40x64xf32> to vector<40x56xf32>
    %633 = tpu.concatenate %631, %632 in 1 : vector<40x8xf32>, vector<40x56xf32> -> vector<40x64xf32>
    %634 = vector.extract_strided_slice %617 {offsets = [0, 1], sizes = [40, 1], strides = [1, 1]} : vector<40x9xf32> to vector<40x1xf32>
    %635 = vector.broadcast %634 : vector<40x1xf32> to vector<40x64xf32>
    %636 = arith.mulf %635, %633 : vector<40x64xf32>
    %637 = arith.addf %630, %636 : vector<40x64xf32>
    %cst_213 = arith.constant 0.000000e+00 : f32
    %638 = vector.broadcast %cst_213 : f32 to vector<40x7xf32>
    %639 = vector.extract_strided_slice %616 {offsets = [0, 0], sizes = [40, 57], strides = [1, 1]} : vector<40x64xf32> to vector<40x57xf32>
    %640 = tpu.concatenate %638, %639 in 1 : vector<40x7xf32>, vector<40x57xf32> -> vector<40x64xf32>
    %c2_214 = arith.constant 2 : index
    %c0_215 = arith.constant 0 : index
    %641 = vector.load %arg6[%c2_214, %c0_215] : memref<9x64xf32, #tpu.memory_space<vmem>>, vector<1x64xf32>
    %642 = vector.broadcast %641 : vector<1x64xf32> to vector<40x64xf32>
    %643 = arith.mulf %640, %642 : vector<40x64xf32>
    %644 = vector.extract_strided_slice %617 {offsets = [0, 2], sizes = [40, 1], strides = [1, 1]} : vector<40x9xf32> to vector<40x1xf32>
    %645 = vector.broadcast %644 : vector<40x1xf32> to vector<40x64xf32>
    %646 = arith.mulf %645, %643 : vector<40x64xf32>
    %647 = arith.addf %637, %646 : vector<40x64xf32>
    %cst_216 = arith.constant 0.000000e+00 : f32
    %648 = vector.broadcast %cst_216 : f32 to vector<40x1xf32>
    %649 = vector.extract_strided_slice %616 {offsets = [0, 0], sizes = [40, 63], strides = [1, 1]} : vector<40x64xf32> to vector<40x63xf32>
    %650 = tpu.concatenate %648, %649 in 1 : vector<40x1xf32>, vector<40x63xf32> -> vector<40x64xf32>
    %c3_217 = arith.constant 3 : index
    %c0_218 = arith.constant 0 : index
    %651 = vector.load %arg6[%c3_217, %c0_218] : memref<9x64xf32, #tpu.memory_space<vmem>>, vector<1x64xf32>
    %652 = vector.broadcast %651 : vector<1x64xf32> to vector<40x64xf32>
    %653 = arith.mulf %650, %652 : vector<40x64xf32>
    %654 = vector.extract_strided_slice %617 {offsets = [0, 3], sizes = [40, 1], strides = [1, 1]} : vector<40x9xf32> to vector<40x1xf32>
    %655 = vector.broadcast %654 : vector<40x1xf32> to vector<40x64xf32>
    %656 = arith.mulf %655, %653 : vector<40x64xf32>
    %657 = arith.addf %647, %656 : vector<40x64xf32>
    %658 = vector.extract_strided_slice %616 {offsets = [0, 1], sizes = [40, 63], strides = [1, 1]} : vector<40x64xf32> to vector<40x63xf32>
    %cst_219 = arith.constant 0.000000e+00 : f32
    %659 = vector.broadcast %cst_219 : f32 to vector<40x1xf32>
    %660 = tpu.concatenate %658, %659 in 1 : vector<40x63xf32>, vector<40x1xf32> -> vector<40x64xf32>
    %c5_220 = arith.constant 5 : index
    %c0_221 = arith.constant 0 : index
    %661 = vector.load %arg6[%c5_220, %c0_221] : memref<9x64xf32, #tpu.memory_space<vmem>>, vector<1x64xf32>
    %662 = vector.broadcast %661 : vector<1x64xf32> to vector<40x64xf32>
    %663 = arith.mulf %660, %662 : vector<40x64xf32>
    %664 = vector.extract_strided_slice %617 {offsets = [0, 5], sizes = [40, 1], strides = [1, 1]} : vector<40x9xf32> to vector<40x1xf32>
    %665 = vector.broadcast %664 : vector<40x1xf32> to vector<40x64xf32>
    %666 = arith.mulf %665, %663 : vector<40x64xf32>
    %667 = arith.addf %657, %666 : vector<40x64xf32>
    %668 = vector.extract_strided_slice %616 {offsets = [0, 7], sizes = [40, 57], strides = [1, 1]} : vector<40x64xf32> to vector<40x57xf32>
    %cst_222 = arith.constant 0.000000e+00 : f32
    %669 = vector.broadcast %cst_222 : f32 to vector<40x7xf32>
    %670 = tpu.concatenate %668, %669 in 1 : vector<40x57xf32>, vector<40x7xf32> -> vector<40x64xf32>
    %c6_223 = arith.constant 6 : index
    %c0_224 = arith.constant 0 : index
    %671 = vector.load %arg6[%c6_223, %c0_224] : memref<9x64xf32, #tpu.memory_space<vmem>>, vector<1x64xf32>
    %672 = vector.broadcast %671 : vector<1x64xf32> to vector<40x64xf32>
    %673 = arith.mulf %670, %672 : vector<40x64xf32>
    %674 = vector.extract_strided_slice %617 {offsets = [0, 6], sizes = [40, 1], strides = [1, 1]} : vector<40x9xf32> to vector<40x1xf32>
    %675 = vector.broadcast %674 : vector<40x1xf32> to vector<40x64xf32>
    %676 = arith.mulf %675, %673 : vector<40x64xf32>
    %677 = arith.addf %667, %676 : vector<40x64xf32>
    %678 = vector.extract_strided_slice %616 {offsets = [0, 8], sizes = [40, 56], strides = [1, 1]} : vector<40x64xf32> to vector<40x56xf32>
    %cst_225 = arith.constant 0.000000e+00 : f32
    %679 = vector.broadcast %cst_225 : f32 to vector<40x8xf32>
    %680 = tpu.concatenate %678, %679 in 1 : vector<40x56xf32>, vector<40x8xf32> -> vector<40x64xf32>
    %681 = vector.extract_strided_slice %617 {offsets = [0, 7], sizes = [40, 1], strides = [1, 1]} : vector<40x9xf32> to vector<40x1xf32>
    %682 = vector.broadcast %681 : vector<40x1xf32> to vector<40x64xf32>
    %683 = arith.mulf %682, %680 : vector<40x64xf32>
    %684 = arith.addf %677, %683 : vector<40x64xf32>
    %685 = vector.extract_strided_slice %616 {offsets = [0, 9], sizes = [40, 55], strides = [1, 1]} : vector<40x64xf32> to vector<40x55xf32>
    %cst_226 = arith.constant 0.000000e+00 : f32
    %686 = vector.broadcast %cst_226 : f32 to vector<40x9xf32>
    %687 = tpu.concatenate %685, %686 in 1 : vector<40x55xf32>, vector<40x9xf32> -> vector<40x64xf32>
    %c8_227 = arith.constant 8 : index
    %c0_228 = arith.constant 0 : index
    %688 = vector.load %arg6[%c8_227, %c0_228] : memref<9x64xf32, #tpu.memory_space<vmem>>, vector<1x64xf32>
    %689 = vector.broadcast %688 : vector<1x64xf32> to vector<40x64xf32>
    %690 = arith.mulf %687, %689 : vector<40x64xf32>
    %691 = vector.extract_strided_slice %617 {offsets = [0, 8], sizes = [40, 1], strides = [1, 1]} : vector<40x9xf32> to vector<40x1xf32>
    %692 = vector.broadcast %691 : vector<40x1xf32> to vector<40x64xf32>
    %693 = arith.mulf %692, %690 : vector<40x64xf32>
    %694 = arith.addf %684, %693 : vector<40x64xf32>
    %c342 = arith.constant 342 : index
    %c0_229 = arith.constant 0 : index
    %695 = vector.load %arg3[%c342, %c0_229] : memref<616x1xf32, #tpu.memory_space<vmem>>, vector<40x1xf32>
    %696 = vector.broadcast %695 : vector<40x1xf32> to vector<40x64xf32>
    %697 = arith.addf %694, %696 : vector<40x64xf32>
    %cst_230 = arith.constant 1.000000e-01 : f32
    %698 = vector.broadcast %cst_230 : f32 to vector<40x64xf32>
    %699 = arith.mulf %698, %697 : vector<40x64xf32>
    %700 = arith.maximumf %697, %699 : vector<40x64xf32>
    %c240 = arith.constant 240 : index
    %c0_231 = arith.constant 0 : index
    %701 = vector.load %arg1[%c240, %c0_231] : memref<402x40xf32, #tpu.memory_space<vmem>>, vector<8x40xf32>
    %cst_232 = arith.constant dense<0.000000e+00> : vector<8x64xf32>
    %702 = tpu.matmul %701, %700, %cst_232 {dimension_numbers = #tpu.dot_dimension_numbers<[1], [0], [0], [1], [0, 0, 1, 1], [], []>} : vector<8x40xf32>, vector<40x64xf32>, vector<8x64xf32> -> vector<8x64xf32>
    %c382 = arith.constant 382 : index
    %c0_233 = arith.constant 0 : index
    %703 = vector.load %arg3[%c382, %c0_233] : memref<616x1xf32, #tpu.memory_space<vmem>>, vector<8x1xf32>
    %704 = vector.broadcast %703 : vector<8x1xf32> to vector<8x64xf32>
    %705 = arith.addf %702, %704 : vector<8x64xf32>
    %706 = arith.addf %705, %608 : vector<8x64xf32>
    %c248 = arith.constant 248 : index
    %c0_234 = arith.constant 0 : index
    %707 = vector.load %arg1[%c248, %c0_234] : memref<402x40xf32, #tpu.memory_space<vmem>>, vector<24x8xf32>
    %cst_235 = arith.constant dense<0.000000e+00> : vector<24x64xf32>
    %708 = tpu.matmul %707, %706, %cst_235 {dimension_numbers = #tpu.dot_dimension_numbers<[1], [0], [0], [1], [0, 0, 1, 1], [], []>} : vector<24x8xf32>, vector<8x64xf32>, vector<24x64xf32> -> vector<24x64xf32>
    %c390 = arith.constant 390 : index
    %c0_236 = arith.constant 0 : index
    %709 = vector.load %arg3[%c390, %c0_236] : memref<616x1xf32, #tpu.memory_space<vmem>>, vector<24x1xf32>
    %710 = vector.broadcast %709 : vector<24x1xf32> to vector<24x64xf32>
    %711 = arith.addf %708, %710 : vector<24x64xf32>
    %cst_237 = arith.constant 1.000000e-01 : f32
    %712 = vector.broadcast %cst_237 : f32 to vector<24x64xf32>
    %713 = arith.mulf %712, %711 : vector<24x64xf32>
    %714 = arith.maximumf %711, %713 : vector<24x64xf32>
    %cst_238 = arith.constant 0.000000e+00 : f32
    %715 = vector.broadcast %cst_238 : f32 to vector<24x1xf32>
    %716 = vector.extract_strided_slice %419 {offsets = [0, 0], sizes = [24, 255], strides = [1, 1]} : vector<24x256xf32> to vector<24x255xf32>
    %717 = tpu.concatenate %715, %716 in 1 : vector<24x1xf32>, vector<24x255xf32> -> vector<24x256xf32>
    %c0_239 = arith.constant 0 : index
    %c0_240 = arith.constant 0 : index
    %718 = vector.load %arg8[%c0_239, %c0_240] : memref<8x256xf32, #tpu.memory_space<vmem>>, vector<1x256xf32>
    %719 = vector.broadcast %718 : vector<1x256xf32> to vector<24x256xf32>
    %720 = arith.addf %717, %719 : vector<24x256xf32>
    %c1_241 = arith.constant 1 : index
    %c0_242 = arith.constant 0 : index
    %721 = vector.load %arg8[%c1_241, %c0_242] : memref<8x256xf32, #tpu.memory_space<vmem>>, vector<1x256xf32>
    %722 = vector.broadcast %721 : vector<1x256xf32> to vector<24x256xf32>
    %723 = arith.addf %419, %722 : vector<24x256xf32>
    %724 = arith.maximumf %720, %723 : vector<24x256xf32>
    %725 = vector.extract_strided_slice %419 {offsets = [0, 1], sizes = [24, 255], strides = [1, 1]} : vector<24x256xf32> to vector<24x255xf32>
    %cst_243 = arith.constant 0.000000e+00 : f32
    %726 = vector.broadcast %cst_243 : f32 to vector<24x1xf32>
    %727 = tpu.concatenate %725, %726 in 1 : vector<24x255xf32>, vector<24x1xf32> -> vector<24x256xf32>
    %c2_244 = arith.constant 2 : index
    %c0_245 = arith.constant 0 : index
    %728 = vector.load %arg8[%c2_244, %c0_245] : memref<8x256xf32, #tpu.memory_space<vmem>>, vector<1x256xf32>
    %729 = vector.broadcast %728 : vector<1x256xf32> to vector<24x256xf32>
    %730 = arith.addf %727, %729 : vector<24x256xf32>
    %731 = arith.maximumf %724, %730 : vector<24x256xf32>
    %732 = vector.extract_strided_slice %419 {offsets = [0, 2], sizes = [24, 254], strides = [1, 1]} : vector<24x256xf32> to vector<24x254xf32>
    %cst_246 = arith.constant 0.000000e+00 : f32
    %733 = vector.broadcast %cst_246 : f32 to vector<24x2xf32>
    %734 = tpu.concatenate %732, %733 in 1 : vector<24x254xf32>, vector<24x2xf32> -> vector<24x256xf32>
    %c3_247 = arith.constant 3 : index
    %c0_248 = arith.constant 0 : index
    %735 = vector.load %arg8[%c3_247, %c0_248] : memref<8x256xf32, #tpu.memory_space<vmem>>, vector<1x256xf32>
    %736 = vector.broadcast %735 : vector<1x256xf32> to vector<24x256xf32>
    %737 = arith.addf %734, %736 : vector<24x256xf32>
    %738 = arith.maximumf %731, %737 : vector<24x256xf32>
    %cst_249 = arith.constant 0.000000e+00 : f32
    %739 = vector.broadcast %cst_249 : f32 to vector<24x16xf32>
    %740 = vector.extract_strided_slice %738 {offsets = [0, 0], sizes = [24, 240], strides = [1, 1]} : vector<24x256xf32> to vector<24x240xf32>
    %741 = tpu.concatenate %739, %740 in 1 : vector<24x16xf32>, vector<24x240xf32> -> vector<24x256xf32>
    %c4_250 = arith.constant 4 : index
    %c0_251 = arith.constant 0 : index
    %742 = vector.load %arg8[%c4_250, %c0_251] : memref<8x256xf32, #tpu.memory_space<vmem>>, vector<1x256xf32>
    %743 = vector.broadcast %742 : vector<1x256xf32> to vector<24x256xf32>
    %744 = arith.addf %741, %743 : vector<24x256xf32>
    %c5_252 = arith.constant 5 : index
    %c0_253 = arith.constant 0 : index
    %745 = vector.load %arg8[%c5_252, %c0_253] : memref<8x256xf32, #tpu.memory_space<vmem>>, vector<1x256xf32>
    %746 = vector.broadcast %745 : vector<1x256xf32> to vector<24x256xf32>
    %747 = arith.addf %738, %746 : vector<24x256xf32>
    %748 = arith.maximumf %744, %747 : vector<24x256xf32>
    %749 = vector.extract_strided_slice %738 {offsets = [0, 16], sizes = [24, 240], strides = [1, 1]} : vector<24x256xf32> to vector<24x240xf32>
    %cst_254 = arith.constant 0.000000e+00 : f32
    %750 = vector.broadcast %cst_254 : f32 to vector<24x16xf32>
    %751 = tpu.concatenate %749, %750 in 1 : vector<24x240xf32>, vector<24x16xf32> -> vector<24x256xf32>
    %c6_255 = arith.constant 6 : index
    %c0_256 = arith.constant 0 : index
    %752 = vector.load %arg8[%c6_255, %c0_256] : memref<8x256xf32, #tpu.memory_space<vmem>>, vector<1x256xf32>
    %753 = vector.broadcast %752 : vector<1x256xf32> to vector<24x256xf32>
    %754 = arith.addf %751, %753 : vector<24x256xf32>
    %755 = arith.maximumf %748, %754 : vector<24x256xf32>
    %756 = vector.extract_strided_slice %738 {offsets = [0, 32], sizes = [24, 224], strides = [1, 1]} : vector<24x256xf32> to vector<24x224xf32>
    %cst_257 = arith.constant 0.000000e+00 : f32
    %757 = vector.broadcast %cst_257 : f32 to vector<24x32xf32>
    %758 = tpu.concatenate %756, %757 in 1 : vector<24x224xf32>, vector<24x32xf32> -> vector<24x256xf32>
    %c7_258 = arith.constant 7 : index
    %c0_259 = arith.constant 0 : index
    %759 = vector.load %arg8[%c7_258, %c0_259] : memref<8x256xf32, #tpu.memory_space<vmem>>, vector<1x256xf32>
    %760 = vector.broadcast %759 : vector<1x256xf32> to vector<24x256xf32>
    %761 = arith.addf %758, %760 : vector<24x256xf32>
    %762 = arith.maximumf %755, %761 : vector<24x256xf32>
    %c0_260 = arith.constant 0 : index
    %c0_261 = arith.constant 0 : index
    %763 = vector.load %arg10[%c0_260, %c0_261] : memref<256x64xf32, #tpu.memory_space<vmem>>, vector<256x64xf32>
    %cst_262 = arith.constant dense<0.000000e+00> : vector<24x64xf32>
    %764 = tpu.matmul %762, %763, %cst_262 {dimension_numbers = #tpu.dot_dimension_numbers<[1], [0], [0], [1], [0, 0, 1, 1], [], []>} : vector<24x256xf32>, vector<256x64xf32>, vector<24x64xf32> -> vector<24x64xf32>
    %c272 = arith.constant 272 : index
    %c0_263 = arith.constant 0 : index
    %765 = vector.load %arg1[%c272, %c0_263] : memref<402x40xf32, #tpu.memory_space<vmem>>, vector<40x24xf32>
    %cst_264 = arith.constant dense<0.000000e+00> : vector<40x64xf32>
    %766 = tpu.matmul %765, %764, %cst_264 {dimension_numbers = #tpu.dot_dimension_numbers<[1], [0], [0], [1], [0, 0, 1, 1], [], []>} : vector<40x24xf32>, vector<24x64xf32>, vector<40x64xf32> -> vector<40x64xf32>
    %c312 = arith.constant 312 : index
    %c0_265 = arith.constant 0 : index
    %767 = vector.load %arg1[%c312, %c0_265] : memref<402x40xf32, #tpu.memory_space<vmem>>, vector<40x24xf32>
    %cst_266 = arith.constant dense<0.000000e+00> : vector<40x64xf32>
    %768 = tpu.matmul %767, %714, %cst_266 {dimension_numbers = #tpu.dot_dimension_numbers<[1], [0], [0], [1], [0, 0, 1, 1], [], []>} : vector<40x24xf32>, vector<24x64xf32>, vector<40x64xf32> -> vector<40x64xf32>
    %769 = arith.addf %766, %768 : vector<40x64xf32>
    %c414 = arith.constant 414 : index
    %c0_267 = arith.constant 0 : index
    %770 = vector.load %arg3[%c414, %c0_267] : memref<616x1xf32, #tpu.memory_space<vmem>>, vector<40x1xf32>
    %771 = vector.broadcast %770 : vector<40x1xf32> to vector<40x64xf32>
    %772 = arith.addf %769, %771 : vector<40x64xf32>
    %cst_268 = arith.constant 1.000000e-01 : f32
    %773 = vector.broadcast %cst_268 : f32 to vector<40x64xf32>
    %774 = arith.mulf %773, %772 : vector<40x64xf32>
    %775 = arith.maximumf %772, %774 : vector<40x64xf32>
    %c166 = arith.constant 166 : index
    %c0_269 = arith.constant 0 : index
    %776 = vector.load %arg2[%c166, %c0_269] : memref<206x9xf32, #tpu.memory_space<vmem>>, vector<40x9xf32>
    %777 = vector.extract_strided_slice %776 {offsets = [0, 4], sizes = [40, 1], strides = [1, 1]} : vector<40x9xf32> to vector<40x1xf32>
    %778 = vector.broadcast %777 : vector<40x1xf32> to vector<40x64xf32>
    %779 = arith.mulf %778, %775 : vector<40x64xf32>
    %cst_270 = arith.constant 0.000000e+00 : f32
    %780 = vector.broadcast %cst_270 : f32 to vector<40x9xf32>
    %781 = vector.extract_strided_slice %775 {offsets = [0, 0], sizes = [40, 55], strides = [1, 1]} : vector<40x64xf32> to vector<40x55xf32>
    %782 = tpu.concatenate %780, %781 in 1 : vector<40x9xf32>, vector<40x55xf32> -> vector<40x64xf32>
    %c0_271 = arith.constant 0 : index
    %c0_272 = arith.constant 0 : index
    %783 = vector.load %arg6[%c0_271, %c0_272] : memref<9x64xf32, #tpu.memory_space<vmem>>, vector<1x64xf32>
    %784 = vector.broadcast %783 : vector<1x64xf32> to vector<40x64xf32>
    %785 = arith.mulf %782, %784 : vector<40x64xf32>
    %786 = vector.extract_strided_slice %776 {offsets = [0, 0], sizes = [40, 1], strides = [1, 1]} : vector<40x9xf32> to vector<40x1xf32>
    %787 = vector.broadcast %786 : vector<40x1xf32> to vector<40x64xf32>
    %788 = arith.mulf %787, %785 : vector<40x64xf32>
    %789 = arith.addf %779, %788 : vector<40x64xf32>
    %cst_273 = arith.constant 0.000000e+00 : f32
    %790 = vector.broadcast %cst_273 : f32 to vector<40x8xf32>
    %791 = vector.extract_strided_slice %775 {offsets = [0, 0], sizes = [40, 56], strides = [1, 1]} : vector<40x64xf32> to vector<40x56xf32>
    %792 = tpu.concatenate %790, %791 in 1 : vector<40x8xf32>, vector<40x56xf32> -> vector<40x64xf32>
    %793 = vector.extract_strided_slice %776 {offsets = [0, 1], sizes = [40, 1], strides = [1, 1]} : vector<40x9xf32> to vector<40x1xf32>
    %794 = vector.broadcast %793 : vector<40x1xf32> to vector<40x64xf32>
    %795 = arith.mulf %794, %792 : vector<40x64xf32>
    %796 = arith.addf %789, %795 : vector<40x64xf32>
    %cst_274 = arith.constant 0.000000e+00 : f32
    %797 = vector.broadcast %cst_274 : f32 to vector<40x7xf32>
    %798 = vector.extract_strided_slice %775 {offsets = [0, 0], sizes = [40, 57], strides = [1, 1]} : vector<40x64xf32> to vector<40x57xf32>
    %799 = tpu.concatenate %797, %798 in 1 : vector<40x7xf32>, vector<40x57xf32> -> vector<40x64xf32>
    %c2_275 = arith.constant 2 : index
    %c0_276 = arith.constant 0 : index
    %800 = vector.load %arg6[%c2_275, %c0_276] : memref<9x64xf32, #tpu.memory_space<vmem>>, vector<1x64xf32>
    %801 = vector.broadcast %800 : vector<1x64xf32> to vector<40x64xf32>
    %802 = arith.mulf %799, %801 : vector<40x64xf32>
    %803 = vector.extract_strided_slice %776 {offsets = [0, 2], sizes = [40, 1], strides = [1, 1]} : vector<40x9xf32> to vector<40x1xf32>
    %804 = vector.broadcast %803 : vector<40x1xf32> to vector<40x64xf32>
    %805 = arith.mulf %804, %802 : vector<40x64xf32>
    %806 = arith.addf %796, %805 : vector<40x64xf32>
    %cst_277 = arith.constant 0.000000e+00 : f32
    %807 = vector.broadcast %cst_277 : f32 to vector<40x1xf32>
    %808 = vector.extract_strided_slice %775 {offsets = [0, 0], sizes = [40, 63], strides = [1, 1]} : vector<40x64xf32> to vector<40x63xf32>
    %809 = tpu.concatenate %807, %808 in 1 : vector<40x1xf32>, vector<40x63xf32> -> vector<40x64xf32>
    %c3_278 = arith.constant 3 : index
    %c0_279 = arith.constant 0 : index
    %810 = vector.load %arg6[%c3_278, %c0_279] : memref<9x64xf32, #tpu.memory_space<vmem>>, vector<1x64xf32>
    %811 = vector.broadcast %810 : vector<1x64xf32> to vector<40x64xf32>
    %812 = arith.mulf %809, %811 : vector<40x64xf32>
    %813 = vector.extract_strided_slice %776 {offsets = [0, 3], sizes = [40, 1], strides = [1, 1]} : vector<40x9xf32> to vector<40x1xf32>
    %814 = vector.broadcast %813 : vector<40x1xf32> to vector<40x64xf32>
    %815 = arith.mulf %814, %812 : vector<40x64xf32>
    %816 = arith.addf %806, %815 : vector<40x64xf32>
    %817 = vector.extract_strided_slice %775 {offsets = [0, 1], sizes = [40, 63], strides = [1, 1]} : vector<40x64xf32> to vector<40x63xf32>
    %cst_280 = arith.constant 0.000000e+00 : f32
    %818 = vector.broadcast %cst_280 : f32 to vector<40x1xf32>
    %819 = tpu.concatenate %817, %818 in 1 : vector<40x63xf32>, vector<40x1xf32> -> vector<40x64xf32>
    %c5_281 = arith.constant 5 : index
    %c0_282 = arith.constant 0 : index
    %820 = vector.load %arg6[%c5_281, %c0_282] : memref<9x64xf32, #tpu.memory_space<vmem>>, vector<1x64xf32>
    %821 = vector.broadcast %820 : vector<1x64xf32> to vector<40x64xf32>
    %822 = arith.mulf %819, %821 : vector<40x64xf32>
    %823 = vector.extract_strided_slice %776 {offsets = [0, 5], sizes = [40, 1], strides = [1, 1]} : vector<40x9xf32> to vector<40x1xf32>
    %824 = vector.broadcast %823 : vector<40x1xf32> to vector<40x64xf32>
    %825 = arith.mulf %824, %822 : vector<40x64xf32>
    %826 = arith.addf %816, %825 : vector<40x64xf32>
    %827 = vector.extract_strided_slice %775 {offsets = [0, 7], sizes = [40, 57], strides = [1, 1]} : vector<40x64xf32> to vector<40x57xf32>
    %cst_283 = arith.constant 0.000000e+00 : f32
    %828 = vector.broadcast %cst_283 : f32 to vector<40x7xf32>
    %829 = tpu.concatenate %827, %828 in 1 : vector<40x57xf32>, vector<40x7xf32> -> vector<40x64xf32>
    %c6_284 = arith.constant 6 : index
    %c0_285 = arith.constant 0 : index
    %830 = vector.load %arg6[%c6_284, %c0_285] : memref<9x64xf32, #tpu.memory_space<vmem>>, vector<1x64xf32>
    %831 = vector.broadcast %830 : vector<1x64xf32> to vector<40x64xf32>
    %832 = arith.mulf %829, %831 : vector<40x64xf32>
    %833 = vector.extract_strided_slice %776 {offsets = [0, 6], sizes = [40, 1], strides = [1, 1]} : vector<40x9xf32> to vector<40x1xf32>
    %834 = vector.broadcast %833 : vector<40x1xf32> to vector<40x64xf32>
    %835 = arith.mulf %834, %832 : vector<40x64xf32>
    %836 = arith.addf %826, %835 : vector<40x64xf32>
    %837 = vector.extract_strided_slice %775 {offsets = [0, 8], sizes = [40, 56], strides = [1, 1]} : vector<40x64xf32> to vector<40x56xf32>
    %cst_286 = arith.constant 0.000000e+00 : f32
    %838 = vector.broadcast %cst_286 : f32 to vector<40x8xf32>
    %839 = tpu.concatenate %837, %838 in 1 : vector<40x56xf32>, vector<40x8xf32> -> vector<40x64xf32>
    %840 = vector.extract_strided_slice %776 {offsets = [0, 7], sizes = [40, 1], strides = [1, 1]} : vector<40x9xf32> to vector<40x1xf32>
    %841 = vector.broadcast %840 : vector<40x1xf32> to vector<40x64xf32>
    %842 = arith.mulf %841, %839 : vector<40x64xf32>
    %843 = arith.addf %836, %842 : vector<40x64xf32>
    %844 = vector.extract_strided_slice %775 {offsets = [0, 9], sizes = [40, 55], strides = [1, 1]} : vector<40x64xf32> to vector<40x55xf32>
    %cst_287 = arith.constant 0.000000e+00 : f32
    %845 = vector.broadcast %cst_287 : f32 to vector<40x9xf32>
    %846 = tpu.concatenate %844, %845 in 1 : vector<40x55xf32>, vector<40x9xf32> -> vector<40x64xf32>
    %c8_288 = arith.constant 8 : index
    %c0_289 = arith.constant 0 : index
    %847 = vector.load %arg6[%c8_288, %c0_289] : memref<9x64xf32, #tpu.memory_space<vmem>>, vector<1x64xf32>
    %848 = vector.broadcast %847 : vector<1x64xf32> to vector<40x64xf32>
    %849 = arith.mulf %846, %848 : vector<40x64xf32>
    %850 = vector.extract_strided_slice %776 {offsets = [0, 8], sizes = [40, 1], strides = [1, 1]} : vector<40x9xf32> to vector<40x1xf32>
    %851 = vector.broadcast %850 : vector<40x1xf32> to vector<40x64xf32>
    %852 = arith.mulf %851, %849 : vector<40x64xf32>
    %853 = arith.addf %843, %852 : vector<40x64xf32>
    %c454 = arith.constant 454 : index
    %c0_290 = arith.constant 0 : index
    %854 = vector.load %arg3[%c454, %c0_290] : memref<616x1xf32, #tpu.memory_space<vmem>>, vector<40x1xf32>
    %855 = vector.broadcast %854 : vector<40x1xf32> to vector<40x64xf32>
    %856 = arith.addf %853, %855 : vector<40x64xf32>
    %cst_291 = arith.constant 1.000000e-01 : f32
    %857 = vector.broadcast %cst_291 : f32 to vector<40x64xf32>
    %858 = arith.mulf %857, %856 : vector<40x64xf32>
    %859 = arith.maximumf %856, %858 : vector<40x64xf32>
    %c352 = arith.constant 352 : index
    %c0_292 = arith.constant 0 : index
    %860 = vector.load %arg1[%c352, %c0_292] : memref<402x40xf32, #tpu.memory_space<vmem>>, vector<32x40xf32>
    %cst_293 = arith.constant dense<0.000000e+00> : vector<32x64xf32>
    %861 = tpu.matmul %860, %859, %cst_293 {dimension_numbers = #tpu.dot_dimension_numbers<[1], [0], [0], [1], [0, 0, 1, 1], [], []>} : vector<32x40xf32>, vector<40x64xf32>, vector<32x64xf32> -> vector<32x64xf32>
    %c494 = arith.constant 494 : index
    %c0_294 = arith.constant 0 : index
    %862 = vector.load %arg3[%c494, %c0_294] : memref<616x1xf32, #tpu.memory_space<vmem>>, vector<32x1xf32>
    %863 = vector.broadcast %862 : vector<32x1xf32> to vector<32x64xf32>
    %864 = arith.addf %861, %863 : vector<32x64xf32>
    %cst_295 = arith.constant 1.000000e-01 : f32
    %865 = vector.broadcast %cst_295 : f32 to vector<32x64xf32>
    %866 = arith.mulf %865, %864 : vector<32x64xf32>
    %867 = arith.maximumf %864, %866 : vector<32x64xf32>
    %c384 = arith.constant 384 : index
    %c0_296 = arith.constant 0 : index
    %868 = vector.load %arg1[%c384, %c0_296] : memref<402x40xf32, #tpu.memory_space<vmem>>, vector<18x32xf32>
    %cst_297 = arith.constant dense<0.000000e+00> : vector<18x64xf32>
    %869 = tpu.matmul %868, %867, %cst_297 {dimension_numbers = #tpu.dot_dimension_numbers<[1], [0], [0], [1], [0, 0, 1, 1], [], []>} : vector<18x32xf32>, vector<32x64xf32>, vector<18x64xf32> -> vector<18x64xf32>
    %c526 = arith.constant 526 : index
    %c0_298 = arith.constant 0 : index
    %870 = vector.load %arg3[%c526, %c0_298] : memref<616x1xf32, #tpu.memory_space<vmem>>, vector<18x1xf32>
    %871 = vector.broadcast %870 : vector<18x1xf32> to vector<18x64xf32>
    %872 = arith.addf %869, %871 : vector<18x64xf32>
    %cst_299 = arith.constant 0.000000e+00 : f32
    %873 = vector.broadcast %cst_299 : f32 to vector<18x64xf32>
    %874 = arith.subf %873, %872 : vector<18x64xf32>
    %875 = math.exp %874 : vector<18x64xf32>
    %cst_300 = arith.constant 1.000000e+00 : f32
    %876 = vector.broadcast %cst_300 : f32 to vector<18x64xf32>
    %877 = arith.addf %876, %875 : vector<18x64xf32>
    %cst_301 = arith.constant 1.000000e+00 : f32
    %878 = vector.broadcast %cst_301 : f32 to vector<18x64xf32>
    %879 = arith.divf %878, %877 : vector<18x64xf32>
    %c580 = arith.constant 580 : index
    %c0_302 = arith.constant 0 : index
    %880 = vector.load %arg3[%c580, %c0_302] : memref<616x1xf32, #tpu.memory_space<vmem>>, vector<18x1xf32>
    %cst_303 = arith.constant 0.000000e+00 : f32
    %881 = vector.broadcast %cst_303 : f32 to vector<18x1xf32>
    %882 = arith.cmpf ogt, %880, %881 : vector<18x1xf32>
    %cst_304 = arith.constant 0.000000e+00 : f32
    %883 = vector.shape_cast %882 : vector<18x1xi1> to vector<18x1xi1>
    %884 = vector.broadcast %883 : vector<18x1xi1> to vector<18x64xi1>
    %885 = vector.broadcast %cst_304 : f32 to vector<18x64xf32>
    %886 = arith.select %884, %872, %885 : vector<18x64xi1>, vector<18x64xf32>
    %887 = math.exp %886 : vector<18x64xf32>
    %c562 = arith.constant 562 : index
    %c0_305 = arith.constant 0 : index
    %888 = vector.load %arg3[%c562, %c0_305] : memref<616x1xf32, #tpu.memory_space<vmem>>, vector<18x1xf32>
    %c0_306 = arith.constant 0 : index
    %c0_307 = arith.constant 0 : index
    %889 = vector.load %arg11[%c0_306, %c0_307] : memref<18x64xf32, #tpu.memory_space<vmem>>, vector<18x64xf32>
    %890 = arith.addf %879, %889 : vector<18x64xf32>
    %891 = vector.broadcast %888 : vector<18x1xf32> to vector<18x64xf32>
    %892 = arith.mulf %891, %890 : vector<18x64xf32>
    %cst_308 = arith.constant 8.000000e+00 : f32
    %893 = vector.broadcast %cst_308 : f32 to vector<18x64xf32>
    %894 = arith.mulf %892, %893 : vector<18x64xf32>
    %895 = vector.broadcast %880 : vector<18x1xf32> to vector<18x64xf32>
    %896 = arith.mulf %895, %887 : vector<18x64xf32>
    %c544 = arith.constant 544 : index
    %c0_309 = arith.constant 0 : index
    %897 = vector.load %arg3[%c544, %c0_309] : memref<616x1xf32, #tpu.memory_space<vmem>>, vector<18x1xf32>
    %898 = vector.broadcast %897 : vector<18x1xf32> to vector<18x64xf32>
    %899 = arith.mulf %896, %898 : vector<18x64xf32>
    %900 = arith.addf %894, %899 : vector<18x64xf32>
    %c598 = arith.constant 598 : index
    %c0_310 = arith.constant 0 : index
    %901 = vector.load %arg3[%c598, %c0_310] : memref<616x1xf32, #tpu.memory_space<vmem>>, vector<18x1xf32>
    %902 = vector.broadcast %901 : vector<18x1xf32> to vector<18x64xf32>
    %903 = arith.mulf %902, %879 : vector<18x64xf32>
    %904 = arith.addf %900, %903 : vector<18x64xf32>
    %c0_311 = arith.constant 0 : index
    %c0_312 = arith.constant 0 : index
    %905 = vector.load %arg12[%c0_311, %c0_312] : memref<18x64xf32, #tpu.memory_space<vmem>>, vector<18x64xf32>
    tpu.vector_store %arg12[%c0_311, %c0_312], %904 {strides = array<i32>} : memref<18x64xf32, #tpu.memory_space<vmem>>, vector<18x64xf32>,
    return
  }
}

</mosaic_0001>

<llo_original>
// kernel: yoloface_forward.1
$region0: #{yoloface_forward.1}
  #allocation0 [shape = 'u32[]', space=smem, size = 0x4, offset = 0x4, fixed_abs, tag = 'smem constant byte address 0x4 - core index']
  #allocation1 [shape = 'u32[144,128]{1,0:T(1,128)}', space=vmem, size = 0x12000, scoped, tag = 'internal scratch']
  %s0 = inlined_call_operand.vmem [shape: f32[27,1024], index: 0, kind: input, shape index: {}]
  %s1 = inlined_call_operand.vmem [shape: f32[402,40], index: 1, kind: input, shape index: {}]
  %s2 = inlined_call_operand.vmem [shape: f32[206,9], index: 2, kind: input, shape index: {}]
  %s3 = inlined_call_operand.vmem [shape: f32[616,1], index: 3, kind: input, shape index: {}]
  %s4 = inlined_call_operand.vmem [shape: f32[9,1024], index: 4, kind: input, shape index: {}]
  %s5 = inlined_call_operand.vmem [shape: f32[9,256], index: 5, kind: input, shape index: {}]
  %s6 = inlined_call_operand.vmem [shape: f32[9,64], index: 6, kind: input, shape index: {}]
  %s7 = inlined_call_operand.vmem [shape: f32[16,1024], index: 7, kind: input, shape index: {}]
  %s8 = inlined_call_operand.vmem [shape: f32[8,256], index: 8, kind: input, shape index: {}]
  %s9 = inlined_call_operand.vmem [shape: f32[1024,256], index: 9, kind: input, shape index: {}]
  %s10 = inlined_call_operand.vmem [shape: f32[256,64], index: 10, kind: input, shape index: {}]
  %s11 = inlined_call_operand.vmem [shape: f32[18,64], index: 11, kind: input, shape index: {}]
  %s12 = inlined_call_operand.vmem [shape: f32[18,64], index: 12, kind: output, shape index: {}]
  %s13 = sld [smem:[#allocation0]]
  $region58: #{yoloface_forward.1} parent=0
    _
  %s15 = ssub.s32 1, %s13
  %s16 = scalar_select 0, %s15, %s13
  // Predicated region
  $region2: #{yoloface_forward.1} parent=0 // pred_check
    _
  $region3: #{yoloface_forward.1} parent=0 // pred_check_branch
    %18 = sbr.rel (0) target = $region5
  $region4: #{yoloface_forward.1} parent=0 // pred_region
    _
  $region5: #{yoloface_forward.1} parent=0 // pred_fallthru
    _
  // Predicated region
  $region6: #{yoloface_forward.1} parent=0 // pred_check
    _
  $region7: #{yoloface_forward.1} parent=0 // pred_check_branch
    %20 = sbr.rel (0) target = $region9
  $region8: #{yoloface_forward.1} parent=0 // pred_region
    _
  $region9: #{yoloface_forward.1} parent=0 // pred_fallthru
    _
  // Predicated region
  $region10: #{yoloface_forward.1} parent=0 // pred_check
    _
  $region11: #{yoloface_forward.1} parent=0 // pred_check_branch
    %22 = sbr.rel (0) target = $region13
  $region12: #{yoloface_forward.1} parent=0 // pred_region
    _
  $region13: #{yoloface_forward.1} parent=0 // pred_fallthru
    _
  // Predicated region
  $region14: #{yoloface_forward.1} parent=0 // pred_check
    _
  $region15: #{yoloface_forward.1} parent=0 // pred_check_branch
    %24 = sbr.rel (0) target = $region17
  $region16: #{yoloface_forward.1} parent=0 // pred_region
    _
  $region17: #{yoloface_forward.1} parent=0 // pred_fallthru
    _
  // Predicated region
  $region18: #{yoloface_forward.1} parent=0 // pred_check
    _
  $region19: #{yoloface_forward.1} parent=0 // pred_check_branch
    %26 = sbr.rel (0) target = $region21
  $region20: #{yoloface_forward.1} parent=0 // pred_region
    _
  $region21: #{yoloface_forward.1} parent=0 // pred_fallthru
    _
  // Predicated region
  $region22: #{yoloface_forward.1} parent=0 // pred_check
    _
  $region23: #{yoloface_forward.1} parent=0 // pred_check_branch
    %28 = sbr.rel (0) target = $region25
  $region24: #{yoloface_forward.1} parent=0 // pred_region
    _
  $region25: #{yoloface_forward.1} parent=0 // pred_fallthru
    _
  // Predicated region
  $region26: #{yoloface_forward.1} parent=0 // pred_check
    _
  $region27: #{yoloface_forward.1} parent=0 // pred_check_branch
    %30 = sbr.rel (0) target = $region29
  $region28: #{yoloface_forward.1} parent=0 // pred_region
    _
  $region29: #{yoloface_forward.1} parent=0 // pred_fallthru
    _
  // Predicated region
  $region30: #{yoloface_forward.1} parent=0 // pred_check
    _
  $region31: #{yoloface_forward.1} parent=0 // pred_check_branch
    %32 = sbr.rel (0) target = $region33
  $region32: #{yoloface_forward.1} parent=0 // pred_region
    _
  $region33: #{yoloface_forward.1} parent=0 // pred_fallthru
    _
  // Predicated region
  $region34: #{yoloface_forward.1} parent=0 // pred_check
    _
  $region35: #{yoloface_forward.1} parent=0 // pred_check_branch
    %34 = sbr.rel (0) target = $region37
  $region36: #{yoloface_forward.1} parent=0 // pred_region
    _
  $region37: #{yoloface_forward.1} parent=0 // pred_fallthru
    _
  // Predicated region
  $region38: #{yoloface_forward.1} parent=0 // pred_check
    _
  $region39: #{yoloface_forward.1} parent=0 // pred_check_branch
    %36 = sbr.rel (0) target = $region41
  $region40: #{yoloface_forward.1} parent=0 // pred_region
    _
  $region41: #{yoloface_forward.1} parent=0 // pred_fallthru
    _
  // Predicated region
  $region42: #{yoloface_forward.1} parent=0 // pred_check
    _
  $region43: #{yoloface_forward.1} parent=0 // pred_check_branch
    %38 = sbr.rel (0) target = $region45
  $region44: #{yoloface_forward.1} parent=0 // pred_region
    _
  $region45: #{yoloface_forward.1} parent=0 // pred_fallthru
    _
  // Predicated region
  $region46: #{yoloface_forward.1} parent=0 // pred_check
    _
  $region47: #{yoloface_forward.1} parent=0 // pred_check_branch
    %40 = sbr.rel (0) target = $region49
  $region48: #{yoloface_forward.1} parent=0 // pred_region
    _
  $region49: #{yoloface_forward.1} parent=0 // pred_fallthru
    _
  %v41 = vld [vmem:[%s0] sm:$0xff]
  %v42 = vld [vmem:[%s0 + $0x8] sm:$0xff]
  %v43 = vld [vmem:[%s0 + $0x10] sm:$0xff]
  %v44 = vld [vmem:[%s0 + $0x18] sm:$0xff]
  %v45 = vld [vmem:[%s0 + $0x20] sm:$0xff]
  %v46 = vld [vmem:[%s0 + $0x28] sm:$0xff]
  %v47 = vld [vmem:[%s0 + $0x30] sm:$0xff]
  %v48 = vld [vmem:[%s0 + $0x38] sm:$0xff]
  %v49 = vld [vmem:[%s0 + $0x40] sm:$0xff]
  %v50 = vld [vmem:[%s0 + $0x48] sm:$0xff]
  %v51 = vld [vmem:[%s0 + $0x50] sm:$0xff]
  %v52 = vld [vmem:[%s0 + $0x58] sm:$0xff]
  %v53 = vld [vmem:[%s0 + $0x60] sm:$0xff]
  %v54 = vld [vmem:[%s0 + $0x68] sm:$0xff]
  %v55 = vld [vmem:[%s0 + $0x70] sm:$0xff]
  %v56 = vld [vmem:[%s0 + $0x78] sm:$0xff]
  %v57 = vld [vmem:[%s0 + $0x80] sm:$0xff]
  %v58 = vld [vmem:[%s0 + $0x88] sm:$0xff]
  %v59 = vld [vmem:[%s0 + $0x90] sm:$0xff]
  %v60 = vld [vmem:[%s0 + $0x98] sm:$0xff]
  %v61 = vld [vmem:[%s0 + $0xa0] sm:$0xff]
  %v62 = vld [vmem:[%s0 + $0xa8] sm:$0xff]
  %v63 = vld [vmem:[%s0 + $0xb0] sm:$0xff]
  %v64 = vld [vmem:[%s0 + $0xb8] sm:$0xff]
  %v65 = vld [vmem:[%s0 + $0xc0] sm:$0x7]
  %v66 = vld [vmem:[%s0 + $0xc8] sm:$0x7]
  %v67 = vld [vmem:[%s0 + $0xd0] sm:$0x7]
  %v68 = vld [vmem:[%s0 + $0xd8] sm:$0x7]
  %v69 = vld [vmem:[%s0 + $0xe0] sm:$0x7]
  %v70 = vld [vmem:[%s0 + $0xe8] sm:$0x7]
  %v71 = vld [vmem:[%s0 + $0xf0] sm:$0x7]
  %v72 = vld [vmem:[%s0 + $0xf8] sm:$0x7]
  %v73 = vld [vmem:[%s1] sm:$0xff]
  %v74 = vld [vmem:[%s3] sm:$0xff]
  %76 = vset.pattern.permute.xlu0 0
  %77 = vperm.xlu0 %76, %v74
  %v78 = vpop.permute.xlu0 %77
  %vm80 = vcmask 220160
  %v82 = vsel %vm80, %v73, 0
  %vm84 = vcmask 1042432
  %v86 = vsel %vm84, %v65, 0
  %v89 = vsel %vm84, %v66, 0
  %v92 = vsel %vm84, %v67, 0
  %v95 = vsel %vm84, %v68, 0
  %v98 = vsel %vm84, %v69, 0
  %v101 = vsel %vm84, %v70, 0
  %v104 = vsel %vm84, %v71, 0
  %v107 = vsel %vm84, %v72, 0
  %109 = vmatprep.subr.mxu0 %v42
  %110 = vmatpush1.msra.mxu0 %v41
  %111 = vmatprep.subr.mxu0 %v50
  %112 = vmatpush1.msra.mxu0 %v49
  %113 = vmatprep.subr.mxu0 %v58
  %114 = vmatpush1.msra.mxu0 %v57
  %115 = vmatprep.subr.mxu0 %v89
  %116 = vmatpush1.msra.mxu0 %v86
  %117 = vmatprep.subr.mxu0 0.0
  %118 = vmatpush1.msra.mxu0 0.0
  %119 = vmatprep.subr.mxu0 0.0
  %120 = vmatpush1.msra.mxu0 0.0
  %121 = vmatprep.subr.mxu0 0.0
  %122 = vmatpush1.msra.mxu0 0.0
  %123 = vmatprep.subr.mxu0 0.0
  %124 = vmatpush1.msra.mxu0 0.0
  %125 = vmatprep.subr.mxu0 0.0
  %126 = vmatpush1.msra.mxu0 0.0
  %127 = vmatprep.subr.mxu0 0.0
  %128 = vmatpush1.msra.mxu0 0.0
  %129 = vmatprep.subr.mxu0 0.0
  %130 = vmatpush1.msra.mxu0 0.0
  %131 = vmatprep.subr.mxu0 0.0
  %132 = vmatpush1.msra.mxu0 0.0
  %133 = vmatprep.subr.mxu0 0.0
  %134 = vmatpush1.msra.mxu0 0.0
  %135 = vmatprep.subr.mxu0 0.0
  %136 = vmatpush1.msra.mxu0 0.0
  %137 = vmatprep.subr.mxu0 0.0
  %138 = vmatpush1.msra.mxu0 0.0
  %139 = vmatprep.subr.mxu0 0.0
  %140 = vmatpush1.msra.mxu0 0.0
  %141 = vmatprep.subr.mxu0 0.0
  %142 = vmatpush1.msra.mxu0 0.0
  %143 = vmatprep.subr.mxu0 0.0
  %144 = vmatpush1.msra.mxu0 0.0
  %145 = vmatprep.subr.mxu0 0.0
  %146 = vmatpush1.msra.mxu0 0.0
  %147 = vmatprep.subr.mxu0 0.0
  %148 = vmatpush1.msra.mxu0 0.0
  %149 = vmatprep.subr.mxu0 0.0
  %150 = vmatpush1.msra.mxu0 0.0
  %151 = vmatprep.subr.mxu0 0.0
  %152 = vmatpush1.msra.mxu0 0.0
  %153 = vmatprep.subr.mxu0 0.0
  %154 = vmatpush1.msra.mxu0 0.0
  %155 = vmatprep.subr.mxu0 0.0
  %156 = vmatpush1.msra.mxu0 0.0
  %157 = vmatprep.subr.mxu0 0.0
  %158 = vmatpush1.msra.mxu0 0.0
  %159 = vmatprep.subr.mxu0 0.0
  %160 = vmatpush1.msra.mxu0 0.0
  %161 = vmatprep.subr.mxu0 0.0
  %162 = vmatpush1.msra.mxu0 0.0
  %163 = vmatprep.subr.mxu0 0.0
  %164 = vmatpush1.msra.mxu0 0.0
  %165 = vmatprep.subr.mxu0 0.0
  %166 = vmatpush1.msra.mxu0 0.0
  %167 = vmatprep.subr.mxu0 0.0
  %168 = vmatpush1.msra.mxu0 0.0
  %169 = vmatprep.subr.mxu0 0.0
  %170 = vmatpush1.msra.mxu0 0.0
  %171 = vmatprep.subr.mxu0 0.0
  %172 = vmatpush1.msra.mxu0 0.0
  %173 = vmatprep.mubr.f32.mxu0 0.0
  %174 = vmatmul.mubr.f32.gmra.mrb[0].mxu0 %v82
  %v175 = vpop.f32.mrb[0].mxu0
  %v176 = vadd.f32 %v78, %v175
  %v177 = vpop.f32.mrb[0].mxu0
  %v178 = vadd.f32 %v78, %v177
  %179 = vdwg.mxu0
  %180 = vmatprep.subr.mxu0 %v44
  %181 = vmatpush1.msra.mxu0 %v43
  %182 = vmatprep.subr.mxu0 %v52
  %183 = vmatpush1.msra.mxu0 %v51
  %184 = vmatprep.subr.mxu0 %v60
  %185 = vmatpush1.msra.mxu0 %v59
  %186 = vmatprep.subr.mxu0 %v95
  %187 = vmatpush1.msra.mxu0 %v92
  %188 = vmatprep.subr.mxu0 0.0
  %189 = vmatpush1.msra.mxu0 0.0
  %190 = vmatprep.subr.mxu0 0.0
  %191 = vmatpush1.msra.mxu0 0.0
  %192 = vmatprep.subr.mxu0 0.0
  %193 = vmatpush1.msra.mxu0 0.0
  %194 = vmatprep.subr.mxu0 0.0
  %195 = vmatpush1.msra.mxu0 0.0
  %196 = vmatprep.subr.mxu0 0.0
  %197 = vmatpush1.msra.mxu0 0.0
  %198 = vmatprep.subr.mxu0 0.0
  %199 = vmatpush1.msra.mxu0 0.0
  %200 = vmatprep.subr.mxu0 0.0
  %201 = vmatpush1.msra.mxu0 0.0
  %202 = vmatprep.subr.mxu0 0.0
  %203 = vmatpush1.msra.mxu0 0.0
  %204 = vmatprep.subr.mxu0 0.0
  %205 = vmatpush1.msra.mxu0 0.0
  %206 = vmatprep.subr.mxu0 0.0
  %207 = vmatpush1.msra.mxu0 0.0
  %208 = vmatprep.subr.mxu0 0.0
  %209 = vmatpush1.msra.mxu0 0.0
  %210 = vmatprep.subr.mxu0 0.0
  %211 = vmatpush1.msra.mxu0 0.0
  %212 = vmatprep.subr.mxu0 0.0
  %213 = vmatpush1.msra.mxu0 0.0
  %214 = vmatprep.subr.mxu0 0.0
  %215 = vmatpush1.msra.mxu0 0.0
  %216 = vmatprep.subr.mxu0 0.0
  %217 = vmatpush1.msra.mxu0 0.0
  %218 = vmatprep.subr.mxu0 0.0
  %219 = vmatpush1.msra.mxu0 0.0
  %220 = vmatprep.subr.mxu0 0.0
  %221 = vmatpush1.msra.mxu0 0.0
  %222 = vmatprep.subr.mxu0 0.0
  %223 = vmatpush1.msra.mxu0 0.0
  %224 = vmatprep.subr.mxu0 0.0
  %225 = vmatpush1.msra.mxu0 0.0
  %226 = vmatprep.subr.mxu0 0.0
  %227 = vmatpush1.msra.mxu0 0.0
  %228 = vmatprep.subr.mxu0 0.0
  %229 = vmatpush1.msra.mxu0 0.0
  %230 = vmatprep.subr.mxu0 0.0
  %231 = vmatpush1.msra.mxu0 0.0
  %232 = vmatprep.subr.mxu0 0.0
  %233 = vmatpush1.msra.mxu0 0.0
  %234 = vmatprep.subr.mxu0 0.0
  %235 = vmatpush1.msra.mxu0 0.0
  %236 = vmatprep.subr.mxu0 0.0
  %237 = vmatpush1.msra.mxu0 0.0
  %238 = vmatprep.subr.mxu0 0.0
  %239 = vmatpush1.msra.mxu0 0.0
  %240 = vmatprep.subr.mxu0 0.0
  %241 = vmatpush1.msra.mxu0 0.0
  %242 = vmatprep.subr.mxu0 0.0
  %243 = vmatpush1.msra.mxu0 0.0
  %244 = vmatprep.mubr.f32.mxu0 0.0
  %245 = vmatmul.mubr.f32.gmra.mrb[0].mxu0 %v82
  %v246 = vpop.f32.mrb[0].mxu0
  %v247 = vadd.f32 %v78, %v246
  %v248 = vpop.f32.mrb[0].mxu0
  %v249 = vadd.f32 %v78, %v248
  %250 = vdwg.mxu0
  %251 = vmatprep.subr.mxu0 %v46
  %252 = vmatpush1.msra.mxu0 %v45
  %253 = vmatprep.subr.mxu0 %v54
  %254 = vmatpush1.msra.mxu0 %v53
  %255 = vmatprep.subr.mxu0 %v62
  %256 = vmatpush1.msra.mxu0 %v61
  %257 = vmatprep.subr.mxu0 %v101
  %258 = vmatpush1.msra.mxu0 %v98
  %259 = vmatprep.subr.mxu0 0.0
  %260 = vmatpush1.msra.mxu0 0.0
  %261 = vmatprep.subr.mxu0 0.0
  %262 = vmatpush1.msra.mxu0 0.0
  %263 = vmatprep.subr.mxu0 0.0
  %264 = vmatpush1.msra.mxu0 0.0
  %265 = vmatprep.subr.mxu0 0.0
  %266 = vmatpush1.msra.mxu0 0.0
  %267 = vmatprep.subr.mxu0 0.0
  %268 = vmatpush1.msra.mxu0 0.0
  %269 = vmatprep.subr.mxu0 0.0
  %270 = vmatpush1.msra.mxu0 0.0
  %271 = vmatprep.subr.mxu0 0.0
  %272 = vmatpush1.msra.mxu0 0.0
  %273 = vmatprep.subr.mxu0 0.0
  %274 = vmatpush1.msra.mxu0 0.0
  %275 = vmatprep.subr.mxu0 0.0
  %276 = vmatpush1.msra.mxu0 0.0
  %277 = vmatprep.subr.mxu0 0.0
  %278 = vmatpush1.msra.mxu0 0.0
  %279 = vmatprep.subr.mxu0 0.0
  %280 = vmatpush1.msra.mxu0 0.0
  %281 = vmatprep.subr.mxu0 0.0
  %282 = vmatpush1.msra.mxu0 0.0
  %283 = vmatprep.subr.mxu0 0.0
  %284 = vmatpush1.msra.mxu0 0.0
  %285 = vmatprep.subr.mxu0 0.0
  %286 = vmatpush1.msra.mxu0 0.0
  %287 = vmatprep.subr.mxu0 0.0
  %288 = vmatpush1.msra.mxu0 0.0
  %289 = vmatprep.subr.mxu0 0.0
  %290 = vmatpush1.msra.mxu0 0.0
  %291 = vmatprep.subr.mxu0 0.0
  %292 = vmatpush1.msra.mxu0 0.0
  %293 = vmatprep.subr.mxu0 0.0
  %294 = vmatpush1.msra.mxu0 0.0
  %295 = vmatprep.subr.mxu0 0.0
  %296 = vmatpush1.msra.mxu0 0.0
  %297 = vmatprep.subr.mxu0 0.0
  %298 = vmatpush1.msra.mxu0 0.0
  %299 = vmatprep.subr.mxu0 0.0
  %300 = vmatpush1.msra.mxu0 0.0
  %301 = vmatprep.subr.mxu0 0.0
  %302 = vmatpush1.msra.mxu0 0.0
  %303 = vmatprep.subr.mxu0 0.0
  %304 = vmatpush1.msra.mxu0 0.0
  %305 = vmatprep.subr.mxu0 0.0
  %306 = vmatpush1.msra.mxu0 0.0
  %307 = vmatprep.subr.mxu0 0.0
  %308 = vmatpush1.msra.mxu0 0.0
  %309 = vmatprep.subr.mxu0 0.0
  %310 = vmatpush1.msra.mxu0 0.0
  %311 = vmatprep.subr.mxu0 0.0
  %312 = vmatpush1.msra.mxu0 0.0
  %313 = vmatprep.subr.mxu0 0.0
  %314 = vmatpush1.msra.mxu0 0.0
  %315 = vmatprep.mubr.f32.mxu0 0.0
  %316 = vmatmul.mubr.f32.gmra.mrb[0].mxu0 %v82
  %v317 = vpop.f32.mrb[0].mxu0
  %v318 = vadd.f32 %v78, %v317
  %v319 = vpop.f32.mrb[0].mxu0
  %v320 = vadd.f32 %v78, %v319
  %321 = vdwg.mxu0
  %322 = vmatprep.subr.mxu0 %v48
  %323 = vmatpush1.msra.mxu0 %v47
  %324 = vmatprep.subr.mxu0 %v56
  %325 = vmatpush1.msra.mxu0 %v55
  %326 = vmatprep.subr.mxu0 %v64
  %327 = vmatpush1.msra.mxu0 %v63
  %328 = vmatprep.subr.mxu0 %v107
  %329 = vmatpush1.msra.mxu0 %v104
  %330 = vmatprep.subr.mxu0 0.0
  %331 = vmatpush1.msra.mxu0 0.0
  %332 = vmatprep.subr.mxu0 0.0
  %333 = vmatpush1.msra.mxu0 0.0
  %334 = vmatprep.subr.mxu0 0.0
  %335 = vmatpush1.msra.mxu0 0.0
  %336 = vmatprep.subr.mxu0 0.0
  %337 = vmatpush1.msra.mxu0 0.0
  %338 = vmatprep.subr.mxu0 0.0
  %339 = vmatpush1.msra.mxu0 0.0
  %340 = vmatprep.subr.mxu0 0.0
  %341 = vmatpush1.msra.mxu0 0.0
  %342 = vmatprep.subr.mxu0 0.0
  %343 = vmatpush1.msra.mxu0 0.0
  %344 = vmatprep.subr.mxu0 0.0
  %345 = vmatpush1.msra.mxu0 0.0
  %346 = vmatprep.subr.mxu0 0.0
  %347 = vmatpush1.msra.mxu0 0.0
  %348 = vmatprep.subr.mxu0 0.0
  %349 = vmatpush1.msra.mxu0 0.0
  %350 = vmatprep.subr.mxu0 0.0
  %351 = vmatpush1.msra.mxu0 0.0
  %352 = vmatprep.subr.mxu0 0.0
  %353 = vmatpush1.msra.mxu0 0.0
  %354 = vmatprep.subr.mxu0 0.0
  %355 = vmatpush1.msra.mxu0 0.0
  %356 = vmatprep.subr.mxu0 0.0
  %357 = vmatpush1.msra.mxu0 0.0
  %358 = vmatprep.subr.mxu0 0.0
  %359 = vmatpush1.msra.mxu0 0.0
  %360 = vmatprep.subr.mxu0 0.0
  %361 = vmatpush1.msra.mxu0 0.0
  %362 = vmatprep.subr.mxu0 0.0
  %363 = vmatpush1.msra.mxu0 0.0
  %364 = vmatprep.subr.mxu0 0.0
  %365 = vmatpush1.msra.mxu0 0.0
  %366 = vmatprep.subr.mxu0 0.0
  %367 = vmatpush1.msra.mxu0 0.0
  %368 = vmatprep.subr.mxu0 0.0
  %369 = vmatpush1.msra.mxu0 0.0
  %370 = vmatprep.subr.mxu0 0.0
  %371 = vmatpush1.msra.mxu0 0.0
  %372 = vmatprep.subr.mxu0 0.0
  %373 = vmatpush1.msra.mxu0 0.0
  %374 = vmatprep.subr.mxu0 0.0
  %375 = vmatpush1.msra.mxu0 0.0
  %376 = vmatprep.subr.mxu0 0.0
  %377 = vmatpush1.msra.mxu0 0.0
  %378 = vmatprep.subr.mxu0 0.0
  %379 = vmatpush1.msra.mxu0 0.0
  %380 = vmatprep.subr.mxu0 0.0
  %381 = vmatpush1.msra.mxu0 0.0
  %382 = vmatprep.subr.mxu0 0.0
  %383 = vmatpush1.msra.mxu0 0.0
  %384 = vmatprep.subr.mxu0 0.0
  %385 = vmatpush1.msra.mxu0 0.0
  %386 = vmatprep.mubr.f32.mxu0 0.0
  %387 = vmatmul.mubr.f32.gmra.mrb[0].mxu0 %v82
  %v388 = vpop.f32.mrb[0].mxu0
  %v389 = vadd.f32 %v78, %v388
  %v390 = vpop.f32.mrb[0].mxu0
  %v391 = vadd.f32 %v78, %v390
  %392 = vdwg.mxu0
  %v393 = vmul.f32 %v176, 0.1
  %v394 = vmul.f32 %v178, 0.1
  %v395 = vmul.f32 %v247, 0.1
  %v396 = vmul.f32 %v249, 0.1
  %v397 = vmul.f32 %v318, 0.1
  %v398 = vmul.f32 %v320, 0.1
  %v399 = vmul.f32 %v389, 0.1
  %v400 = vmul.f32 %v391, 0.1
  %v401 = vmax.f32 %v176, %v393
  %v402 = vmax.f32 %v178, %v394
  %v403 = vmax.f32 %v247, %v395
  %v404 = vmax.f32 %v249, %v396
  %v405 = vmax.f32 %v318, %v397
  %v406 = vmax.f32 %v320, %v398
  %v407 = vmax.f32 %v389, %v399
  %v408 = vmax.f32 %v391, %v400
  %v409 = vld [vmem:[%s2] sm:$0xff]
  %411 = vset.pattern.permute.xlu0 4
  %412 = vperm.xlu0 %411, %v409
  %v413 = vpop.permute.xlu0 %412
  %v415 = vmul.f32 %v413, %v401
  %v416 = vmul.f32 %v413, %v402
  %v417 = vmul.f32 %v413, %v403
  %v418 = vmul.f32 %v413, %v404
  %v419 = vmul.f32 %v413, %v405
  %v420 = vmul.f32 %v413, %v406
  %v421 = vmul.f32 %v413, %v407
  %v422 = vmul.f32 %v413, %v408
  %431 = vrot.lane.b32.xlu0 %v401, 33
  %v432 = vpop.permute.xlu0 %431
  %433 = vrot.lane.b32.xlu0 %v402, 33
  %v434 = vpop.permute.xlu0 %433
  %435 = vrot.lane.b32.xlu0 %v403, 33
  %v436 = vpop.permute.xlu0 %435
  %437 = vrot.lane.b32.xlu0 %v404, 33
  %v438 = vpop.permute.xlu0 %437
  %439 = vrot.lane.b32.xlu0 %v405, 33
  %v440 = vpop.permute.xlu0 %439
  %441 = vrot.lane.b32.xlu0 %v406, 33
  %v442 = vpop.permute.xlu0 %441
  %443 = vrot.lane.b32.xlu0 %v407, 33
  %v444 = vpop.permute.xlu0 %443
  %445 = vrot.lane.b32.xlu0 %v408, 33
  %v446 = vpop.permute.xlu0 %445
  %vm447 = vcmask 269312
  %v448 = vsel %vm447, %v432, %v434
  %v449 = vsel %vm447, %v434, %v436
  %v450 = vsel %vm447, %v436, %v438
  %v451 = vsel %vm447, %v438, %v440
  %v452 = vsel %vm447, %v440, %v442
  %v453 = vsel %vm447, %v442, %v444
  %v454 = vsel %vm447, %v444, %v446
  %v463 = vsel %vm447, 0.0, %v432
  %v464 = vld [vmem:[%s4] ss:$8 sm:$0xf]
  %v465 = vld [vmem:[%s4] ss:$8 sm:$0xf0]
  %v466 = vor.u32 %v464, %v465
  %v468 = vlaneseq
  %v469 = vshrl.u32 %v468, 7
  %v470 = vsub.s32 0, %v469
  %v471 = vrot.slane %v466, %v470
  %v472 = vlaneseq
  %v473 = vshrl.u32 %v472, 7
  %v474 = vsub.s32 1, %v473
  %v475 = vrot.slane %v466, %v474
  %v476 = vlaneseq
  %v477 = vshrl.u32 %v476, 7
  %v478 = vsub.s32 2, %v477
  %v479 = vrot.slane %v466, %v478
  %v480 = vlaneseq
  %v481 = vshrl.u32 %v480, 7
  %v482 = vsub.s32 3, %v481
  %v483 = vrot.slane %v466, %v482
  %v484 = vlaneseq
  %v485 = vshrl.u32 %v484, 7
  %v486 = vsub.s32 4, %v485
  %v487 = vrot.slane %v466, %v486
  %v488 = vlaneseq
  %v489 = vshrl.u32 %v488, 7
  %v490 = vsub.s32 5, %v489
  %v491 = vrot.slane %v466, %v490
  %v492 = vlaneseq
  %v493 = vshrl.u32 %v492, 7
  %v494 = vsub.s32 6, %v493
  %v495 = vrot.slane %v466, %v494
  %v496 = vlaneseq
  %v497 = vshrl.u32 %v496, 7
  %v498 = vsub.s32 7, %v497
  %v499 = vrot.slane %v466, %v498
  %v508 = vmul.f32 %v463, %v471
  %v509 = vmul.f32 %v448, %v475
  %v510 = vmul.f32 %v449, %v479
  %v511 = vmul.f32 %v450, %v483
  %v512 = vmul.f32 %v451, %v487
  %v513 = vmul.f32 %v452, %v491
  %v514 = vmul.f32 %v453, %v495
  %v515 = vmul.f32 %v454, %v499
  %516 = vset.pattern.permute.xlu0 0
  %517 = vperm.xlu0 %516, %v409
  %v518 = vpop.permute.xlu0 %517
  %v520 = vmul.f32 %v518, %v508
  %v521 = vmul.f32 %v518, %v509
  %v522 = vmul.f32 %v518, %v510
  %v523 = vmul.f32 %v518, %v511
  %v524 = vmul.f32 %v518, %v512
  %v525 = vmul.f32 %v518, %v513
  %v526 = vmul.f32 %v518, %v514
  %v527 = vmul.f32 %v518, %v515
  %v528 = vadd.f32 %v415, %v520
  %v529 = vadd.f32 %v416, %v521
  %v530 = vadd.f32 %v417, %v522
  %v531 = vadd.f32 %v418, %v523
  %v532 = vadd.f32 %v419, %v524
  %v533 = vadd.f32 %v420, %v525
  %v534 = vadd.f32 %v421, %v526
  %v535 = vadd.f32 %v422, %v527
  %536 = vrot.lane.b32.xlu0 %v401, 32
  %v537 = vpop.permute.xlu0 %536
  %538 = vrot.lane.b32.xlu0 %v402, 32
  %v539 = vpop.permute.xlu0 %538
  %540 = vrot.lane.b32.xlu0 %v403, 32
  %v541 = vpop.permute.xlu0 %540
  %542 = vrot.lane.b32.xlu0 %v404, 32
  %v543 = vpop.permute.xlu0 %542
  %544 = vrot.lane.b32.xlu0 %v405, 32
  %v545 = vpop.permute.xlu0 %544
  %546 = vrot.lane.b32.xlu0 %v406, 32
  %v547 = vpop.permute.xlu0 %546
  %548 = vrot.lane.b32.xlu0 %v407, 32
  %v549 = vpop.permute.xlu0 %548
  %550 = vrot.lane.b32.xlu0 %v408, 32
  %v551 = vpop.permute.xlu0 %550
  %vm552 = vcmask 261120
  %v553 = vsel %vm552, %v537, %v539
  %v554 = vsel %vm552, %v539, %v541
  %v555 = vsel %vm552, %v541, %v543
  %v556 = vsel %vm552, %v543, %v545
  %v557 = vsel %vm552, %v545, %v547
  %v558 = vsel %vm552, %v547, %v549
  %v559 = vsel %vm552, %v549, %v551
  %v568 = vsel %vm552, 0.0, %v537
  %569 = vset.pattern.permute.xlu0 1
  %570 = vperm.xlu0 %569, %v409
  %v571 = vpop.permute.xlu0 %570
  %v573 = vmul.f32 %v571, %v568
  %v574 = vmul.f32 %v571, %v553
  %v575 = vmul.f32 %v571, %v554
  %v576 = vmul.f32 %v571, %v555
  %v577 = vmul.f32 %v571, %v556
  %v578 = vmul.f32 %v571, %v557
  %v579 = vmul.f32 %v571, %v558
  %v580 = vmul.f32 %v571, %v559
  %v581 = vadd.f32 %v528, %v573
  %v582 = vadd.f32 %v529, %v574
  %v583 = vadd.f32 %v530, %v575
  %v584 = vadd.f32 %v531, %v576
  %v585 = vadd.f32 %v532, %v577
  %v586 = vadd.f32 %v533, %v578
  %v587 = vadd.f32 %v534, %v579
  %v588 = vadd.f32 %v535, %v580
  %589 = vrot.lane.b32.xlu0 %v401, 31
  %v590 = vpop.permute.xlu0 %589
  %591 = vrot.lane.b32.xlu0 %v402, 31
  %v592 = vpop.permute.xlu0 %591
  %593 = vrot.lane.b32.xlu0 %v403, 31
  %v594 = vpop.permute.xlu0 %593
  %595 = vrot.lane.b32.xlu0 %v404, 31
  %v596 = vpop.permute.xlu0 %595
  %597 = vrot.lane.b32.xlu0 %v405, 31
  %v598 = vpop.permute.xlu0 %597
  %599 = vrot.lane.b32.xlu0 %v406, 31
  %v600 = vpop.permute.xlu0 %599
  %601 = vrot.lane.b32.xlu0 %v407, 31
  %v602 = vpop.permute.xlu0 %601
  %603 = vrot.lane.b32.xlu0 %v408, 31
  %v604 = vpop.permute.xlu0 %603
  %vm605 = vcmask 252928
  %v606 = vsel %vm605, %v590, %v592
  %v607 = vsel %vm605, %v592, %v594
  %v608 = vsel %vm605, %v594, %v596
  %v609 = vsel %vm605, %v596, %v598
  %v610 = vsel %vm605, %v598, %v600
  %v611 = vsel %vm605, %v600, %v602
  %v612 = vsel %vm605, %v602, %v604
  %v621 = vsel %vm605, 0.0, %v590
  %s622 = scalar_lea.vmem %s4, 2
  %v623 = vld [vmem:[%s622] ss:$8 sm:$0xf]
  %v624 = vld [vmem:[%s622] ss:$8 sm:$0xf0]
  %v625 = vor.u32 %v623, %v624
  %v627 = vlaneseq
  %v628 = vshrl.u32 %v627, 7
  %v629 = vsub.s32 0, %v628
  %v630 = vrot.slane %v625, %v629
  %v631 = vlaneseq
  %v632 = vshrl.u32 %v631, 7
  %v633 = vsub.s32 1, %v632
  %v634 = vrot.slane %v625, %v633
  %v635 = vlaneseq
  %v636 = vshrl.u32 %v635, 7
  %v637 = vsub.s32 2, %v636
  %v638 = vrot.slane %v625, %v637
  %v639 = vlaneseq
  %v640 = vshrl.u32 %v639, 7
  %v641 = vsub.s32 3, %v640
  %v642 = vrot.slane %v625, %v641
  %v643 = vlaneseq
  %v644 = vshrl.u32 %v643, 7
  %v645 = vsub.s32 4, %v644
  %v646 = vrot.slane %v625, %v645
  %v647 = vlaneseq
  %v648 = vshrl.u32 %v647, 7
  %v649 = vsub.s32 5, %v648
  %v650 = vrot.slane %v625, %v649
  %v651 = vlaneseq
  %v652 = vshrl.u32 %v651, 7
  %v653 = vsub.s32 6, %v652
  %v654 = vrot.slane %v625, %v653
  %v655 = vlaneseq
  %v656 = vshrl.u32 %v655, 7
  %v657 = vsub.s32 7, %v656
  %v658 = vrot.slane %v625, %v657
  %v667 = vmul.f32 %v621, %v630
  %v668 = vmul.f32 %v606, %v634
  %v669 = vmul.f32 %v607, %v638
  %v670 = vmul.f32 %v608, %v642
  %v671 = vmul.f32 %v609, %v646
  %v672 = vmul.f32 %v610, %v650
  %v673 = vmul.f32 %v611, %v654
  %v674 = vmul.f32 %v612, %v658
  %675 = vset.pattern.permute.xlu0 2
  %676 = vperm.xlu0 %675, %v409
  %v677 = vpop.permute.xlu0 %676
  %v679 = vmul.f32 %v677, %v667
  %v680 = vmul.f32 %v677, %v668
  %v681 = vmul.f32 %v677, %v669
  %v682 = vmul.f32 %v677, %v670
  %v683 = vmul.f32 %v677, %v671
  %v684 = vmul.f32 %v677, %v672
  %v685 = vmul.f32 %v677, %v673
  %v686 = vmul.f32 %v677, %v674
  %v687 = vadd.f32 %v581, %v679
  %v688 = vadd.f32 %v582, %v680
  %v689 = vadd.f32 %v583, %v681
  %v690 = vadd.f32 %v584, %v682
  %v691 = vadd.f32 %v585, %v683
  %v692 = vadd.f32 %v586, %v684
  %v693 = vadd.f32 %v587, %v685
  %v694 = vadd.f32 %v588, %v686
  %695 = vrot.lane.b32.xlu0 %v401, 1
  %v696 = vpop.permute.xlu0 %695
  %697 = vrot.lane.b32.xlu0 %v402, 1
  %v698 = vpop.permute.xlu0 %697
  %699 = vrot.lane.b32.xlu0 %v403, 1
  %v700 = vpop.permute.xlu0 %699
  %701 = vrot.lane.b32.xlu0 %v404, 1
  %v702 = vpop.permute.xlu0 %701
  %703 = vrot.lane.b32.xlu0 %v405, 1
  %v704 = vpop.permute.xlu0 %703
  %705 = vrot.lane.b32.xlu0 %v406, 1
  %v706 = vpop.permute.xlu0 %705
  %707 = vrot.lane.b32.xlu0 %v407, 1
  %v708 = vpop.permute.xlu0 %707
  %709 = vrot.lane.b32.xlu0 %v408, 1
  %v710 = vpop.permute.xlu0 %709
  %vm711 = vcmask 7168
  %v712 = vsel %vm711, %v696, %v698
  %v713 = vsel %vm711, %v698, %v700
  %v714 = vsel %vm711, %v700, %v702
  %v715 = vsel %vm711, %v702, %v704
  %v716 = vsel %vm711, %v704, %v706
  %v717 = vsel %vm711, %v706, %v708
  %v718 = vsel %vm711, %v708, %v710
  %v727 = vsel %vm711, 0.0, %v696
  %s728 = scalar_lea.vmem %s4, 3
  %v729 = vld [vmem:[%s728] ss:$8 sm:$0xf]
  %v730 = vld [vmem:[%s728] ss:$8 sm:$0xf0]
  %v731 = vor.u32 %v729, %v730
  %v733 = vlaneseq
  %v734 = vshrl.u32 %v733, 7
  %v735 = vsub.s32 0, %v734
  %v736 = vrot.slane %v731, %v735
  %v737 = vlaneseq
  %v738 = vshrl.u32 %v737, 7
  %v739 = vsub.s32 1, %v738
  %v740 = vrot.slane %v731, %v739
  %v741 = vlaneseq
  %v742 = vshrl.u32 %v741, 7
  %v743 = vsub.s32 2, %v742
  %v744 = vrot.slane %v731, %v743
  %v745 = vlaneseq
  %v746 = vshrl.u32 %v745, 7
  %v747 = vsub.s32 3, %v746
  %v748 = vrot.slane %v731, %v747
  %v749 = vlaneseq
  %v750 = vshrl.u32 %v749, 7
  %v751 = vsub.s32 4, %v750
  %v752 = vrot.slane %v731, %v751
  %v753 = vlaneseq
  %v754 = vshrl.u32 %v753, 7
  %v755 = vsub.s32 5, %v754
  %v756 = vrot.slane %v731, %v755
  %v757 = vlaneseq
  %v758 = vshrl.u32 %v757, 7
  %v759 = vsub.s32 6, %v758
  %v760 = vrot.slane %v731, %v759
  %v761 = vlaneseq
  %v762 = vshrl.u32 %v761, 7
  %v763 = vsub.s32 7, %v762
  %v764 = vrot.slane %v731, %v763
  %v773 = vmul.f32 %v727, %v736
  %v774 = vmul.f32 %v712, %v740
  %v775 = vmul.f32 %v713, %v744
  %v776 = vmul.f32 %v714, %v748
  %v777 = vmul.f32 %v715, %v752
  %v778 = vmul.f32 %v716, %v756
  %v779 = vmul.f32 %v717, %v760
  %v780 = vmul.f32 %v718, %v764
  %781 = vset.pattern.permute.xlu0 3
  %782 = vperm.xlu0 %781, %v409
  %v783 = vpop.permute.xlu0 %782
  %v785 = vmul.f32 %v783, %v773
  %v786 = vmul.f32 %v783, %v774
  %v787 = vmul.f32 %v783, %v775
  %v788 = vmul.f32 %v783, %v776
  %v789 = vmul.f32 %v783, %v777
  %v790 = vmul.f32 %v783, %v778
  %v791 = vmul.f32 %v783, %v779
  %v792 = vmul.f32 %v783, %v780
  %v793 = vadd.f32 %v687, %v785
  %v794 = vadd.f32 %v688, %v786
  %v795 = vadd.f32 %v689, %v787
  %v796 = vadd.f32 %v690, %v788
  %v797 = vadd.f32 %v691, %v789
  %v798 = vadd.f32 %v692, %v790
  %v799 = vadd.f32 %v693, %v791
  %v800 = vadd.f32 %v694, %v792
  %801 = vrot.lane.b32.xlu0 %v401, 127
  %v802 = vpop.permute.xlu0 %801
  %803 = vrot.lane.b32.xlu0 %v402, 127
  %v804 = vpop.permute.xlu0 %803
  %805 = vrot.lane.b32.xlu0 %v403, 127
  %v806 = vpop.permute.xlu0 %805
  %807 = vrot.lane.b32.xlu0 %v404, 127
  %v808 = vpop.permute.xlu0 %807
  %809 = vrot.lane.b32.xlu0 %v405, 127
  %v810 = vpop.permute.xlu0 %809
  %811 = vrot.lane.b32.xlu0 %v406, 127
  %v812 = vpop.permute.xlu0 %811
  %813 = vrot.lane.b32.xlu0 %v407, 127
  %v814 = vpop.permute.xlu0 %813
  %815 = vrot.lane.b32.xlu0 %v408, 127
  %v816 = vpop.permute.xlu0 %815
  %vm817 = vcmask 1039360
  %v818 = vsel %vm817, %v802, %v804
  %v819 = vsel %vm817, %v804, %v806
  %v820 = vsel %vm817, %v806, %v808
  %v821 = vsel %vm817, %v808, %v810
  %v822 = vsel %vm817, %v810, %v812
  %v823 = vsel %vm817, %v812, %v814
  %v824 = vsel %vm817, %v814, %v816
  %v833 = vsel %vm817, %v816, 0.0
  %s834 = scalar_lea.vmem %s4, 5
  %v835 = vld [vmem:[%s834] ss:$8 sm:$0xf]
  %v836 = vld [vmem:[%s834] ss:$8 sm:$0xf0]
  %v837 = vor.u32 %v835, %v836
  %v839 = vlaneseq
  %v840 = vshrl.u32 %v839, 7
  %v841 = vsub.s32 0, %v840
  %v842 = vrot.slane %v837, %v841
  %v843 = vlaneseq
  %v844 = vshrl.u32 %v843, 7
  %v845 = vsub.s32 1, %v844
  %v846 = vrot.slane %v837, %v845
  %v847 = vlaneseq
  %v848 = vshrl.u32 %v847, 7
  %v849 = vsub.s32 2, %v848
  %v850 = vrot.slane %v837, %v849
  %v851 = vlaneseq
  %v852 = vshrl.u32 %v851, 7
  %v853 = vsub.s32 3, %v852
  %v854 = vrot.slane %v837, %v853
  %v855 = vlaneseq
  %v856 = vshrl.u32 %v855, 7
  %v857 = vsub.s32 4, %v856
  %v858 = vrot.slane %v837, %v857
  %v859 = vlaneseq
  %v860 = vshrl.u32 %v859, 7
  %v861 = vsub.s32 5, %v860
  %v862 = vrot.slane %v837, %v861
  %v863 = vlaneseq
  %v864 = vshrl.u32 %v863, 7
  %v865 = vsub.s32 6, %v864
  %v866 = vrot.slane %v837, %v865
  %v867 = vlaneseq
  %v868 = vshrl.u32 %v867, 7
  %v869 = vsub.s32 7, %v868
  %v870 = vrot.slane %v837, %v869
  %v879 = vmul.f32 %v818, %v842
  %v880 = vmul.f32 %v819, %v846
  %v881 = vmul.f32 %v820, %v850
  %v882 = vmul.f32 %v821, %v854
  %v883 = vmul.f32 %v822, %v858
  %v884 = vmul.f32 %v823, %v862
  %v885 = vmul.f32 %v824, %v866
  %v886 = vmul.f32 %v833, %v870
  %887 = vset.pattern.permute.xlu0 5
  %888 = vperm.xlu0 %887, %v409
  %v889 = vpop.permute.xlu0 %888
  %v891 = vmul.f32 %v889, %v879
  %v892 = vmul.f32 %v889, %v880
  %v893 = vmul.f32 %v889, %v881
  %v894 = vmul.f32 %v889, %v882
  %v895 = vmul.f32 %v889, %v883
  %v896 = vmul.f32 %v889, %v884
  %v897 = vmul.f32 %v889, %v885
  %v898 = vmul.f32 %v889, %v886
  %v899 = vadd.f32 %v793, %v891
  %v900 = vadd.f32 %v794, %v892
  %v901 = vadd.f32 %v795, %v893
  %v902 = vadd.f32 %v796, %v894
  %v903 = vadd.f32 %v797, %v895
  %v904 = vadd.f32 %v798, %v896
  %v905 = vadd.f32 %v799, %v897
  %v906 = vadd.f32 %v800, %v898
  %907 = vrot.lane.b32.xlu0 %v401, 97
  %v908 = vpop.permute.xlu0 %907
  %909 = vrot.lane.b32.xlu0 %v402, 97
  %v910 = vpop.permute.xlu0 %909
  %911 = vrot.lane.b32.xlu0 %v403, 97
  %v912 = vpop.permute.xlu0 %911
  %913 = vrot.lane.b32.xlu0 %v404, 97
  %v914 = vpop.permute.xlu0 %913
  %915 = vrot.lane.b32.xlu0 %v405, 97
  %v916 = vpop.permute.xlu0 %915
  %917 = vrot.lane.b32.xlu0 %v406, 97
  %v918 = vpop.permute.xlu0 %917
  %919 = vrot.lane.b32.xlu0 %v407, 97
  %v920 = vpop.permute.xlu0 %919
  %921 = vrot.lane.b32.xlu0 %v408, 97
  %v922 = vpop.permute.xlu0 %921
  %vm923 = vcmask 793600
  %v924 = vsel %vm923, %v908, %v910
  %v925 = vsel %vm923, %v910, %v912
  %v926 = vsel %vm923, %v912, %v914
  %v927 = vsel %vm923, %v914, %v916
  %v928 = vsel %vm923, %v916, %v918
  %v929 = vsel %vm923, %v918, %v920
  %v930 = vsel %vm923, %v920, %v922
  %v939 = vsel %vm923, %v922, 0.0
  %s940 = scalar_lea.vmem %s4, 6
  %v941 = vld [vmem:[%s940] ss:$8 sm:$0xf]
  %v942 = vld [vmem:[%s940] ss:$8 sm:$0xf0]
  %v943 = vor.u32 %v941, %v942
  %v945 = vlaneseq
  %v946 = vshrl.u32 %v945, 7
  %v947 = vsub.s32 0, %v946
  %v948 = vrot.slane %v943, %v947
  %v949 = vlaneseq
  %v950 = vshrl.u32 %v949, 7
  %v951 = vsub.s32 1, %v950
  %v952 = vrot.slane %v943, %v951
  %v953 = vlaneseq
  %v954 = vshrl.u32 %v953, 7
  %v955 = vsub.s32 2, %v954
  %v956 = vrot.slane %v943, %v955
  %v957 = vlaneseq
  %v958 = vshrl.u32 %v957, 7
  %v959 = vsub.s32 3, %v958
  %v960 = vrot.slane %v943, %v959
  %v961 = vlaneseq
  %v962 = vshrl.u32 %v961, 7
  %v963 = vsub.s32 4, %v962
  %v964 = vrot.slane %v943, %v963
  %v965 = vlaneseq
  %v966 = vshrl.u32 %v965, 7
  %v967 = vsub.s32 5, %v966
  %v968 = vrot.slane %v943, %v967
  %v969 = vlaneseq
  %v970 = vshrl.u32 %v969, 7
  %v971 = vsub.s32 6, %v970
  %v972 = vrot.slane %v943, %v971
  %v973 = vlaneseq
  %v974 = vshrl.u32 %v973, 7
  %v975 = vsub.s32 7, %v974
  %v976 = vrot.slane %v943, %v975
  %v985 = vmul.f32 %v924, %v948
  %v986 = vmul.f32 %v925, %v952
  %v987 = vmul.f32 %v926, %v956
  %v988 = vmul.f32 %v927, %v960
  %v989 = vmul.f32 %v928, %v964
  %v990 = vmul.f32 %v929, %v968
  %v991 = vmul.f32 %v930, %v972
  %v992 = vmul.f32 %v939, %v976
  %993 = vset.pattern.permute.xlu0 6
  %994 = vperm.xlu0 %993, %v409
  %v995 = vpop.permute.xlu0 %994
  %v997 = vmul.f32 %v995, %v985
  %v998 = vmul.f32 %v995, %v986
  %v999 = vmul.f32 %v995, %v987
  %v1000 = vmul.f32 %v995, %v988
  %v1001 = vmul.f32 %v995, %v989
  %v1002 = vmul.f32 %v995, %v990
  %v1003 = vmul.f32 %v995, %v991
  %v1004 = vmul.f32 %v995, %v992
  %v1005 = vadd.f32 %v899, %v997
  %v1006 = vadd.f32 %v900, %v998
  %v1007 = vadd.f32 %v901, %v999
  %v1008 = vadd.f32 %v902, %v1000
  %v1009 = vadd.f32 %v903, %v1001
  %v1010 = vadd.f32 %v904, %v1002
  %v1011 = vadd.f32 %v905, %v1003
  %v1012 = vadd.f32 %v906, %v1004
  %1013 = vrot.lane.b32.xlu0 %v401, 96
  %v1014 = vpop.permute.xlu0 %1013
  %1015 = vrot.lane.b32.xlu0 %v402, 96
  %v1016 = vpop.permute.xlu0 %1015
  %1017 = vrot.lane.b32.xlu0 %v403, 96
  %v1018 = vpop.permute.xlu0 %1017
  %1019 = vrot.lane.b32.xlu0 %v404, 96
  %v1020 = vpop.permute.xlu0 %1019
  %1021 = vrot.lane.b32.xlu0 %v405, 96
  %v1022 = vpop.permute.xlu0 %1021
  %1023 = vrot.lane.b32.xlu0 %v406, 96
  %v1024 = vpop.permute.xlu0 %1023
  %1025 = vrot.lane.b32.xlu0 %v407, 96
  %v1026 = vpop.permute.xlu0 %1025
  %1027 = vrot.lane.b32.xlu0 %v408, 96
  %v1028 = vpop.permute.xlu0 %1027
  %vm1029 = vcmask 785408
  %v1030 = vsel %vm1029, %v1014, %v1016
  %v1031 = vsel %vm1029, %v1016, %v1018
  %v1032 = vsel %vm1029, %v1018, %v1020
  %v1033 = vsel %vm1029, %v1020, %v1022
  %v1034 = vsel %vm1029, %v1022, %v1024
  %v1035 = vsel %vm1029, %v1024, %v1026
  %v1036 = vsel %vm1029, %v1026, %v1028
  %v1045 = vsel %vm1029, %v1028, 0.0
  %1046 = vset.pattern.permute.xlu0 7
  %1047 = vperm.xlu0 %1046, %v409
  %v1048 = vpop.permute.xlu0 %1047
  %v1050 = vmul.f32 %v1048, %v1030
  %v1051 = vmul.f32 %v1048, %v1031
  %v1052 = vmul.f32 %v1048, %v1032
  %v1053 = vmul.f32 %v1048, %v1033
  %v1054 = vmul.f32 %v1048, %v1034
  %v1055 = vmul.f32 %v1048, %v1035
  %v1056 = vmul.f32 %v1048, %v1036
  %v1057 = vmul.f32 %v1048, %v1045
  %v1058 = vadd.f32 %v1005, %v1050
  %v1059 = vadd.f32 %v1006, %v1051
  %v1060 = vadd.f32 %v1007, %v1052
  %v1061 = vadd.f32 %v1008, %v1053
  %v1062 = vadd.f32 %v1009, %v1054
  %v1063 = vadd.f32 %v1010, %v1055
  %v1064 = vadd.f32 %v1011, %v1056
  %v1065 = vadd.f32 %v1012, %v1057
  %1066 = vrot.lane.b32.xlu0 %v401, 95
  %v1067 = vpop.permute.xlu0 %1066
  %1068 = vrot.lane.b32.xlu0 %v402, 95
  %v1069 = vpop.permute.xlu0 %1068
  %1070 = vrot.lane.b32.xlu0 %v403, 95
  %v1071 = vpop.permute.xlu0 %1070
  %1072 = vrot.lane.b32.xlu0 %v404, 95
  %v1073 = vpop.permute.xlu0 %1072
  %1074 = vrot.lane.b32.xlu0 %v405, 95
  %v1075 = vpop.permute.xlu0 %1074
  %1076 = vrot.lane.b32.xlu0 %v406, 95
  %v1077 = vpop.permute.xlu0 %1076
  %1078 = vrot.lane.b32.xlu0 %v407, 95
  %v1079 = vpop.permute.xlu0 %1078
  %1080 = vrot.lane.b32.xlu0 %v408, 95
  %v1081 = vpop.permute.xlu0 %1080
  %vm1082 = vcmask 777216
  %v1083 = vsel %vm1082, %v1067, %v1069
  %v1084 = vsel %vm1082, %v1069, %v1071
  %v1085 = vsel %vm1082, %v1071, %v1073
  %v1086 = vsel %vm1082, %v1073, %v1075
  %v1087 = vsel %vm1082, %v1075, %v1077
  %v1088 = vsel %vm1082, %v1077, %v1079
  %v1089 = vsel %vm1082, %v1079, %v1081
  %v1098 = vsel %vm1082, %v1081, 0.0
  %s1099 = scalar_lea.vmem %s4, 64
  %v1100 = vld [vmem:[%s1099] ss:$8 sm:$0xf]
  %v1101 = vld [vmem:[%s1099] ss:$8 sm:$0xf0]
  %v1102 = vor.u32 %v1100, %v1101
  %v1104 = vlaneseq
  %v1105 = vshrl.u32 %v1104, 7
  %v1106 = vsub.s32 0, %v1105
  %v1107 = vrot.slane %v1102, %v1106
  %v1108 = vlaneseq
  %v1109 = vshrl.u32 %v1108, 7
  %v1110 = vsub.s32 1, %v1109
  %v1111 = vrot.slane %v1102, %v1110
  %v1112 = vlaneseq
  %v1113 = vshrl.u32 %v1112, 7
  %v1114 = vsub.s32 2, %v1113
  %v1115 = vrot.slane %v1102, %v1114
  %v1116 = vlaneseq
  %v1117 = vshrl.u32 %v1116, 7
  %v1118 = vsub.s32 3, %v1117
  %v1119 = vrot.slane %v1102, %v1118
  %v1120 = vlaneseq
  %v1121 = vshrl.u32 %v1120, 7
  %v1122 = vsub.s32 4, %v1121
  %v1123 = vrot.slane %v1102, %v1122
  %v1124 = vlaneseq
  %v1125 = vshrl.u32 %v1124, 7
  %v1126 = vsub.s32 5, %v1125
  %v1127 = vrot.slane %v1102, %v1126
  %v1128 = vlaneseq
  %v1129 = vshrl.u32 %v1128, 7
  %v1130 = vsub.s32 6, %v1129
  %v1131 = vrot.slane %v1102, %v1130
  %v1132 = vlaneseq
  %v1133 = vshrl.u32 %v1132, 7
  %v1134 = vsub.s32 7, %v1133
  %v1135 = vrot.slane %v1102, %v1134
  %v1144 = vmul.f32 %v1083, %v1107
  %v1145 = vmul.f32 %v1084, %v1111
  %v1146 = vmul.f32 %v1085, %v1115
  %v1147 = vmul.f32 %v1086, %v1119
  %v1148 = vmul.f32 %v1087, %v1123
  %v1149 = vmul.f32 %v1088, %v1127
  %v1150 = vmul.f32 %v1089, %v1131
  %v1151 = vmul.f32 %v1098, %v1135
  %1152 = vset.pattern.permute.xlu0 8
  %1153 = vperm.xlu0 %1152, %v409
  %v1154 = vpop.permute.xlu0 %1153
  %v1156 = vmul.f32 %v1154, %v1144
  %v1157 = vmul.f32 %v1154, %v1145
  %v1158 = vmul.f32 %v1154, %v1146
  %v1159 = vmul.f32 %v1154, %v1147
  %v1160 = vmul.f32 %v1154, %v1148
  %v1161 = vmul.f32 %v1154, %v1149
  %v1162 = vmul.f32 %v1154, %v1150
  %v1163 = vmul.f32 %v1154, %v1151
  %v1164 = vadd.f32 %v1058, %v1156
  %v1165 = vadd.f32 %v1059, %v1157
  %v1166 = vadd.f32 %v1060, %v1158
  %v1167 = vadd.f32 %v1061, %v1159
  %v1168 = vadd.f32 %v1062, %v1160
  %v1169 = vadd.f32 %v1063, %v1161
  %v1170 = vadd.f32 %v1064, %v1162
  %v1171 = vadd.f32 %v1065, %v1163
  %v1172 = vld [vmem:[%s3 + $0x8] sm:$0xff]
  %1174 = vset.pattern.permute.xlu0 0
  %1175 = vperm.xlu0 %1174, %v1172
  %v1176 = vpop.permute.xlu0 %1175
  %v1178 = vadd.f32 %v1164, %v1176
  %v1179 = vadd.f32 %v1165, %v1176
  %v1180 = vadd.f32 %v1166, %v1176
  %v1181 = vadd.f32 %v1167, %v1176
  %v1182 = vadd.f32 %v1168, %v1176
  %v1183 = vadd.f32 %v1169, %v1176
  %v1184 = vadd.f32 %v1170, %v1176
  %v1185 = vadd.f32 %v1171, %v1176
  %v1186 = vmul.f32 %v1178, 0.1
  %v1187 = vmul.f32 %v1179, 0.1
  %v1188 = vmul.f32 %v1180, 0.1
  %v1189 = vmul.f32 %v1181, 0.1
  %v1190 = vmul.f32 %v1182, 0.1
  %v1191 = vmul.f32 %v1183, 0.1
  %v1192 = vmul.f32 %v1184, 0.1
  %v1193 = vmul.f32 %v1185, 0.1
  %v1194 = vmax.f32 %v1178, %v1186
  %v1195 = vmax.f32 %v1179, %v1187
  %v1196 = vmax.f32 %v1180, %v1188
  %v1197 = vmax.f32 %v1181, %v1189
  %v1198 = vmax.f32 %v1182, %v1190
  %v1199 = vmax.f32 %v1183, %v1191
  %v1200 = vmax.f32 %v1184, %v1192
  %v1201 = vmax.f32 %v1185, %v1193
  %v1202 = vld [vmem:[%s1 + $0x8] sm:$0xf]
  %v1203 = vld [vmem:[%s3 + $0x10] sm:$0xf]
  %1205 = vset.pattern.permute.xlu0 0
  %1206 = vperm.xlu0 %1205, %v1203
  %v1207 = vpop.permute.xlu0 %1206
  %vm1209 = vcmask 64512
  %v1211 = vsel %vm1209, %v1202, 0
  %1213 = vmatprep.subr.mxu0 %v1195
  %1214 = vmatpush1.msra.mxu0 %v1194
  %1215 = vmatprep.subr.mxu0 0.0
  %1216 = vmatpush1.msra.mxu0 0.0
  %1217 = vmatprep.subr.mxu0 0.0
  %1218 = vmatpush1.msra.mxu0 0.0
  %1219 = vmatprep.subr.mxu0 0.0
  %1220 = vmatpush1.msra.mxu0 0.0
  %1221 = vmatprep.subr.mxu0 0.0
  %1222 = vmatpush1.msra.mxu0 0.0
  %1223 = vmatprep.subr.mxu0 0.0
  %1224 = vmatpush1.msra.mxu0 0.0
  %1225 = vmatprep.subr.mxu0 0.0
  %1226 = vmatpush1.msra.mxu0 0.0
  %1227 = vmatprep.subr.mxu0 0.0
  %1228 = vmatpush1.msra.mxu0 0.0
  %1229 = vmatprep.subr.mxu0 0.0
  %1230 = vmatpush1.msra.mxu0 0.0
  %1231 = vmatprep.subr.mxu0 0.0
  %1232 = vmatpush1.msra.mxu0 0.0
  %1233 = vmatprep.subr.mxu0 0.0
  %1234 = vmatpush1.msra.mxu0 0.0
  %1235 = vmatprep.subr.mxu0 0.0
  %1236 = vmatpush1.msra.mxu0 0.0
  %1237 = vmatprep.subr.mxu0 0.0
  %1238 = vmatpush1.msra.mxu0 0.0
  %1239 = vmatprep.subr.mxu0 0.0
  %1240 = vmatpush1.msra.mxu0 0.0
  %1241 = vmatprep.subr.mxu0 0.0
  %1242 = vmatpush1.msra.mxu0 0.0
  %1243 = vmatprep.subr.mxu0 0.0
  %1244 = vmatpush1.msra.mxu0 0.0
  %1245 = vmatprep.subr.mxu0 0.0
  %1246 = vmatpush1.msra.mxu0 0.0
  %1247 = vmatprep.subr.mxu0 0.0
  %1248 = vmatpush1.msra.mxu0 0.0
  %1249 = vmatprep.subr.mxu0 0.0
  %1250 = vmatpush1.msra.mxu0 0.0
  %1251 = vmatprep.subr.mxu0 0.0
  %1252 = vmatpush1.msra.mxu0 0.0
  %1253 = vmatprep.subr.mxu0 0.0
  %1254 = vmatpush1.msra.mxu0 0.0
  %1255 = vmatprep.subr.mxu0 0.0
  %1256 = vmatpush1.msra.mxu0 0.0
  %1257 = vmatprep.subr.mxu0 0.0
  %1258 = vmatpush1.msra.mxu0 0.0
  %1259 = vmatprep.subr.mxu0 0.0
  %1260 = vmatpush1.msra.mxu0 0.0
  %1261 = vmatprep.subr.mxu0 0.0
  %1262 = vmatpush1.msra.mxu0 0.0
  %1263 = vmatprep.subr.mxu0 0.0
  %1264 = vmatpush1.msra.mxu0 0.0
  %1265 = vmatprep.subr.mxu0 0.0
  %1266 = vmatpush1.msra.mxu0 0.0
  %1267 = vmatprep.subr.mxu0 0.0
  %1268 = vmatpush1.msra.mxu0 0.0
  %1269 = vmatprep.subr.mxu0 0.0
  %1270 = vmatpush1.msra.mxu0 0.0
  %1271 = vmatprep.subr.mxu0 0.0
  %1272 = vmatpush1.msra.mxu0 0.0
  %1273 = vmatprep.subr.mxu0 0.0
  %1274 = vmatpush1.msra.mxu0 0.0
  %1275 = vmatprep.subr.mxu0 0.0
  %1276 = vmatpush1.msra.mxu0 0.0
  %1277 = vmatprep.mubr.f32.mxu0 0.0
  %1278 = vmatmul.mubr.f32.gmra.mrb[0].mxu0 %v1211
  %v1279 = vpop.f32.mrb[0].mxu0
  %v1280 = vadd.f32 %v1207, %v1279
  %v1281 = vpop.f32.mrb[0].mxu0
  %v1282 = vadd.f32 %v1207, %v1281
  %1283 = vdwg.mxu0
  %1284 = vmatprep.subr.mxu0 %v1197
  %1285 = vmatpush1.msra.mxu0 %v1196
  %1286 = vmatprep.subr.mxu0 0.0
  %1287 = vmatpush1.msra.mxu0 0.0
  %1288 = vmatprep.subr.mxu0 0.0
  %1289 = vmatpush1.msra.mxu0 0.0
  %1290 = vmatprep.subr.mxu0 0.0
  %1291 = vmatpush1.msra.mxu0 0.0
  %1292 = vmatprep.subr.mxu0 0.0
  %1293 = vmatpush1.msra.mxu0 0.0
  %1294 = vmatprep.subr.mxu0 0.0
  %1295 = vmatpush1.msra.mxu0 0.0
  %1296 = vmatprep.subr.mxu0 0.0
  %1297 = vmatpush1.msra.mxu0 0.0
  %1298 = vmatprep.subr.mxu0 0.0
  %1299 = vmatpush1.msra.mxu0 0.0
  %1300 = vmatprep.subr.mxu0 0.0
  %1301 = vmatpush1.msra.mxu0 0.0
  %1302 = vmatprep.subr.mxu0 0.0
  %1303 = vmatpush1.msra.mxu0 0.0
  %1304 = vmatprep.subr.mxu0 0.0
  %1305 = vmatpush1.msra.mxu0 0.0
  %1306 = vmatprep.subr.mxu0 0.0
  %1307 = vmatpush1.msra.mxu0 0.0
  %1308 = vmatprep.subr.mxu0 0.0
  %1309 = vmatpush1.msra.mxu0 0.0
  %1310 = vmatprep.subr.mxu0 0.0
  %1311 = vmatpush1.msra.mxu0 0.0
  %1312 = vmatprep.subr.mxu0 0.0
  %1313 = vmatpush1.msra.mxu0 0.0
  %1314 = vmatprep.subr.mxu0 0.0
  %1315 = vmatpush1.msra.mxu0 0.0
  %1316 = vmatprep.subr.mxu0 0.0
  %1317 = vmatpush1.msra.mxu0 0.0
  %1318 = vmatprep.subr.mxu0 0.0
  %1319 = vmatpush1.msra.mxu0 0.0
  %1320 = vmatprep.subr.mxu0 0.0
  %1321 = vmatpush1.msra.mxu0 0.0
  %1322 = vmatprep.subr.mxu0 0.0
  %1323 = vmatpush1.msra.mxu0 0.0
  %1324 = vmatprep.subr.mxu0 0.0
  %1325 = vmatpush1.msra.mxu0 0.0
  %1326 = vmatprep.subr.mxu0 0.0
  %1327 = vmatpush1.msra.mxu0 0.0
  %1328 = vmatprep.subr.mxu0 0.0
  %1329 = vmatpush1.msra.mxu0 0.0
  %1330 = vmatprep.subr.mxu0 0.0
  %1331 = vmatpush1.msra.mxu0 0.0
  %1332 = vmatprep.subr.mxu0 0.0
  %1333 = vmatpush1.msra.mxu0 0.0
  %1334 = vmatprep.subr.mxu0 0.0
  %1335 = vmatpush1.msra.mxu0 0.0
  %1336 = vmatprep.subr.mxu0 0.0
  %1337 = vmatpush1.msra.mxu0 0.0
  %1338 = vmatprep.subr.mxu0 0.0
  %1339 = vmatpush1.msra.mxu0 0.0
  %1340 = vmatprep.subr.mxu0 0.0
  %1341 = vmatpush1.msra.mxu0 0.0
  %1342 = vmatprep.subr.mxu0 0.0
  %1343 = vmatpush1.msra.mxu0 0.0
  %1344 = vmatprep.subr.mxu0 0.0
  %1345 = vmatpush1.msra.mxu0 0.0
  %1346 = vmatprep.subr.mxu0 0.0
  %1347 = vmatpush1.msra.mxu0 0.0
  %1348 = vmatprep.mubr.f32.mxu0 0.0
  %1349 = vmatmul.mubr.f32.gmra.mrb[0].mxu0 %v1211
  %v1350 = vpop.f32.mrb[0].mxu0
  %v1351 = vadd.f32 %v1207, %v1350
  %v1352 = vpop.f32.mrb[0].mxu0
  %v1353 = vadd.f32 %v1207, %v1352
  %1354 = vdwg.mxu0
  %1355 = vmatprep.subr.mxu0 %v1199
  %1356 = vmatpush1.msra.mxu0 %v1198
  %1357 = vmatprep.subr.mxu0 0.0
  %1358 = vmatpush1.msra.mxu0 0.0
  %1359 = vmatprep.subr.mxu0 0.0
  %1360 = vmatpush1.msra.mxu0 0.0
  %1361 = vmatprep.subr.mxu0 0.0
  %1362 = vmatpush1.msra.mxu0 0.0
  %1363 = vmatprep.subr.mxu0 0.0
  %1364 = vmatpush1.msra.mxu0 0.0
  %1365 = vmatprep.subr.mxu0 0.0
  %1366 = vmatpush1.msra.mxu0 0.0
  %1367 = vmatprep.subr.mxu0 0.0
  %1368 = vmatpush1.msra.mxu0 0.0
  %1369 = vmatprep.subr.mxu0 0.0
  %1370 = vmatpush1.msra.mxu0 0.0
  %1371 = vmatprep.subr.mxu0 0.0
  %1372 = vmatpush1.msra.mxu0 0.0
  %1373 = vmatprep.subr.mxu0 0.0
  %1374 = vmatpush1.msra.mxu0 0.0
  %1375 = vmatprep.subr.mxu0 0.0
  %1376 = vmatpush1.msra.mxu0 0.0
  %1377 = vmatprep.subr.mxu0 0.0
  %1378 = vmatpush1.msra.mxu0 0.0
  %1379 = vmatprep.subr.mxu0 0.0
  %1380 = vmatpush1.msra.mxu0 0.0
  %1381 = vmatprep.subr.mxu0 0.0
  %1382 = vmatpush1.msra.mxu0 0.0
  %1383 = vmatprep.subr.mxu0 0.0
  %1384 = vmatpush1.msra.mxu0 0.0
  %1385 = vmatprep.subr.mxu0 0.0
  %1386 = vmatpush1.msra.mxu0 0.0
  %1387 = vmatprep.subr.mxu0 0.0
  %1388 = vmatpush1.msra.mxu0 0.0
  %1389 = vmatprep.subr.mxu0 0.0
  %1390 = vmatpush1.msra.mxu0 0.0
  %1391 = vmatprep.subr.mxu0 0.0
  %1392 = vmatpush1.msra.mxu0 0.0
  %1393 = vmatprep.subr.mxu0 0.0
  %1394 = vmatpush1.msra.mxu0 0.0
  %1395 = vmatprep.subr.mxu0 0.0
  %1396 = vmatpush1.msra.mxu0 0.0
  %1397 = vmatprep.subr.mxu0 0.0
  %1398 = vmatpush1.msra.mxu0 0.0
  %1399 = vmatprep.subr.mxu0 0.0
  %1400 = vmatpush1.msra.mxu0 0.0
  %1401 = vmatprep.subr.mxu0 0.0
  %1402 = vmatpush1.msra.mxu0 0.0
  %1403 = vmatprep.subr.mxu0 0.0
  %1404 = vmatpush1.msra.mxu0 0.0
  %1405 = vmatprep.subr.mxu0 0.0
  %1406 = vmatpush1.msra.mxu0 0.0
  %1407 = vmatprep.subr.mxu0 0.0
  %1408 = vmatpush1.msra.mxu0 0.0
  %1409 = vmatprep.subr.mxu0 0.0
  %1410 = vmatpush1.msra.mxu0 0.0
  %1411 = vmatprep.subr.mxu0 0.0
  %1412 = vmatpush1.msra.mxu0 0.0
  %1413 = vmatprep.subr.mxu0 0.0
  %1414 = vmatpush1.msra.mxu0 0.0
  %1415 = vmatprep.subr.mxu0 0.0
  %1416 = vmatpush1.msra.mxu0 0.0
  %1417 = vmatprep.subr.mxu0 0.0
  %1418 = vmatpush1.msra.mxu0 0.0
  %1419 = vmatprep.mubr.f32.mxu0 0.0
  %1420 = vmatmul.mubr.f32.gmra.mrb[0].mxu0 %v1211
  %v1421 = vpop.f32.mrb[0].mxu0
  %v1422 = vadd.f32 %v1207, %v1421
  %v1423 = vpop.f32.mrb[0].mxu0
  %v1424 = vadd.f32 %v1207, %v1423
  %1425 = vdwg.mxu0
  %1426 = vmatprep.subr.mxu0 %v1201
  %1427 = vmatpush1.msra.mxu0 %v1200
  %1428 = vmatprep.subr.mxu0 0.0
  %1429 = vmatpush1.msra.mxu0 0.0
  %1430 = vmatprep.subr.mxu0 0.0
  %1431 = vmatpush1.msra.mxu0 0.0
  %1432 = vmatprep.subr.mxu0 0.0
  %1433 = vmatpush1.msra.mxu0 0.0
  %1434 = vmatprep.subr.mxu0 0.0
  %1435 = vmatpush1.msra.mxu0 0.0
  %1436 = vmatprep.subr.mxu0 0.0
  %1437 = vmatpush1.msra.mxu0 0.0
  %1438 = vmatprep.subr.mxu0 0.0
  %1439 = vmatpush1.msra.mxu0 0.0
  %1440 = vmatprep.subr.mxu0 0.0
  %1441 = vmatpush1.msra.mxu0 0.0
  %1442 = vmatprep.subr.mxu0 0.0
  %1443 = vmatpush1.msra.mxu0 0.0
  %1444 = vmatprep.subr.mxu0 0.0
  %1445 = vmatpush1.msra.mxu0 0.0
  %1446 = vmatprep.subr.mxu0 0.0
  %1447 = vmatpush1.msra.mxu0 0.0
  %1448 = vmatprep.subr.mxu0 0.0
  %1449 = vmatpush1.msra.mxu0 0.0
  %1450 = vmatprep.subr.mxu0 0.0
  %1451 = vmatpush1.msra.mxu0 0.0
  %1452 = vmatprep.subr.mxu0 0.0
  %1453 = vmatpush1.msra.mxu0 0.0
  %1454 = vmatprep.subr.mxu0 0.0
  %1455 = vmatpush1.msra.mxu0 0.0
  %1456 = vmatprep.subr.mxu0 0.0
  %1457 = vmatpush1.msra.mxu0 0.0
  %1458 = vmatprep.subr.mxu0 0.0
  %1459 = vmatpush1.msra.mxu0 0.0
  %1460 = vmatprep.subr.mxu0 0.0
  %1461 = vmatpush1.msra.mxu0 0.0
  %1462 = vmatprep.subr.mxu0 0.0
  %1463 = vmatpush1.msra.mxu0 0.0
  %1464 = vmatprep.subr.mxu0 0.0
  %1465 = vmatpush1.msra.mxu0 0.0
  %1466 = vmatprep.subr.mxu0 0.0
  %1467 = vmatpush1.msra.mxu0 0.0
  %1468 = vmatprep.subr.mxu0 0.0
  %1469 = vmatpush1.msra.mxu0 0.0
  %1470 = vmatprep.subr.mxu0 0.0
  %1471 = vmatpush1.msra.mxu0 0.0
  %1472 = vmatprep.subr.mxu0 0.0
  %1473 = vmatpush1.msra.mxu0 0.0
  %1474 = vmatprep.subr.mxu0 0.0
  %1475 = vmatpush1.msra.mxu0 0.0
  %1476 = vmatprep.subr.mxu0 0.0
  %1477 = vmatpush1.msra.mxu0 0.0
  %1478 = vmatprep.subr.mxu0 0.0
  %1479 = vmatpush1.msra.mxu0 0.0
  %1480 = vmatprep.subr.mxu0 0.0
  %1481 = vmatpush1.msra.mxu0 0.0
  %1482 = vmatprep.subr.mxu0 0.0
  %1483 = vmatpush1.msra.mxu0 0.0
  %1484 = vmatprep.subr.mxu0 0.0
  %1485 = vmatpush1.msra.mxu0 0.0
  %1486 = vmatprep.subr.mxu0 0.0
  %1487 = vmatpush1.msra.mxu0 0.0
  %1488 = vmatprep.subr.mxu0 0.0
  %1489 = vmatpush1.msra.mxu0 0.0
  %1490 = vmatprep.mubr.f32.mxu0 0.0
  %1491 = vmatmul.mubr.f32.gmra.mrb[0].mxu0 %v1211
  %v1492 = vpop.f32.mrb[0].mxu0
  %v1493 = vadd.f32 %v1207, %v1492
  %v1494 = vpop.f32.mrb[0].mxu0
  %v1495 = vadd.f32 %v1207, %v1494
  %1496 = vdwg.mxu0
  %v1497 = vld [vmem:[%s1 + $0xc] sm:$0xff]
  %v1498 = vld [vmem:[%s1 + $0x14] sm:$0xff]
  %v1499 = vld [vmem:[%s1 + $0x1c] sm:$0x3]
  %v1500 = vld [vmem:[%s3 + $0x14] sm:$0xff]
  %v1501 = vld [vmem:[%s3 + $0x1c] sm:$0xff]
  %v1502 = vld [vmem:[%s3 + $0x24] sm:$0x3]
  %1504 = vset.pattern.permute.xlu0 0
  %1505 = vperm.xlu0 %1504, %v1500
  %v1506 = vpop.permute.xlu0 %1505
  %1509 = vset.pattern.permute.xlu0 0
  %1510 = vperm.xlu0 %1509, %v1501
  %v1511 = vpop.permute.xlu0 %1510
  %1514 = vset.pattern.permute.xlu0 0
  %1515 = vperm.xlu0 %1514, %v1502
  %v1516 = vpop.permute.xlu0 %1515
  %vm1518 = vcmask 31744
  %v1520 = vsel %vm1518, %v1497, 0
  %v1523 = vsel %vm1518, %v1498, 0
  %v1526 = vsel %vm1518, %v1499, 0
  %vm1528 = vcmask 1043456
  %v1530 = vsel %vm1528, %v1280, 0
  %v1533 = vsel %vm1528, %v1282, 0
  %v1536 = vsel %vm1528, %v1351, 0
  %v1539 = vsel %vm1528, %v1353, 0
  %v1542 = vsel %vm1528, %v1422, 0
  %v1545 = vsel %vm1528, %v1424, 0
  %v1548 = vsel %vm1528, %v1493, 0
  %v1551 = vsel %vm1528, %v1495, 0
  %1553 = vmatprep.subr.mxu0 %v1533
  %1554 = vmatpush1.msra.mxu0 %v1530
  %1555 = vmatprep.subr.mxu0 0.0
  %1556 = vmatpush1.msra.mxu0 0.0
  %1557 = vmatprep.subr.mxu0 0.0
  %1558 = vmatpush1.msra.mxu0 0.0
  %1559 = vmatprep.subr.mxu0 0.0
  %1560 = vmatpush1.msra.mxu0 0.0
  %1561 = vmatprep.subr.mxu0 0.0
  %1562 = vmatpush1.msra.mxu0 0.0
  %1563 = vmatprep.subr.mxu0 0.0
  %1564 = vmatpush1.msra.mxu0 0.0
  %1565 = vmatprep.subr.mxu0 0.0
  %1566 = vmatpush1.msra.mxu0 0.0
  %1567 = vmatprep.subr.mxu0 0.0
  %1568 = vmatpush1.msra.mxu0 0.0
  %1569 = vmatprep.subr.mxu0 0.0
  %1570 = vmatpush1.msra.mxu0 0.0
  %1571 = vmatprep.subr.mxu0 0.0
  %1572 = vmatpush1.msra.mxu0 0.0
  %1573 = vmatprep.subr.mxu0 0.0
  %1574 = vmatpush1.msra.mxu0 0.0
  %1575 = vmatprep.subr.mxu0 0.0
  %1576 = vmatpush1.msra.mxu0 0.0
  %1577 = vmatprep.subr.mxu0 0.0
  %1578 = vmatpush1.msra.mxu0 0.0
  %1579 = vmatprep.subr.mxu0 0.0
  %1580 = vmatpush1.msra.mxu0 0.0
  %1581 = vmatprep.subr.mxu0 0.0
  %1582 = vmatpush1.msra.mxu0 0.0
  %1583 = vmatprep.subr.mxu0 0.0
  %1584 = vmatpush1.msra.mxu0 0.0
  %1585 = vmatprep.subr.mxu0 0.0
  %1586 = vmatpush1.msra.mxu0 0.0
  %1587 = vmatprep.subr.mxu0 0.0
  %1588 = vmatpush1.msra.mxu0 0.0
  %1589 = vmatprep.subr.mxu0 0.0
  %1590 = vmatpush1.msra.mxu0 0.0
  %1591 = vmatprep.subr.mxu0 0.0
  %1592 = vmatpush1.msra.mxu0 0.0
  %1593 = vmatprep.subr.mxu0 0.0
  %1594 = vmatpush1.msra.mxu0 0.0
  %1595 = vmatprep.subr.mxu0 0.0
  %1596 = vmatpush1.msra.mxu0 0.0
  %1597 = vmatprep.subr.mxu0 0.0
  %1598 = vmatpush1.msra.mxu0 0.0
  %1599 = vmatprep.subr.mxu0 0.0
  %1600 = vmatpush1.msra.mxu0 0.0
  %1601 = vmatprep.subr.mxu0 0.0
  %1602 = vmatpush1.msra.mxu0 0.0
  %1603 = vmatprep.subr.mxu0 0.0
  %1604 = vmatpush1.msra.mxu0 0.0
  %1605 = vmatprep.subr.mxu0 0.0
  %1606 = vmatpush1.msra.mxu0 0.0
  %1607 = vmatprep.subr.mxu0 0.0
  %1608 = vmatpush1.msra.mxu0 0.0
  %1609 = vmatprep.subr.mxu0 0.0
  %1610 = vmatpush1.msra.mxu0 0.0
  %1611 = vmatprep.subr.mxu0 0.0
  %1612 = vmatpush1.msra.mxu0 0.0
  %1613 = vmatprep.subr.mxu0 0.0
  %1614 = vmatpush1.msra.mxu0 0.0
  %1615 = vmatprep.subr.mxu0 0.0
  %1616 = vmatpush1.msra.mxu0 0.0
  %1617 = vmatprep.mubr.f32.mxu0 0.0
  %1618 = vmatmul.mubr.f32.gmra.mrb[0].mxu0 %v1520
  %v1619 = vpop.f32.mrb[0].mxu0
  %v1620 = vadd.f32 %v1506, %v1619
  %v1621 = vpop.f32.mrb[0].mxu0
  %v1622 = vadd.f32 %v1506, %v1621
  %1623 = vmatprep.mubr.f32.mxu0 0.0
  %1624 = vmatmul.mubr.f32.gmra.mrb[0].mxu0 %v1523
  %v1625 = vpop.f32.mrb[0].mxu0
  %v1626 = vadd.f32 %v1511, %v1625
  %v1627 = vpop.f32.mrb[0].mxu0
  %v1628 = vadd.f32 %v1511, %v1627
  %1629 = vmatprep.mubr.f32.mxu0 0.0
  %1630 = vmatmul.mubr.f32.gmra.mrb[0].mxu0 %v1526
  %v1631 = vpop.f32.mrb[0].mxu0
  %v1632 = vadd.f32 %v1516, %v1631
  %v1633 = vpop.f32.mrb[0].mxu0
  %v1634 = vadd.f32 %v1516, %v1633
  %1635 = vdwg.mxu0
  %1636 = vmatprep.subr.mxu0 %v1539
  %1637 = vmatpush1.msra.mxu0 %v1536
  %1638 = vmatprep.subr.mxu0 0.0
  %1639 = vmatpush1.msra.mxu0 0.0
  %1640 = vmatprep.subr.mxu0 0.0
  %1641 = vmatpush1.msra.mxu0 0.0
  %1642 = vmatprep.subr.mxu0 0.0
  %1643 = vmatpush1.msra.mxu0 0.0
  %1644 = vmatprep.subr.mxu0 0.0
  %1645 = vmatpush1.msra.mxu0 0.0
  %1646 = vmatprep.subr.mxu0 0.0
  %1647 = vmatpush1.msra.mxu0 0.0
  %1648 = vmatprep.subr.mxu0 0.0
  %1649 = vmatpush1.msra.mxu0 0.0
  %1650 = vmatprep.subr.mxu0 0.0
  %1651 = vmatpush1.msra.mxu0 0.0
  %1652 = vmatprep.subr.mxu0 0.0
  %1653 = vmatpush1.msra.mxu0 0.0
  %1654 = vmatprep.subr.mxu0 0.0
  %1655 = vmatpush1.msra.mxu0 0.0
  %1656 = vmatprep.subr.mxu0 0.0
  %1657 = vmatpush1.msra.mxu0 0.0
  %1658 = vmatprep.subr.mxu0 0.0
  %1659 = vmatpush1.msra.mxu0 0.0
  %1660 = vmatprep.subr.mxu0 0.0
  %1661 = vmatpush1.msra.mxu0 0.0
  %1662 = vmatprep.subr.mxu0 0.0
  %1663 = vmatpush1.msra.mxu0 0.0
  %1664 = vmatprep.subr.mxu0 0.0
  %1665 = vmatpush1.msra.mxu0 0.0
  %1666 = vmatprep.subr.mxu0 0.0
  %1667 = vmatpush1.msra.mxu0 0.0
  %1668 = vmatprep.subr.mxu0 0.0
  %1669 = vmatpush1.msra.mxu0 0.0
  %1670 = vmatprep.subr.mxu0 0.0
  %1671 = vmatpush1.msra.mxu0 0.0
  %1672 = vmatprep.subr.mxu0 0.0
  %1673 = vmatpush1.msra.mxu0 0.0
  %1674 = vmatprep.subr.mxu0 0.0
  %1675 = vmatpush1.msra.mxu0 0.0
  %1676 = vmatprep.subr.mxu0 0.0
  %1677 = vmatpush1.msra.mxu0 0.0
  %1678 = vmatprep.subr.mxu0 0.0
  %1679 = vmatpush1.msra.mxu0 0.0
  %1680 = vmatprep.subr.mxu0 0.0
  %1681 = vmatpush1.msra.mxu0 0.0
  %1682 = vmatprep.subr.mxu0 0.0
  %1683 = vmatpush1.msra.mxu0 0.0
  %1684 = vmatprep.subr.mxu0 0.0
  %1685 = vmatpush1.msra.mxu0 0.0
  %1686 = vmatprep.subr.mxu0 0.0
  %1687 = vmatpush1.msra.mxu0 0.0
  %1688 = vmatprep.subr.mxu0 0.0
  %1689 = vmatpush1.msra.mxu0 0.0
  %1690 = vmatprep.subr.mxu0 0.0
  %1691 = vmatpush1.msra.mxu0 0.0
  %1692 = vmatprep.subr.mxu0 0.0
  %1693 = vmatpush1.msra.mxu0 0.0
  %1694 = vmatprep.subr.mxu0 0.0
  %1695 = vmatpush1.msra.mxu0 0.0
  %1696 = vmatprep.subr.mxu0 0.0
  %1697 = vmatpush1.msra.mxu0 0.0
  %1698 = vmatprep.subr.mxu0 0.0
  %1699 = vmatpush1.msra.mxu0 0.0
  %1700 = vmatprep.mubr.f32.mxu0 0.0
  %1701 = vmatmul.mubr.f32.gmra.mrb[0].mxu0 %v1520
  %v1702 = vpop.f32.mrb[0].mxu0
  %v1703 = vadd.f32 %v1506, %v1702
  %v1704 = vpop.f32.mrb[0].mxu0
  %v1705 = vadd.f32 %v1506, %v1704
  %1706 = vmatprep.mubr.f32.mxu0 0.0
  %1707 = vmatmul.mubr.f32.gmra.mrb[0].mxu0 %v1523
  %v1708 = vpop.f32.mrb[0].mxu0
  %v1709 = vadd.f32 %v1511, %v1708
  %v1710 = vpop.f32.mrb[0].mxu0
  %v1711 = vadd.f32 %v1511, %v1710
  %1712 = vmatprep.mubr.f32.mxu0 0.0
  %1713 = vmatmul.mubr.f32.gmra.mrb[0].mxu0 %v1526
  %v1714 = vpop.f32.mrb[0].mxu0
  %v1715 = vadd.f32 %v1516, %v1714
  %v1716 = vpop.f32.mrb[0].mxu0
  %v1717 = vadd.f32 %v1516, %v1716
  %1718 = vdwg.mxu0
  %1719 = vmatprep.subr.mxu0 %v1545
  %1720 = vmatpush1.msra.mxu0 %v1542
  %1721 = vmatprep.subr.mxu0 0.0
  %1722 = vmatpush1.msra.mxu0 0.0
  %1723 = vmatprep.subr.mxu0 0.0
  %1724 = vmatpush1.msra.mxu0 0.0
  %1725 = vmatprep.subr.mxu0 0.0
  %1726 = vmatpush1.msra.mxu0 0.0
  %1727 = vmatprep.subr.mxu0 0.0
  %1728 = vmatpush1.msra.mxu0 0.0
  %1729 = vmatprep.subr.mxu0 0.0
  %1730 = vmatpush1.msra.mxu0 0.0
  %1731 = vmatprep.subr.mxu0 0.0
  %1732 = vmatpush1.msra.mxu0 0.0
  %1733 = vmatprep.subr.mxu0 0.0
  %1734 = vmatpush1.msra.mxu0 0.0
  %1735 = vmatprep.subr.mxu0 0.0
  %1736 = vmatpush1.msra.mxu0 0.0
  %1737 = vmatprep.subr.mxu0 0.0
  %1738 = vmatpush1.msra.mxu0 0.0
  %1739 = vmatprep.subr.mxu0 0.0
  %1740 = vmatpush1.msra.mxu0 0.0
  %1741 = vmatprep.subr.mxu0 0.0
  %1742 = vmatpush1.msra.mxu0 0.0
  %1743 = vmatprep.subr.mxu0 0.0
  %1744 = vmatpush1.msra.mxu0 0.0
  %1745 = vmatprep.subr.mxu0 0.0
  %1746 = vmatpush1.msra.mxu0 0.0
  %1747 = vmatprep.subr.mxu0 0.0
  %1748 = vmatpush1.msra.mxu0 0.0
  %1749 = vmatprep.subr.mxu0 0.0
  %1750 = vmatpush1.msra.mxu0 0.0
  %1751 = vmatprep.subr.mxu0 0.0
  %1752 = vmatpush1.msra.mxu0 0.0
  %1753 = vmatprep.subr.mxu0 0.0
  %1754 = vmatpush1.msra.mxu0 0.0
  %1755 = vmatprep.subr.mxu0 0.0
  %1756 = vmatpush1.msra.mxu0 0.0
  %1757 = vmatprep.subr.mxu0 0.0
  %1758 = vmatpush1.msra.mxu0 0.0
  %1759 = vmatprep.subr.mxu0 0.0
  %1760 = vmatpush1.msra.mxu0 0.0
  %1761 = vmatprep.subr.mxu0 0.0
  %1762 = vmatpush1.msra.mxu0 0.0
  %1763 = vmatprep.subr.mxu0 0.0
  %1764 = vmatpush1.msra.mxu0 0.0
  %1765 = vmatprep.subr.mxu0 0.0
  %1766 = vmatpush1.msra.mxu0 0.0
  %1767 = vmatprep.subr.mxu0 0.0
  %1768 = vmatpush1.msra.mxu0 0.0
  %1769 = vmatprep.subr.mxu0 0.0
  %1770 = vmatpush1.msra.mxu0 0.0
  %1771 = vmatprep.subr.mxu0 0.0
  %1772 = vmatpush1.msra.mxu0 0.0
  %1773 = vmatprep.subr.mxu0 0.0
  %1774 = vmatpush1.msra.mxu0 0.0
  %1775 = vmatprep.subr.mxu0 0.0
  %1776 = vmatpush1.msra.mxu0 0.0
  %1777 = vmatprep.subr.mxu0 0.0
  %1778 = vmatpush1.msra.mxu0 0.0
  %1779 = vmatprep.subr.mxu0 0.0
  %1780 = vmatpush1.msra.mxu0 0.0
  %1781 = vmatprep.subr.mxu0 0.0
  %1782 = vmatpush1.msra.mxu0 0.0
  %1783 = vmatprep.mubr.f32.mxu0 0.0
  %1784 = vmatmul.mubr.f32.gmra.mrb[0].mxu0 %v1520
  %v1785 = vpop.f32.mrb[0].mxu0
  %v1786 = vadd.f32 %v1506, %v1785
  %v1787 = vpop.f32.mrb[0].mxu0
  %v1788 = vadd.f32 %v1506, %v1787
  %1789 = vmatprep.mubr.f32.mxu0 0.0
  %1790 = vmatmul.mubr.f32.gmra.mrb[0].mxu0 %v1523
  %v1791 = vpop.f32.mrb[0].mxu0
  %v1792 = vadd.f32 %v1511, %v1791
  %v1793 = vpop.f32.mrb[0].mxu0
  %v1794 = vadd.f32 %v1511, %v1793
  %1795 = vmatprep.mubr.f32.mxu0 0.0
  %1796 = vmatmul.mubr.f32.gmra.mrb[0].mxu0 %v1526
  %v1797 = vpop.f32.mrb[0].mxu0
  %v1798 = vadd.f32 %v1516, %v1797
  %v1799 = vpop.f32.mrb[0].mxu0
  %v1800 = vadd.f32 %v1516, %v1799
  %1801 = vdwg.mxu0
  %1802 = vmatprep.subr.mxu0 %v1551
  %1803 = vmatpush1.msra.mxu0 %v1548
  %1804 = vmatprep.subr.mxu0 0.0
  %1805 = vmatpush1.msra.mxu0 0.0
  %1806 = vmatprep.subr.mxu0 0.0
  %1807 = vmatpush1.msra.mxu0 0.0
  %1808 = vmatprep.subr.mxu0 0.0
  %1809 = vmatpush1.msra.mxu0 0.0
  %1810 = vmatprep.subr.mxu0 0.0
  %1811 = vmatpush1.msra.mxu0 0.0
  %1812 = vmatprep.subr.mxu0 0.0
  %1813 = vmatpush1.msra.mxu0 0.0
  %1814 = vmatprep.subr.mxu0 0.0
  %1815 = vmatpush1.msra.mxu0 0.0
  %1816 = vmatprep.subr.mxu0 0.0
  %1817 = vmatpush1.msra.mxu0 0.0
  %1818 = vmatprep.subr.mxu0 0.0
  %1819 = vmatpush1.msra.mxu0 0.0
  %1820 = vmatprep.subr.mxu0 0.0
  %1821 = vmatpush1.msra.mxu0 0.0
  %1822 = vmatprep.subr.mxu0 0.0
  %1823 = vmatpush1.msra.mxu0 0.0
  %1824 = vmatprep.subr.mxu0 0.0
  %1825 = vmatpush1.msra.mxu0 0.0
  %1826 = vmatprep.subr.mxu0 0.0
  %1827 = vmatpush1.msra.mxu0 0.0
  %1828 = vmatprep.subr.mxu0 0.0
  %1829 = vmatpush1.msra.mxu0 0.0
  %1830 = vmatprep.subr.mxu0 0.0
  %1831 = vmatpush1.msra.mxu0 0.0
  %1832 = vmatprep.subr.mxu0 0.0
  %1833 = vmatpush1.msra.mxu0 0.0
  %1834 = vmatprep.subr.mxu0 0.0
  %1835 = vmatpush1.msra.mxu0 0.0
  %1836 = vmatprep.subr.mxu0 0.0
  %1837 = vmatpush1.msra.mxu0 0.0
  %1838 = vmatprep.subr.mxu0 0.0
  %1839 = vmatpush1.msra.mxu0 0.0
  %1840 = vmatprep.subr.mxu0 0.0
  %1841 = vmatpush1.msra.mxu0 0.0
  %1842 = vmatprep.subr.mxu0 0.0
  %1843 = vmatpush1.msra.mxu0 0.0
  %1844 = vmatprep.subr.mxu0 0.0
  %1845 = vmatpush1.msra.mxu0 0.0
  %1846 = vmatprep.subr.mxu0 0.0
  %1847 = vmatpush1.msra.mxu0 0.0
  %1848 = vmatprep.subr.mxu0 0.0
  %1849 = vmatpush1.msra.mxu0 0.0
  %1850 = vmatprep.subr.mxu0 0.0
  %1851 = vmatpush1.msra.mxu0 0.0
  %1852 = vmatprep.subr.mxu0 0.0
  %1853 = vmatpush1.msra.mxu0 0.0
  %1854 = vmatprep.subr.mxu0 0.0
  %1855 = vmatpush1.msra.mxu0 0.0
  %1856 = vmatprep.subr.mxu0 0.0
  %1857 = vmatpush1.msra.mxu0 0.0
  %1858 = vmatprep.subr.mxu0 0.0
  %1859 = vmatpush1.msra.mxu0 0.0
  %1860 = vmatprep.subr.mxu0 0.0
  %1861 = vmatpush1.msra.mxu0 0.0
  %1862 = vmatprep.subr.mxu0 0.0
  %1863 = vmatpush1.msra.mxu0 0.0
  %1864 = vmatprep.subr.mxu0 0.0
  %1865 = vmatpush1.msra.mxu0 0.0
  %1866 = vmatprep.mubr.f32.mxu0 0.0
  %1867 = vmatmul.mubr.f32.gmra.mrb[0].mxu0 %v1520
  %v1868 = vpop.f32.mrb[0].mxu0
  %v1869 = vadd.f32 %v1506, %v1868
  %v1870 = vpop.f32.mrb[0].mxu0
  %v1871 = vadd.f32 %v1506, %v1870
  %1872 = vmatprep.mubr.f32.mxu0 0.0
  %1873 = vmatmul.mubr.f32.gmra.mrb[0].mxu0 %v1523
  %v1874 = vpop.f32.mrb[0].mxu0
  %v1875 = vadd.f32 %v1511, %v1874
  %v1876 = vpop.f32.mrb[0].mxu0
  %v1877 = vadd.f32 %v1511, %v1876
  %1878 = vmatprep.mubr.f32.mxu0 0.0
  %1879 = vmatmul.mubr.f32.gmra.mrb[0].mxu0 %v1526
  %v1880 = vpop.f32.mrb[0].mxu0
  %v1881 = vadd.f32 %v1516, %v1880
  %v1882 = vpop.f32.mrb[0].mxu0
  %v1883 = vadd.f32 %v1516, %v1882
  %1884 = vdwg.mxu0
  %v1885 = vmul.f32 %v1620, 0.1
  %v1886 = vmul.f32 %v1622, 0.1
  %v1887 = vmul.f32 %v1703, 0.1
  %v1888 = vmul.f32 %v1705, 0.1
  %v1889 = vmul.f32 %v1786, 0.1
  %v1890 = vmul.f32 %v1788, 0.1
  %v1891 = vmul.f32 %v1869, 0.1
  %v1892 = vmul.f32 %v1871, 0.1
  %v1893 = vmul.f32 %v1626, 0.1
  %v1894 = vmul.f32 %v1628, 0.1
  %v1895 = vmul.f32 %v1709, 0.1
  %v1896 = vmul.f32 %v1711, 0.1
  %v1897 = vmul.f32 %v1792, 0.1
  %v1898 = vmul.f32 %v1794, 0.1
  %v1899 = vmul.f32 %v1875, 0.1
  %v1900 = vmul.f32 %v1877, 0.1
  %v1901 = vmul.f32 %v1632, 0.1
  %v1902 = vmul.f32 %v1634, 0.1
  %v1903 = vmul.f32 %v1715, 0.1
  %v1904 = vmul.f32 %v1717, 0.1
  %v1905 = vmul.f32 %v1798, 0.1
  %v1906 = vmul.f32 %v1800, 0.1
  %v1907 = vmul.f32 %v1881, 0.1
  %v1908 = vmul.f32 %v1883, 0.1
  %v1909 = vmax.f32 %v1620, %v1885
  %v1910 = vmax.f32 %v1622, %v1886
  %v1911 = vmax.f32 %v1703, %v1887
  %v1912 = vmax.f32 %v1705, %v1888
  %v1913 = vmax.f32 %v1786, %v1889
  %v1914 = vmax.f32 %v1788, %v1890
  %v1915 = vmax.f32 %v1869, %v1891
  %v1916 = vmax.f32 %v1871, %v1892
  %v1917 = vmax.f32 %v1626, %v1893
  %v1918 = vmax.f32 %v1628, %v1894
  %v1919 = vmax.f32 %v1709, %v1895
  %v1920 = vmax.f32 %v1711, %v1896
  %v1921 = vmax.f32 %v1792, %v1897
  %v1922 = vmax.f32 %v1794, %v1898
  %v1923 = vmax.f32 %v1875, %v1899
  %v1924 = vmax.f32 %v1877, %v1900
  %v1925 = vmax.f32 %v1632, %v1901
  %v1926 = vmax.f32 %v1634, %v1902
  %v1927 = vmax.f32 %v1715, %v1903
  %v1928 = vmax.f32 %v1717, %v1904
  %v1929 = vmax.f32 %v1798, %v1905
  %v1930 = vmax.f32 %v1800, %v1906
  %v1931 = vmax.f32 %v1881, %v1907
  %v1932 = vmax.f32 %v1883, %v1908
  %v1933 = vld [vmem:[%s2 + $0x8] sm:$0xff]
  %v1934 = vld [vmem:[%s2 + $0x10] sm:$0xff]
  %v1935 = vld [vmem:[%s2 + $0x18] sm:$0x3]
  %1937 = vset.pattern.permute.xlu0 4
  %1938 = vperm.xlu0 %1937, %v1933
  %v1939 = vpop.permute.xlu0 %1938
  %1942 = vset.pattern.permute.xlu0 4
  %1943 = vperm.xlu0 %1942, %v1934
  %v1944 = vpop.permute.xlu0 %1943
  %1947 = vset.pattern.permute.xlu0 4
  %1948 = vperm.xlu0 %1947, %v1935
  %v1949 = vpop.permute.xlu0 %1948
  %v1951 = vmul.f32 %v1939, %v1909
  %v1952 = vmul.f32 %v1939, %v1910
  %v1953 = vmul.f32 %v1939, %v1911
  %v1954 = vmul.f32 %v1939, %v1912
  %v1955 = vmul.f32 %v1939, %v1913
  %v1956 = vmul.f32 %v1939, %v1914
  %v1957 = vmul.f32 %v1939, %v1915
  %v1958 = vmul.f32 %v1939, %v1916
  %v1959 = vmul.f32 %v1944, %v1917
  %v1960 = vmul.f32 %v1944, %v1918
  %v1961 = vmul.f32 %v1944, %v1919
  %v1962 = vmul.f32 %v1944, %v1920
  %v1963 = vmul.f32 %v1944, %v1921
  %v1964 = vmul.f32 %v1944, %v1922
  %v1965 = vmul.f32 %v1944, %v1923
  %v1966 = vmul.f32 %v1944, %v1924
  %v1967 = vmul.f32 %v1949, %v1925
  %v1968 = vmul.f32 %v1949, %v1926
  %v1969 = vmul.f32 %v1949, %v1927
  %v1970 = vmul.f32 %v1949, %v1928
  %v1971 = vmul.f32 %v1949, %v1929
  %v1972 = vmul.f32 %v1949, %v1930
  %v1973 = vmul.f32 %v1949, %v1931
  %v1974 = vmul.f32 %v1949, %v1932
  %1999 = vrot.lane.b32.xlu0 %v1909, 33
  %v2000 = vpop.permute.xlu0 %1999
  %2001 = vrot.lane.b32.xlu0 %v1910, 33
  %v2002 = vpop.permute.xlu0 %2001
  %2003 = vrot.lane.b32.xlu0 %v1911, 33
  %v2004 = vpop.permute.xlu0 %2003
  %2005 = vrot.lane.b32.xlu0 %v1912, 33
  %v2006 = vpop.permute.xlu0 %2005
  %2007 = vrot.lane.b32.xlu0 %v1913, 33
  %v2008 = vpop.permute.xlu0 %2007
  %2009 = vrot.lane.b32.xlu0 %v1914, 33
  %v2010 = vpop.permute.xlu0 %2009
  %2011 = vrot.lane.b32.xlu0 %v1915, 33
  %v2012 = vpop.permute.xlu0 %2011
  %2013 = vrot.lane.b32.xlu0 %v1916, 33
  %v2014 = vpop.permute.xlu0 %2013
  %2015 = vrot.lane.b32.xlu0 %v1917, 33
  %v2016 = vpop.permute.xlu0 %2015
  %2017 = vrot.lane.b32.xlu0 %v1918, 33
  %v2018 = vpop.permute.xlu0 %2017
  %2019 = vrot.lane.b32.xlu0 %v1919, 33
  %v2020 = vpop.permute.xlu0 %2019
  %2021 = vrot.lane.b32.xlu0 %v1920, 33
  %v2022 = vpop.permute.xlu0 %2021
  %2023 = vrot.lane.b32.xlu0 %v1921, 33
  %v2024 = vpop.permute.xlu0 %2023
  %2025 = vrot.lane.b32.xlu0 %v1922, 33
  %v2026 = vpop.permute.xlu0 %2025
  %2027 = vrot.lane.b32.xlu0 %v1923, 33
  %v2028 = vpop.permute.xlu0 %2027
  %2029 = vrot.lane.b32.xlu0 %v1924, 33
  %v2030 = vpop.permute.xlu0 %2029
  %2031 = vrot.lane.b32.xlu0 %v1925, 33
  %v2032 = vpop.permute.xlu0 %2031
  %2033 = vrot.lane.b32.xlu0 %v1926, 33
  %v2034 = vpop.permute.xlu0 %2033
  %2035 = vrot.lane.b32.xlu0 %v1927, 33
  %v2036 = vpop.permute.xlu0 %2035
  %2037 = vrot.lane.b32.xlu0 %v1928, 33
  %v2038 = vpop.permute.xlu0 %2037
  %2039 = vrot.lane.b32.xlu0 %v1929, 33
  %v2040 = vpop.permute.xlu0 %2039
  %2041 = vrot.lane.b32.xlu0 %v1930, 33
  %v2042 = vpop.permute.xlu0 %2041
  %2043 = vrot.lane.b32.xlu0 %v1931, 33
  %v2044 = vpop.permute.xlu0 %2043
  %2045 = vrot.lane.b32.xlu0 %v1932, 33
  %v2046 = vpop.permute.xlu0 %2045
  %v2047 = vsel %vm447, %v2000, %v2002
  %v2048 = vsel %vm447, %v2002, %v2004
  %v2049 = vsel %vm447, %v2004, %v2006
  %v2050 = vsel %vm447, %v2006, %v2008
  %v2051 = vsel %vm447, %v2008, %v2010
  %v2052 = vsel %vm447, %v2010, %v2012
  %v2053 = vsel %vm447, %v2012, %v2014
  %v2054 = vsel %vm447, %v2016, %v2018
  %v2055 = vsel %vm447, %v2018, %v2020
  %v2056 = vsel %vm447, %v2020, %v2022
  %v2057 = vsel %vm447, %v2022, %v2024
  %v2058 = vsel %vm447, %v2024, %v2026
  %v2059 = vsel %vm447, %v2026, %v2028
  %v2060 = vsel %vm447, %v2028, %v2030
  %v2061 = vsel %vm447, %v2032, %v2034
  %v2062 = vsel %vm447, %v2034, %v2036
  %v2063 = vsel %vm447, %v2036, %v2038
  %v2064 = vsel %vm447, %v2038, %v2040
  %v2065 = vsel %vm447, %v2040, %v2042
  %v2066 = vsel %vm447, %v2042, %v2044
  %v2067 = vsel %vm447, %v2044, %v2046
  %v2092 = vsel %vm447, 0.0, %v2000
  %v2093 = vsel %vm447, 0.0, %v2016
  %v2094 = vsel %vm447, 0.0, %v2032
  %v2095 = vmul.f32 %v2092, %v471
  %v2096 = vmul.f32 %v2047, %v475
  %v2097 = vmul.f32 %v2048, %v479
  %v2098 = vmul.f32 %v2049, %v483
  %v2099 = vmul.f32 %v2050, %v487
  %v2100 = vmul.f32 %v2051, %v491
  %v2101 = vmul.f32 %v2052, %v495
  %v2102 = vmul.f32 %v2053, %v499
  %v2103 = vmul.f32 %v2093, %v471
  %v2104 = vmul.f32 %v2054, %v475
  %v2105 = vmul.f32 %v2055, %v479
  %v2106 = vmul.f32 %v2056, %v483
  %v2107 = vmul.f32 %v2057, %v487
  %v2108 = vmul.f32 %v2058, %v491
  %v2109 = vmul.f32 %v2059, %v495
  %v2110 = vmul.f32 %v2060, %v499
  %v2111 = vmul.f32 %v2094, %v471
  %v2112 = vmul.f32 %v2061, %v475
  %v2113 = vmul.f32 %v2062, %v479
  %v2114 = vmul.f32 %v2063, %v483
  %v2115 = vmul.f32 %v2064, %v487
  %v2116 = vmul.f32 %v2065, %v491
  %v2117 = vmul.f32 %v2066, %v495
  %v2118 = vmul.f32 %v2067, %v499
  %2119 = vset.pattern.permute.xlu0 0
  %2120 = vperm.xlu0 %2119, %v1933
  %v2121 = vpop.permute.xlu0 %2120
  %2123 = vset.pattern.permute.xlu0 0
  %2124 = vperm.xlu0 %2123, %v1934
  %v2125 = vpop.permute.xlu0 %2124
  %2127 = vset.pattern.permute.xlu0 0
  %2128 = vperm.xlu0 %2127, %v1935
  %v2129 = vpop.permute.xlu0 %2128
  %v2131 = vmul.f32 %v2121, %v2095
  %v2132 = vmul.f32 %v2121, %v2096
  %v2133 = vmul.f32 %v2121, %v2097
  %v2134 = vmul.f32 %v2121, %v2098
  %v2135 = vmul.f32 %v2121, %v2099
  %v2136 = vmul.f32 %v2121, %v2100
  %v2137 = vmul.f32 %v2121, %v2101
  %v2138 = vmul.f32 %v2121, %v2102
  %v2139 = vmul.f32 %v2125, %v2103
  %v2140 = vmul.f32 %v2125, %v2104
  %v2141 = vmul.f32 %v2125, %v2105
  %v2142 = vmul.f32 %v2125, %v2106
  %v2143 = vmul.f32 %v2125, %v2107
  %v2144 = vmul.f32 %v2125, %v2108
  %v2145 = vmul.f32 %v2125, %v2109
  %v2146 = vmul.f32 %v2125, %v2110
  %v2147 = vmul.f32 %v2129, %v2111
  %v2148 = vmul.f32 %v2129, %v2112
  %v2149 = vmul.f32 %v2129, %v2113
  %v2150 = vmul.f32 %v2129, %v2114
  %v2151 = vmul.f32 %v2129, %v2115
  %v2152 = vmul.f32 %v2129, %v2116
  %v2153 = vmul.f32 %v2129, %v2117
  %v2154 = vmul.f32 %v2129, %v2118
  %v2155 = vadd.f32 %v1951, %v2131
  %v2156 = vadd.f32 %v1952, %v2132
  %v2157 = vadd.f32 %v1953, %v2133
  %v2158 = vadd.f32 %v1954, %v2134
  %v2159 = vadd.f32 %v1955, %v2135
  %v2160 = vadd.f32 %v1956, %v2136
  %v2161 = vadd.f32 %v1957, %v2137
  %v2162 = vadd.f32 %v1958, %v2138
  %v2163 = vadd.f32 %v1959, %v2139
  %v2164 = vadd.f32 %v1960, %v2140
  %v2165 = vadd.f32 %v1961, %v2141
  %v2166 = vadd.f32 %v1962, %v2142
  %v2167 = vadd.f32 %v1963, %v2143
  %v2168 = vadd.f32 %v1964, %v2144
  %v2169 = vadd.f32 %v1965, %v2145
  %v2170 = vadd.f32 %v1966, %v2146
  %v2171 = vadd.f32 %v1967, %v2147
  %v2172 = vadd.f32 %v1968, %v2148
  %v2173 = vadd.f32 %v1969, %v2149
  %v2174 = vadd.f32 %v1970, %v2150
  %v2175 = vadd.f32 %v1971, %v2151
  %v2176 = vadd.f32 %v1972, %v2152
  %v2177 = vadd.f32 %v1973, %v2153
  %v2178 = vadd.f32 %v1974, %v2154
  %2179 = vrot.lane.b32.xlu0 %v1909, 32
  %v2180 = vpop.permute.xlu0 %2179
  %2181 = vrot.lane.b32.xlu0 %v1910, 32
  %v2182 = vpop.permute.xlu0 %2181
  %2183 = vrot.lane.b32.xlu0 %v1911, 32
  %v2184 = vpop.permute.xlu0 %2183
  %2185 = vrot.lane.b32.xlu0 %v1912, 32
  %v2186 = vpop.permute.xlu0 %2185
  %2187 = vrot.lane.b32.xlu0 %v1913, 32
  %v2188 = vpop.permute.xlu0 %2187
  %2189 = vrot.lane.b32.xlu0 %v1914, 32
  %v2190 = vpop.permute.xlu0 %2189
  %2191 = vrot.lane.b32.xlu0 %v1915, 32
  %v2192 = vpop.permute.xlu0 %2191
  %2193 = vrot.lane.b32.xlu0 %v1916, 32
  %v2194 = vpop.permute.xlu0 %2193
  %2195 = vrot.lane.b32.xlu0 %v1917, 32
  %v2196 = vpop.permute.xlu0 %2195
  %2197 = vrot.lane.b32.xlu0 %v1918, 32
  %v2198 = vpop.permute.xlu0 %2197
  %2199 = vrot.lane.b32.xlu0 %v1919, 32
  %v2200 = vpop.permute.xlu0 %2199
  %2201 = vrot.lane.b32.xlu0 %v1920, 32
  %v2202 = vpop.permute.xlu0 %2201
  %2203 = vrot.lane.b32.xlu0 %v1921, 32
  %v2204 = vpop.permute.xlu0 %2203
  %2205 = vrot.lane.b32.xlu0 %v1922, 32
  %v2206 = vpop.permute.xlu0 %2205
  %2207 = vrot.lane.b32.xlu0 %v1923, 32
  %v2208 = vpop.permute.xlu0 %2207
  %2209 = vrot.lane.b32.xlu0 %v1924, 32
  %v2210 = vpop.permute.xlu0 %2209
  %2211 = vrot.lane.b32.xlu0 %v1925, 32
  %v2212 = vpop.permute.xlu0 %2211
  %2213 = vrot.lane.b32.xlu0 %v1926, 32
  %v2214 = vpop.permute.xlu0 %2213
  %2215 = vrot.lane.b32.xlu0 %v1927, 32
  %v2216 = vpop.permute.xlu0 %2215
  %2217 = vrot.lane.b32.xlu0 %v1928, 32
  %v2218 = vpop.permute.xlu0 %2217
  %2219 = vrot.lane.b32.xlu0 %v1929, 32
  %v2220 = vpop.permute.xlu0 %2219
  %2221 = vrot.lane.b32.xlu0 %v1930, 32
  %v2222 = vpop.permute.xlu0 %2221
  %2223 = vrot.lane.b32.xlu0 %v1931, 32
  %v2224 = vpop.permute.xlu0 %2223
  %2225 = vrot.lane.b32.xlu0 %v1932, 32
  %v2226 = vpop.permute.xlu0 %2225
  %v2227 = vsel %vm552, %v2180, %v2182
  %v2228 = vsel %vm552, %v2182, %v2184
  %v2229 = vsel %vm552, %v2184, %v2186
  %v2230 = vsel %vm552, %v2186, %v2188
  %v2231 = vsel %vm552, %v2188, %v2190
  %v2232 = vsel %vm552, %v2190, %v2192
  %v2233 = vsel %vm552, %v2192, %v2194
  %v2234 = vsel %vm552, %v2196, %v2198
  %v2235 = vsel %vm552, %v2198, %v2200
  %v2236 = vsel %vm552, %v2200, %v2202
  %v2237 = vsel %vm552, %v2202, %v2204
  %v2238 = vsel %vm552, %v2204, %v2206
  %v2239 = vsel %vm552, %v2206, %v2208
  %v2240 = vsel %vm552, %v2208, %v2210
  %v2241 = vsel %vm552, %v2212, %v2214
  %v2242 = vsel %vm552, %v2214, %v2216
  %v2243 = vsel %vm552, %v2216, %v2218
  %v2244 = vsel %vm552, %v2218, %v2220
  %v2245 = vsel %vm552, %v2220, %v2222
  %v2246 = vsel %vm552, %v2222, %v2224
  %v2247 = vsel %vm552, %v2224, %v2226
  %v2272 = vsel %vm552, 0.0, %v2180
  %v2273 = vsel %vm552, 0.0, %v2196
  %v2274 = vsel %vm552, 0.0, %v2212
  %2275 = vset.pattern.permute.xlu0 1
  %2276 = vperm.xlu0 %2275, %v1933
  %v2277 = vpop.permute.xlu0 %2276
  %2279 = vset.pattern.permute.xlu0 1
  %2280 = vperm.xlu0 %2279, %v1934
  %v2281 = vpop.permute.xlu0 %2280
  %2283 = vset.pattern.permute.xlu0 1
  %2284 = vperm.xlu0 %2283, %v1935
  %v2285 = vpop.permute.xlu0 %2284
  %v2287 = vmul.f32 %v2277, %v2272
  %v2288 = vmul.f32 %v2277, %v2227
  %v2289 = vmul.f32 %v2277, %v2228
  %v2290 = vmul.f32 %v2277, %v2229
  %v2291 = vmul.f32 %v2277, %v2230
  %v2292 = vmul.f32 %v2277, %v2231
  %v2293 = vmul.f32 %v2277, %v2232
  %v2294 = vmul.f32 %v2277, %v2233
  %v2295 = vmul.f32 %v2281, %v2273
  %v2296 = vmul.f32 %v2281, %v2234
  %v2297 = vmul.f32 %v2281, %v2235
  %v2298 = vmul.f32 %v2281, %v2236
  %v2299 = vmul.f32 %v2281, %v2237
  %v2300 = vmul.f32 %v2281, %v2238
  %v2301 = vmul.f32 %v2281, %v2239
  %v2302 = vmul.f32 %v2281, %v2240
  %v2303 = vmul.f32 %v2285, %v2274
  %v2304 = vmul.f32 %v2285, %v2241
  %v2305 = vmul.f32 %v2285, %v2242
  %v2306 = vmul.f32 %v2285, %v2243
  %v2307 = vmul.f32 %v2285, %v2244
  %v2308 = vmul.f32 %v2285, %v2245
  %v2309 = vmul.f32 %v2285, %v2246
  %v2310 = vmul.f32 %v2285, %v2247
  %v2311 = vadd.f32 %v2155, %v2287
  %v2312 = vadd.f32 %v2156, %v2288
  %v2313 = vadd.f32 %v2157, %v2289
  %v2314 = vadd.f32 %v2158, %v2290
  %v2315 = vadd.f32 %v2159, %v2291
  %v2316 = vadd.f32 %v2160, %v2292
  %v2317 = vadd.f32 %v2161, %v2293
  %v2318 = vadd.f32 %v2162, %v2294
  %v2319 = vadd.f32 %v2163, %v2295
  %v2320 = vadd.f32 %v2164, %v2296
  %v2321 = vadd.f32 %v2165, %v2297
  %v2322 = vadd.f32 %v2166, %v2298
  %v2323 = vadd.f32 %v2167, %v2299
  %v2324 = vadd.f32 %v2168, %v2300
  %v2325 = vadd.f32 %v2169, %v2301
  %v2326 = vadd.f32 %v2170, %v2302
  %v2327 = vadd.f32 %v2171, %v2303
  %v2328 = vadd.f32 %v2172, %v2304
  %v2329 = vadd.f32 %v2173, %v2305
  %v2330 = vadd.f32 %v2174, %v2306
  %v2331 = vadd.f32 %v2175, %v2307
  %v2332 = vadd.f32 %v2176, %v2308
  %v2333 = vadd.f32 %v2177, %v2309
  %v2334 = vadd.f32 %v2178, %v2310
  %2335 = vrot.lane.b32.xlu0 %v1909, 31
  %v2336 = vpop.permute.xlu0 %2335
  %2337 = vrot.lane.b32.xlu0 %v1910, 31
  %v2338 = vpop.permute.xlu0 %2337
  %2339 = vrot.lane.b32.xlu0 %v1911, 31
  %v2340 = vpop.permute.xlu0 %2339
  %2341 = vrot.lane.b32.xlu0 %v1912, 31
  %v2342 = vpop.permute.xlu0 %2341
  %2343 = vrot.lane.b32.xlu0 %v1913, 31
  %v2344 = vpop.permute.xlu0 %2343
  %2345 = vrot.lane.b32.xlu0 %v1914, 31
  %v2346 = vpop.permute.xlu0 %2345
  %2347 = vrot.lane.b32.xlu0 %v1915, 31
  %v2348 = vpop.permute.xlu0 %2347
  %2349 = vrot.lane.b32.xlu0 %v1916, 31
  %v2350 = vpop.permute.xlu0 %2349
  %2351 = vrot.lane.b32.xlu0 %v1917, 31
  %v2352 = vpop.permute.xlu0 %2351
  %2353 = vrot.lane.b32.xlu0 %v1918, 31
  %v2354 = vpop.permute.xlu0 %2353
  %2355 = vrot.lane.b32.xlu0 %v1919, 31
  %v2356 = vpop.permute.xlu0 %2355
  %2357 = vrot.lane.b32.xlu0 %v1920, 31
  %v2358 = vpop.permute.xlu0 %2357
  %2359 = vrot.lane.b32.xlu0 %v1921, 31
  %v2360 = vpop.permute.xlu0 %2359
  %2361 = vrot.lane.b32.xlu0 %v1922, 31
  %v2362 = vpop.permute.xlu0 %2361
  %2363 = vrot.lane.b32.xlu0 %v1923, 31
  %v2364 = vpop.permute.xlu0 %2363
  %2365 = vrot.lane.b32.xlu0 %v1924, 31
  %v2366 = vpop.permute.xlu0 %2365
  %2367 = vrot.lane.b32.xlu0 %v1925, 31
  %v2368 = vpop.permute.xlu0 %2367
  %2369 = vrot.lane.b32.xlu0 %v1926, 31
  %v2370 = vpop.permute.xlu0 %2369
  %2371 = vrot.lane.b32.xlu0 %v1927, 31
  %v2372 = vpop.permute.xlu0 %2371
  %2373 = vrot.lane.b32.xlu0 %v1928, 31
  %v2374 = vpop.permute.xlu0 %2373
  %2375 = vrot.lane.b32.xlu0 %v1929, 31
  %v2376 = vpop.permute.xlu0 %2375
  %2377 = vrot.lane.b32.xlu0 %v1930, 31
  %v2378 = vpop.permute.xlu0 %2377
  %2379 = vrot.lane.b32.xlu0 %v1931, 31
  %v2380 = vpop.permute.xlu0 %2379
  %2381 = vrot.lane.b32.xlu0 %v1932, 31
  %v2382 = vpop.permute.xlu0 %2381
  %v2383 = vsel %vm605, %v2336, %v2338
  %v2384 = vsel %vm605, %v2338, %v2340
  %v2385 = vsel %vm605, %v2340, %v2342
  %v2386 = vsel %vm605, %v2342, %v2344
  %v2387 = vsel %vm605, %v2344, %v2346
  %v2388 = vsel %vm605, %v2346, %v2348
  %v2389 = vsel %vm605, %v2348, %v2350
  %v2390 = vsel %vm605, %v2352, %v2354
  %v2391 = vsel %vm605, %v2354, %v2356
  %v2392 = vsel %vm605, %v2356, %v2358
  %v2393 = vsel %vm605, %v2358, %v2360
  %v2394 = vsel %vm605, %v2360, %v2362
  %v2395 = vsel %vm605, %v2362, %v2364
  %v2396 = vsel %vm605, %v2364, %v2366
  %v2397 = vsel %vm605, %v2368, %v2370
  %v2398 = vsel %vm605, %v2370, %v2372
  %v2399 = vsel %vm605, %v2372, %v2374
  %v2400 = vsel %vm605, %v2374, %v2376
  %v2401 = vsel %vm605, %v2376, %v2378
  %v2402 = vsel %vm605, %v2378, %v2380
  %v2403 = vsel %vm605, %v2380, %v2382
  %v2428 = vsel %vm605, 0.0, %v2336
  %v2429 = vsel %vm605, 0.0, %v2352
  %v2430 = vsel %vm605, 0.0, %v2368
  %v2431 = vmul.f32 %v2428, %v630
  %v2432 = vmul.f32 %v2383, %v634
  %v2433 = vmul.f32 %v2384, %v638
  %v2434 = vmul.f32 %v2385, %v642
  %v2435 = vmul.f32 %v2386, %v646
  %v2436 = vmul.f32 %v2387, %v650
  %v2437 = vmul.f32 %v2388, %v654
  %v2438 = vmul.f32 %v2389, %v658
  %v2439 = vmul.f32 %v2429, %v630
  %v2440 = vmul.f32 %v2390, %v634
  %v2441 = vmul.f32 %v2391, %v638
  %v2442 = vmul.f32 %v2392, %v642
  %v2443 = vmul.f32 %v2393, %v646
  %v2444 = vmul.f32 %v2394, %v650
  %v2445 = vmul.f32 %v2395, %v654
  %v2446 = vmul.f32 %v2396, %v658
  %v2447 = vmul.f32 %v2430, %v630
  %v2448 = vmul.f32 %v2397, %v634
  %v2449 = vmul.f32 %v2398, %v638
  %v2450 = vmul.f32 %v2399, %v642
  %v2451 = vmul.f32 %v2400, %v646
  %v2452 = vmul.f32 %v2401, %v650
  %v2453 = vmul.f32 %v2402, %v654
  %v2454 = vmul.f32 %v2403, %v658
  %2455 = vset.pattern.permute.xlu0 2
  %2456 = vperm.xlu0 %2455, %v1933
  %v2457 = vpop.permute.xlu0 %2456
  %2459 = vset.pattern.permute.xlu0 2
  %2460 = vperm.xlu0 %2459, %v1934
  %v2461 = vpop.permute.xlu0 %2460
  %2463 = vset.pattern.permute.xlu0 2
  %2464 = vperm.xlu0 %2463, %v1935
  %v2465 = vpop.permute.xlu0 %2464
  %v2467 = vmul.f32 %v2457, %v2431
  %v2468 = vmul.f32 %v2457, %v2432
  %v2469 = vmul.f32 %v2457, %v2433
  %v2470 = vmul.f32 %v2457, %v2434
  %v2471 = vmul.f32 %v2457, %v2435
  %v2472 = vmul.f32 %v2457, %v2436
  %v2473 = vmul.f32 %v2457, %v2437
  %v2474 = vmul.f32 %v2457, %v2438
  %v2475 = vmul.f32 %v2461, %v2439
  %v2476 = vmul.f32 %v2461, %v2440
  %v2477 = vmul.f32 %v2461, %v2441
  %v2478 = vmul.f32 %v2461, %v2442
  %v2479 = vmul.f32 %v2461, %v2443
  %v2480 = vmul.f32 %v2461, %v2444
  %v2481 = vmul.f32 %v2461, %v2445
  %v2482 = vmul.f32 %v2461, %v2446
  %v2483 = vmul.f32 %v2465, %v2447
  %v2484 = vmul.f32 %v2465, %v2448
  %v2485 = vmul.f32 %v2465, %v2449
  %v2486 = vmul.f32 %v2465, %v2450
  %v2487 = vmul.f32 %v2465, %v2451
  %v2488 = vmul.f32 %v2465, %v2452
  %v2489 = vmul.f32 %v2465, %v2453
  %v2490 = vmul.f32 %v2465, %v2454
  %v2491 = vadd.f32 %v2311, %v2467
  %v2492 = vadd.f32 %v2312, %v2468
  %v2493 = vadd.f32 %v2313, %v2469
  %v2494 = vadd.f32 %v2314, %v2470
  %v2495 = vadd.f32 %v2315, %v2471
  %v2496 = vadd.f32 %v2316, %v2472
  %v2497 = vadd.f32 %v2317, %v2473
  %v2498 = vadd.f32 %v2318, %v2474
  %v2499 = vadd.f32 %v2319, %v2475
  %v2500 = vadd.f32 %v2320, %v2476
  %v2501 = vadd.f32 %v2321, %v2477
  %v2502 = vadd.f32 %v2322, %v2478
  %v2503 = vadd.f32 %v2323, %v2479
  %v2504 = vadd.f32 %v2324, %v2480
  %v2505 = vadd.f32 %v2325, %v2481
  %v2506 = vadd.f32 %v2326, %v2482
  %v2507 = vadd.f32 %v2327, %v2483
  %v2508 = vadd.f32 %v2328, %v2484
  %v2509 = vadd.f32 %v2329, %v2485
  %v2510 = vadd.f32 %v2330, %v2486
  %v2511 = vadd.f32 %v2331, %v2487
  %v2512 = vadd.f32 %v2332, %v2488
  %v2513 = vadd.f32 %v2333, %v2489
  %v2514 = vadd.f32 %v2334, %v2490
  %2515 = vrot.lane.b32.xlu0 %v1909, 1
  %v2516 = vpop.permute.xlu0 %2515
  %2517 = vrot.lane.b32.xlu0 %v1910, 1
  %v2518 = vpop.permute.xlu0 %2517
  %2519 = vrot.lane.b32.xlu0 %v1911, 1
  %v2520 = vpop.permute.xlu0 %2519
  %2521 = vrot.lane.b32.xlu0 %v1912, 1
  %v2522 = vpop.permute.xlu0 %2521
  %2523 = vrot.lane.b32.xlu0 %v1913, 1
  %v2524 = vpop.permute.xlu0 %2523
  %2525 = vrot.lane.b32.xlu0 %v1914, 1
  %v2526 = vpop.permute.xlu0 %2525
  %2527 = vrot.lane.b32.xlu0 %v1915, 1
  %v2528 = vpop.permute.xlu0 %2527
  %2529 = vrot.lane.b32.xlu0 %v1916, 1
  %v2530 = vpop.permute.xlu0 %2529
  %2531 = vrot.lane.b32.xlu0 %v1917, 1
  %v2532 = vpop.permute.xlu0 %2531
  %2533 = vrot.lane.b32.xlu0 %v1918, 1
  %v2534 = vpop.permute.xlu0 %2533
  %2535 = vrot.lane.b32.xlu0 %v1919, 1
  %v2536 = vpop.permute.xlu0 %2535
  %2537 = vrot.lane.b32.xlu0 %v1920, 1
  %v2538 = vpop.permute.xlu0 %2537
  %2539 = vrot.lane.b32.xlu0 %v1921, 1
  %v2540 = vpop.permute.xlu0 %2539
  %2541 = vrot.lane.b32.xlu0 %v1922, 1
  %v2542 = vpop.permute.xlu0 %2541
  %2543 = vrot.lane.b32.xlu0 %v1923, 1
  %v2544 = vpop.permute.xlu0 %2543
  %2545 = vrot.lane.b32.xlu0 %v1924, 1
  %v2546 = vpop.permute.xlu0 %2545
  %2547 = vrot.lane.b32.xlu0 %v1925, 1
  %v2548 = vpop.permute.xlu0 %2547
  %2549 = vrot.lane.b32.xlu0 %v1926, 1
  %v2550 = vpop.permute.xlu0 %2549
  %2551 = vrot.lane.b32.xlu0 %v1927, 1
  %v2552 = vpop.permute.xlu0 %2551
  %2553 = vrot.lane.b32.xlu0 %v1928, 1
  %v2554 = vpop.permute.xlu0 %2553
  %2555 = vrot.lane.b32.xlu0 %v1929, 1
  %v2556 = vpop.permute.xlu0 %2555
  %2557 = vrot.lane.b32.xlu0 %v1930, 1
  %v2558 = vpop.permute.xlu0 %2557
  %2559 = vrot.lane.b32.xlu0 %v1931, 1
  %v2560 = vpop.permute.xlu0 %2559
  %2561 = vrot.lane.b32.xlu0 %v1932, 1
  %v2562 = vpop.permute.xlu0 %2561
  %v2563 = vsel %vm711, %v2516, %v2518
  %v2564 = vsel %vm711, %v2518, %v2520
  %v2565 = vsel %vm711, %v2520, %v2522
  %v2566 = vsel %vm711, %v2522, %v2524
  %v2567 = vsel %vm711, %v2524, %v2526
  %v2568 = vsel %vm711, %v2526, %v2528
  %v2569 = vsel %vm711, %v2528, %v2530
  %v2570 = vsel %vm711, %v2532, %v2534
  %v2571 = vsel %vm711, %v2534, %v2536
  %v2572 = vsel %vm711, %v2536, %v2538
  %v2573 = vsel %vm711, %v2538, %v2540
  %v2574 = vsel %vm711, %v2540, %v2542
  %v2575 = vsel %vm711, %v2542, %v2544
  %v2576 = vsel %vm711, %v2544, %v2546
  %v2577 = vsel %vm711, %v2548, %v2550
  %v2578 = vsel %vm711, %v2550, %v2552
  %v2579 = vsel %vm711, %v2552, %v2554
  %v2580 = vsel %vm711, %v2554, %v2556
  %v2581 = vsel %vm711, %v2556, %v2558
  %v2582 = vsel %vm711, %v2558, %v2560
  %v2583 = vsel %vm711, %v2560, %v2562
  %v2608 = vsel %vm711, 0.0, %v2516
  %v2609 = vsel %vm711, 0.0, %v2532
  %v2610 = vsel %vm711, 0.0, %v2548
  %v2611 = vmul.f32 %v2608, %v736
  %v2612 = vmul.f32 %v2563, %v740
  %v2613 = vmul.f32 %v2564, %v744
  %v2614 = vmul.f32 %v2565, %v748
  %v2615 = vmul.f32 %v2566, %v752
  %v2616 = vmul.f32 %v2567, %v756
  %v2617 = vmul.f32 %v2568, %v760
  %v2618 = vmul.f32 %v2569, %v764
  %v2619 = vmul.f32 %v2609, %v736
  %v2620 = vmul.f32 %v2570, %v740
  %v2621 = vmul.f32 %v2571, %v744
  %v2622 = vmul.f32 %v2572, %v748
  %v2623 = vmul.f32 %v2573, %v752
  %v2624 = vmul.f32 %v2574, %v756
  %v2625 = vmul.f32 %v2575, %v760
  %v2626 = vmul.f32 %v2576, %v764
  %v2627 = vmul.f32 %v2610, %v736
  %v2628 = vmul.f32 %v2577, %v740
  %v2629 = vmul.f32 %v2578, %v744
  %v2630 = vmul.f32 %v2579, %v748
  %v2631 = vmul.f32 %v2580, %v752
  %v2632 = vmul.f32 %v2581, %v756
  %v2633 = vmul.f32 %v2582, %v760
  %v2634 = vmul.f32 %v2583, %v764
  %2635 = vset.pattern.permute.xlu0 3
  %2636 = vperm.xlu0 %2635, %v1933
  %v2637 = vpop.permute.xlu0 %2636
  %2639 = vset.pattern.permute.xlu0 3
  %2640 = vperm.xlu0 %2639, %v1934
  %v2641 = vpop.permute.xlu0 %2640
  %2643 = vset.pattern.permute.xlu0 3
  %2644 = vperm.xlu0 %2643, %v1935
  %v2645 = vpop.permute.xlu0 %2644
  %v2647 = vmul.f32 %v2637, %v2611
  %v2648 = vmul.f32 %v2637, %v2612
  %v2649 = vmul.f32 %v2637, %v2613
  %v2650 = vmul.f32 %v2637, %v2614
  %v2651 = vmul.f32 %v2637, %v2615
  %v2652 = vmul.f32 %v2637, %v2616
  %v2653 = vmul.f32 %v2637, %v2617
  %v2654 = vmul.f32 %v2637, %v2618
  %v2655 = vmul.f32 %v2641, %v2619
  %v2656 = vmul.f32 %v2641, %v2620
  %v2657 = vmul.f32 %v2641, %v2621
  %v2658 = vmul.f32 %v2641, %v2622
  %v2659 = vmul.f32 %v2641, %v2623
  %v2660 = vmul.f32 %v2641, %v2624
  %v2661 = vmul.f32 %v2641, %v2625
  %v2662 = vmul.f32 %v2641, %v2626
  %v2663 = vmul.f32 %v2645, %v2627
  %v2664 = vmul.f32 %v2645, %v2628
  %v2665 = vmul.f32 %v2645, %v2629
  %v2666 = vmul.f32 %v2645, %v2630
  %v2667 = vmul.f32 %v2645, %v2631
  %v2668 = vmul.f32 %v2645, %v2632
  %v2669 = vmul.f32 %v2645, %v2633
  %v2670 = vmul.f32 %v2645, %v2634
  %v2671 = vadd.f32 %v2491, %v2647
  %v2672 = vadd.f32 %v2492, %v2648
  %v2673 = vadd.f32 %v2493, %v2649
  %v2674 = vadd.f32 %v2494, %v2650
  %v2675 = vadd.f32 %v2495, %v2651
  %v2676 = vadd.f32 %v2496, %v2652
  %v2677 = vadd.f32 %v2497, %v2653
  %v2678 = vadd.f32 %v2498, %v2654
  %v2679 = vadd.f32 %v2499, %v2655
  %v2680 = vadd.f32 %v2500, %v2656
  %v2681 = vadd.f32 %v2501, %v2657
  %v2682 = vadd.f32 %v2502, %v2658
  %v2683 = vadd.f32 %v2503, %v2659
  %v2684 = vadd.f32 %v2504, %v2660
  %v2685 = vadd.f32 %v2505, %v2661
  %v2686 = vadd.f32 %v2506, %v2662
  %v2687 = vadd.f32 %v2507, %v2663
  %v2688 = vadd.f32 %v2508, %v2664
  %v2689 = vadd.f32 %v2509, %v2665
  %v2690 = vadd.f32 %v2510, %v2666
  %v2691 = vadd.f32 %v2511, %v2667
  %v2692 = vadd.f32 %v2512, %v2668
  %v2693 = vadd.f32 %v2513, %v2669
  %v2694 = vadd.f32 %v2514, %v2670
  %2695 = vrot.lane.b32.xlu0 %v1909, 127
  %v2696 = vpop.permute.xlu0 %2695
  %2697 = vrot.lane.b32.xlu0 %v1910, 127
  %v2698 = vpop.permute.xlu0 %2697
  %2699 = vrot.lane.b32.xlu0 %v1911, 127
  %v2700 = vpop.permute.xlu0 %2699
  %2701 = vrot.lane.b32.xlu0 %v1912, 127
  %v2702 = vpop.permute.xlu0 %2701
  %2703 = vrot.lane.b32.xlu0 %v1913, 127
  %v2704 = vpop.permute.xlu0 %2703
  %2705 = vrot.lane.b32.xlu0 %v1914, 127
  %v2706 = vpop.permute.xlu0 %2705
  %2707 = vrot.lane.b32.xlu0 %v1915, 127
  %v2708 = vpop.permute.xlu0 %2707
  %2709 = vrot.lane.b32.xlu0 %v1916, 127
  %v2710 = vpop.permute.xlu0 %2709
  %2711 = vrot.lane.b32.xlu0 %v1917, 127
  %v2712 = vpop.permute.xlu0 %2711
  %2713 = vrot.lane.b32.xlu0 %v1918, 127
  %v2714 = vpop.permute.xlu0 %2713
  %2715 = vrot.lane.b32.xlu0 %v1919, 127
  %v2716 = vpop.permute.xlu0 %2715
  %2717 = vrot.lane.b32.xlu0 %v1920, 127
  %v2718 = vpop.permute.xlu0 %2717
  %2719 = vrot.lane.b32.xlu0 %v1921, 127
  %v2720 = vpop.permute.xlu0 %2719
  %2721 = vrot.lane.b32.xlu0 %v1922, 127
  %v2722 = vpop.permute.xlu0 %2721
  %2723 = vrot.lane.b32.xlu0 %v1923, 127
  %v2724 = vpop.permute.xlu0 %2723
  %2725 = vrot.lane.b32.xlu0 %v1924, 127
  %v2726 = vpop.permute.xlu0 %2725
  %2727 = vrot.lane.b32.xlu0 %v1925, 127
  %v2728 = vpop.permute.xlu0 %2727
  %2729 = vrot.lane.b32.xlu0 %v1926, 127
  %v2730 = vpop.permute.xlu0 %2729
  %2731 = vrot.lane.b32.xlu0 %v1927, 127
  %v2732 = vpop.permute.xlu0 %2731
  %2733 = vrot.lane.b32.xlu0 %v1928, 127
  %v2734 = vpop.permute.xlu0 %2733
  %2735 = vrot.lane.b32.xlu0 %v1929, 127
  %v2736 = vpop.permute.xlu0 %2735
  %2737 = vrot.lane.b32.xlu0 %v1930, 127
  %v2738 = vpop.permute.xlu0 %2737
  %2739 = vrot.lane.b32.xlu0 %v1931, 127
  %v2740 = vpop.permute.xlu0 %2739
  %2741 = vrot.lane.b32.xlu0 %v1932, 127
  %v2742 = vpop.permute.xlu0 %2741
  %v2743 = vsel %vm817, %v2696, %v2698
  %v2744 = vsel %vm817, %v2698, %v2700
  %v2745 = vsel %vm817, %v2700, %v2702
  %v2746 = vsel %vm817, %v2702, %v2704
  %v2747 = vsel %vm817, %v2704, %v2706
  %v2748 = vsel %vm817, %v2706, %v2708
  %v2749 = vsel %vm817, %v2708, %v2710
  %v2750 = vsel %vm817, %v2712, %v2714
  %v2751 = vsel %vm817, %v2714, %v2716
  %v2752 = vsel %vm817, %v2716, %v2718
  %v2753 = vsel %vm817, %v2718, %v2720
  %v2754 = vsel %vm817, %v2720, %v2722
  %v2755 = vsel %vm817, %v2722, %v2724
  %v2756 = vsel %vm817, %v2724, %v2726
  %v2757 = vsel %vm817, %v2728, %v2730
  %v2758 = vsel %vm817, %v2730, %v2732
  %v2759 = vsel %vm817, %v2732, %v2734
  %v2760 = vsel %vm817, %v2734, %v2736
  %v2761 = vsel %vm817, %v2736, %v2738
  %v2762 = vsel %vm817, %v2738, %v2740
  %v2763 = vsel %vm817, %v2740, %v2742
  %v2788 = vsel %vm817, %v2710, 0.0
  %v2789 = vsel %vm817, %v2726, 0.0
  %v2790 = vsel %vm817, %v2742, 0.0
  %v2791 = vmul.f32 %v2743, %v842
  %v2792 = vmul.f32 %v2744, %v846
  %v2793 = vmul.f32 %v2745, %v850
  %v2794 = vmul.f32 %v2746, %v854
  %v2795 = vmul.f32 %v2747, %v858
  %v2796 = vmul.f32 %v2748, %v862
  %v2797 = vmul.f32 %v2749, %v866
  %v2798 = vmul.f32 %v2788, %v870
  %v2799 = vmul.f32 %v2750, %v842
  %v2800 = vmul.f32 %v2751, %v846
  %v2801 = vmul.f32 %v2752, %v850
  %v2802 = vmul.f32 %v2753, %v854
  %v2803 = vmul.f32 %v2754, %v858
  %v2804 = vmul.f32 %v2755, %v862
  %v2805 = vmul.f32 %v2756, %v866
  %v2806 = vmul.f32 %v2789, %v870
  %v2807 = vmul.f32 %v2757, %v842
  %v2808 = vmul.f32 %v2758, %v846
  %v2809 = vmul.f32 %v2759, %v850
  %v2810 = vmul.f32 %v2760, %v854
  %v2811 = vmul.f32 %v2761, %v858
  %v2812 = vmul.f32 %v2762, %v862
  %v2813 = vmul.f32 %v2763, %v866
  %v2814 = vmul.f32 %v2790, %v870
  %2815 = vset.pattern.permute.xlu0 5
  %2816 = vperm.xlu0 %2815, %v1933
  %v2817 = vpop.permute.xlu0 %2816
  %2819 = vset.pattern.permute.xlu0 5
  %2820 = vperm.xlu0 %2819, %v1934
  %v2821 = vpop.permute.xlu0 %2820
  %2823 = vset.pattern.permute.xlu0 5
  %2824 = vperm.xlu0 %2823, %v1935
  %v2825 = vpop.permute.xlu0 %2824
  %v2827 = vmul.f32 %v2817, %v2791
  %v2828 = vmul.f32 %v2817, %v2792
  %v2829 = vmul.f32 %v2817, %v2793
  %v2830 = vmul.f32 %v2817, %v2794
  %v2831 = vmul.f32 %v2817, %v2795
  %v2832 = vmul.f32 %v2817, %v2796
  %v2833 = vmul.f32 %v2817, %v2797
  %v2834 = vmul.f32 %v2817, %v2798
  %v2835 = vmul.f32 %v2821, %v2799
  %v2836 = vmul.f32 %v2821, %v2800
  %v2837 = vmul.f32 %v2821, %v2801
  %v2838 = vmul.f32 %v2821, %v2802
  %v2839 = vmul.f32 %v2821, %v2803
  %v2840 = vmul.f32 %v2821, %v2804
  %v2841 = vmul.f32 %v2821, %v2805
  %v2842 = vmul.f32 %v2821, %v2806
  %v2843 = vmul.f32 %v2825, %v2807
  %v2844 = vmul.f32 %v2825, %v2808
  %v2845 = vmul.f32 %v2825, %v2809
  %v2846 = vmul.f32 %v2825, %v2810
  %v2847 = vmul.f32 %v2825, %v2811
  %v2848 = vmul.f32 %v2825, %v2812
  %v2849 = vmul.f32 %v2825, %v2813
  %v2850 = vmul.f32 %v2825, %v2814
  %v2851 = vadd.f32 %v2671, %v2827
  %v2852 = vadd.f32 %v2672, %v2828
  %v2853 = vadd.f32 %v2673, %v2829
  %v2854 = vadd.f32 %v2674, %v2830
  %v2855 = vadd.f32 %v2675, %v2831
  %v2856 = vadd.f32 %v2676, %v2832
  %v2857 = vadd.f32 %v2677, %v2833
  %v2858 = vadd.f32 %v2678, %v2834
  %v2859 = vadd.f32 %v2679, %v2835
  %v2860 = vadd.f32 %v2680, %v2836
  %v2861 = vadd.f32 %v2681, %v2837
  %v2862 = vadd.f32 %v2682, %v2838
  %v2863 = vadd.f32 %v2683, %v2839
  %v2864 = vadd.f32 %v2684, %v2840
  %v2865 = vadd.f32 %v2685, %v2841
  %v2866 = vadd.f32 %v2686, %v2842
  %v2867 = vadd.f32 %v2687, %v2843
  %v2868 = vadd.f32 %v2688, %v2844
  %v2869 = vadd.f32 %v2689, %v2845
  %v2870 = vadd.f32 %v2690, %v2846
  %v2871 = vadd.f32 %v2691, %v2847
  %v2872 = vadd.f32 %v2692, %v2848
  %v2873 = vadd.f32 %v2693, %v2849
  %v2874 = vadd.f32 %v2694, %v2850
  %2875 = vrot.lane.b32.xlu0 %v1909, 97
  %v2876 = vpop.permute.xlu0 %2875
  %2877 = vrot.lane.b32.xlu0 %v1910, 97
  %v2878 = vpop.permute.xlu0 %2877
  %2879 = vrot.lane.b32.xlu0 %v1911, 97
  %v2880 = vpop.permute.xlu0 %2879
  %2881 = vrot.lane.b32.xlu0 %v1912, 97
  %v2882 = vpop.permute.xlu0 %2881
  %2883 = vrot.lane.b32.xlu0 %v1913, 97
  %v2884 = vpop.permute.xlu0 %2883
  %2885 = vrot.lane.b32.xlu0 %v1914, 97
  %v2886 = vpop.permute.xlu0 %2885
  %2887 = vrot.lane.b32.xlu0 %v1915, 97
  %v2888 = vpop.permute.xlu0 %2887
  %2889 = vrot.lane.b32.xlu0 %v1916, 97
  %v2890 = vpop.permute.xlu0 %2889
  %2891 = vrot.lane.b32.xlu0 %v1917, 97
  %v2892 = vpop.permute.xlu0 %2891
  %2893 = vrot.lane.b32.xlu0 %v1918, 97
  %v2894 = vpop.permute.xlu0 %2893
  %2895 = vrot.lane.b32.xlu0 %v1919, 97
  %v2896 = vpop.permute.xlu0 %2895
  %2897 = vrot.lane.b32.xlu0 %v1920, 97
  %v2898 = vpop.permute.xlu0 %2897
  %2899 = vrot.lane.b32.xlu0 %v1921, 97
  %v2900 = vpop.permute.xlu0 %2899
  %2901 = vrot.lane.b32.xlu0 %v1922, 97
  %v2902 = vpop.permute.xlu0 %2901
  %2903 = vrot.lane.b32.xlu0 %v1923, 97
  %v2904 = vpop.permute.xlu0 %2903
  %2905 = vrot.lane.b32.xlu0 %v1924, 97
  %v2906 = vpop.permute.xlu0 %2905
  %2907 = vrot.lane.b32.xlu0 %v1925, 97
  %v2908 = vpop.permute.xlu0 %2907
  %2909 = vrot.lane.b32.xlu0 %v1926, 97
  %v2910 = vpop.permute.xlu0 %2909
  %2911 = vrot.lane.b32.xlu0 %v1927, 97
  %v2912 = vpop.permute.xlu0 %2911
  %2913 = vrot.lane.b32.xlu0 %v1928, 97
  %v2914 = vpop.permute.xlu0 %2913
  %2915 = vrot.lane.b32.xlu0 %v1929, 97
  %v2916 = vpop.permute.xlu0 %2915
  %2917 = vrot.lane.b32.xlu0 %v1930, 97
  %v2918 = vpop.permute.xlu0 %2917
  %2919 = vrot.lane.b32.xlu0 %v1931, 97
  %v2920 = vpop.permute.xlu0 %2919
  %2921 = vrot.lane.b32.xlu0 %v1932, 97
  %v2922 = vpop.permute.xlu0 %2921
  %v2923 = vsel %vm923, %v2876, %v2878
  %v2924 = vsel %vm923, %v2878, %v2880
  %v2925 = vsel %vm923, %v2880, %v2882
  %v2926 = vsel %vm923, %v2882, %v2884
  %v2927 = vsel %vm923, %v2884, %v2886
  %v2928 = vsel %vm923, %v2886, %v2888
  %v2929 = vsel %vm923, %v2888, %v2890
  %v2930 = vsel %vm923, %v2892, %v2894
  %v2931 = vsel %vm923, %v2894, %v2896
  %v2932 = vsel %vm923, %v2896, %v2898
  %v2933 = vsel %vm923, %v2898, %v2900
  %v2934 = vsel %vm923, %v2900, %v2902
  %v2935 = vsel %vm923, %v2902, %v2904
  %v2936 = vsel %vm923, %v2904, %v2906
  %v2937 = vsel %vm923, %v2908, %v2910
  %v2938 = vsel %vm923, %v2910, %v2912
  %v2939 = vsel %vm923, %v2912, %v2914
  %v2940 = vsel %vm923, %v2914, %v2916
  %v2941 = vsel %vm923, %v2916, %v2918
  %v2942 = vsel %vm923, %v2918, %v2920
  %v2943 = vsel %vm923, %v2920, %v2922
  %v2968 = vsel %vm923, %v2890, 0.0
  %v2969 = vsel %vm923, %v2906, 0.0
  %v2970 = vsel %vm923, %v2922, 0.0
  %v2971 = vmul.f32 %v2923, %v948
  %v2972 = vmul.f32 %v2924, %v952
  %v2973 = vmul.f32 %v2925, %v956
  %v2974 = vmul.f32 %v2926, %v960
  %v2975 = vmul.f32 %v2927, %v964
  %v2976 = vmul.f32 %v2928, %v968
  %v2977 = vmul.f32 %v2929, %v972
  %v2978 = vmul.f32 %v2968, %v976
  %v2979 = vmul.f32 %v2930, %v948
  %v2980 = vmul.f32 %v2931, %v952
  %v2981 = vmul.f32 %v2932, %v956
  %v2982 = vmul.f32 %v2933, %v960
  %v2983 = vmul.f32 %v2934, %v964
  %v2984 = vmul.f32 %v2935, %v968
  %v2985 = vmul.f32 %v2936, %v972
  %v2986 = vmul.f32 %v2969, %v976
  %v2987 = vmul.f32 %v2937, %v948
  %v2988 = vmul.f32 %v2938, %v952
  %v2989 = vmul.f32 %v2939, %v956
  %v2990 = vmul.f32 %v2940, %v960
  %v2991 = vmul.f32 %v2941, %v964
  %v2992 = vmul.f32 %v2942, %v968
  %v2993 = vmul.f32 %v2943, %v972
  %v2994 = vmul.f32 %v2970, %v976
  %2995 = vset.pattern.permute.xlu0 6
  %2996 = vperm.xlu0 %2995, %v1933
  %v2997 = vpop.permute.xlu0 %2996
  %2999 = vset.pattern.permute.xlu0 6
  %3000 = vperm.xlu0 %2999, %v1934
  %v3001 = vpop.permute.xlu0 %3000
  %3003 = vset.pattern.permute.xlu0 6
  %3004 = vperm.xlu0 %3003, %v1935
  %v3005 = vpop.permute.xlu0 %3004
  %v3007 = vmul.f32 %v2997, %v2971
  %v3008 = vmul.f32 %v2997, %v2972
  %v3009 = vmul.f32 %v2997, %v2973
  %v3010 = vmul.f32 %v2997, %v2974
  %v3011 = vmul.f32 %v2997, %v2975
  %v3012 = vmul.f32 %v2997, %v2976
  %v3013 = vmul.f32 %v2997, %v2977
  %v3014 = vmul.f32 %v2997, %v2978
  %v3015 = vmul.f32 %v3001, %v2979
  %v3016 = vmul.f32 %v3001, %v2980
  %v3017 = vmul.f32 %v3001, %v2981
  %v3018 = vmul.f32 %v3001, %v2982
  %v3019 = vmul.f32 %v3001, %v2983
  %v3020 = vmul.f32 %v3001, %v2984
  %v3021 = vmul.f32 %v3001, %v2985
  %v3022 = vmul.f32 %v3001, %v2986
  %v3023 = vmul.f32 %v3005, %v2987
  %v3024 = vmul.f32 %v3005, %v2988
  %v3025 = vmul.f32 %v3005, %v2989
  %v3026 = vmul.f32 %v3005, %v2990
  %v3027 = vmul.f32 %v3005, %v2991
  %v3028 = vmul.f32 %v3005, %v2992
  %v3029 = vmul.f32 %v3005, %v2993
  %v3030 = vmul.f32 %v3005, %v2994
  %v3031 = vadd.f32 %v2851, %v3007
  %v3032 = vadd.f32 %v2852, %v3008
  %v3033 = vadd.f32 %v2853, %v3009
  %v3034 = vadd.f32 %v2854, %v3010
  %v3035 = vadd.f32 %v2855, %v3011
  %v3036 = vadd.f32 %v2856, %v3012
  %v3037 = vadd.f32 %v2857, %v3013
  %v3038 = vadd.f32 %v2858, %v3014
  %v3039 = vadd.f32 %v2859, %v3015
  %v3040 = vadd.f32 %v2860, %v3016
  %v3041 = vadd.f32 %v2861, %v3017
  %v3042 = vadd.f32 %v2862, %v3018
  %v3043 = vadd.f32 %v2863, %v3019
  %v3044 = vadd.f32 %v2864, %v3020
  %v3045 = vadd.f32 %v2865, %v3021
  %v3046 = vadd.f32 %v2866, %v3022
  %v3047 = vadd.f32 %v2867, %v3023
  %v3048 = vadd.f32 %v2868, %v3024
  %v3049 = vadd.f32 %v2869, %v3025
  %v3050 = vadd.f32 %v2870, %v3026
  %v3051 = vadd.f32 %v2871, %v3027
  %v3052 = vadd.f32 %v2872, %v3028
  %v3053 = vadd.f32 %v2873, %v3029
  %v3054 = vadd.f32 %v2874, %v3030
  %3055 = vrot.lane.b32.xlu0 %v1909, 96
  %v3056 = vpop.permute.xlu0 %3055
  %3057 = vrot.lane.b32.xlu0 %v1910, 96
  %v3058 = vpop.permute.xlu0 %3057
  %3059 = vrot.lane.b32.xlu0 %v1911, 96
  %v3060 = vpop.permute.xlu0 %3059
  %3061 = vrot.lane.b32.xlu0 %v1912, 96
  %v3062 = vpop.permute.xlu0 %3061
  %3063 = vrot.lane.b32.xlu0 %v1913, 96
  %v3064 = vpop.permute.xlu0 %3063
  %3065 = vrot.lane.b32.xlu0 %v1914, 96
  %v3066 = vpop.permute.xlu0 %3065
  %3067 = vrot.lane.b32.xlu0 %v1915, 96
  %v3068 = vpop.permute.xlu0 %3067
  %3069 = vrot.lane.b32.xlu0 %v1916, 96
  %v3070 = vpop.permute.xlu0 %3069
  %3071 = vrot.lane.b32.xlu0 %v1917, 96
  %v3072 = vpop.permute.xlu0 %3071
  %3073 = vrot.lane.b32.xlu0 %v1918, 96
  %v3074 = vpop.permute.xlu0 %3073
  %3075 = vrot.lane.b32.xlu0 %v1919, 96
  %v3076 = vpop.permute.xlu0 %3075
  %3077 = vrot.lane.b32.xlu0 %v1920, 96
  %v3078 = vpop.permute.xlu0 %3077
  %3079 = vrot.lane.b32.xlu0 %v1921, 96
  %v3080 = vpop.permute.xlu0 %3079
  %3081 = vrot.lane.b32.xlu0 %v1922, 96
  %v3082 = vpop.permute.xlu0 %3081
  %3083 = vrot.lane.b32.xlu0 %v1923, 96
  %v3084 = vpop.permute.xlu0 %3083
  %3085 = vrot.lane.b32.xlu0 %v1924, 96
  %v3086 = vpop.permute.xlu0 %3085
  %3087 = vrot.lane.b32.xlu0 %v1925, 96
  %v3088 = vpop.permute.xlu0 %3087
  %3089 = vrot.lane.b32.xlu0 %v1926, 96
  %v3090 = vpop.permute.xlu0 %3089
  %3091 = vrot.lane.b32.xlu0 %v1927, 96
  %v3092 = vpop.permute.xlu0 %3091
  %3093 = vrot.lane.b32.xlu0 %v1928, 96
  %v3094 = vpop.permute.xlu0 %3093
  %3095 = vrot.lane.b32.xlu0 %v1929, 96
  %v3096 = vpop.permute.xlu0 %3095
  %3097 = vrot.lane.b32.xlu0 %v1930, 96
  %v3098 = vpop.permute.xlu0 %3097
  %3099 = vrot.lane.b32.xlu0 %v1931, 96
  %v3100 = vpop.permute.xlu0 %3099
  %3101 = vrot.lane.b32.xlu0 %v1932, 96
  %v3102 = vpop.permute.xlu0 %3101
  %v3103 = vsel %vm1029, %v3056, %v3058
  %v3104 = vsel %vm1029, %v3058, %v3060
  %v3105 = vsel %vm1029, %v3060, %v3062
  %v3106 = vsel %vm1029, %v3062, %v3064
  %v3107 = vsel %vm1029, %v3064, %v3066
  %v3108 = vsel %vm1029, %v3066, %v3068
  %v3109 = vsel %vm1029, %v3068, %v3070
  %v3110 = vsel %vm1029, %v3072, %v3074
  %v3111 = vsel %vm1029, %v3074, %v3076
  %v3112 = vsel %vm1029, %v3076, %v3078
  %v3113 = vsel %vm1029, %v3078, %v3080
  %v3114 = vsel %vm1029, %v3080, %v3082
  %v3115 = vsel %vm1029, %v3082, %v3084
  %v3116 = vsel %vm1029, %v3084, %v3086
  %v3117 = vsel %vm1029, %v3088, %v3090
  %v3118 = vsel %vm1029, %v3090, %v3092
  %v3119 = vsel %vm1029, %v3092, %v3094
  %v3120 = vsel %vm1029, %v3094, %v3096
  %v3121 = vsel %vm1029, %v3096, %v3098
  %v3122 = vsel %vm1029, %v3098, %v3100
  %v3123 = vsel %vm1029, %v3100, %v3102
  %v3148 = vsel %vm1029, %v3070, 0.0
  %v3149 = vsel %vm1029, %v3086, 0.0
  %v3150 = vsel %vm1029, %v3102, 0.0
  %3151 = vset.pattern.permute.xlu0 7
  %3152 = vperm.xlu0 %3151, %v1933
  %v3153 = vpop.permute.xlu0 %3152
  %3155 = vset.pattern.permute.xlu0 7
  %3156 = vperm.xlu0 %3155, %v1934
  %v3157 = vpop.permute.xlu0 %3156
  %3159 = vset.pattern.permute.xlu0 7
  %3160 = vperm.xlu0 %3159, %v1935
  %v3161 = vpop.permute.xlu0 %3160
  %v3163 = vmul.f32 %v3153, %v3103
  %v3164 = vmul.f32 %v3153, %v3104
  %v3165 = vmul.f32 %v3153, %v3105
  %v3166 = vmul.f32 %v3153, %v3106
  %v3167 = vmul.f32 %v3153, %v3107
  %v3168 = vmul.f32 %v3153, %v3108
  %v3169 = vmul.f32 %v3153, %v3109
  %v3170 = vmul.f32 %v3153, %v3148
  %v3171 = vmul.f32 %v3157, %v3110
  %v3172 = vmul.f32 %v3157, %v3111
  %v3173 = vmul.f32 %v3157, %v3112
  %v3174 = vmul.f32 %v3157, %v3113
  %v3175 = vmul.f32 %v3157, %v3114
  %v3176 = vmul.f32 %v3157, %v3115
  %v3177 = vmul.f32 %v3157, %v3116
  %v3178 = vmul.f32 %v3157, %v3149
  %v3179 = vmul.f32 %v3161, %v3117
  %v3180 = vmul.f32 %v3161, %v3118
  %v3181 = vmul.f32 %v3161, %v3119
  %v3182 = vmul.f32 %v3161, %v3120
  %v3183 = vmul.f32 %v3161, %v3121
  %v3184 = vmul.f32 %v3161, %v3122
  %v3185 = vmul.f32 %v3161, %v3123
  %v3186 = vmul.f32 %v3161, %v3150
  %v3187 = vadd.f32 %v3031, %v3163
  %v3188 = vadd.f32 %v3032, %v3164
  %v3189 = vadd.f32 %v3033, %v3165
  %v3190 = vadd.f32 %v3034, %v3166
  %v3191 = vadd.f32 %v3035, %v3167
  %v3192 = vadd.f32 %v3036, %v3168
  %v3193 = vadd.f32 %v3037, %v3169
  %v3194 = vadd.f32 %v3038, %v3170
  %v3195 = vadd.f32 %v3039, %v3171
  %v3196 = vadd.f32 %v3040, %v3172
  %v3197 = vadd.f32 %v3041, %v3173
  %v3198 = vadd.f32 %v3042, %v3174
  %v3199 = vadd.f32 %v3043, %v3175
  %v3200 = vadd.f32 %v3044, %v3176
  %v3201 = vadd.f32 %v3045, %v3177
  %v3202 = vadd.f32 %v3046, %v3178
  %v3203 = vadd.f32 %v3047, %v3179
  %v3204 = vadd.f32 %v3048, %v3180
  %v3205 = vadd.f32 %v3049, %v3181
  %v3206 = vadd.f32 %v3050, %v3182
  %v3207 = vadd.f32 %v3051, %v3183
  %v3208 = vadd.f32 %v3052, %v3184
  %v3209 = vadd.f32 %v3053, %v3185
  %v3210 = vadd.f32 %v3054, %v3186
  %3211 = vrot.lane.b32.xlu0 %v1909, 95
  %v3212 = vpop.permute.xlu0 %3211
  %3213 = vrot.lane.b32.xlu0 %v1910, 95
  %v3214 = vpop.permute.xlu0 %3213
  %3215 = vrot.lane.b32.xlu0 %v1911, 95
  %v3216 = vpop.permute.xlu0 %3215
  %3217 = vrot.lane.b32.xlu0 %v1912, 95
  %v3218 = vpop.permute.xlu0 %3217
  %3219 = vrot.lane.b32.xlu0 %v1913, 95
  %v3220 = vpop.permute.xlu0 %3219
  %3221 = vrot.lane.b32.xlu0 %v1914, 95
  %v3222 = vpop.permute.xlu0 %3221
  %3223 = vrot.lane.b32.xlu0 %v1915, 95
  %v3224 = vpop.permute.xlu0 %3223
  %3225 = vrot.lane.b32.xlu0 %v1916, 95
  %v3226 = vpop.permute.xlu0 %3225
  %3227 = vrot.lane.b32.xlu0 %v1917, 95
  %v3228 = vpop.permute.xlu0 %3227
  %3229 = vrot.lane.b32.xlu0 %v1918, 95
  %v3230 = vpop.permute.xlu0 %3229
  %3231 = vrot.lane.b32.xlu0 %v1919, 95
  %v3232 = vpop.permute.xlu0 %3231
  %3233 = vrot.lane.b32.xlu0 %v1920, 95
  %v3234 = vpop.permute.xlu0 %3233
  %3235 = vrot.lane.b32.xlu0 %v1921, 95
  %v3236 = vpop.permute.xlu0 %3235
  %3237 = vrot.lane.b32.xlu0 %v1922, 95
  %v3238 = vpop.permute.xlu0 %3237
  %3239 = vrot.lane.b32.xlu0 %v1923, 95
  %v3240 = vpop.permute.xlu0 %3239
  %3241 = vrot.lane.b32.xlu0 %v1924, 95
  %v3242 = vpop.permute.xlu0 %3241
  %3243 = vrot.lane.b32.xlu0 %v1925, 95
  %v3244 = vpop.permute.xlu0 %3243
  %3245 = vrot.lane.b32.xlu0 %v1926, 95
  %v3246 = vpop.permute.xlu0 %3245
  %3247 = vrot.lane.b32.xlu0 %v1927, 95
  %v3248 = vpop.permute.xlu0 %3247
  %3249 = vrot.lane.b32.xlu0 %v1928, 95
  %v3250 = vpop.permute.xlu0 %3249
  %3251 = vrot.lane.b32.xlu0 %v1929, 95
  %v3252 = vpop.permute.xlu0 %3251
  %3253 = vrot.lane.b32.xlu0 %v1930, 95
  %v3254 = vpop.permute.xlu0 %3253
  %3255 = vrot.lane.b32.xlu0 %v1931, 95
  %v3256 = vpop.permute.xlu0 %3255
  %3257 = vrot.lane.b32.xlu0 %v1932, 95
  %v3258 = vpop.permute.xlu0 %3257
  %v3259 = vsel %vm1082, %v3212, %v3214
  %v3260 = vsel %vm1082, %v3214, %v3216
  %v3261 = vsel %vm1082, %v3216, %v3218
  %v3262 = vsel %vm1082, %v3218, %v3220
  %v3263 = vsel %vm1082, %v3220, %v3222
  %v3264 = vsel %vm1082, %v3222, %v3224
  %v3265 = vsel %vm1082, %v3224, %v3226
  %v3266 = vsel %vm1082, %v3228, %v3230
  %v3267 = vsel %vm1082, %v3230, %v3232
  %v3268 = vsel %vm1082, %v3232, %v3234
  %v3269 = vsel %vm1082, %v3234, %v3236
  %v3270 = vsel %vm1082, %v3236, %v3238
  %v3271 = vsel %vm1082, %v3238, %v3240
  %v3272 = vsel %vm1082, %v3240, %v3242
  %v3273 = vsel %vm1082, %v3244, %v3246
  %v3274 = vsel %vm1082, %v3246, %v3248
  %v3275 = vsel %vm1082, %v3248, %v3250
  %v3276 = vsel %vm1082, %v3250, %v3252
  %v3277 = vsel %vm1082, %v3252, %v3254
  %v3278 = vsel %vm1082, %v3254, %v3256
  %v3279 = vsel %vm1082, %v3256, %v3258
  %v3304 = vsel %vm1082, %v3226, 0.0
  %v3305 = vsel %vm1082, %v3242, 0.0
  %v3306 = vsel %vm1082, %v3258, 0.0
  %v3307 = vmul.f32 %v3259, %v1107
  %v3308 = vmul.f32 %v3260, %v1111
  %v3309 = vmul.f32 %v3261, %v1115
  %v3310 = vmul.f32 %v3262, %v1119
  %v3311 = vmul.f32 %v3263, %v1123
  %v3312 = vmul.f32 %v3264, %v1127
  %v3313 = vmul.f32 %v3265, %v1131
  %v3314 = vmul.f32 %v3304, %v1135
  %v3315 = vmul.f32 %v3266, %v1107
  %v3316 = vmul.f32 %v3267, %v1111
  %v3317 = vmul.f32 %v3268, %v1115
  %v3318 = vmul.f32 %v3269, %v1119
  %v3319 = vmul.f32 %v3270, %v1123
  %v3320 = vmul.f32 %v3271, %v1127
  %v3321 = vmul.f32 %v3272, %v1131
  %v3322 = vmul.f32 %v3305, %v1135
  %v3323 = vmul.f32 %v3273, %v1107
  %v3324 = vmul.f32 %v3274, %v1111
  %v3325 = vmul.f32 %v3275, %v1115
  %v3326 = vmul.f32 %v3276, %v1119
  %v3327 = vmul.f32 %v3277, %v1123
  %v3328 = vmul.f32 %v3278, %v1127
  %v3329 = vmul.f32 %v3279, %v1131
  %v3330 = vmul.f32 %v3306, %v1135
  %3331 = vset.pattern.permute.xlu0 8
  %3332 = vperm.xlu0 %3331, %v1933
  %v3333 = vpop.permute.xlu0 %3332
  %3335 = vset.pattern.permute.xlu0 8
  %3336 = vperm.xlu0 %3335, %v1934
  %v3337 = vpop.permute.xlu0 %3336
  %3339 = vset.pattern.permute.xlu0 8
  %3340 = vperm.xlu0 %3339, %v1935
  %v3341 = vpop.permute.xlu0 %3340
  %v3343 = vmul.f32 %v3333, %v3307
  %v3344 = vmul.f32 %v3333, %v3308
  %v3345 = vmul.f32 %v3333, %v3309
  %v3346 = vmul.f32 %v3333, %v3310
  %v3347 = vmul.f32 %v3333, %v3311
  %v3348 = vmul.f32 %v3333, %v3312
  %v3349 = vmul.f32 %v3333, %v3313
  %v3350 = vmul.f32 %v3333, %v3314
  %v3351 = vmul.f32 %v3337, %v3315
  %v3352 = vmul.f32 %v3337, %v3316
  %v3353 = vmul.f32 %v3337, %v3317
  %v3354 = vmul.f32 %v3337, %v3318
  %v3355 = vmul.f32 %v3337, %v3319
  %v3356 = vmul.f32 %v3337, %v3320
  %v3357 = vmul.f32 %v3337, %v3321
  %v3358 = vmul.f32 %v3337, %v3322
  %v3359 = vmul.f32 %v3341, %v3323
  %v3360 = vmul.f32 %v3341, %v3324
  %v3361 = vmul.f32 %v3341, %v3325
  %v3362 = vmul.f32 %v3341, %v3326
  %v3363 = vmul.f32 %v3341, %v3327
  %v3364 = vmul.f32 %v3341, %v3328
  %v3365 = vmul.f32 %v3341, %v3329
  %v3366 = vmul.f32 %v3341, %v3330
  %v3367 = vadd.f32 %v3187, %v3343
  %v3368 = vadd.f32 %v3188, %v3344
  %v3369 = vadd.f32 %v3189, %v3345
  %v3370 = vadd.f32 %v3190, %v3346
  %v3371 = vadd.f32 %v3191, %v3347
  %v3372 = vadd.f32 %v3192, %v3348
  %v3373 = vadd.f32 %v3193, %v3349
  %v3374 = vadd.f32 %v3194, %v3350
  %v3375 = vadd.f32 %v3195, %v3351
  %v3376 = vadd.f32 %v3196, %v3352
  %v3377 = vadd.f32 %v3197, %v3353
  %v3378 = vadd.f32 %v3198, %v3354
  %v3379 = vadd.f32 %v3199, %v3355
  %v3380 = vadd.f32 %v3200, %v3356
  %v3381 = vadd.f32 %v3201, %v3357
  %v3382 = vadd.f32 %v3202, %v3358
  %v3383 = vadd.f32 %v3203, %v3359
  %v3384 = vadd.f32 %v3204, %v3360
  %v3385 = vadd.f32 %v3205, %v3361
  %v3386 = vadd.f32 %v3206, %v3362
  %v3387 = vadd.f32 %v3207, %v3363
  %v3388 = vadd.f32 %v3208, %v3364
  %v3389 = vadd.f32 %v3209, %v3365
  %v3390 = vadd.f32 %v3210, %v3366
  %v3391 = vld [vmem:[%s9] sm:$0xff]
  %v3392 = vld [vmem:[%s9 + $0x8] sm:$0xff]
  %v3393 = vld [vmem:[%s9 + $0x10] sm:$0xff]
  %v3394 = vld [vmem:[%s9 + $0x18] sm:$0xff]
  %v3395 = vld [vmem:[%s9 + $0x20] sm:$0xff]
  %v3396 = vld [vmem:[%s9 + $0x28] sm:$0xff]
  %v3397 = vld [vmem:[%s9 + $0x30] sm:$0xff]
  %v3398 = vld [vmem:[%s9 + $0x38] sm:$0xff]
  %v3399 = vld [vmem:[%s9 + $0x40] sm:$0xff]
  %v3400 = vld [vmem:[%s9 + $0x48] sm:$0xff]
  %v3401 = vld [vmem:[%s9 + $0x50] sm:$0xff]
  %v3402 = vld [vmem:[%s9 + $0x58] sm:$0xff]
  %v3403 = vld [vmem:[%s9 + $0x60] sm:$0xff]
  %v3404 = vld [vmem:[%s9 + $0x68] sm:$0xff]
  %v3405 = vld [vmem:[%s9 + $0x70] sm:$0xff]
  %v3406 = vld [vmem:[%s9 + $0x78] sm:$0xff]
  %v3407 = vld [vmem:[%s9 + $0x80] sm:$0xff]
  %v3408 = vld [vmem:[%s9 + $0x88] sm:$0xff]
  %v3409 = vld [vmem:[%s9 + $0x90] sm:$0xff]
  %v3410 = vld [vmem:[%s9 + $0x98] sm:$0xff]
  %v3411 = vld [vmem:[%s9 + $0xa0] sm:$0xff]
  %v3412 = vld [vmem:[%s9 + $0xa8] sm:$0xff]
  %v3413 = vld [vmem:[%s9 + $0xb0] sm:$0xff]
  %v3414 = vld [vmem:[%s9 + $0xb8] sm:$0xff]
  %v3415 = vld [vmem:[%s9 + $0xc0] sm:$0xff]
  %v3416 = vld [vmem:[%s9 + $0xc8] sm:$0xff]
  %v3417 = vld [vmem:[%s9 + $0xd0] sm:$0xff]
  %v3418 = vld [vmem:[%s9 + $0xd8] sm:$0xff]
  %v3419 = vld [vmem:[%s9 + $0xe0] sm:$0xff]
  %v3420 = vld [vmem:[%s9 + $0xe8] sm:$0xff]
  %v3421 = vld [vmem:[%s9 + $0xf0] sm:$0xff]
  %v3422 = vld [vmem:[%s9 + $0xf8] sm:$0xff]
  %v3423 = vld [vmem:[%s9 + $0x100] sm:$0xff]
  %v3424 = vld [vmem:[%s9 + $0x108] sm:$0xff]
  %v3425 = vld [vmem:[%s9 + $0x110] sm:$0xff]
  %v3426 = vld [vmem:[%s9 + $0x118] sm:$0xff]
  %v3427 = vld [vmem:[%s9 + $0x120] sm:$0xff]
  %v3428 = vld [vmem:[%s9 + $0x128] sm:$0xff]
  %v3429 = vld [vmem:[%s9 + $0x130] sm:$0xff]
  %v3430 = vld [vmem:[%s9 + $0x138] sm:$0xff]
  %v3431 = vld [vmem:[%s9 + $0x140] sm:$0xff]
  %v3432 = vld [vmem:[%s9 + $0x148] sm:$0xff]
  %v3433 = vld [vmem:[%s9 + $0x150] sm:$0xff]
  %v3434 = vld [vmem:[%s9 + $0x158] sm:$0xff]
  %v3435 = vld [vmem:[%s9 + $0x160] sm:$0xff]
  %v3436 = vld [vmem:[%s9 + $0x168] sm:$0xff]
  %v3437 = vld [vmem:[%s9 + $0x170] sm:$0xff]
  %v3438 = vld [vmem:[%s9 + $0x178] sm:$0xff]
  %v3439 = vld [vmem:[%s9 + $0x180] sm:$0xff]
  %v3440 = vld [vmem:[%s9 + $0x188] sm:$0xff]
  %v3441 = vld [vmem:[%s9 + $0x190] sm:$0xff]
  %v3442 = vld [vmem:[%s9 + $0x198] sm:$0xff]
  %v3443 = vld [vmem:[%s9 + $0x1a0] sm:$0xff]
  %v3444 = vld [vmem:[%s9 + $0x1a8] sm:$0xff]
  %v3445 = vld [vmem:[%s9 + $0x1b0] sm:$0xff]
  %v3446 = vld [vmem:[%s9 + $0x1b8] sm:$0xff]
  %v3447 = vld [vmem:[%s9 + $0x1c0] sm:$0xff]
  %v3448 = vld [vmem:[%s9 + $0x1c8] sm:$0xff]
  %v3449 = vld [vmem:[%s9 + $0x1d0] sm:$0xff]
  %v3450 = vld [vmem:[%s9 + $0x1d8] sm:$0xff]
  %v3451 = vld [vmem:[%s9 + $0x1e0] sm:$0xff]
  %v3452 = vld [vmem:[%s9 + $0x1e8] sm:$0xff]
  %v3453 = vld [vmem:[%s9 + $0x1f0] sm:$0xff]
  %v3454 = vld [vmem:[%s9 + $0x1f8] sm:$0xff]
  %v3455 = vld [vmem:[%s9 + $0x200] sm:$0xff]
  %v3456 = vld [vmem:[%s9 + $0x208] sm:$0xff]
  %v3457 = vld [vmem:[%s9 + $0x210] sm:$0xff]
  %v3458 = vld [vmem:[%s9 + $0x218] sm:$0xff]
  %v3459 = vld [vmem:[%s9 + $0x220] sm:$0xff]
  %v3460 = vld [vmem:[%s9 + $0x228] sm:$0xff]
  %v3461 = vld [vmem:[%s9 + $0x230] sm:$0xff]
  %v3462 = vld [vmem:[%s9 + $0x238] sm:$0xff]
  %v3463 = vld [vmem:[%s9 + $0x240] sm:$0xff]
  %v3464 = vld [vmem:[%s9 + $0x248] sm:$0xff]
  %v3465 = vld [vmem:[%s9 + $0x250] sm:$0xff]
  %v3466 = vld [vmem:[%s9 + $0x258] sm:$0xff]
  %v3467 = vld [vmem:[%s9 + $0x260] sm:$0xff]
  %v3468 = vld [vmem:[%s9 + $0x268] sm:$0xff]
  %v3469 = vld [vmem:[%s9 + $0x270] sm:$0xff]
  %v3470 = vld [vmem:[%s9 + $0x278] sm:$0xff]
  %v3471 = vld [vmem:[%s9 + $0x280] sm:$0xff]
  %v3472 = vld [vmem:[%s9 + $0x288] sm:$0xff]
  %v3473 = vld [vmem:[%s9 + $0x290] sm:$0xff]
  %v3474 = vld [vmem:[%s9 + $0x298] sm:$0xff]
  %v3475 = vld [vmem:[%s9 + $0x2a0] sm:$0xff]
  %v3476 = vld [vmem:[%s9 + $0x2a8] sm:$0xff]
  %v3477 = vld [vmem:[%s9 + $0x2b0] sm:$0xff]
  %v3478 = vld [vmem:[%s9 + $0x2b8] sm:$0xff]
  %v3479 = vld [vmem:[%s9 + $0x2c0] sm:$0xff]
  %v3480 = vld [vmem:[%s9 + $0x2c8] sm:$0xff]
  %v3481 = vld [vmem:[%s9 + $0x2d0] sm:$0xff]
  %v3482 = vld [vmem:[%s9 + $0x2d8] sm:$0xff]
  %v3483 = vld [vmem:[%s9 + $0x2e0] sm:$0xff]
  %v3484 = vld [vmem:[%s9 + $0x2e8] sm:$0xff]
  %v3485 = vld [vmem:[%s9 + $0x2f0] sm:$0xff]
  %v3486 = vld [vmem:[%s9 + $0x2f8] sm:$0xff]
  %v3487 = vld [vmem:[%s9 + $0x300] sm:$0xff]
  %v3488 = vld [vmem:[%s9 + $0x308] sm:$0xff]
  %v3489 = vld [vmem:[%s9 + $0x310] sm:$0xff]
  %v3490 = vld [vmem:[%s9 + $0x318] sm:$0xff]
  %v3491 = vld [vmem:[%s9 + $0x320] sm:$0xff]
  %v3492 = vld [vmem:[%s9 + $0x328] sm:$0xff]
  %v3493 = vld [vmem:[%s9 + $0x330] sm:$0xff]
  %v3494 = vld [vmem:[%s9 + $0x338] sm:$0xff]
  %v3495 = vld [vmem:[%s9 + $0x340] sm:$0xff]
  %v3496 = vld [vmem:[%s9 + $0x348] sm:$0xff]
  %v3497 = vld [vmem:[%s9 + $0x350] sm:$0xff]
  %v3498 = vld [vmem:[%s9 + $0x358] sm:$0xff]
  %v3499 = vld [vmem:[%s9 + $0x360] sm:$0xff]
  %v3500 = vld [vmem:[%s9 + $0x368] sm:$0xff]
  %v3501 = vld [vmem:[%s9 + $0x370] sm:$0xff]
  %v3502 = vld [vmem:[%s9 + $0x378] sm:$0xff]
  %v3503 = vld [vmem:[%s9 + $0x380] sm:$0xff]
  %v3504 = vld [vmem:[%s9 + $0x388] sm:$0xff]
  %v3505 = vld [vmem:[%s9 + $0x390] sm:$0xff]
  %v3506 = vld [vmem:[%s9 + $0x398] sm:$0xff]
  %v3507 = vld [vmem:[%s9 + $0x3a0] sm:$0xff]
  %v3508 = vld [vmem:[%s9 + $0x3a8] sm:$0xff]
  %v3509 = vld [vmem:[%s9 + $0x3b0] sm:$0xff]
  %v3510 = vld [vmem:[%s9 + $0x3b8] sm:$0xff]
  %v3511 = vld [vmem:[%s9 + $0x3c0] sm:$0xff]
  %v3512 = vld [vmem:[%s9 + $0x3c8] sm:$0xff]
  %v3513 = vld [vmem:[%s9 + $0x3d0] sm:$0xff]
  %v3514 = vld [vmem:[%s9 + $0x3d8] sm:$0xff]
  %v3515 = vld [vmem:[%s9 + $0x3e0] sm:$0xff]
  %v3516 = vld [vmem:[%s9 + $0x3e8] sm:$0xff]
  %v3517 = vld [vmem:[%s9 + $0x3f0] sm:$0xff]
  %v3518 = vld [vmem:[%s9 + $0x3f8] sm:$0xff]
  %v3519 = vld [vmem:[%s9 + $0x400] sm:$0xff]
  %v3520 = vld [vmem:[%s9 + $0x408] sm:$0xff]
  %v3521 = vld [vmem:[%s9 + $0x410] sm:$0xff]
  %v3522 = vld [vmem:[%s9 + $0x418] sm:$0xff]
  %v3523 = vld [vmem:[%s9 + $0x420] sm:$0xff]
  %v3524 = vld [vmem:[%s9 + $0x428] sm:$0xff]
  %v3525 = vld [vmem:[%s9 + $0x430] sm:$0xff]
  %v3526 = vld [vmem:[%s9 + $0x438] sm:$0xff]
  %v3527 = vld [vmem:[%s9 + $0x440] sm:$0xff]
  %v3528 = vld [vmem:[%s9 + $0x448] sm:$0xff]
  %v3529 = vld [vmem:[%s9 + $0x450] sm:$0xff]
  %v3530 = vld [vmem:[%s9 + $0x458] sm:$0xff]
  %v3531 = vld [vmem:[%s9 + $0x460] sm:$0xff]
  %v3532 = vld [vmem:[%s9 + $0x468] sm:$0xff]
  %v3533 = vld [vmem:[%s9 + $0x470] sm:$0xff]
  %v3534 = vld [vmem:[%s9 + $0x478] sm:$0xff]
  %v3535 = vld [vmem:[%s9 + $0x480] sm:$0xff]
  %v3536 = vld [vmem:[%s9 + $0x488] sm:$0xff]
  %v3537 = vld [vmem:[%s9 + $0x490] sm:$0xff]
  %v3538 = vld [vmem:[%s9 + $0x498] sm:$0xff]
  %v3539 = vld [vmem:[%s9 + $0x4a0] sm:$0xff]
  %v3540 = vld [vmem:[%s9 + $0x4a8] sm:$0xff]
  %v3541 = vld [vmem:[%s9 + $0x4b0] sm:$0xff]
  %v3542 = vld [vmem:[%s9 + $0x4b8] sm:$0xff]
  %v3543 = vld [vmem:[%s9 + $0x4c0] sm:$0xff]
  %v3544 = vld [vmem:[%s9 + $0x4c8] sm:$0xff]
  %v3545 = vld [vmem:[%s9 + $0x4d0] sm:$0xff]
  %v3546 = vld [vmem:[%s9 + $0x4d8] sm:$0xff]
  %v3547 = vld [vmem:[%s9 + $0x4e0] sm:$0xff]
  %v3548 = vld [vmem:[%s9 + $0x4e8] sm:$0xff]
  %v3549 = vld [vmem:[%s9 + $0x4f0] sm:$0xff]
  %v3550 = vld [vmem:[%s9 + $0x4f8] sm:$0xff]
  %v3551 = vld [vmem:[%s9 + $0x500] sm:$0xff]
  %v3552 = vld [vmem:[%s9 + $0x508] sm:$0xff]
  %v3553 = vld [vmem:[%s9 + $0x510] sm:$0xff]
  %v3554 = vld [vmem:[%s9 + $0x518] sm:$0xff]
  %v3555 = vld [vmem:[%s9 + $0x520] sm:$0xff]
  %v3556 = vld [vmem:[%s9 + $0x528] sm:$0xff]
  %v3557 = vld [vmem:[%s9 + $0x530] sm:$0xff]
  %v3558 = vld [vmem:[%s9 + $0x538] sm:$0xff]
  %v3559 = vld [vmem:[%s9 + $0x540] sm:$0xff]
  %v3560 = vld [vmem:[%s9 + $0x548] sm:$0xff]
  %v3561 = vld [vmem:[%s9 + $0x550] sm:$0xff]
  %v3562 = vld [vmem:[%s9 + $0x558] sm:$0xff]
  %v3563 = vld [vmem:[%s9 + $0x560] sm:$0xff]
  %v3564 = vld [vmem:[%s9 + $0x568] sm:$0xff]
  %v3565 = vld [vmem:[%s9 + $0x570] sm:$0xff]
  %v3566 = vld [vmem:[%s9 + $0x578] sm:$0xff]
  %v3567 = vld [vmem:[%s9 + $0x580] sm:$0xff]
  %v3568 = vld [vmem:[%s9 + $0x588] sm:$0xff]
  %v3569 = vld [vmem:[%s9 + $0x590] sm:$0xff]
  %v3570 = vld [vmem:[%s9 + $0x598] sm:$0xff]
  %v3571 = vld [vmem:[%s9 + $0x5a0] sm:$0xff]
  %v3572 = vld [vmem:[%s9 + $0x5a8] sm:$0xff]
  %v3573 = vld [vmem:[%s9 + $0x5b0] sm:$0xff]
  %v3574 = vld [vmem:[%s9 + $0x5b8] sm:$0xff]
  %v3575 = vld [vmem:[%s9 + $0x5c0] sm:$0xff]
  %v3576 = vld [vmem:[%s9 + $0x5c8] sm:$0xff]
  %v3577 = vld [vmem:[%s9 + $0x5d0] sm:$0xff]
  %v3578 = vld [vmem:[%s9 + $0x5d8] sm:$0xff]
  %v3579 = vld [vmem:[%s9 + $0x5e0] sm:$0xff]
  %v3580 = vld [vmem:[%s9 + $0x5e8] sm:$0xff]
  %v3581 = vld [vmem:[%s9 + $0x5f0] sm:$0xff]
  %v3582 = vld [vmem:[%s9 + $0x5f8] sm:$0xff]
  %v3583 = vld [vmem:[%s9 + $0x600] sm:$0xff]
  %v3584 = vld [vmem:[%s9 + $0x608] sm:$0xff]
  %v3585 = vld [vmem:[%s9 + $0x610] sm:$0xff]
  %v3586 = vld [vmem:[%s9 + $0x618] sm:$0xff]
  %v3587 = vld [vmem:[%s9 + $0x620] sm:$0xff]
  %v3588 = vld [vmem:[%s9 + $0x628] sm:$0xff]
  %v3589 = vld [vmem:[%s9 + $0x630] sm:$0xff]
  %v3590 = vld [vmem:[%s9 + $0x638] sm:$0xff]
  %v3591 = vld [vmem:[%s9 + $0x640] sm:$0xff]
  %v3592 = vld [vmem:[%s9 + $0x648] sm:$0xff]
  %v3593 = vld [vmem:[%s9 + $0x650] sm:$0xff]
  %v3594 = vld [vmem:[%s9 + $0x658] sm:$0xff]
  %v3595 = vld [vmem:[%s9 + $0x660] sm:$0xff]
  %v3596 = vld [vmem:[%s9 + $0x668] sm:$0xff]
  %v3597 = vld [vmem:[%s9 + $0x670] sm:$0xff]
  %v3598 = vld [vmem:[%s9 + $0x678] sm:$0xff]
  %v3599 = vld [vmem:[%s9 + $0x680] sm:$0xff]
  %v3600 = vld [vmem:[%s9 + $0x688] sm:$0xff]
  %v3601 = vld [vmem:[%s9 + $0x690] sm:$0xff]
  %v3602 = vld [vmem:[%s9 + $0x698] sm:$0xff]
  %v3603 = vld [vmem:[%s9 + $0x6a0] sm:$0xff]
  %v3604 = vld [vmem:[%s9 + $0x6a8] sm:$0xff]
  %v3605 = vld [vmem:[%s9 + $0x6b0] sm:$0xff]
  %v3606 = vld [vmem:[%s9 + $0x6b8] sm:$0xff]
  %v3607 = vld [vmem:[%s9 + $0x6c0] sm:$0xff]
  %v3608 = vld [vmem:[%s9 + $0x6c8] sm:$0xff]
  %v3609 = vld [vmem:[%s9 + $0x6d0] sm:$0xff]
  %v3610 = vld [vmem:[%s9 + $0x6d8] sm:$0xff]
  %v3611 = vld [vmem:[%s9 + $0x6e0] sm:$0xff]
  %v3612 = vld [vmem:[%s9 + $0x6e8] sm:$0xff]
  %v3613 = vld [vmem:[%s9 + $0x6f0] sm:$0xff]
  %v3614 = vld [vmem:[%s9 + $0x6f8] sm:$0xff]
  %v3615 = vld [vmem:[%s9 + $0x700] sm:$0xff]
  %v3616 = vld [vmem:[%s9 + $0x708] sm:$0xff]
  %v3617 = vld [vmem:[%s9 + $0x710] sm:$0xff]
  %v3618 = vld [vmem:[%s9 + $0x718] sm:$0xff]
  %v3619 = vld [vmem:[%s9 + $0x720] sm:$0xff]
  %v3620 = vld [vmem:[%s9 + $0x728] sm:$0xff]
  %v3621 = vld [vmem:[%s9 + $0x730] sm:$0xff]
  %v3622 = vld [vmem:[%s9 + $0x738] sm:$0xff]
  %v3623 = vld [vmem:[%s9 + $0x740] sm:$0xff]
  %v3624 = vld [vmem:[%s9 + $0x748] sm:$0xff]
  %v3625 = vld [vmem:[%s9 + $0x750] sm:$0xff]
  %v3626 = vld [vmem:[%s9 + $0x758] sm:$0xff]
  %v3627 = vld [vmem:[%s9 + $0x760] sm:$0xff]
  %v3628 = vld [vmem:[%s9 + $0x768] sm:$0xff]
  %v3629 = vld [vmem:[%s9 + $0x770] sm:$0xff]
  %v3630 = vld [vmem:[%s9 + $0x778] sm:$0xff]
  %v3631 = vld [vmem:[%s9 + $0x780] sm:$0xff]
  %v3632 = vld [vmem:[%s9 + $0x788] sm:$0xff]
  %v3633 = vld [vmem:[%s9 + $0x790] sm:$0xff]
  %v3634 = vld [vmem:[%s9 + $0x798] sm:$0xff]
  %v3635 = vld [vmem:[%s9 + $0x7a0] sm:$0xff]
  %v3636 = vld [vmem:[%s9 + $0x7a8] sm:$0xff]
  %v3637 = vld [vmem:[%s9 + $0x7b0] sm:$0xff]
  %v3638 = vld [vmem:[%s9 + $0x7b8] sm:$0xff]
  %v3639 = vld [vmem:[%s9 + $0x7c0] sm:$0xff]
  %v3640 = vld [vmem:[%s9 + $0x7c8] sm:$0xff]
  %v3641 = vld [vmem:[%s9 + $0x7d0] sm:$0xff]
  %v3642 = vld [vmem:[%s9 + $0x7d8] sm:$0xff]
  %v3643 = vld [vmem:[%s9 + $0x7e0] sm:$0xff]
  %v3644 = vld [vmem:[%s9 + $0x7e8] sm:$0xff]
  %v3645 = vld [vmem:[%s9 + $0x7f0] sm:$0xff]
  %v3646 = vld [vmem:[%s9 + $0x7f8] sm:$0xff]
  %v3647 = vld [vmem:[%s3 + $0x26] sm:$0xff]
  %v3648 = vld [vmem:[%s3 + $0x2e] sm:$0xff]
  %v3649 = vld [vmem:[%s3 + $0x36] sm:$0x3]
  %3651 = vset.pattern.permute.xlu0 0
  %3652 = vperm.xlu0 %3651, %v3647
  %v3653 = vpop.permute.xlu0 %3652
  %3656 = vset.pattern.permute.xlu0 0
  %3657 = vperm.xlu0 %3656, %v3648
  %v3658 = vpop.permute.xlu0 %3657
  %3661 = vset.pattern.permute.xlu0 0
  %3662 = vperm.xlu0 %3661, %v3649
  %v3663 = vpop.permute.xlu0 %3662
  %3665 = vmatprep.subr.mxu0 %v3392
  %3666 = vmatpush1.msra.mxu0 %v3391
  %3667 = vmatprep.subr.mxu0 %v3394
  %3668 = vmatpush1.msra.mxu0 %v3393
  %3669 = vmatprep.subr.mxu0 %v3396
  %3670 = vmatpush1.msra.mxu0 %v3395
  %3671 = vmatprep.subr.mxu0 %v3398
  %3672 = vmatpush1.msra.mxu0 %v3397
  %3673 = vmatprep.subr.mxu0 %v3400
  %3674 = vmatpush1.msra.mxu0 %v3399
  %3675 = vmatprep.subr.mxu0 %v3402
  %3676 = vmatpush1.msra.mxu0 %v3401
  %3677 = vmatprep.subr.mxu0 %v3404
  %3678 = vmatpush1.msra.mxu0 %v3403
  %3679 = vmatprep.subr.mxu0 %v3406
  %3680 = vmatpush1.msra.mxu0 %v3405
  %3681 = vmatprep.subr.mxu0 %v3408
  %3682 = vmatpush1.msra.mxu0 %v3407
  %3683 = vmatprep.subr.mxu0 %v3410
  %3684 = vmatpush1.msra.mxu0 %v3409
  %3685 = vmatprep.subr.mxu0 %v3412
  %3686 = vmatpush1.msra.mxu0 %v3411
  %3687 = vmatprep.subr.mxu0 %v3414
  %3688 = vmatpush1.msra.mxu0 %v3413
  %3689 = vmatprep.subr.mxu0 %v3416
  %3690 = vmatpush1.msra.mxu0 %v3415
  %3691 = vmatprep.subr.mxu0 %v3418
  %3692 = vmatpush1.msra.mxu0 %v3417
  %3693 = vmatprep.subr.mxu0 %v3420
  %3694 = vmatpush1.msra.mxu0 %v3419
  %3695 = vmatprep.subr.mxu0 %v3422
  %3696 = vmatpush1.msra.mxu0 %v3421
  %3697 = vmatprep.subr.mxu0 %v3424
  %3698 = vmatpush1.msra.mxu0 %v3423
  %3699 = vmatprep.subr.mxu0 %v3426
  %3700 = vmatpush1.msra.mxu0 %v3425
  %3701 = vmatprep.subr.mxu0 %v3428
  %3702 = vmatpush1.msra.mxu0 %v3427
  %3703 = vmatprep.subr.mxu0 %v3430
  %3704 = vmatpush1.msra.mxu0 %v3429
  %3705 = vmatprep.subr.mxu0 %v3432
  %3706 = vmatpush1.msra.mxu0 %v3431
  %3707 = vmatprep.subr.mxu0 %v3434
  %3708 = vmatpush1.msra.mxu0 %v3433
  %3709 = vmatprep.subr.mxu0 %v3436
  %3710 = vmatpush1.msra.mxu0 %v3435
  %3711 = vmatprep.subr.mxu0 %v3438
  %3712 = vmatpush1.msra.mxu0 %v3437
  %3713 = vmatprep.subr.mxu0 %v3440
  %3714 = vmatpush1.msra.mxu0 %v3439
  %3715 = vmatprep.subr.mxu0 %v3442
  %3716 = vmatpush1.msra.mxu0 %v3441
  %3717 = vmatprep.subr.mxu0 %v3444
  %3718 = vmatpush1.msra.mxu0 %v3443
  %3719 = vmatprep.subr.mxu0 %v3446
  %3720 = vmatpush1.msra.mxu0 %v3445
  %3721 = vmatprep.subr.mxu0 %v3448
  %3722 = vmatpush1.msra.mxu0 %v3447
  %3723 = vmatprep.subr.mxu0 %v3450
  %3724 = vmatpush1.msra.mxu0 %v3449
  %3725 = vmatprep.subr.mxu0 %v3452
  %3726 = vmatpush1.msra.mxu0 %v3451
  %3727 = vmatprep.subr.mxu0 %v3454
  %3728 = vmatpush1.msra.mxu0 %v3453
  %3729 = vmatprep.mubr.f32.mxu0 %v3368
  %3730 = vmatmul.mubr.f32.gmra.mrb[0].mxu0 %v3367
  %v3731 = vpop.f32.mrb[0].mxu0
  %v3732 = vadd.f32 %v3653, %v3731
  %v3733 = vpop.f32.mrb[0].mxu0
  %v3734 = vadd.f32 %v3653, %v3733
  %3735 = vmatprep.mubr.f32.mxu0 %v3376
  %3736 = vmatmul.mubr.f32.gmra.mrb[0].mxu0 %v3375
  %v3737 = vpop.f32.mrb[0].mxu0
  %v3738 = vadd.f32 %v3658, %v3737
  %v3739 = vpop.f32.mrb[0].mxu0
  %v3740 = vadd.f32 %v3658, %v3739
  %3741 = vmatprep.mubr.f32.mxu0 %v3384
  %3742 = vmatmul.mubr.f32.gmra.mrb[0].mxu0 %v3383
  %v3743 = vpop.f32.mrb[0].mxu0
  %v3744 = vadd.f32 %v3663, %v3743
  %v3745 = vpop.f32.mrb[0].mxu0
  %v3746 = vadd.f32 %v3663, %v3745
  %3747 = vdwg.mxu0
  %3748 = vmatprep.subr.mxu0 %v3456
  %3749 = vmatpush1.msra.mxu0 %v3455
  %3750 = vmatprep.subr.mxu0 %v3458
  %3751 = vmatpush1.msra.mxu0 %v3457
  %3752 = vmatprep.subr.mxu0 %v3460
  %3753 = vmatpush1.msra.mxu0 %v3459
  %3754 = vmatprep.subr.mxu0 %v3462
  %3755 = vmatpush1.msra.mxu0 %v3461
  %3756 = vmatprep.subr.mxu0 %v3464
  %3757 = vmatpush1.msra.mxu0 %v3463
  %3758 = vmatprep.subr.mxu0 %v3466
  %3759 = vmatpush1.msra.mxu0 %v3465
  %3760 = vmatprep.subr.mxu0 %v3468
  %3761 = vmatpush1.msra.mxu0 %v3467
  %3762 = vmatprep.subr.mxu0 %v3470
  %3763 = vmatpush1.msra.mxu0 %v3469
  %3764 = vmatprep.subr.mxu0 %v3472
  %3765 = vmatpush1.msra.mxu0 %v3471
  %3766 = vmatprep.subr.mxu0 %v3474
  %3767 = vmatpush1.msra.mxu0 %v3473
  %3768 = vmatprep.subr.mxu0 %v3476
  %3769 = vmatpush1.msra.mxu0 %v3475
  %3770 = vmatprep.subr.mxu0 %v3478
  %3771 = vmatpush1.msra.mxu0 %v3477
  %3772 = vmatprep.subr.mxu0 %v3480
  %3773 = vmatpush1.msra.mxu0 %v3479
  %3774 = vmatprep.subr.mxu0 %v3482
  %3775 = vmatpush1.msra.mxu0 %v3481
  %3776 = vmatprep.subr.mxu0 %v3484
  %3777 = vmatpush1.msra.mxu0 %v3483
  %3778 = vmatprep.subr.mxu0 %v3486
  %3779 = vmatpush1.msra.mxu0 %v3485
  %3780 = vmatprep.subr.mxu0 %v3488
  %3781 = vmatpush1.msra.mxu0 %v3487
  %3782 = vmatprep.subr.mxu0 %v3490
  %3783 = vmatpush1.msra.mxu0 %v3489
  %3784 = vmatprep.subr.mxu0 %v3492
  %3785 = vmatpush1.msra.mxu0 %v3491
  %3786 = vmatprep.subr.mxu0 %v3494
  %3787 = vmatpush1.msra.mxu0 %v3493
  %3788 = vmatprep.subr.mxu0 %v3496
  %3789 = vmatpush1.msra.mxu0 %v3495
  %3790 = vmatprep.subr.mxu0 %v3498
  %3791 = vmatpush1.msra.mxu0 %v3497
  %3792 = vmatprep.subr.mxu0 %v3500
  %3793 = vmatpush1.msra.mxu0 %v3499
  %3794 = vmatprep.subr.mxu0 %v3502
  %3795 = vmatpush1.msra.mxu0 %v3501
  %3796 = vmatprep.subr.mxu0 %v3504
  %3797 = vmatpush1.msra.mxu0 %v3503
  %3798 = vmatprep.subr.mxu0 %v3506
  %3799 = vmatpush1.msra.mxu0 %v3505
  %3800 = vmatprep.subr.mxu0 %v3508
  %3801 = vmatpush1.msra.mxu0 %v3507
  %3802 = vmatprep.subr.mxu0 %v3510
  %3803 = vmatpush1.msra.mxu0 %v3509
  %3804 = vmatprep.subr.mxu0 %v3512
  %3805 = vmatpush1.msra.mxu0 %v3511
  %3806 = vmatprep.subr.mxu0 %v3514
  %3807 = vmatpush1.msra.mxu0 %v3513
  %3808 = vmatprep.subr.mxu0 %v3516
  %3809 = vmatpush1.msra.mxu0 %v3515
  %3810 = vmatprep.subr.mxu0 %v3518
  %3811 = vmatpush1.msra.mxu0 %v3517
  %3812 = vmatprep.mubr.f32.mxu0 %v3370
  %3813 = vmatmul.mubr.f32.gmra.mrb[0].mxu0 %v3369
  %v3814 = vpop.f32.mrb[0].mxu0
  %v3815 = vadd.f32 %v3732, %v3814
  %v3816 = vpop.f32.mrb[0].mxu0
  %v3817 = vadd.f32 %v3734, %v3816
  %3818 = vmatprep.mubr.f32.mxu0 %v3378
  %3819 = vmatmul.mubr.f32.gmra.mrb[0].mxu0 %v3377
  %v3820 = vpop.f32.mrb[0].mxu0
  %v3821 = vadd.f32 %v3738, %v3820
  %v3822 = vpop.f32.mrb[0].mxu0
  %v3823 = vadd.f32 %v3740, %v3822
  %3824 = vmatprep.mubr.f32.mxu0 %v3386
  %3825 = vmatmul.mubr.f32.gmra.mrb[0].mxu0 %v3385
  %v3826 = vpop.f32.mrb[0].mxu0
  %v3827 = vadd.f32 %v3744, %v3826
  %v3828 = vpop.f32.mrb[0].mxu0
  %v3829 = vadd.f32 %v3746, %v3828
  %3830 = vdwg.mxu0
  %3831 = vmatprep.subr.mxu0 %v3520
  %3832 = vmatpush1.msra.mxu0 %v3519
  %3833 = vmatprep.subr.mxu0 %v3522
  %3834 = vmatpush1.msra.mxu0 %v3521
  %3835 = vmatprep.subr.mxu0 %v3524
  %3836 = vmatpush1.msra.mxu0 %v3523
  %3837 = vmatprep.subr.mxu0 %v3526
  %3838 = vmatpush1.msra.mxu0 %v3525
  %3839 = vmatprep.subr.mxu0 %v3528
  %3840 = vmatpush1.msra.mxu0 %v3527
  %3841 = vmatprep.subr.mxu0 %v3530
  %3842 = vmatpush1.msra.mxu0 %v3529
  %3843 = vmatprep.subr.mxu0 %v3532
  %3844 = vmatpush1.msra.mxu0 %v3531
  %3845 = vmatprep.subr.mxu0 %v3534
  %3846 = vmatpush1.msra.mxu0 %v3533
  %3847 = vmatprep.subr.mxu0 %v3536
  %3848 = vmatpush1.msra.mxu0 %v3535
  %3849 = vmatprep.subr.mxu0 %v3538
  %3850 = vmatpush1.msra.mxu0 %v3537
  %3851 = vmatprep.subr.mxu0 %v3540
  %3852 = vmatpush1.msra.mxu0 %v3539
  %3853 = vmatprep.subr.mxu0 %v3542
  %3854 = vmatpush1.msra.mxu0 %v3541
  %3855 = vmatprep.subr.mxu0 %v3544
  %3856 = vmatpush1.msra.mxu0 %v3543
  %3857 = vmatprep.subr.mxu0 %v3546
  %3858 = vmatpush1.msra.mxu0 %v3545
  %3859 = vmatprep.subr.mxu0 %v3548
  %3860 = vmatpush1.msra.mxu0 %v3547
  %3861 = vmatprep.subr.mxu0 %v3550
  %3862 = vmatpush1.msra.mxu0 %v3549
  %3863 = vmatprep.subr.mxu0 %v3552
  %3864 = vmatpush1.msra.mxu0 %v3551
  %3865 = vmatprep.subr.mxu0 %v3554
  %3866 = vmatpush1.msra.mxu0 %v3553
  %3867 = vmatprep.subr.mxu0 %v3556
  %3868 = vmatpush1.msra.mxu0 %v3555
  %3869 = vmatprep.subr.mxu0 %v3558
  %3870 = vmatpush1.msra.mxu0 %v3557
  %3871 = vmatprep.subr.mxu0 %v3560
  %3872 = vmatpush1.msra.mxu0 %v3559
  %3873 = vmatprep.subr.mxu0 %v3562
  %3874 = vmatpush1.msra.mxu0 %v3561
  %3875 = vmatprep.subr.mxu0 %v3564
  %3876 = vmatpush1.msra.mxu0 %v3563
  %3877 = vmatprep.subr.mxu0 %v3566
  %3878 = vmatpush1.msra.mxu0 %v3565
  %3879 = vmatprep.subr.mxu0 %v3568
  %3880 = vmatpush1.msra.mxu0 %v3567
  %3881 = vmatprep.subr.mxu0 %v3570
  %3882 = vmatpush1.msra.mxu0 %v3569
  %3883 = vmatprep.subr.mxu0 %v3572
  %3884 = vmatpush1.msra.mxu0 %v3571
  %3885 = vmatprep.subr.mxu0 %v3574
  %3886 = vmatpush1.msra.mxu0 %v3573
  %3887 = vmatprep.subr.mxu0 %v3576
  %3888 = vmatpush1.msra.mxu0 %v3575
  %3889 = vmatprep.subr.mxu0 %v3578
  %3890 = vmatpush1.msra.mxu0 %v3577
  %3891 = vmatprep.subr.mxu0 %v3580
  %3892 = vmatpush1.msra.mxu0 %v3579
  %3893 = vmatprep.subr.mxu0 %v3582
  %3894 = vmatpush1.msra.mxu0 %v3581
  %3895 = vmatprep.mubr.f32.mxu0 %v3372
  %3896 = vmatmul.mubr.f32.gmra.mrb[0].mxu0 %v3371
  %v3897 = vpop.f32.mrb[0].mxu0
  %v3898 = vadd.f32 %v3815, %v3897
  %v3899 = vpop.f32.mrb[0].mxu0
  %v3900 = vadd.f32 %v3817, %v3899
  %3901 = vmatprep.mubr.f32.mxu0 %v3380
  %3902 = vmatmul.mubr.f32.gmra.mrb[0].mxu0 %v3379
  %v3903 = vpop.f32.mrb[0].mxu0
  %v3904 = vadd.f32 %v3821, %v3903
  %v3905 = vpop.f32.mrb[0].mxu0
  %v3906 = vadd.f32 %v3823, %v3905
  %3907 = vmatprep.mubr.f32.mxu0 %v3388
  %3908 = vmatmul.mubr.f32.gmra.mrb[0].mxu0 %v3387
  %v3909 = vpop.f32.mrb[0].mxu0
  %v3910 = vadd.f32 %v3827, %v3909
  %v3911 = vpop.f32.mrb[0].mxu0
  %v3912 = vadd.f32 %v3829, %v3911
  %3913 = vdwg.mxu0
  %3914 = vmatprep.subr.mxu0 %v3584
  %3915 = vmatpush1.msra.mxu0 %v3583
  %3916 = vmatprep.subr.mxu0 %v3586
  %3917 = vmatpush1.msra.mxu0 %v3585
  %3918 = vmatprep.subr.mxu0 %v3588
  %3919 = vmatpush1.msra.mxu0 %v3587
  %3920 = vmatprep.subr.mxu0 %v3590
  %3921 = vmatpush1.msra.mxu0 %v3589
  %3922 = vmatprep.subr.mxu0 %v3592
  %3923 = vmatpush1.msra.mxu0 %v3591
  %3924 = vmatprep.subr.mxu0 %v3594
  %3925 = vmatpush1.msra.mxu0 %v3593
  %3926 = vmatprep.subr.mxu0 %v3596
  %3927 = vmatpush1.msra.mxu0 %v3595
  %3928 = vmatprep.subr.mxu0 %v3598
  %3929 = vmatpush1.msra.mxu0 %v3597
  %3930 = vmatprep.subr.mxu0 %v3600
  %3931 = vmatpush1.msra.mxu0 %v3599
  %3932 = vmatprep.subr.mxu0 %v3602
  %3933 = vmatpush1.msra.mxu0 %v3601
  %3934 = vmatprep.subr.mxu0 %v3604
  %3935 = vmatpush1.msra.mxu0 %v3603
  %3936 = vmatprep.subr.mxu0 %v3606
  %3937 = vmatpush1.msra.mxu0 %v3605
  %3938 = vmatprep.subr.mxu0 %v3608
  %3939 = vmatpush1.msra.mxu0 %v3607
  %3940 = vmatprep.subr.mxu0 %v3610
  %3941 = vmatpush1.msra.mxu0 %v3609
  %3942 = vmatprep.subr.mxu0 %v3612
  %3943 = vmatpush1.msra.mxu0 %v3611
  %3944 = vmatprep.subr.mxu0 %v3614
  %3945 = vmatpush1.msra.mxu0 %v3613
  %3946 = vmatprep.subr.mxu0 %v3616
  %3947 = vmatpush1.msra.mxu0 %v3615
  %3948 = vmatprep.subr.mxu0 %v3618
  %3949 = vmatpush1.msra.mxu0 %v3617
  %3950 = vmatprep.subr.mxu0 %v3620
  %3951 = vmatpush1.msra.mxu0 %v3619
  %3952 = vmatprep.subr.mxu0 %v3622
  %3953 = vmatpush1.msra.mxu0 %v3621
  %3954 = vmatprep.subr.mxu0 %v3624
  %3955 = vmatpush1.msra.mxu0 %v3623
  %3956 = vmatprep.subr.mxu0 %v3626
  %3957 = vmatpush1.msra.mxu0 %v3625
  %3958 = vmatprep.subr.mxu0 %v3628
  %3959 = vmatpush1.msra.mxu0 %v3627
  %3960 = vmatprep.subr.mxu0 %v3630
  %3961 = vmatpush1.msra.mxu0 %v3629
  %3962 = vmatprep.subr.mxu0 %v3632
  %3963 = vmatpush1.msra.mxu0 %v3631
  %3964 = vmatprep.subr.mxu0 %v3634
  %3965 = vmatpush1.msra.mxu0 %v3633
  %3966 = vmatprep.subr.mxu0 %v3636
  %3967 = vmatpush1.msra.mxu0 %v3635
  %3968 = vmatprep.subr.mxu0 %v3638
  %3969 = vmatpush1.msra.mxu0 %v3637
  %3970 = vmatprep.subr.mxu0 %v3640
  %3971 = vmatpush1.msra.mxu0 %v3639
  %3972 = vmatprep.subr.mxu0 %v3642
  %3973 = vmatpush1.msra.mxu0 %v3641
  %3974 = vmatprep.subr.mxu0 %v3644
  %3975 = vmatpush1.msra.mxu0 %v3643
  %3976 = vmatprep.subr.mxu0 %v3646
  %3977 = vmatpush1.msra.mxu0 %v3645
  %3978 = vmatprep.mubr.f32.mxu0 %v3374
  %3979 = vmatmul.mubr.f32.gmra.mrb[0].mxu0 %v3373
  %v3980 = vpop.f32.mrb[0].mxu0
  %v3981 = vadd.f32 %v3898, %v3980
  %v3982 = vpop.f32.mrb[0].mxu0
  %v3983 = vadd.f32 %v3900, %v3982
  %3984 = vmatprep.mubr.f32.mxu0 %v3382
  %3985 = vmatmul.mubr.f32.gmra.mrb[0].mxu0 %v3381
  %v3986 = vpop.f32.mrb[0].mxu0
  %v3987 = vadd.f32 %v3904, %v3986
  %v3988 = vpop.f32.mrb[0].mxu0
  %v3989 = vadd.f32 %v3906, %v3988
  %3990 = vmatprep.mubr.f32.mxu0 %v3390
  %3991 = vmatmul.mubr.f32.gmra.mrb[0].mxu0 %v3389
  %v3992 = vpop.f32.mrb[0].mxu0
  %v3993 = vadd.f32 %v3910, %v3992
  %v3994 = vpop.f32.mrb[0].mxu0
  %v3995 = vadd.f32 %v3912, %v3994
  %3996 = vdwg.mxu0
  %v3997 = vmul.f32 %v3981, 0.1
  %v3998 = vmul.f32 %v3983, 0.1
  %v3999 = vmul.f32 %v3987, 0.1
  %v4000 = vmul.f32 %v3989, 0.1
  %v4001 = vmul.f32 %v3993, 0.1
  %v4002 = vmul.f32 %v3995, 0.1
  %v4003 = vmax.f32 %v3981, %v3997
  %v4004 = vmax.f32 %v3983, %v3998
  %v4005 = vmax.f32 %v3987, %v3999
  %v4006 = vmax.f32 %v3989, %v4000
  %v4007 = vmax.f32 %v3993, %v4001
  %v4008 = vmax.f32 %v3995, %v4002
  %v4009 = vld [vmem:[%s1 + $0x1e] sm:$0x3f]
  %v4010 = vld [vmem:[%s3 + $0x38] sm:$0x3f]
  %4012 = vset.pattern.permute.xlu0 0
  %4013 = vperm.xlu0 %4012, %v4010
  %v4014 = vpop.permute.xlu0 %4013
  %vm4016 = vcmask 146432
  %v4018 = vsel %vm4016, %v4009, 0
  %vm4020 = vcmask 1041408
  %v4022 = vsel %vm4020, %v4007, 0
  %v4025 = vsel %vm4020, %v4008, 0
  %4027 = vmatprep.subr.mxu0 %v4004
  %4028 = vmatpush1.msra.mxu0 %v4003
  %4029 = vmatprep.subr.mxu0 %v4006
  %4030 = vmatpush1.msra.mxu0 %v4005
  %4031 = vmatprep.subr.mxu0 %v4025
  %4032 = vmatpush1.msra.mxu0 %v4022
  %4033 = vmatprep.subr.mxu0 0.0
  %4034 = vmatpush1.msra.mxu0 0.0
  %4035 = vmatprep.subr.mxu0 0.0
  %4036 = vmatpush1.msra.mxu0 0.0
  %4037 = vmatprep.subr.mxu0 0.0
  %4038 = vmatpush1.msra.mxu0 0.0
  %4039 = vmatprep.subr.mxu0 0.0
  %4040 = vmatpush1.msra.mxu0 0.0
  %4041 = vmatprep.subr.mxu0 0.0
  %4042 = vmatpush1.msra.mxu0 0.0
  %4043 = vmatprep.subr.mxu0 0.0
  %4044 = vmatpush1.msra.mxu0 0.0
  %4045 = vmatprep.subr.mxu0 0.0
  %4046 = vmatpush1.msra.mxu0 0.0
  %4047 = vmatprep.subr.mxu0 0.0
  %4048 = vmatpush1.msra.mxu0 0.0
  %4049 = vmatprep.subr.mxu0 0.0
  %4050 = vmatpush1.msra.mxu0 0.0
  %4051 = vmatprep.subr.mxu0 0.0
  %4052 = vmatpush1.msra.mxu0 0.0
  %4053 = vmatprep.subr.mxu0 0.0
  %4054 = vmatpush1.msra.mxu0 0.0
  %4055 = vmatprep.subr.mxu0 0.0
  %4056 = vmatpush1.msra.mxu0 0.0
  %4057 = vmatprep.subr.mxu0 0.0
  %4058 = vmatpush1.msra.mxu0 0.0
  %4059 = vmatprep.subr.mxu0 0.0
  %4060 = vmatpush1.msra.mxu0 0.0
  %4061 = vmatprep.subr.mxu0 0.0
  %4062 = vmatpush1.msra.mxu0 0.0
  %4063 = vmatprep.subr.mxu0 0.0
  %4064 = vmatpush1.msra.mxu0 0.0
  %4065 = vmatprep.subr.mxu0 0.0
  %4066 = vmatpush1.msra.mxu0 0.0
  %4067 = vmatprep.subr.mxu0 0.0
  %4068 = vmatpush1.msra.mxu0 0.0
  %4069 = vmatprep.subr.mxu0 0.0
  %4070 = vmatpush1.msra.mxu0 0.0
  %4071 = vmatprep.subr.mxu0 0.0
  %4072 = vmatpush1.msra.mxu0 0.0
  %4073 = vmatprep.subr.mxu0 0.0
  %4074 = vmatpush1.msra.mxu0 0.0
  %4075 = vmatprep.subr.mxu0 0.0
  %4076 = vmatpush1.msra.mxu0 0.0
  %4077 = vmatprep.subr.mxu0 0.0
  %4078 = vmatpush1.msra.mxu0 0.0
  %4079 = vmatprep.subr.mxu0 0.0
  %4080 = vmatpush1.msra.mxu0 0.0
  %4081 = vmatprep.subr.mxu0 0.0
  %4082 = vmatpush1.msra.mxu0 0.0
  %4083 = vmatprep.subr.mxu0 0.0
  %4084 = vmatpush1.msra.mxu0 0.0
  %4085 = vmatprep.subr.mxu0 0.0
  %4086 = vmatpush1.msra.mxu0 0.0
  %4087 = vmatprep.subr.mxu0 0.0
  %4088 = vmatpush1.msra.mxu0 0.0
  %4089 = vmatprep.subr.mxu0 0.0
  %4090 = vmatpush1.msra.mxu0 0.0
  %4091 = vmatprep.mubr.f32.mxu0 0.0
  %4092 = vmatmul.mubr.f32.gmra.mrb[0].mxu0 %v4018
  %v4093 = vpop.f32.mrb[0].mxu0
  %v4094 = vadd.f32 %v4014, %v4093
  %v4095 = vpop.f32.mrb[0].mxu0
  %v4096 = vadd.f32 %v4014, %v4095
  %4097 = vdwg.mxu0
  %v4098 = vld [vmem:[%s1 + $0x24] sm:$0xff]
  %v4099 = vld [vmem:[%s1 + $0x2c] sm:$0xff]
  %v4100 = vld [vmem:[%s1 + $0x34] sm:$0xff]
  %v4101 = vld [vmem:[%s1 + $0x3c] sm:$0xff]
  %v4102 = vld [vmem:[%s1 + $0x44] sm:$0xf]
  %v4103 = vld [vmem:[%s3 + $0x3e] sm:$0xff]
  %v4104 = vld [vmem:[%s3 + $0x46] sm:$0xff]
  %v4105 = vld [vmem:[%s3 + $0x4e] sm:$0xff]
  %v4106 = vld [vmem:[%s3 + $0x56] sm:$0xff]
  %v4107 = vld [vmem:[%s3 + $0x5e] sm:$0xf]
  %4109 = vset.pattern.permute.xlu0 0
  %4110 = vperm.xlu0 %4109, %v4103
  %v4111 = vpop.permute.xlu0 %4110
  %4114 = vset.pattern.permute.xlu0 0
  %4115 = vperm.xlu0 %4114, %v4104
  %v4116 = vpop.permute.xlu0 %4115
  %4119 = vset.pattern.permute.xlu0 0
  %4120 = vperm.xlu0 %4119, %v4105
  %v4121 = vpop.permute.xlu0 %4120
  %4124 = vset.pattern.permute.xlu0 0
  %4125 = vperm.xlu0 %4124, %v4106
  %v4126 = vpop.permute.xlu0 %4125
  %4129 = vset.pattern.permute.xlu0 0
  %4130 = vperm.xlu0 %4129, %v4107
  %v4131 = vpop.permute.xlu0 %4130
  %vm4133 = vcmask 48128
  %v4135 = vsel %vm4133, %v4098, 0
  %v4138 = vsel %vm4133, %v4099, 0
  %v4141 = vsel %vm4133, %v4100, 0
  %v4144 = vsel %vm4133, %v4101, 0
  %v4147 = vsel %vm4133, %v4102, 0
  %vm4149 = vcmask 1045504
  %v4151 = vsel %vm4149, %v4094, 0
  %v4154 = vsel %vm4149, %v4096, 0
  %4156 = vmatprep.subr.mxu0 %v4154
  %4157 = vmatpush1.msra.mxu0 %v4151
  %4158 = vmatprep.subr.mxu0 0.0
  %4159 = vmatpush1.msra.mxu0 0.0
  %4160 = vmatprep.subr.mxu0 0.0
  %4161 = vmatpush1.msra.mxu0 0.0
  %4162 = vmatprep.subr.mxu0 0.0
  %4163 = vmatpush1.msra.mxu0 0.0
  %4164 = vmatprep.subr.mxu0 0.0
  %4165 = vmatpush1.msra.mxu0 0.0
  %4166 = vmatprep.subr.mxu0 0.0
  %4167 = vmatpush1.msra.mxu0 0.0
  %4168 = vmatprep.subr.mxu0 0.0
  %4169 = vmatpush1.msra.mxu0 0.0
  %4170 = vmatprep.subr.mxu0 0.0
  %4171 = vmatpush1.msra.mxu0 0.0
  %4172 = vmatprep.subr.mxu0 0.0
  %4173 = vmatpush1.msra.mxu0 0.0
  %4174 = vmatprep.subr.mxu0 0.0
  %4175 = vmatpush1.msra.mxu0 0.0
  %4176 = vmatprep.subr.mxu0 0.0
  %4177 = vmatpush1.msra.mxu0 0.0
  %4178 = vmatprep.subr.mxu0 0.0
  %4179 = vmatpush1.msra.mxu0 0.0
  %4180 = vmatprep.subr.mxu0 0.0
  %4181 = vmatpush1.msra.mxu0 0.0
  %4182 = vmatprep.subr.mxu0 0.0
  %4183 = vmatpush1.msra.mxu0 0.0
  %4184 = vmatprep.subr.mxu0 0.0
  %4185 = vmatpush1.msra.mxu0 0.0
  %4186 = vmatprep.subr.mxu0 0.0
  %4187 = vmatpush1.msra.mxu0 0.0
  %4188 = vmatprep.subr.mxu0 0.0
  %4189 = vmatpush1.msra.mxu0 0.0
  %4190 = vmatprep.subr.mxu0 0.0
  %4191 = vmatpush1.msra.mxu0 0.0
  %4192 = vmatprep.subr.mxu0 0.0
  %4193 = vmatpush1.msra.mxu0 0.0
  %4194 = vmatprep.subr.mxu0 0.0
  %4195 = vmatpush1.msra.mxu0 0.0
  %4196 = vmatprep.subr.mxu0 0.0
  %4197 = vmatpush1.msra.mxu0 0.0
  %4198 = vmatprep.subr.mxu0 0.0
  %4199 = vmatpush1.msra.mxu0 0.0
  %4200 = vmatprep.subr.mxu0 0.0
  %4201 = vmatpush1.msra.mxu0 0.0
  %4202 = vmatprep.subr.mxu0 0.0
  %4203 = vmatpush1.msra.mxu0 0.0
  %4204 = vmatprep.subr.mxu0 0.0
  %4205 = vmatpush1.msra.mxu0 0.0
  %4206 = vmatprep.subr.mxu0 0.0
  %4207 = vmatpush1.msra.mxu0 0.0
  %4208 = vmatprep.subr.mxu0 0.0
  %4209 = vmatpush1.msra.mxu0 0.0
  %4210 = vmatprep.subr.mxu0 0.0
  %4211 = vmatpush1.msra.mxu0 0.0
  %4212 = vmatprep.subr.mxu0 0.0
  %4213 = vmatpush1.msra.mxu0 0.0
  %4214 = vmatprep.subr.mxu0 0.0
  %4215 = vmatpush1.msra.mxu0 0.0
  %4216 = vmatprep.subr.mxu0 0.0
  %4217 = vmatpush1.msra.mxu0 0.0
  %4218 = vmatprep.subr.mxu0 0.0
  %4219 = vmatpush1.msra.mxu0 0.0
  %4220 = vmatprep.mubr.f32.mxu0 0.0
  %4221 = vmatmul.mubr.f32.gmra.mrb[0].mxu0 %v4135
  %v4222 = vpop.f32.mrb[0].mxu0
  %v4223 = vadd.f32 %v4111, %v4222
  %v4224 = vpop.f32.mrb[0].mxu0
  %v4225 = vadd.f32 %v4111, %v4224
  %4226 = vmatprep.mubr.f32.mxu0 0.0
  %4227 = vmatmul.mubr.f32.gmra.mrb[0].mxu0 %v4138
  %v4228 = vpop.f32.mrb[0].mxu0
  %v4229 = vadd.f32 %v4116, %v4228
  %v4230 = vpop.f32.mrb[0].mxu0
  %v4231 = vadd.f32 %v4116, %v4230
  %4232 = vmatprep.mubr.f32.mxu0 0.0
  %4233 = vmatmul.mubr.f32.gmra.mrb[0].mxu0 %v4141
  %v4234 = vpop.f32.mrb[0].mxu0
  %v4235 = vadd.f32 %v4121, %v4234
  %v4236 = vpop.f32.mrb[0].mxu0
  %v4237 = vadd.f32 %v4121, %v4236
  %4238 = vmatprep.mubr.f32.mxu0 0.0
  %4239 = vmatmul.mubr.f32.gmra.mrb[0].mxu0 %v4144
  %v4240 = vpop.f32.mrb[0].mxu0
  %v4241 = vadd.f32 %v4126, %v4240
  %v4242 = vpop.f32.mrb[0].mxu0
  %v4243 = vadd.f32 %v4126, %v4242
  %4244 = vmatprep.mubr.f32.mxu0 0.0
  %4245 = vmatmul.mubr.f32.gmra.mrb[0].mxu0 %v4147
  %v4246 = vpop.f32.mrb[0].mxu0
  %v4247 = vadd.f32 %v4131, %v4246
  %v4248 = vpop.f32.mrb[0].mxu0
  %v4249 = vadd.f32 %v4131, %v4248
  %4250 = vdwg.mxu0
  %v4251 = vmul.f32 %v4223, 0.1
  %v4252 = vmul.f32 %v4225, 0.1
  %v4253 = vmul.f32 %v4229, 0.1
  %v4254 = vmul.f32 %v4231, 0.1
  %v4255 = vmul.f32 %v4235, 0.1
  %v4256 = vmul.f32 %v4237, 0.1
  %v4257 = vmul.f32 %v4241, 0.1
  %v4258 = vmul.f32 %v4243, 0.1
  %v4259 = vmul.f32 %v4247, 0.1
  %v4260 = vmul.f32 %v4249, 0.1
  %v4261 = vmax.f32 %v4223, %v4251
  %v4262 = vmax.f32 %v4225, %v4252
  %v4263 = vmax.f32 %v4229, %v4253
  %v4264 = vmax.f32 %v4231, %v4254
  %v4265 = vmax.f32 %v4235, %v4255
  %v4266 = vmax.f32 %v4237, %v4256
  %v4267 = vmax.f32 %v4241, %v4257
  %v4268 = vmax.f32 %v4243, %v4258
  %v4269 = vmax.f32 %v4247, %v4259
  %v4270 = vmax.f32 %v4249, %v4260
  %v4271 = vld [vmem:[%s2 + $0x1a] sm:$0xff]
  %v4272 = vld [vmem:[%s2 + $0x22] sm:$0xff]
  %v4273 = vld [vmem:[%s2 + $0x2a] sm:$0xff]
  %v4274 = vld [vmem:[%s2 + $0x32] sm:$0xff]
  %v4275 = vld [vmem:[%s2 + $0x3a] sm:$0xf]
  %4277 = vset.pattern.permute.xlu0 4
  %4278 = vperm.xlu0 %4277, %v4271
  %v4279 = vpop.permute.xlu0 %4278
  %4282 = vset.pattern.permute.xlu0 4
  %4283 = vperm.xlu0 %4282, %v4272
  %v4284 = vpop.permute.xlu0 %4283
  %4287 = vset.pattern.permute.xlu0 4
  %4288 = vperm.xlu0 %4287, %v4273
  %v4289 = vpop.permute.xlu0 %4288
  %4292 = vset.pattern.permute.xlu0 4
  %4293 = vperm.xlu0 %4292, %v4274
  %v4294 = vpop.permute.xlu0 %4293
  %4297 = vset.pattern.permute.xlu0 4
  %4298 = vperm.xlu0 %4297, %v4275
  %v4299 = vpop.permute.xlu0 %4298
  %v4301 = vmul.f32 %v4279, %v4261
  %v4302 = vmul.f32 %v4279, %v4262
  %v4303 = vmul.f32 %v4284, %v4263
  %v4304 = vmul.f32 %v4284, %v4264
  %v4305 = vmul.f32 %v4289, %v4265
  %v4306 = vmul.f32 %v4289, %v4266
  %v4307 = vmul.f32 %v4294, %v4267
  %v4308 = vmul.f32 %v4294, %v4268
  %v4309 = vmul.f32 %v4299, %v4269
  %v4310 = vmul.f32 %v4299, %v4270
  %4321 = vrot.lane.b32.xlu0 %v4261, 17
  %v4322 = vpop.permute.xlu0 %4321
  %4323 = vrot.lane.b32.xlu0 %v4262, 17
  %v4324 = vpop.permute.xlu0 %4323
  %4325 = vrot.lane.b32.xlu0 %v4263, 17
  %v4326 = vpop.permute.xlu0 %4325
  %4327 = vrot.lane.b32.xlu0 %v4264, 17
  %v4328 = vpop.permute.xlu0 %4327
  %4329 = vrot.lane.b32.xlu0 %v4265, 17
  %v4330 = vpop.permute.xlu0 %4329
  %4331 = vrot.lane.b32.xlu0 %v4266, 17
  %v4332 = vpop.permute.xlu0 %4331
  %4333 = vrot.lane.b32.xlu0 %v4267, 17
  %v4334 = vpop.permute.xlu0 %4333
  %4335 = vrot.lane.b32.xlu0 %v4268, 17
  %v4336 = vpop.permute.xlu0 %4335
  %4337 = vrot.lane.b32.xlu0 %v4269, 17
  %v4338 = vpop.permute.xlu0 %4337
  %4339 = vrot.lane.b32.xlu0 %v4270, 17
  %v4340 = vpop.permute.xlu0 %4339
  %vm4341 = vcmask 138240
  %v4342 = vsel %vm4341, %v4322, %v4324
  %v4343 = vsel %vm4341, %v4326, %v4328
  %v4344 = vsel %vm4341, %v4330, %v4332
  %v4345 = vsel %vm4341, %v4334, %v4336
  %v4346 = vsel %vm4341, %v4338, %v4340
  %v4357 = vsel %vm4341, 0.0, %v4322
  %v4358 = vsel %vm4341, 0.0, %v4326
  %v4359 = vsel %vm4341, 0.0, %v4330
  %v4360 = vsel %vm4341, 0.0, %v4334
  %v4361 = vsel %vm4341, 0.0, %v4338
  %v4362 = vld [vmem:[%s5] ss:$8 sm:$0x3]
  %v4364 = vlaneseq
  %v4365 = vshrl.u32 %v4364, 7
  %v4366 = vsub.s32 0, %v4365
  %v4367 = vrot.slane %v4362, %v4366
  %v4368 = vlaneseq
  %v4369 = vshrl.u32 %v4368, 7
  %v4370 = vsub.s32 1, %v4369
  %v4371 = vrot.slane %v4362, %v4370
  %v4374 = vmul.f32 %v4357, %v4367
  %v4375 = vmul.f32 %v4342, %v4371
  %v4376 = vmul.f32 %v4358, %v4367
  %v4377 = vmul.f32 %v4343, %v4371
  %v4378 = vmul.f32 %v4359, %v4367
  %v4379 = vmul.f32 %v4344, %v4371
  %v4380 = vmul.f32 %v4360, %v4367
  %v4381 = vmul.f32 %v4345, %v4371
  %v4382 = vmul.f32 %v4361, %v4367
  %v4383 = vmul.f32 %v4346, %v4371
  %4384 = vset.pattern.permute.xlu0 0
  %4385 = vperm.xlu0 %4384, %v4271
  %v4386 = vpop.permute.xlu0 %4385
  %4388 = vset.pattern.permute.xlu0 0
  %4389 = vperm.xlu0 %4388, %v4272
  %v4390 = vpop.permute.xlu0 %4389
  %4392 = vset.pattern.permute.xlu0 0
  %4393 = vperm.xlu0 %4392, %v4273
  %v4394 = vpop.permute.xlu0 %4393
  %4396 = vset.pattern.permute.xlu0 0
  %4397 = vperm.xlu0 %4396, %v4274
  %v4398 = vpop.permute.xlu0 %4397
  %4400 = vset.pattern.permute.xlu0 0
  %4401 = vperm.xlu0 %4400, %v4275
  %v4402 = vpop.permute.xlu0 %4401
  %v4404 = vmul.f32 %v4386, %v4374
  %v4405 = vmul.f32 %v4386, %v4375
  %v4406 = vmul.f32 %v4390, %v4376
  %v4407 = vmul.f32 %v4390, %v4377
  %v4408 = vmul.f32 %v4394, %v4378
  %v4409 = vmul.f32 %v4394, %v4379
  %v4410 = vmul.f32 %v4398, %v4380
  %v4411 = vmul.f32 %v4398, %v4381
  %v4412 = vmul.f32 %v4402, %v4382
  %v4413 = vmul.f32 %v4402, %v4383
  %v4414 = vadd.f32 %v4301, %v4404
  %v4415 = vadd.f32 %v4302, %v4405
  %v4416 = vadd.f32 %v4303, %v4406
  %v4417 = vadd.f32 %v4304, %v4407
  %v4418 = vadd.f32 %v4305, %v4408
  %v4419 = vadd.f32 %v4306, %v4409
  %v4420 = vadd.f32 %v4307, %v4410
  %v4421 = vadd.f32 %v4308, %v4411
  %v4422 = vadd.f32 %v4309, %v4412
  %v4423 = vadd.f32 %v4310, %v4413
  %4424 = vrot.lane.b32.xlu0 %v4261, 16
  %v4425 = vpop.permute.xlu0 %4424
  %4426 = vrot.lane.b32.xlu0 %v4262, 16
  %v4427 = vpop.permute.xlu0 %4426
  %4428 = vrot.lane.b32.xlu0 %v4263, 16
  %v4429 = vpop.permute.xlu0 %4428
  %4430 = vrot.lane.b32.xlu0 %v4264, 16
  %v4431 = vpop.permute.xlu0 %4430
  %4432 = vrot.lane.b32.xlu0 %v4265, 16
  %v4433 = vpop.permute.xlu0 %4432
  %4434 = vrot.lane.b32.xlu0 %v4266, 16
  %v4435 = vpop.permute.xlu0 %4434
  %4436 = vrot.lane.b32.xlu0 %v4267, 16
  %v4437 = vpop.permute.xlu0 %4436
  %4438 = vrot.lane.b32.xlu0 %v4268, 16
  %v4439 = vpop.permute.xlu0 %4438
  %4440 = vrot.lane.b32.xlu0 %v4269, 16
  %v4441 = vpop.permute.xlu0 %4440
  %4442 = vrot.lane.b32.xlu0 %v4270, 16
  %v4443 = vpop.permute.xlu0 %4442
  %vm4444 = vcmask 130048
  %v4445 = vsel %vm4444, %v4425, %v4427
  %v4446 = vsel %vm4444, %v4429, %v4431
  %v4447 = vsel %vm4444, %v4433, %v4435
  %v4448 = vsel %vm4444, %v4437, %v4439
  %v4449 = vsel %vm4444, %v4441, %v4443
  %v4460 = vsel %vm4444, 0.0, %v4425
  %v4461 = vsel %vm4444, 0.0, %v4429
  %v4462 = vsel %vm4444, 0.0, %v4433
  %v4463 = vsel %vm4444, 0.0, %v4437
  %v4464 = vsel %vm4444, 0.0, %v4441
  %4465 = vset.pattern.permute.xlu0 1
  %4466 = vperm.xlu0 %4465, %v4271
  %v4467 = vpop.permute.xlu0 %4466
  %4469 = vset.pattern.permute.xlu0 1
  %4470 = vperm.xlu0 %4469, %v4272
  %v4471 = vpop.permute.xlu0 %4470
  %4473 = vset.pattern.permute.xlu0 1
  %4474 = vperm.xlu0 %4473, %v4273
  %v4475 = vpop.permute.xlu0 %4474
  %4477 = vset.pattern.permute.xlu0 1
  %4478 = vperm.xlu0 %4477, %v4274
  %v4479 = vpop.permute.xlu0 %4478
  %4481 = vset.pattern.permute.xlu0 1
  %4482 = vperm.xlu0 %4481, %v4275
  %v4483 = vpop.permute.xlu0 %4482
  %v4485 = vmul.f32 %v4467, %v4460
  %v4486 = vmul.f32 %v4467, %v4445
  %v4487 = vmul.f32 %v4471, %v4461
  %v4488 = vmul.f32 %v4471, %v4446
  %v4489 = vmul.f32 %v4475, %v4462
  %v4490 = vmul.f32 %v4475, %v4447
  %v4491 = vmul.f32 %v4479, %v4463
  %v4492 = vmul.f32 %v4479, %v4448
  %v4493 = vmul.f32 %v4483, %v4464
  %v4494 = vmul.f32 %v4483, %v4449
  %v4495 = vadd.f32 %v4414, %v4485
  %v4496 = vadd.f32 %v4415, %v4486
  %v4497 = vadd.f32 %v4416, %v4487
  %v4498 = vadd.f32 %v4417, %v4488
  %v4499 = vadd.f32 %v4418, %v4489
  %v4500 = vadd.f32 %v4419, %v4490
  %v4501 = vadd.f32 %v4420, %v4491
  %v4502 = vadd.f32 %v4421, %v4492
  %v4503 = vadd.f32 %v4422, %v4493
  %v4504 = vadd.f32 %v4423, %v4494
  %4505 = vrot.lane.b32.xlu0 %v4261, 15
  %v4506 = vpop.permute.xlu0 %4505
  %4507 = vrot.lane.b32.xlu0 %v4262, 15
  %v4508 = vpop.permute.xlu0 %4507
  %4509 = vrot.lane.b32.xlu0 %v4263, 15
  %v4510 = vpop.permute.xlu0 %4509
  %4511 = vrot.lane.b32.xlu0 %v4264, 15
  %v4512 = vpop.permute.xlu0 %4511
  %4513 = vrot.lane.b32.xlu0 %v4265, 15
  %v4514 = vpop.permute.xlu0 %4513
  %4515 = vrot.lane.b32.xlu0 %v4266, 15
  %v4516 = vpop.permute.xlu0 %4515
  %4517 = vrot.lane.b32.xlu0 %v4267, 15
  %v4518 = vpop.permute.xlu0 %4517
  %4519 = vrot.lane.b32.xlu0 %v4268, 15
  %v4520 = vpop.permute.xlu0 %4519
  %4521 = vrot.lane.b32.xlu0 %v4269, 15
  %v4522 = vpop.permute.xlu0 %4521
  %4523 = vrot.lane.b32.xlu0 %v4270, 15
  %v4524 = vpop.permute.xlu0 %4523
  %vm4525 = vcmask 121856
  %v4526 = vsel %vm4525, %v4506, %v4508
  %v4527 = vsel %vm4525, %v4510, %v4512
  %v4528 = vsel %vm4525, %v4514, %v4516
  %v4529 = vsel %vm4525, %v4518, %v4520
  %v4530 = vsel %vm4525, %v4522, %v4524
  %v4541 = vsel %vm4525, 0.0, %v4506
  %v4542 = vsel %vm4525, 0.0, %v4510
  %v4543 = vsel %vm4525, 0.0, %v4514
  %v4544 = vsel %vm4525, 0.0, %v4518
  %v4545 = vsel %vm4525, 0.0, %v4522
  %s4546 = scalar_lea.vmem %s5, 2
  %v4547 = vld [vmem:[%s4546] ss:$8 sm:$0x3]
  %v4549 = vlaneseq
  %v4550 = vshrl.u32 %v4549, 7
  %v4551 = vsub.s32 0, %v4550
  %v4552 = vrot.slane %v4547, %v4551
  %v4553 = vlaneseq
  %v4554 = vshrl.u32 %v4553, 7
  %v4555 = vsub.s32 1, %v4554
  %v4556 = vrot.slane %v4547, %v4555
  %v4559 = vmul.f32 %v4541, %v4552
  %v4560 = vmul.f32 %v4526, %v4556
  %v4561 = vmul.f32 %v4542, %v4552
  %v4562 = vmul.f32 %v4527, %v4556
  %v4563 = vmul.f32 %v4543, %v4552
  %v4564 = vmul.f32 %v4528, %v4556
  %v4565 = vmul.f32 %v4544, %v4552
  %v4566 = vmul.f32 %v4529, %v4556
  %v4567 = vmul.f32 %v4545, %v4552
  %v4568 = vmul.f32 %v4530, %v4556
  %4569 = vset.pattern.permute.xlu0 2
  %4570 = vperm.xlu0 %4569, %v4271
  %v4571 = vpop.permute.xlu0 %4570
  %4573 = vset.pattern.permute.xlu0 2
  %4574 = vperm.xlu0 %4573, %v4272
  %v4575 = vpop.permute.xlu0 %4574
  %4577 = vset.pattern.permute.xlu0 2
  %4578 = vperm.xlu0 %4577, %v4273
  %v4579 = vpop.permute.xlu0 %4578
  %4581 = vset.pattern.permute.xlu0 2
  %4582 = vperm.xlu0 %4581, %v4274
  %v4583 = vpop.permute.xlu0 %4582
  %4585 = vset.pattern.permute.xlu0 2
  %4586 = vperm.xlu0 %4585, %v4275
  %v4587 = vpop.permute.xlu0 %4586
  %v4589 = vmul.f32 %v4571, %v4559
  %v4590 = vmul.f32 %v4571, %v4560
  %v4591 = vmul.f32 %v4575, %v4561
  %v4592 = vmul.f32 %v4575, %v4562
  %v4593 = vmul.f32 %v4579, %v4563
  %v4594 = vmul.f32 %v4579, %v4564
  %v4595 = vmul.f32 %v4583, %v4565
  %v4596 = vmul.f32 %v4583, %v4566
  %v4597 = vmul.f32 %v4587, %v4567
  %v4598 = vmul.f32 %v4587, %v4568
  %v4599 = vadd.f32 %v4495, %v4589
  %v4600 = vadd.f32 %v4496, %v4590
  %v4601 = vadd.f32 %v4497, %v4591
  %v4602 = vadd.f32 %v4498, %v4592
  %v4603 = vadd.f32 %v4499, %v4593
  %v4604 = vadd.f32 %v4500, %v4594
  %v4605 = vadd.f32 %v4501, %v4595
  %v4606 = vadd.f32 %v4502, %v4596
  %v4607 = vadd.f32 %v4503, %v4597
  %v4608 = vadd.f32 %v4504, %v4598
  %4609 = vrot.lane.b32.xlu0 %v4261, 1
  %v4610 = vpop.permute.xlu0 %4609
  %4611 = vrot.lane.b32.xlu0 %v4262, 1
  %v4612 = vpop.permute.xlu0 %4611
  %4613 = vrot.lane.b32.xlu0 %v4263, 1
  %v4614 = vpop.permute.xlu0 %4613
  %4615 = vrot.lane.b32.xlu0 %v4264, 1
  %v4616 = vpop.permute.xlu0 %4615
  %4617 = vrot.lane.b32.xlu0 %v4265, 1
  %v4618 = vpop.permute.xlu0 %4617
  %4619 = vrot.lane.b32.xlu0 %v4266, 1
  %v4620 = vpop.permute.xlu0 %4619
  %4621 = vrot.lane.b32.xlu0 %v4267, 1
  %v4622 = vpop.permute.xlu0 %4621
  %4623 = vrot.lane.b32.xlu0 %v4268, 1
  %v4624 = vpop.permute.xlu0 %4623
  %4625 = vrot.lane.b32.xlu0 %v4269, 1
  %v4626 = vpop.permute.xlu0 %4625
  %4627 = vrot.lane.b32.xlu0 %v4270, 1
  %v4628 = vpop.permute.xlu0 %4627
  %v4629 = vsel %vm711, %v4610, %v4612
  %v4630 = vsel %vm711, %v4614, %v4616
  %v4631 = vsel %vm711, %v4618, %v4620
  %v4632 = vsel %vm711, %v4622, %v4624
  %v4633 = vsel %vm711, %v4626, %v4628
  %v4644 = vsel %vm711, 0.0, %v4610
  %v4645 = vsel %vm711, 0.0, %v4614
  %v4646 = vsel %vm711, 0.0, %v4618
  %v4647 = vsel %vm711, 0.0, %v4622
  %v4648 = vsel %vm711, 0.0, %v4626
  %s4649 = scalar_lea.vmem %s5, 3
  %v4650 = vld [vmem:[%s4649] ss:$8 sm:$0x3]
  %v4652 = vlaneseq
  %v4653 = vshrl.u32 %v4652, 7
  %v4654 = vsub.s32 0, %v4653
  %v4655 = vrot.slane %v4650, %v4654
  %v4656 = vlaneseq
  %v4657 = vshrl.u32 %v4656, 7
  %v4658 = vsub.s32 1, %v4657
  %v4659 = vrot.slane %v4650, %v4658
  %v4662 = vmul.f32 %v4644, %v4655
  %v4663 = vmul.f32 %v4629, %v4659
  %v4664 = vmul.f32 %v4645, %v4655
  %v4665 = vmul.f32 %v4630, %v4659
  %v4666 = vmul.f32 %v4646, %v4655
  %v4667 = vmul.f32 %v4631, %v4659
  %v4668 = vmul.f32 %v4647, %v4655
  %v4669 = vmul.f32 %v4632, %v4659
  %v4670 = vmul.f32 %v4648, %v4655
  %v4671 = vmul.f32 %v4633, %v4659
  %4672 = vset.pattern.permute.xlu0 3
  %4673 = vperm.xlu0 %4672, %v4271
  %v4674 = vpop.permute.xlu0 %4673
  %4676 = vset.pattern.permute.xlu0 3
  %4677 = vperm.xlu0 %4676, %v4272
  %v4678 = vpop.permute.xlu0 %4677
  %4680 = vset.pattern.permute.xlu0 3
  %4681 = vperm.xlu0 %4680, %v4273
  %v4682 = vpop.permute.xlu0 %4681
  %4684 = vset.pattern.permute.xlu0 3
  %4685 = vperm.xlu0 %4684, %v4274
  %v4686 = vpop.permute.xlu0 %4685
  %4688 = vset.pattern.permute.xlu0 3
  %4689 = vperm.xlu0 %4688, %v4275
  %v4690 = vpop.permute.xlu0 %4689
  %v4692 = vmul.f32 %v4674, %v4662
  %v4693 = vmul.f32 %v4674, %v4663
  %v4694 = vmul.f32 %v4678, %v4664
  %v4695 = vmul.f32 %v4678, %v4665
  %v4696 = vmul.f32 %v4682, %v4666
  %v4697 = vmul.f32 %v4682, %v4667
  %v4698 = vmul.f32 %v4686, %v4668
  %v4699 = vmul.f32 %v4686, %v4669
  %v4700 = vmul.f32 %v4690, %v4670
  %v4701 = vmul.f32 %v4690, %v4671
  %v4702 = vadd.f32 %v4599, %v4692
  %v4703 = vadd.f32 %v4600, %v4693
  %v4704 = vadd.f32 %v4601, %v4694
  %v4705 = vadd.f32 %v4602, %v4695
  %v4706 = vadd.f32 %v4603, %v4696
  %v4707 = vadd.f32 %v4604, %v4697
  %v4708 = vadd.f32 %v4605, %v4698
  %v4709 = vadd.f32 %v4606, %v4699
  %v4710 = vadd.f32 %v4607, %v4700
  %v4711 = vadd.f32 %v4608, %v4701
  %4712 = vrot.lane.b32.xlu0 %v4261, 127
  %v4713 = vpop.permute.xlu0 %4712
  %4714 = vrot.lane.b32.xlu0 %v4262, 127
  %v4715 = vpop.permute.xlu0 %4714
  %4716 = vrot.lane.b32.xlu0 %v4263, 127
  %v4717 = vpop.permute.xlu0 %4716
  %4718 = vrot.lane.b32.xlu0 %v4264, 127
  %v4719 = vpop.permute.xlu0 %4718
  %4720 = vrot.lane.b32.xlu0 %v4265, 127
  %v4721 = vpop.permute.xlu0 %4720
  %4722 = vrot.lane.b32.xlu0 %v4266, 127
  %v4723 = vpop.permute.xlu0 %4722
  %4724 = vrot.lane.b32.xlu0 %v4267, 127
  %v4725 = vpop.permute.xlu0 %4724
  %4726 = vrot.lane.b32.xlu0 %v4268, 127
  %v4727 = vpop.permute.xlu0 %4726
  %4728 = vrot.lane.b32.xlu0 %v4269, 127
  %v4729 = vpop.permute.xlu0 %4728
  %4730 = vrot.lane.b32.xlu0 %v4270, 127
  %v4731 = vpop.permute.xlu0 %4730
  %v4732 = vsel %vm817, %v4713, %v4715
  %v4733 = vsel %vm817, %v4717, %v4719
  %v4734 = vsel %vm817, %v4721, %v4723
  %v4735 = vsel %vm817, %v4725, %v4727
  %v4736 = vsel %vm817, %v4729, %v4731
  %v4747 = vsel %vm817, %v4715, 0.0
  %v4748 = vsel %vm817, %v4719, 0.0
  %v4749 = vsel %vm817, %v4723, 0.0
  %v4750 = vsel %vm817, %v4727, 0.0
  %v4751 = vsel %vm817, %v4731, 0.0
  %s4752 = scalar_lea.vmem %s5, 5
  %v4753 = vld [vmem:[%s4752] ss:$8 sm:$0x3]
  %v4755 = vlaneseq
  %v4756 = vshrl.u32 %v4755, 7
  %v4757 = vsub.s32 0, %v4756
  %v4758 = vrot.slane %v4753, %v4757
  %v4759 = vlaneseq
  %v4760 = vshrl.u32 %v4759, 7
  %v4761 = vsub.s32 1, %v4760
  %v4762 = vrot.slane %v4753, %v4761
  %v4765 = vmul.f32 %v4732, %v4758
  %v4766 = vmul.f32 %v4747, %v4762
  %v4767 = vmul.f32 %v4733, %v4758
  %v4768 = vmul.f32 %v4748, %v4762
  %v4769 = vmul.f32 %v4734, %v4758
  %v4770 = vmul.f32 %v4749, %v4762
  %v4771 = vmul.f32 %v4735, %v4758
  %v4772 = vmul.f32 %v4750, %v4762
  %v4773 = vmul.f32 %v4736, %v4758
  %v4774 = vmul.f32 %v4751, %v4762
  %4775 = vset.pattern.permute.xlu0 5
  %4776 = vperm.xlu0 %4775, %v4271
  %v4777 = vpop.permute.xlu0 %4776
  %4779 = vset.pattern.permute.xlu0 5
  %4780 = vperm.xlu0 %4779, %v4272
  %v4781 = vpop.permute.xlu0 %4780
  %4783 = vset.pattern.permute.xlu0 5
  %4784 = vperm.xlu0 %4783, %v4273
  %v4785 = vpop.permute.xlu0 %4784
  %4787 = vset.pattern.permute.xlu0 5
  %4788 = vperm.xlu0 %4787, %v4274
  %v4789 = vpop.permute.xlu0 %4788
  %4791 = vset.pattern.permute.xlu0 5
  %4792 = vperm.xlu0 %4791, %v4275
  %v4793 = vpop.permute.xlu0 %4792
  %v4795 = vmul.f32 %v4777, %v4765
  %v4796 = vmul.f32 %v4777, %v4766
  %v4797 = vmul.f32 %v4781, %v4767
  %v4798 = vmul.f32 %v4781, %v4768
  %v4799 = vmul.f32 %v4785, %v4769
  %v4800 = vmul.f32 %v4785, %v4770
  %v4801 = vmul.f32 %v4789, %v4771
  %v4802 = vmul.f32 %v4789, %v4772
  %v4803 = vmul.f32 %v4793, %v4773
  %v4804 = vmul.f32 %v4793, %v4774
  %v4805 = vadd.f32 %v4702, %v4795
  %v4806 = vadd.f32 %v4703, %v4796
  %v4807 = vadd.f32 %v4704, %v4797
  %v4808 = vadd.f32 %v4705, %v4798
  %v4809 = vadd.f32 %v4706, %v4799
  %v4810 = vadd.f32 %v4707, %v4800
  %v4811 = vadd.f32 %v4708, %v4801
  %v4812 = vadd.f32 %v4709, %v4802
  %v4813 = vadd.f32 %v4710, %v4803
  %v4814 = vadd.f32 %v4711, %v4804
  %4815 = vrot.lane.b32.xlu0 %v4261, 113
  %v4816 = vpop.permute.xlu0 %4815
  %4817 = vrot.lane.b32.xlu0 %v4262, 113
  %v4818 = vpop.permute.xlu0 %4817
  %4819 = vrot.lane.b32.xlu0 %v4263, 113
  %v4820 = vpop.permute.xlu0 %4819
  %4821 = vrot.lane.b32.xlu0 %v4264, 113
  %v4822 = vpop.permute.xlu0 %4821
  %4823 = vrot.lane.b32.xlu0 %v4265, 113
  %v4824 = vpop.permute.xlu0 %4823
  %4825 = vrot.lane.b32.xlu0 %v4266, 113
  %v4826 = vpop.permute.xlu0 %4825
  %4827 = vrot.lane.b32.xlu0 %v4267, 113
  %v4828 = vpop.permute.xlu0 %4827
  %4829 = vrot.lane.b32.xlu0 %v4268, 113
  %v4830 = vpop.permute.xlu0 %4829
  %4831 = vrot.lane.b32.xlu0 %v4269, 113
  %v4832 = vpop.permute.xlu0 %4831
  %4833 = vrot.lane.b32.xlu0 %v4270, 113
  %v4834 = vpop.permute.xlu0 %4833
  %vm4835 = vcmask 924672
  %v4836 = vsel %vm4835, %v4816, %v4818
  %v4837 = vsel %vm4835, %v4820, %v4822
  %v4838 = vsel %vm4835, %v4824, %v4826
  %v4839 = vsel %vm4835, %v4828, %v4830
  %v4840 = vsel %vm4835, %v4832, %v4834
  %v4851 = vsel %vm4835, %v4818, 0.0
  %v4852 = vsel %vm4835, %v4822, 0.0
  %v4853 = vsel %vm4835, %v4826, 0.0
  %v4854 = vsel %vm4835, %v4830, 0.0
  %v4855 = vsel %vm4835, %v4834, 0.0
  %s4856 = scalar_lea.vmem %s5, 6
  %v4857 = vld [vmem:[%s4856] ss:$8 sm:$0x3]
  %v4859 = vlaneseq
  %v4860 = vshrl.u32 %v4859, 7
  %v4861 = vsub.s32 0, %v4860
  %v4862 = vrot.slane %v4857, %v4861
  %v4863 = vlaneseq
  %v4864 = vshrl.u32 %v4863, 7
  %v4865 = vsub.s32 1, %v4864
  %v4866 = vrot.slane %v4857, %v4865
  %v4869 = vmul.f32 %v4836, %v4862
  %v4870 = vmul.f32 %v4851, %v4866
  %v4871 = vmul.f32 %v4837, %v4862
  %v4872 = vmul.f32 %v4852, %v4866
  %v4873 = vmul.f32 %v4838, %v4862
  %v4874 = vmul.f32 %v4853, %v4866
  %v4875 = vmul.f32 %v4839, %v4862
  %v4876 = vmul.f32 %v4854, %v4866
  %v4877 = vmul.f32 %v4840, %v4862
  %v4878 = vmul.f32 %v4855, %v4866
  %4879 = vset.pattern.permute.xlu0 6
  %4880 = vperm.xlu0 %4879, %v4271
  %v4881 = vpop.permute.xlu0 %4880
  %4883 = vset.pattern.permute.xlu0 6
  %4884 = vperm.xlu0 %4883, %v4272
  %v4885 = vpop.permute.xlu0 %4884
  %4887 = vset.pattern.permute.xlu0 6
  %4888 = vperm.xlu0 %4887, %v4273
  %v4889 = vpop.permute.xlu0 %4888
  %4891 = vset.pattern.permute.xlu0 6
  %4892 = vperm.xlu0 %4891, %v4274
  %v4893 = vpop.permute.xlu0 %4892
  %4895 = vset.pattern.permute.xlu0 6
  %4896 = vperm.xlu0 %4895, %v4275
  %v4897 = vpop.permute.xlu0 %4896
  %v4899 = vmul.f32 %v4881, %v4869
  %v4900 = vmul.f32 %v4881, %v4870
  %v4901 = vmul.f32 %v4885, %v4871
  %v4902 = vmul.f32 %v4885, %v4872
  %v4903 = vmul.f32 %v4889, %v4873
  %v4904 = vmul.f32 %v4889, %v4874
  %v4905 = vmul.f32 %v4893, %v4875
  %v4906 = vmul.f32 %v4893, %v4876
  %v4907 = vmul.f32 %v4897, %v4877
  %v4908 = vmul.f32 %v4897, %v4878
  %v4909 = vadd.f32 %v4805, %v4899
  %v4910 = vadd.f32 %v4806, %v4900
  %v4911 = vadd.f32 %v4807, %v4901
  %v4912 = vadd.f32 %v4808, %v4902
  %v4913 = vadd.f32 %v4809, %v4903
  %v4914 = vadd.f32 %v4810, %v4904
  %v4915 = vadd.f32 %v4811, %v4905
  %v4916 = vadd.f32 %v4812, %v4906
  %v4917 = vadd.f32 %v4813, %v4907
  %v4918 = vadd.f32 %v4814, %v4908
  %4919 = vrot.lane.b32.xlu0 %v4261, 112
  %v4920 = vpop.permute.xlu0 %4919
  %4921 = vrot.lane.b32.xlu0 %v4262, 112
  %v4922 = vpop.permute.xlu0 %4921
  %4923 = vrot.lane.b32.xlu0 %v4263, 112
  %v4924 = vpop.permute.xlu0 %4923
  %4925 = vrot.lane.b32.xlu0 %v4264, 112
  %v4926 = vpop.permute.xlu0 %4925
  %4927 = vrot.lane.b32.xlu0 %v4265, 112
  %v4928 = vpop.permute.xlu0 %4927
  %4929 = vrot.lane.b32.xlu0 %v4266, 112
  %v4930 = vpop.permute.xlu0 %4929
  %4931 = vrot.lane.b32.xlu0 %v4267, 112
  %v4932 = vpop.permute.xlu0 %4931
  %4933 = vrot.lane.b32.xlu0 %v4268, 112
  %v4934 = vpop.permute.xlu0 %4933
  %4935 = vrot.lane.b32.xlu0 %v4269, 112
  %v4936 = vpop.permute.xlu0 %4935
  %4937 = vrot.lane.b32.xlu0 %v4270, 112
  %v4938 = vpop.permute.xlu0 %4937
  %vm4939 = vcmask 916480
  %v4940 = vsel %vm4939, %v4920, %v4922
  %v4941 = vsel %vm4939, %v4924, %v4926
  %v4942 = vsel %vm4939, %v4928, %v4930
  %v4943 = vsel %vm4939, %v4932, %v4934
  %v4944 = vsel %vm4939, %v4936, %v4938
  %v4955 = vsel %vm4939, %v4922, 0.0
  %v4956 = vsel %vm4939, %v4926, 0.0
  %v4957 = vsel %vm4939, %v4930, 0.0
  %v4958 = vsel %vm4939, %v4934, 0.0
  %v4959 = vsel %vm4939, %v4938, 0.0
  %4960 = vset.pattern.permute.xlu0 7
  %4961 = vperm.xlu0 %4960, %v4271
  %v4962 = vpop.permute.xlu0 %4961
  %4964 = vset.pattern.permute.xlu0 7
  %4965 = vperm.xlu0 %4964, %v4272
  %v4966 = vpop.permute.xlu0 %4965
  %4968 = vset.pattern.permute.xlu0 7
  %4969 = vperm.xlu0 %4968, %v4273
  %v4970 = vpop.permute.xlu0 %4969
  %4972 = vset.pattern.permute.xlu0 7
  %4973 = vperm.xlu0 %4972, %v4274
  %v4974 = vpop.permute.xlu0 %4973
  %4976 = vset.pattern.permute.xlu0 7
  %4977 = vperm.xlu0 %4976, %v4275
  %v4978 = vpop.permute.xlu0 %4977
  %v4980 = vmul.f32 %v4962, %v4940
  %v4981 = vmul.f32 %v4962, %v4955
  %v4982 = vmul.f32 %v4966, %v4941
  %v4983 = vmul.f32 %v4966, %v4956
  %v4984 = vmul.f32 %v4970, %v4942
  %v4985 = vmul.f32 %v4970, %v4957
  %v4986 = vmul.f32 %v4974, %v4943
  %v4987 = vmul.f32 %v4974, %v4958
  %v4988 = vmul.f32 %v4978, %v4944
  %v4989 = vmul.f32 %v4978, %v4959
  %v4990 = vadd.f32 %v4909, %v4980
  %v4991 = vadd.f32 %v4910, %v4981
  %v4992 = vadd.f32 %v4911, %v4982
  %v4993 = vadd.f32 %v4912, %v4983
  %v4994 = vadd.f32 %v4913, %v4984
  %v4995 = vadd.f32 %v4914, %v4985
  %v4996 = vadd.f32 %v4915, %v4986
  %v4997 = vadd.f32 %v4916, %v4987
  %v4998 = vadd.f32 %v4917, %v4988
  %v4999 = vadd.f32 %v4918, %v4989
  %5000 = vrot.lane.b32.xlu0 %v4261, 111
  %v5001 = vpop.permute.xlu0 %5000
  %5002 = vrot.lane.b32.xlu0 %v4262, 111
  %v5003 = vpop.permute.xlu0 %5002
  %5004 = vrot.lane.b32.xlu0 %v4263, 111
  %v5005 = vpop.permute.xlu0 %5004
  %5006 = vrot.lane.b32.xlu0 %v4264, 111
  %v5007 = vpop.permute.xlu0 %5006
  %5008 = vrot.lane.b32.xlu0 %v4265, 111
  %v5009 = vpop.permute.xlu0 %5008
  %5010 = vrot.lane.b32.xlu0 %v4266, 111
  %v5011 = vpop.permute.xlu0 %5010
  %5012 = vrot.lane.b32.xlu0 %v4267, 111
  %v5013 = vpop.permute.xlu0 %5012
  %5014 = vrot.lane.b32.xlu0 %v4268, 111
  %v5015 = vpop.permute.xlu0 %5014
  %5016 = vrot.lane.b32.xlu0 %v4269, 111
  %v5017 = vpop.permute.xlu0 %5016
  %5018 = vrot.lane.b32.xlu0 %v4270, 111
  %v5019 = vpop.permute.xlu0 %5018
  %vm5020 = vcmask 908288
  %v5021 = vsel %vm5020, %v5001, %v5003
  %v5022 = vsel %vm5020, %v5005, %v5007
  %v5023 = vsel %vm5020, %v5009, %v5011
  %v5024 = vsel %vm5020, %v5013, %v5015
  %v5025 = vsel %vm5020, %v5017, %v5019
  %v5036 = vsel %vm5020, %v5003, 0.0
  %v5037 = vsel %vm5020, %v5007, 0.0
  %v5038 = vsel %vm5020, %v5011, 0.0
  %v5039 = vsel %vm5020, %v5015, 0.0
  %v5040 = vsel %vm5020, %v5019, 0.0
  %s5041 = scalar_lea.vmem %s5, 16
  %v5042 = vld [vmem:[%s5041] ss:$8 sm:$0x3]
  %v5044 = vlaneseq
  %v5045 = vshrl.u32 %v5044, 7
  %v5046 = vsub.s32 0, %v5045
  %v5047 = vrot.slane %v5042, %v5046
  %v5048 = vlaneseq
  %v5049 = vshrl.u32 %v5048, 7
  %v5050 = vsub.s32 1, %v5049
  %v5051 = vrot.slane %v5042, %v5050
  %v5054 = vmul.f32 %v5021, %v5047
  %v5055 = vmul.f32 %v5036, %v5051
  %v5056 = vmul.f32 %v5022, %v5047
  %v5057 = vmul.f32 %v5037, %v5051
  %v5058 = vmul.f32 %v5023, %v5047
  %v5059 = vmul.f32 %v5038, %v5051
  %v5060 = vmul.f32 %v5024, %v5047
  %v5061 = vmul.f32 %v5039, %v5051
  %v5062 = vmul.f32 %v5025, %v5047
  %v5063 = vmul.f32 %v5040, %v5051
  %5064 = vset.pattern.permute.xlu0 8
  %5065 = vperm.xlu0 %5064, %v4271
  %v5066 = vpop.permute.xlu0 %5065
  %5068 = vset.pattern.permute.xlu0 8
  %5069 = vperm.xlu0 %5068, %v4272
  %v5070 = vpop.permute.xlu0 %5069
  %5072 = vset.pattern.permute.xlu0 8
  %5073 = vperm.xlu0 %5072, %v4273
  %v5074 = vpop.permute.xlu0 %5073
  %5076 = vset.pattern.permute.xlu0 8
  %5077 = vperm.xlu0 %5076, %v4274
  %v5078 = vpop.permute.xlu0 %5077
  %5080 = vset.pattern.permute.xlu0 8
  %5081 = vperm.xlu0 %5080, %v4275
  %v5082 = vpop.permute.xlu0 %5081
  %v5084 = vmul.f32 %v5066, %v5054
  %v5085 = vmul.f32 %v5066, %v5055
  %v5086 = vmul.f32 %v5070, %v5056
  %v5087 = vmul.f32 %v5070, %v5057
  %v5088 = vmul.f32 %v5074, %v5058
  %v5089 = vmul.f32 %v5074, %v5059
  %v5090 = vmul.f32 %v5078, %v5060
  %v5091 = vmul.f32 %v5078, %v5061
  %v5092 = vmul.f32 %v5082, %v5062
  %v5093 = vmul.f32 %v5082, %v5063
  %v5094 = vadd.f32 %v4990, %v5084
  %v5095 = vadd.f32 %v4991, %v5085
  %v5096 = vadd.f32 %v4992, %v5086
  %v5097 = vadd.f32 %v4993, %v5087
  %v5098 = vadd.f32 %v4994, %v5088
  %v5099 = vadd.f32 %v4995, %v5089
  %v5100 = vadd.f32 %v4996, %v5090
  %v5101 = vadd.f32 %v4997, %v5091
  %v5102 = vadd.f32 %v4998, %v5092
  %v5103 = vadd.f32 %v4999, %v5093
  %v5104 = vld [vmem:[%s3 + $0x62] sm:$0xff]
  %v5105 = vld [vmem:[%s3 + $0x6a] sm:$0xff]
  %v5106 = vld [vmem:[%s3 + $0x72] sm:$0xff]
  %v5107 = vld [vmem:[%s3 + $0x7a] sm:$0xff]
  %v5108 = vld [vmem:[%s3 + $0x82] sm:$0xf]
  %5110 = vset.pattern.permute.xlu0 0
  %5111 = vperm.xlu0 %5110, %v5104
  %v5112 = vpop.permute.xlu0 %5111
  %5115 = vset.pattern.permute.xlu0 0
  %5116 = vperm.xlu0 %5115, %v5105
  %v5117 = vpop.permute.xlu0 %5116
  %5120 = vset.pattern.permute.xlu0 0
  %5121 = vperm.xlu0 %5120, %v5106
  %v5122 = vpop.permute.xlu0 %5121
  %5125 = vset.pattern.permute.xlu0 0
  %5126 = vperm.xlu0 %5125, %v5107
  %v5127 = vpop.permute.xlu0 %5126
  %5130 = vset.pattern.permute.xlu0 0
  %5131 = vperm.xlu0 %5130, %v5108
  %v5132 = vpop.permute.xlu0 %5131
  %v5134 = vadd.f32 %v5094, %v5112
  %v5135 = vadd.f32 %v5095, %v5112
  %v5136 = vadd.f32 %v5096, %v5117
  %v5137 = vadd.f32 %v5097, %v5117
  %v5138 = vadd.f32 %v5098, %v5122
  %v5139 = vadd.f32 %v5099, %v5122
  %v5140 = vadd.f32 %v5100, %v5127
  %v5141 = vadd.f32 %v5101, %v5127
  %v5142 = vadd.f32 %v5102, %v5132
  %v5143 = vadd.f32 %v5103, %v5132
  %v5144 = vmul.f32 %v5134, 0.1
  %v5145 = vmul.f32 %v5135, 0.1
  %v5146 = vmul.f32 %v5136, 0.1
  %v5147 = vmul.f32 %v5137, 0.1
  %v5148 = vmul.f32 %v5138, 0.1
  %v5149 = vmul.f32 %v5139, 0.1
  %v5150 = vmul.f32 %v5140, 0.1
  %v5151 = vmul.f32 %v5141, 0.1
  %v5152 = vmul.f32 %v5142, 0.1
  %v5153 = vmul.f32 %v5143, 0.1
  %v5154 = vmax.f32 %v5134, %v5144
  %v5155 = vmax.f32 %v5135, %v5145
  %v5156 = vmax.f32 %v5136, %v5146
  %v5157 = vmax.f32 %v5137, %v5147
  %v5158 = vmax.f32 %v5138, %v5148
  %v5159 = vmax.f32 %v5139, %v5149
  %v5160 = vmax.f32 %v5140, %v5150
  %v5161 = vmax.f32 %v5141, %v5151
  %v5162 = vmax.f32 %v5142, %v5152
  %v5163 = vmax.f32 %v5143, %v5153
  %v5164 = vld [vmem:[%s1 + $0x48] sm:$0x3f]
  %v5165 = vld [vmem:[%s3 + $0x86] sm:$0x3f]
  %5167 = vset.pattern.permute.xlu0 0
  %5168 = vperm.xlu0 %5167, %v5165
  %v5169 = vpop.permute.xlu0 %5168
  %vm5171 = vcmask 293888
  %v5173 = vsel %vm5171, %v5164, 0
  %v5176 = vsel %vm1528, %v5162, 0
  %v5179 = vsel %vm1528, %v5163, 0
  %5181 = vmatprep.subr.mxu0 %v5155
  %5182 = vmatpush1.msra.mxu0 %v5154
  %5183 = vmatprep.subr.mxu0 %v5157
  %5184 = vmatpush1.msra.mxu0 %v5156
  %5185 = vmatprep.subr.mxu0 %v5159
  %5186 = vmatpush1.msra.mxu0 %v5158
  %5187 = vmatprep.subr.mxu0 %v5161
  %5188 = vmatpush1.msra.mxu0 %v5160
  %5189 = vmatprep.subr.mxu0 %v5179
  %5190 = vmatpush1.msra.mxu0 %v5176
  %5191 = vmatprep.subr.mxu0 0.0
  %5192 = vmatpush1.msra.mxu0 0.0
  %5193 = vmatprep.subr.mxu0 0.0
  %5194 = vmatpush1.msra.mxu0 0.0
  %5195 = vmatprep.subr.mxu0 0.0
  %5196 = vmatpush1.msra.mxu0 0.0
  %5197 = vmatprep.subr.mxu0 0.0
  %5198 = vmatpush1.msra.mxu0 0.0
  %5199 = vmatprep.subr.mxu0 0.0
  %5200 = vmatpush1.msra.mxu0 0.0
  %5201 = vmatprep.subr.mxu0 0.0
  %5202 = vmatpush1.msra.mxu0 0.0
  %5203 = vmatprep.subr.mxu0 0.0
  %5204 = vmatpush1.msra.mxu0 0.0
  %5205 = vmatprep.subr.mxu0 0.0
  %5206 = vmatpush1.msra.mxu0 0.0
  %5207 = vmatprep.subr.mxu0 0.0
  %5208 = vmatpush1.msra.mxu0 0.0
  %5209 = vmatprep.subr.mxu0 0.0
  %5210 = vmatpush1.msra.mxu0 0.0
  %5211 = vmatprep.subr.mxu0 0.0
  %5212 = vmatpush1.msra.mxu0 0.0
  %5213 = vmatprep.subr.mxu0 0.0
  %5214 = vmatpush1.msra.mxu0 0.0
  %5215 = vmatprep.subr.mxu0 0.0
  %5216 = vmatpush1.msra.mxu0 0.0
  %5217 = vmatprep.subr.mxu0 0.0
  %5218 = vmatpush1.msra.mxu0 0.0
  %5219 = vmatprep.subr.mxu0 0.0
  %5220 = vmatpush1.msra.mxu0 0.0
  %5221 = vmatprep.subr.mxu0 0.0
  %5222 = vmatpush1.msra.mxu0 0.0
  %5223 = vmatprep.subr.mxu0 0.0
  %5224 = vmatpush1.msra.mxu0 0.0
  %5225 = vmatprep.subr.mxu0 0.0
  %5226 = vmatpush1.msra.mxu0 0.0
  %5227 = vmatprep.subr.mxu0 0.0
  %5228 = vmatpush1.msra.mxu0 0.0
  %5229 = vmatprep.subr.mxu0 0.0
  %5230 = vmatpush1.msra.mxu0 0.0
  %5231 = vmatprep.subr.mxu0 0.0
  %5232 = vmatpush1.msra.mxu0 0.0
  %5233 = vmatprep.subr.mxu0 0.0
  %5234 = vmatpush1.msra.mxu0 0.0
  %5235 = vmatprep.subr.mxu0 0.0
  %5236 = vmatpush1.msra.mxu0 0.0
  %5237 = vmatprep.subr.mxu0 0.0
  %5238 = vmatpush1.msra.mxu0 0.0
  %5239 = vmatprep.subr.mxu0 0.0
  %5240 = vmatpush1.msra.mxu0 0.0
  %5241 = vmatprep.subr.mxu0 0.0
  %5242 = vmatpush1.msra.mxu0 0.0
  %5243 = vmatprep.subr.mxu0 0.0
  %5244 = vmatpush1.msra.mxu0 0.0
  %5245 = vmatprep.mubr.f32.mxu0 0.0
  %5246 = vmatmul.mubr.f32.gmra.mrb[0].mxu0 %v5173
  %v5247 = vpop.f32.mrb[0].mxu0
  %v5248 = vadd.f32 %v5169, %v5247
  %v5249 = vpop.f32.mrb[0].mxu0
  %v5250 = vadd.f32 %v5169, %v5249
  %5251 = vdwg.mxu0
  %v5252 = vadd.f32 %v5248, %v4094
  %v5253 = vadd.f32 %v5250, %v4096
  %v5254 = vld [vmem:[%s1 + $0x4e] sm:$0xff]
  %v5255 = vld [vmem:[%s1 + $0x56] sm:$0xff]
  %v5256 = vld [vmem:[%s1 + $0x5e] sm:$0x3]
  %v5257 = vld [vmem:[%s3 + $0x8c] sm:$0xff]
  %v5258 = vld [vmem:[%s3 + $0x94] sm:$0xff]
  %v5259 = vld [vmem:[%s3 + $0x9c] sm:$0x3]
  %5261 = vset.pattern.permute.xlu0 0
  %5262 = vperm.xlu0 %5261, %v5257
  %v5263 = vpop.permute.xlu0 %5262
  %5266 = vset.pattern.permute.xlu0 0
  %5267 = vperm.xlu0 %5266, %v5258
  %v5268 = vpop.permute.xlu0 %5267
  %5271 = vset.pattern.permute.xlu0 0
  %5272 = vperm.xlu0 %5271, %v5259
  %v5273 = vpop.permute.xlu0 %5272
  %v5276 = vsel %vm4133, %v5254, 0
  %v5279 = vsel %vm4133, %v5255, 0
  %v5282 = vsel %vm4133, %v5256, 0
  %v5285 = vsel %vm4149, %v5252, 0
  %v5288 = vsel %vm4149, %v5253, 0
  %5290 = vmatprep.subr.mxu0 %v5288
  %5291 = vmatpush1.msra.mxu0 %v5285
  %5292 = vmatprep.subr.mxu0 0.0
  %5293 = vmatpush1.msra.mxu0 0.0
  %5294 = vmatprep.subr.mxu0 0.0
  %5295 = vmatpush1.msra.mxu0 0.0
  %5296 = vmatprep.subr.mxu0 0.0
  %5297 = vmatpush1.msra.mxu0 0.0
  %5298 = vmatprep.subr.mxu0 0.0
  %5299 = vmatpush1.msra.mxu0 0.0
  %5300 = vmatprep.subr.mxu0 0.0
  %5301 = vmatpush1.msra.mxu0 0.0
  %5302 = vmatprep.subr.mxu0 0.0
  %5303 = vmatpush1.msra.mxu0 0.0
  %5304 = vmatprep.subr.mxu0 0.0
  %5305 = vmatpush1.msra.mxu0 0.0
  %5306 = vmatprep.subr.mxu0 0.0
  %5307 = vmatpush1.msra.mxu0 0.0
  %5308 = vmatprep.subr.mxu0 0.0
  %5309 = vmatpush1.msra.mxu0 0.0
  %5310 = vmatprep.subr.mxu0 0.0
  %5311 = vmatpush1.msra.mxu0 0.0
  %5312 = vmatprep.subr.mxu0 0.0
  %5313 = vmatpush1.msra.mxu0 0.0
  %5314 = vmatprep.subr.mxu0 0.0
  %5315 = vmatpush1.msra.mxu0 0.0
  %5316 = vmatprep.subr.mxu0 0.0
  %5317 = vmatpush1.msra.mxu0 0.0
  %5318 = vmatprep.subr.mxu0 0.0
  %5319 = vmatpush1.msra.mxu0 0.0
  %5320 = vmatprep.subr.mxu0 0.0
  %5321 = vmatpush1.msra.mxu0 0.0
  %5322 = vmatprep.subr.mxu0 0.0
  %5323 = vmatpush1.msra.mxu0 0.0
  %5324 = vmatprep.subr.mxu0 0.0
  %5325 = vmatpush1.msra.mxu0 0.0
  %5326 = vmatprep.subr.mxu0 0.0
  %5327 = vmatpush1.msra.mxu0 0.0
  %5328 = vmatprep.subr.mxu0 0.0
  %5329 = vmatpush1.msra.mxu0 0.0
  %5330 = vmatprep.subr.mxu0 0.0
  %5331 = vmatpush1.msra.mxu0 0.0
  %5332 = vmatprep.subr.mxu0 0.0
  %5333 = vmatpush1.msra.mxu0 0.0
  %5334 = vmatprep.subr.mxu0 0.0
  %5335 = vmatpush1.msra.mxu0 0.0
  %5336 = vmatprep.subr.mxu0 0.0
  %5337 = vmatpush1.msra.mxu0 0.0
  %5338 = vmatprep.subr.mxu0 0.0
  %5339 = vmatpush1.msra.mxu0 0.0
  %5340 = vmatprep.subr.mxu0 0.0
  %5341 = vmatpush1.msra.mxu0 0.0
  %5342 = vmatprep.subr.mxu0 0.0
  %5343 = vmatpush1.msra.mxu0 0.0
  %5344 = vmatprep.subr.mxu0 0.0
  %5345 = vmatpush1.msra.mxu0 0.0
  %5346 = vmatprep.subr.mxu0 0.0
  %5347 = vmatpush1.msra.mxu0 0.0
  %5348 = vmatprep.subr.mxu0 0.0
  %5349 = vmatpush1.msra.mxu0 0.0
  %5350 = vmatprep.subr.mxu0 0.0
  %5351 = vmatpush1.msra.mxu0 0.0
  %5352 = vmatprep.subr.mxu0 0.0
  %5353 = vmatpush1.msra.mxu0 0.0
  %5354 = vmatprep.mubr.f32.mxu0 0.0
  %5355 = vmatmul.mubr.f32.gmra.mrb[0].mxu0 %v5276
  %v5356 = vpop.f32.mrb[0].mxu0
  %v5357 = vadd.f32 %v5263, %v5356
  %v5358 = vpop.f32.mrb[0].mxu0
  %v5359 = vadd.f32 %v5263, %v5358
  %5360 = vmatprep.mubr.f32.mxu0 0.0
  %5361 = vmatmul.mubr.f32.gmra.mrb[0].mxu0 %v5279
  %v5362 = vpop.f32.mrb[0].mxu0
  %v5363 = vadd.f32 %v5268, %v5362
  %v5364 = vpop.f32.mrb[0].mxu0
  %v5365 = vadd.f32 %v5268, %v5364
  %5366 = vmatprep.mubr.f32.mxu0 0.0
  %5367 = vmatmul.mubr.f32.gmra.mrb[0].mxu0 %v5282
  %v5368 = vpop.f32.mrb[0].mxu0
  %v5369 = vadd.f32 %v5273, %v5368
  %v5370 = vpop.f32.mrb[0].mxu0
  %v5371 = vadd.f32 %v5273, %v5370
  %5372 = vdwg.mxu0
  %v5373 = vmul.f32 %v5357, 0.1
  %v5374 = vmul.f32 %v5359, 0.1
  %v5375 = vmul.f32 %v5363, 0.1
  %v5376 = vmul.f32 %v5365, 0.1
  %v5377 = vmul.f32 %v5369, 0.1
  %v5378 = vmul.f32 %v5371, 0.1
  %v5379 = vmax.f32 %v5357, %v5373
  %v5380 = vmax.f32 %v5359, %v5374
  %v5381 = vmax.f32 %v5363, %v5375
  %v5382 = vmax.f32 %v5365, %v5376
  %v5383 = vmax.f32 %v5369, %v5377
  %v5384 = vmax.f32 %v5371, %v5378
  %5385 = vrot.lane.b32.xlu0 %v1909, 3
  %v5386 = vpop.permute.xlu0 %5385
  %5387 = vrot.lane.b32.xlu0 %v1910, 3
  %v5388 = vpop.permute.xlu0 %5387
  %5389 = vrot.lane.b32.xlu0 %v1911, 3
  %v5390 = vpop.permute.xlu0 %5389
  %5391 = vrot.lane.b32.xlu0 %v1912, 3
  %v5392 = vpop.permute.xlu0 %5391
  %5393 = vrot.lane.b32.xlu0 %v1913, 3
  %v5394 = vpop.permute.xlu0 %5393
  %5395 = vrot.lane.b32.xlu0 %v1914, 3
  %v5396 = vpop.permute.xlu0 %5395
  %5397 = vrot.lane.b32.xlu0 %v1915, 3
  %v5398 = vpop.permute.xlu0 %5397
  %5399 = vrot.lane.b32.xlu0 %v1916, 3
  %v5400 = vpop.permute.xlu0 %5399
  %5401 = vrot.lane.b32.xlu0 %v1917, 3
  %v5402 = vpop.permute.xlu0 %5401
  %5403 = vrot.lane.b32.xlu0 %v1918, 3
  %v5404 = vpop.permute.xlu0 %5403
  %5405 = vrot.lane.b32.xlu0 %v1919, 3
  %v5406 = vpop.permute.xlu0 %5405
  %5407 = vrot.lane.b32.xlu0 %v1920, 3
  %v5408 = vpop.permute.xlu0 %5407
  %5409 = vrot.lane.b32.xlu0 %v1921, 3
  %v5410 = vpop.permute.xlu0 %5409
  %5411 = vrot.lane.b32.xlu0 %v1922, 3
  %v5412 = vpop.permute.xlu0 %5411
  %5413 = vrot.lane.b32.xlu0 %v1923, 3
  %v5414 = vpop.permute.xlu0 %5413
  %5415 = vrot.lane.b32.xlu0 %v1924, 3
  %v5416 = vpop.permute.xlu0 %5415
  %5417 = vrot.lane.b32.xlu0 %v1925, 3
  %v5418 = vpop.permute.xlu0 %5417
  %5419 = vrot.lane.b32.xlu0 %v1926, 3
  %v5420 = vpop.permute.xlu0 %5419
  %5421 = vrot.lane.b32.xlu0 %v1927, 3
  %v5422 = vpop.permute.xlu0 %5421
  %5423 = vrot.lane.b32.xlu0 %v1928, 3
  %v5424 = vpop.permute.xlu0 %5423
  %5425 = vrot.lane.b32.xlu0 %v1929, 3
  %v5426 = vpop.permute.xlu0 %5425
  %5427 = vrot.lane.b32.xlu0 %v1930, 3
  %v5428 = vpop.permute.xlu0 %5427
  %5429 = vrot.lane.b32.xlu0 %v1931, 3
  %v5430 = vpop.permute.xlu0 %5429
  %5431 = vrot.lane.b32.xlu0 %v1932, 3
  %v5432 = vpop.permute.xlu0 %5431
  %vm5433 = vcmask 23552
  %v5434 = vsel %vm5433, %v5386, %v5388
  %v5435 = vsel %vm5433, %v5388, %v5390
  %v5436 = vsel %vm5433, %v5390, %v5392
  %v5437 = vsel %vm5433, %v5392, %v5394
  %v5438 = vsel %vm5433, %v5394, %v5396
  %v5439 = vsel %vm5433, %v5396, %v5398
  %v5440 = vsel %vm5433, %v5398, %v5400
  %v5441 = vsel %vm5433, %v5402, %v5404
  %v5442 = vsel %vm5433, %v5404, %v5406
  %v5443 = vsel %vm5433, %v5406, %v5408
  %v5444 = vsel %vm5433, %v5408, %v5410
  %v5445 = vsel %vm5433, %v5410, %v5412
  %v5446 = vsel %vm5433, %v5412, %v5414
  %v5447 = vsel %vm5433, %v5414, %v5416
  %v5448 = vsel %vm5433, %v5418, %v5420
  %v5449 = vsel %vm5433, %v5420, %v5422
  %v5450 = vsel %vm5433, %v5422, %v5424
  %v5451 = vsel %vm5433, %v5424, %v5426
  %v5452 = vsel %vm5433, %v5426, %v5428
  %v5453 = vsel %vm5433, %v5428, %v5430
  %v5454 = vsel %vm5433, %v5430, %v5432
  %v5479 = vsel %vm5433, 0.0, %v5386
  %v5480 = vsel %vm5433, 0.0, %v5402
  %v5481 = vsel %vm5433, 0.0, %v5418
  %v5482 = vld [vmem:[%s7] ss:$8 sm:$0xf]
  %v5483 = vld [vmem:[%s7] ss:$8 sm:$0xf0]
  %v5484 = vor.u32 %v5482, %v5483
  %v5486 = vlaneseq
  %v5487 = vshrl.u32 %v5486, 7
  %v5488 = vsub.s32 0, %v5487
  %v5489 = vrot.slane %v5484, %v5488
  %v5490 = vlaneseq
  %v5491 = vshrl.u32 %v5490, 7
  %v5492 = vsub.s32 1, %v5491
  %v5493 = vrot.slane %v5484, %v5492
  %v5494 = vlaneseq
  %v5495 = vshrl.u32 %v5494, 7
  %v5496 = vsub.s32 2, %v5495
  %v5497 = vrot.slane %v5484, %v5496
  %v5498 = vlaneseq
  %v5499 = vshrl.u32 %v5498, 7
  %v5500 = vsub.s32 3, %v5499
  %v5501 = vrot.slane %v5484, %v5500
  %v5502 = vlaneseq
  %v5503 = vshrl.u32 %v5502, 7
  %v5504 = vsub.s32 4, %v5503
  %v5505 = vrot.slane %v5484, %v5504
  %v5506 = vlaneseq
  %v5507 = vshrl.u32 %v5506, 7
  %v5508 = vsub.s32 5, %v5507
  %v5509 = vrot.slane %v5484, %v5508
  %v5510 = vlaneseq
  %v5511 = vshrl.u32 %v5510, 7
  %v5512 = vsub.s32 6, %v5511
  %v5513 = vrot.slane %v5484, %v5512
  %v5514 = vlaneseq
  %v5515 = vshrl.u32 %v5514, 7
  %v5516 = vsub.s32 7, %v5515
  %v5517 = vrot.slane %v5484, %v5516
  %v5526 = vadd.f32 %v5479, %v5489
  %v5527 = vadd.f32 %v5434, %v5493
  %v5528 = vadd.f32 %v5435, %v5497
  %v5529 = vadd.f32 %v5436, %v5501
  %v5530 = vadd.f32 %v5437, %v5505
  %v5531 = vadd.f32 %v5438, %v5509
  %v5532 = vadd.f32 %v5439, %v5513
  %v5533 = vadd.f32 %v5440, %v5517
  %v5534 = vadd.f32 %v5480, %v5489
  %v5535 = vadd.f32 %v5441, %v5493
  %v5536 = vadd.f32 %v5442, %v5497
  %v5537 = vadd.f32 %v5443, %v5501
  %v5538 = vadd.f32 %v5444, %v5505
  %v5539 = vadd.f32 %v5445, %v5509
  %v5540 = vadd.f32 %v5446, %v5513
  %v5541 = vadd.f32 %v5447, %v5517
  %v5542 = vadd.f32 %v5481, %v5489
  %v5543 = vadd.f32 %v5448, %v5493
  %v5544 = vadd.f32 %v5449, %v5497
  %v5545 = vadd.f32 %v5450, %v5501
  %v5546 = vadd.f32 %v5451, %v5505
  %v5547 = vadd.f32 %v5452, %v5509
  %v5548 = vadd.f32 %v5453, %v5513
  %v5549 = vadd.f32 %v5454, %v5517
  %5550 = vrot.lane.b32.xlu0 %v1909, 2
  %v5551 = vpop.permute.xlu0 %5550
  %5552 = vrot.lane.b32.xlu0 %v1910, 2
  %v5553 = vpop.permute.xlu0 %5552
  %5554 = vrot.lane.b32.xlu0 %v1911, 2
  %v5555 = vpop.permute.xlu0 %5554
  %5556 = vrot.lane.b32.xlu0 %v1912, 2
  %v5557 = vpop.permute.xlu0 %5556
  %5558 = vrot.lane.b32.xlu0 %v1913, 2
  %v5559 = vpop.permute.xlu0 %5558
  %5560 = vrot.lane.b32.xlu0 %v1914, 2
  %v5561 = vpop.permute.xlu0 %5560
  %5562 = vrot.lane.b32.xlu0 %v1915, 2
  %v5563 = vpop.permute.xlu0 %5562
  %5564 = vrot.lane.b32.xlu0 %v1916, 2
  %v5565 = vpop.permute.xlu0 %5564
  %5566 = vrot.lane.b32.xlu0 %v1917, 2
  %v5567 = vpop.permute.xlu0 %5566
  %5568 = vrot.lane.b32.xlu0 %v1918, 2
  %v5569 = vpop.permute.xlu0 %5568
  %5570 = vrot.lane.b32.xlu0 %v1919, 2
  %v5571 = vpop.permute.xlu0 %5570
  %5572 = vrot.lane.b32.xlu0 %v1920, 2
  %v5573 = vpop.permute.xlu0 %5572
  %5574 = vrot.lane.b32.xlu0 %v1921, 2
  %v5575 = vpop.permute.xlu0 %5574
  %5576 = vrot.lane.b32.xlu0 %v1922, 2
  %v5577 = vpop.permute.xlu0 %5576
  %5578 = vrot.lane.b32.xlu0 %v1923, 2
  %v5579 = vpop.permute.xlu0 %5578
  %5580 = vrot.lane.b32.xlu0 %v1924, 2
  %v5581 = vpop.permute.xlu0 %5580
  %5582 = vrot.lane.b32.xlu0 %v1925, 2
  %v5583 = vpop.permute.xlu0 %5582
  %5584 = vrot.lane.b32.xlu0 %v1926, 2
  %v5585 = vpop.permute.xlu0 %5584
  %5586 = vrot.lane.b32.xlu0 %v1927, 2
  %v5587 = vpop.permute.xlu0 %5586
  %5588 = vrot.lane.b32.xlu0 %v1928, 2
  %v5589 = vpop.permute.xlu0 %5588
  %5590 = vrot.lane.b32.xlu0 %v1929, 2
  %v5591 = vpop.permute.xlu0 %5590
  %5592 = vrot.lane.b32.xlu0 %v1930, 2
  %v5593 = vpop.permute.xlu0 %5592
  %5594 = vrot.lane.b32.xlu0 %v1931, 2
  %v5595 = vpop.permute.xlu0 %5594
  %5596 = vrot.lane.b32.xlu0 %v1932, 2
  %v5597 = vpop.permute.xlu0 %5596
  %vm5598 = vcmask 15360
  %v5599 = vsel %vm5598, %v5551, %v5553
  %v5600 = vsel %vm5598, %v5553, %v5555
  %v5601 = vsel %vm5598, %v5555, %v5557
  %v5602 = vsel %vm5598, %v5557, %v5559
  %v5603 = vsel %vm5598, %v5559, %v5561
  %v5604 = vsel %vm5598, %v5561, %v5563
  %v5605 = vsel %vm5598, %v5563, %v5565
  %v5606 = vsel %vm5598, %v5567, %v5569
  %v5607 = vsel %vm5598, %v5569, %v5571
  %v5608 = vsel %vm5598, %v5571, %v5573
  %v5609 = vsel %vm5598, %v5573, %v5575
  %v5610 = vsel %vm5598, %v5575, %v5577
  %v5611 = vsel %vm5598, %v5577, %v5579
  %v5612 = vsel %vm5598, %v5579, %v5581
  %v5613 = vsel %vm5598, %v5583, %v5585
  %v5614 = vsel %vm5598, %v5585, %v5587
  %v5615 = vsel %vm5598, %v5587, %v5589
  %v5616 = vsel %vm5598, %v5589, %v5591
  %v5617 = vsel %vm5598, %v5591, %v5593
  %v5618 = vsel %vm5598, %v5593, %v5595
  %v5619 = vsel %vm5598, %v5595, %v5597
  %v5644 = vsel %vm5598, 0.0, %v5551
  %v5645 = vsel %vm5598, 0.0, %v5567
  %v5646 = vsel %vm5598, 0.0, %v5583
  %s5647 = scalar_lea.vmem %s7, 1
  %v5648 = vld [vmem:[%s5647] ss:$8 sm:$0xf]
  %v5649 = vld [vmem:[%s5647] ss:$8 sm:$0xf0]
  %v5650 = vor.u32 %v5648, %v5649
  %v5652 = vlaneseq
  %v5653 = vshrl.u32 %v5652, 7
  %v5654 = vsub.s32 0, %v5653
  %v5655 = vrot.slane %v5650, %v5654
  %v5656 = vlaneseq
  %v5657 = vshrl.u32 %v5656, 7
  %v5658 = vsub.s32 1, %v5657
  %v5659 = vrot.slane %v5650, %v5658
  %v5660 = vlaneseq
  %v5661 = vshrl.u32 %v5660, 7
  %v5662 = vsub.s32 2, %v5661
  %v5663 = vrot.slane %v5650, %v5662
  %v5664 = vlaneseq
  %v5665 = vshrl.u32 %v5664, 7
  %v5666 = vsub.s32 3, %v5665
  %v5667 = vrot.slane %v5650, %v5666
  %v5668 = vlaneseq
  %v5669 = vshrl.u32 %v5668, 7
  %v5670 = vsub.s32 4, %v5669
  %v5671 = vrot.slane %v5650, %v5670
  %v5672 = vlaneseq
  %v5673 = vshrl.u32 %v5672, 7
  %v5674 = vsub.s32 5, %v5673
  %v5675 = vrot.slane %v5650, %v5674
  %v5676 = vlaneseq
  %v5677 = vshrl.u32 %v5676, 7
  %v5678 = vsub.s32 6, %v5677
  %v5679 = vrot.slane %v5650, %v5678
  %v5680 = vlaneseq
  %v5681 = vshrl.u32 %v5680, 7
  %v5682 = vsub.s32 7, %v5681
  %v5683 = vrot.slane %v5650, %v5682
  %v5692 = vadd.f32 %v5644, %v5655
  %v5693 = vadd.f32 %v5599, %v5659
  %v5694 = vadd.f32 %v5600, %v5663
  %v5695 = vadd.f32 %v5601, %v5667
  %v5696 = vadd.f32 %v5602, %v5671
  %v5697 = vadd.f32 %v5603, %v5675
  %v5698 = vadd.f32 %v5604, %v5679
  %v5699 = vadd.f32 %v5605, %v5683
  %v5700 = vadd.f32 %v5645, %v5655
  %v5701 = vadd.f32 %v5606, %v5659
  %v5702 = vadd.f32 %v5607, %v5663
  %v5703 = vadd.f32 %v5608, %v5667
  %v5704 = vadd.f32 %v5609, %v5671
  %v5705 = vadd.f32 %v5610, %v5675
  %v5706 = vadd.f32 %v5611, %v5679
  %v5707 = vadd.f32 %v5612, %v5683
  %v5708 = vadd.f32 %v5646, %v5655
  %v5709 = vadd.f32 %v5613, %v5659
  %v5710 = vadd.f32 %v5614, %v5663
  %v5711 = vadd.f32 %v5615, %v5667
  %v5712 = vadd.f32 %v5616, %v5671
  %v5713 = vadd.f32 %v5617, %v5675
  %v5714 = vadd.f32 %v5618, %v5679
  %v5715 = vadd.f32 %v5619, %v5683
  %v5716 = vmax.f32 %v5526, %v5692
  %v5717 = vmax.f32 %v5527, %v5693
  %v5718 = vmax.f32 %v5528, %v5694
  %v5719 = vmax.f32 %v5529, %v5695
  %v5720 = vmax.f32 %v5530, %v5696
  %v5721 = vmax.f32 %v5531, %v5697
  %v5722 = vmax.f32 %v5532, %v5698
  %v5723 = vmax.f32 %v5533, %v5699
  %v5724 = vmax.f32 %v5534, %v5700
  %v5725 = vmax.f32 %v5535, %v5701
  %v5726 = vmax.f32 %v5536, %v5702
  %v5727 = vmax.f32 %v5537, %v5703
  %v5728 = vmax.f32 %v5538, %v5704
  %v5729 = vmax.f32 %v5539, %v5705
  %v5730 = vmax.f32 %v5540, %v5706
  %v5731 = vmax.f32 %v5541, %v5707
  %v5732 = vmax.f32 %v5542, %v5708
  %v5733 = vmax.f32 %v5543, %v5709
  %v5734 = vmax.f32 %v5544, %v5710
  %v5735 = vmax.f32 %v5545, %v5711
  %v5736 = vmax.f32 %v5546, %v5712
  %v5737 = vmax.f32 %v5547, %v5713
  %v5738 = vmax.f32 %v5548, %v5714
  %v5739 = vmax.f32 %v5549, %v5715
  %s5740 = scalar_lea.vmem %s7, 2
  %v5741 = vld [vmem:[%s5740] ss:$8 sm:$0xf]
  %v5742 = vld [vmem:[%s5740] ss:$8 sm:$0xf0]
  %v5743 = vor.u32 %v5741, %v5742
  %v5745 = vlaneseq
  %v5746 = vshrl.u32 %v5745, 7
  %v5747 = vsub.s32 0, %v5746
  %v5748 = vrot.slane %v5743, %v5747
  %v5749 = vlaneseq
  %v5750 = vshrl.u32 %v5749, 7
  %v5751 = vsub.s32 1, %v5750
  %v5752 = vrot.slane %v5743, %v5751
  %v5753 = vlaneseq
  %v5754 = vshrl.u32 %v5753, 7
  %v5755 = vsub.s32 2, %v5754
  %v5756 = vrot.slane %v5743, %v5755
  %v5757 = vlaneseq
  %v5758 = vshrl.u32 %v5757, 7
  %v5759 = vsub.s32 3, %v5758
  %v5760 = vrot.slane %v5743, %v5759
  %v5761 = vlaneseq
  %v5762 = vshrl.u32 %v5761, 7
  %v5763 = vsub.s32 4, %v5762
  %v5764 = vrot.slane %v5743, %v5763
  %v5765 = vlaneseq
  %v5766 = vshrl.u32 %v5765, 7
  %v5767 = vsub.s32 5, %v5766
  %v5768 = vrot.slane %v5743, %v5767
  %v5769 = vlaneseq
  %v5770 = vshrl.u32 %v5769, 7
  %v5771 = vsub.s32 6, %v5770
  %v5772 = vrot.slane %v5743, %v5771
  %v5773 = vlaneseq
  %v5774 = vshrl.u32 %v5773, 7
  %v5775 = vsub.s32 7, %v5774
  %v5776 = vrot.slane %v5743, %v5775
  %v5785 = vadd.f32 %v2608, %v5748
  %v5786 = vadd.f32 %v2563, %v5752
  %v5787 = vadd.f32 %v2564, %v5756
  %v5788 = vadd.f32 %v2565, %v5760
  %v5789 = vadd.f32 %v2566, %v5764
  %v5790 = vadd.f32 %v2567, %v5768
  %v5791 = vadd.f32 %v2568, %v5772
  %v5792 = vadd.f32 %v2569, %v5776
  %v5793 = vadd.f32 %v2609, %v5748
  %v5794 = vadd.f32 %v2570, %v5752
  %v5795 = vadd.f32 %v2571, %v5756
  %v5796 = vadd.f32 %v2572, %v5760
  %v5797 = vadd.f32 %v2573, %v5764
  %v5798 = vadd.f32 %v2574, %v5768
  %v5799 = vadd.f32 %v2575, %v5772
  %v5800 = vadd.f32 %v2576, %v5776
  %v5801 = vadd.f32 %v2610, %v5748
  %v5802 = vadd.f32 %v2577, %v5752
  %v5803 = vadd.f32 %v2578, %v5756
  %v5804 = vadd.f32 %v2579, %v5760
  %v5805 = vadd.f32 %v2580, %v5764
  %v5806 = vadd.f32 %v2581, %v5768
  %v5807 = vadd.f32 %v2582, %v5772
  %v5808 = vadd.f32 %v2583, %v5776
  %v5809 = vmax.f32 %v5716, %v5785
  %v5810 = vmax.f32 %v5717, %v5786
  %v5811 = vmax.f32 %v5718, %v5787
  %v5812 = vmax.f32 %v5719, %v5788
  %v5813 = vmax.f32 %v5720, %v5789
  %v5814 = vmax.f32 %v5721, %v5790
  %v5815 = vmax.f32 %v5722, %v5791
  %v5816 = vmax.f32 %v5723, %v5792
  %v5817 = vmax.f32 %v5724, %v5793
  %v5818 = vmax.f32 %v5725, %v5794
  %v5819 = vmax.f32 %v5726, %v5795
  %v5820 = vmax.f32 %v5727, %v5796
  %v5821 = vmax.f32 %v5728, %v5797
  %v5822 = vmax.f32 %v5729, %v5798
  %v5823 = vmax.f32 %v5730, %v5799
  %v5824 = vmax.f32 %v5731, %v5800
  %v5825 = vmax.f32 %v5732, %v5801
  %v5826 = vmax.f32 %v5733, %v5802
  %v5827 = vmax.f32 %v5734, %v5803
  %v5828 = vmax.f32 %v5735, %v5804
  %v5829 = vmax.f32 %v5736, %v5805
  %v5830 = vmax.f32 %v5737, %v5806
  %v5831 = vmax.f32 %v5738, %v5807
  %v5832 = vmax.f32 %v5739, %v5808
  %s5833 = scalar_lea.vmem %s7, 3
  %v5834 = vld [vmem:[%s5833] ss:$8 sm:$0xf]
  %v5835 = vld [vmem:[%s5833] ss:$8 sm:$0xf0]
  %v5836 = vor.u32 %v5834, %v5835
  %v5838 = vlaneseq
  %v5839 = vshrl.u32 %v5838, 7
  %v5840 = vsub.s32 0, %v5839
  %v5841 = vrot.slane %v5836, %v5840
  %v5842 = vlaneseq
  %v5843 = vshrl.u32 %v5842, 7
  %v5844 = vsub.s32 1, %v5843
  %v5845 = vrot.slane %v5836, %v5844
  %v5846 = vlaneseq
  %v5847 = vshrl.u32 %v5846, 7
  %v5848 = vsub.s32 2, %v5847
  %v5849 = vrot.slane %v5836, %v5848
  %v5850 = vlaneseq
  %v5851 = vshrl.u32 %v5850, 7
  %v5852 = vsub.s32 3, %v5851
  %v5853 = vrot.slane %v5836, %v5852
  %v5854 = vlaneseq
  %v5855 = vshrl.u32 %v5854, 7
  %v5856 = vsub.s32 4, %v5855
  %v5857 = vrot.slane %v5836, %v5856
  %v5858 = vlaneseq
  %v5859 = vshrl.u32 %v5858, 7
  %v5860 = vsub.s32 5, %v5859
  %v5861 = vrot.slane %v5836, %v5860
  %v5862 = vlaneseq
  %v5863 = vshrl.u32 %v5862, 7
  %v5864 = vsub.s32 6, %v5863
  %v5865 = vrot.slane %v5836, %v5864
  %v5866 = vlaneseq
  %v5867 = vshrl.u32 %v5866, 7
  %v5868 = vsub.s32 7, %v5867
  %v5869 = vrot.slane %v5836, %v5868
  %v5878 = vadd.f32 %v1909, %v5841
  %v5879 = vadd.f32 %v1910, %v5845
  %v5880 = vadd.f32 %v1911, %v5849
  %v5881 = vadd.f32 %v1912, %v5853
  %v5882 = vadd.f32 %v1913, %v5857
  %v5883 = vadd.f32 %v1914, %v5861
  %v5884 = vadd.f32 %v1915, %v5865
  %v5885 = vadd.f32 %v1916, %v5869
  %v5886 = vadd.f32 %v1917, %v5841
  %v5887 = vadd.f32 %v1918, %v5845
  %v5888 = vadd.f32 %v1919, %v5849
  %v5889 = vadd.f32 %v1920, %v5853
  %v5890 = vadd.f32 %v1921, %v5857
  %v5891 = vadd.f32 %v1922, %v5861
  %v5892 = vadd.f32 %v1923, %v5865
  %v5893 = vadd.f32 %v1924, %v5869
  %v5894 = vadd.f32 %v1925, %v5841
  %v5895 = vadd.f32 %v1926, %v5845
  %v5896 = vadd.f32 %v1927, %v5849
  %v5897 = vadd.f32 %v1928, %v5853
  %v5898 = vadd.f32 %v1929, %v5857
  %v5899 = vadd.f32 %v1930, %v5861
  %v5900 = vadd.f32 %v1931, %v5865
  %v5901 = vadd.f32 %v1932, %v5869
  %v5902 = vmax.f32 %v5809, %v5878
  %v5903 = vmax.f32 %v5810, %v5879
  %v5904 = vmax.f32 %v5811, %v5880
  %v5905 = vmax.f32 %v5812, %v5881
  %v5906 = vmax.f32 %v5813, %v5882
  %v5907 = vmax.f32 %v5814, %v5883
  %v5908 = vmax.f32 %v5815, %v5884
  %v5909 = vmax.f32 %v5816, %v5885
  %v5910 = vmax.f32 %v5817, %v5886
  %v5911 = vmax.f32 %v5818, %v5887
  %v5912 = vmax.f32 %v5819, %v5888
  %v5913 = vmax.f32 %v5820, %v5889
  %v5914 = vmax.f32 %v5821, %v5890
  %v5915 = vmax.f32 %v5822, %v5891
  %v5916 = vmax.f32 %v5823, %v5892
  %v5917 = vmax.f32 %v5824, %v5893
  %v5918 = vmax.f32 %v5825, %v5894
  %v5919 = vmax.f32 %v5826, %v5895
  %v5920 = vmax.f32 %v5827, %v5896
  %v5921 = vmax.f32 %v5828, %v5897
  %v5922 = vmax.f32 %v5829, %v5898
  %v5923 = vmax.f32 %v5830, %v5899
  %v5924 = vmax.f32 %v5831, %v5900
  %v5925 = vmax.f32 %v5832, %v5901
  %s5926 = scalar_lea.vmem %s7, 4
  %v5927 = vld [vmem:[%s5926] ss:$8 sm:$0xf]
  %v5928 = vld [vmem:[%s5926] ss:$8 sm:$0xf0]
  %v5929 = vor.u32 %v5927, %v5928
  %v5931 = vlaneseq
  %v5932 = vshrl.u32 %v5931, 7
  %v5933 = vsub.s32 0, %v5932
  %v5934 = vrot.slane %v5929, %v5933
  %v5935 = vlaneseq
  %v5936 = vshrl.u32 %v5935, 7
  %v5937 = vsub.s32 1, %v5936
  %v5938 = vrot.slane %v5929, %v5937
  %v5939 = vlaneseq
  %v5940 = vshrl.u32 %v5939, 7
  %v5941 = vsub.s32 2, %v5940
  %v5942 = vrot.slane %v5929, %v5941
  %v5943 = vlaneseq
  %v5944 = vshrl.u32 %v5943, 7
  %v5945 = vsub.s32 3, %v5944
  %v5946 = vrot.slane %v5929, %v5945
  %v5947 = vlaneseq
  %v5948 = vshrl.u32 %v5947, 7
  %v5949 = vsub.s32 4, %v5948
  %v5950 = vrot.slane %v5929, %v5949
  %v5951 = vlaneseq
  %v5952 = vshrl.u32 %v5951, 7
  %v5953 = vsub.s32 5, %v5952
  %v5954 = vrot.slane %v5929, %v5953
  %v5955 = vlaneseq
  %v5956 = vshrl.u32 %v5955, 7
  %v5957 = vsub.s32 6, %v5956
  %v5958 = vrot.slane %v5929, %v5957
  %v5959 = vlaneseq
  %v5960 = vshrl.u32 %v5959, 7
  %v5961 = vsub.s32 7, %v5960
  %v5962 = vrot.slane %v5929, %v5961
  %v5971 = vadd.f32 %v2743, %v5934
  %v5972 = vadd.f32 %v2744, %v5938
  %v5973 = vadd.f32 %v2745, %v5942
  %v5974 = vadd.f32 %v2746, %v5946
  %v5975 = vadd.f32 %v2747, %v5950
  %v5976 = vadd.f32 %v2748, %v5954
  %v5977 = vadd.f32 %v2749, %v5958
  %v5978 = vadd.f32 %v2788, %v5962
  %v5979 = vadd.f32 %v2750, %v5934
  %v5980 = vadd.f32 %v2751, %v5938
  %v5981 = vadd.f32 %v2752, %v5942
  %v5982 = vadd.f32 %v2753, %v5946
  %v5983 = vadd.f32 %v2754, %v5950
  %v5984 = vadd.f32 %v2755, %v5954
  %v5985 = vadd.f32 %v2756, %v5958
  %v5986 = vadd.f32 %v2789, %v5962
  %v5987 = vadd.f32 %v2757, %v5934
  %v5988 = vadd.f32 %v2758, %v5938
  %v5989 = vadd.f32 %v2759, %v5942
  %v5990 = vadd.f32 %v2760, %v5946
  %v5991 = vadd.f32 %v2761, %v5950
  %v5992 = vadd.f32 %v2762, %v5954
  %v5993 = vadd.f32 %v2763, %v5958
  %v5994 = vadd.f32 %v2790, %v5962
  %v5995 = vmax.f32 %v5902, %v5971
  %v5996 = vmax.f32 %v5903, %v5972
  %v5997 = vmax.f32 %v5904, %v5973
  %v5998 = vmax.f32 %v5905, %v5974
  %v5999 = vmax.f32 %v5906, %v5975
  %v6000 = vmax.f32 %v5907, %v5976
  %v6001 = vmax.f32 %v5908, %v5977
  %v6002 = vmax.f32 %v5909, %v5978
  %v6003 = vmax.f32 %v5910, %v5979
  %v6004 = vmax.f32 %v5911, %v5980
  %v6005 = vmax.f32 %v5912, %v5981
  %v6006 = vmax.f32 %v5913, %v5982
  %v6007 = vmax.f32 %v5914, %v5983
  %v6008 = vmax.f32 %v5915, %v5984
  %v6009 = vmax.f32 %v5916, %v5985
  %v6010 = vmax.f32 %v5917, %v5986
  %v6011 = vmax.f32 %v5918, %v5987
  %v6012 = vmax.f32 %v5919, %v5988
  %v6013 = vmax.f32 %v5920, %v5989
  %v6014 = vmax.f32 %v5921, %v5990
  %v6015 = vmax.f32 %v5922, %v5991
  %v6016 = vmax.f32 %v5923, %v5992
  %v6017 = vmax.f32 %v5924, %v5993
  %v6018 = vmax.f32 %v5925, %v5994
  %6019 = vrot.lane.b32.xlu0 %v1909, 126
  %v6020 = vpop.permute.xlu0 %6019
  %6021 = vrot.lane.b32.xlu0 %v1910, 126
  %v6022 = vpop.permute.xlu0 %6021
  %6023 = vrot.lane.b32.xlu0 %v1911, 126
  %v6024 = vpop.permute.xlu0 %6023
  %6025 = vrot.lane.b32.xlu0 %v1912, 126
  %v6026 = vpop.permute.xlu0 %6025
  %6027 = vrot.lane.b32.xlu0 %v1913, 126
  %v6028 = vpop.permute.xlu0 %6027
  %6029 = vrot.lane.b32.xlu0 %v1914, 126
  %v6030 = vpop.permute.xlu0 %6029
  %6031 = vrot.lane.b32.xlu0 %v1915, 126
  %v6032 = vpop.permute.xlu0 %6031
  %6033 = vrot.lane.b32.xlu0 %v1916, 126
  %v6034 = vpop.permute.xlu0 %6033
  %6035 = vrot.lane.b32.xlu0 %v1917, 126
  %v6036 = vpop.permute.xlu0 %6035
  %6037 = vrot.lane.b32.xlu0 %v1918, 126
  %v6038 = vpop.permute.xlu0 %6037
  %6039 = vrot.lane.b32.xlu0 %v1919, 126
  %v6040 = vpop.permute.xlu0 %6039
  %6041 = vrot.lane.b32.xlu0 %v1920, 126
  %v6042 = vpop.permute.xlu0 %6041
  %6043 = vrot.lane.b32.xlu0 %v1921, 126
  %v6044 = vpop.permute.xlu0 %6043
  %6045 = vrot.lane.b32.xlu0 %v1922, 126
  %v6046 = vpop.permute.xlu0 %6045
  %6047 = vrot.lane.b32.xlu0 %v1923, 126
  %v6048 = vpop.permute.xlu0 %6047
  %6049 = vrot.lane.b32.xlu0 %v1924, 126
  %v6050 = vpop.permute.xlu0 %6049
  %6051 = vrot.lane.b32.xlu0 %v1925, 126
  %v6052 = vpop.permute.xlu0 %6051
  %6053 = vrot.lane.b32.xlu0 %v1926, 126
  %v6054 = vpop.permute.xlu0 %6053
  %6055 = vrot.lane.b32.xlu0 %v1927, 126
  %v6056 = vpop.permute.xlu0 %6055
  %6057 = vrot.lane.b32.xlu0 %v1928, 126
  %v6058 = vpop.permute.xlu0 %6057
  %6059 = vrot.lane.b32.xlu0 %v1929, 126
  %v6060 = vpop.permute.xlu0 %6059
  %6061 = vrot.lane.b32.xlu0 %v1930, 126
  %v6062 = vpop.permute.xlu0 %6061
  %6063 = vrot.lane.b32.xlu0 %v1931, 126
  %v6064 = vpop.permute.xlu0 %6063
  %6065 = vrot.lane.b32.xlu0 %v1932, 126
  %v6066 = vpop.permute.xlu0 %6065
  %vm6067 = vcmask 1031168
  %v6068 = vsel %vm6067, %v6020, %v6022
  %v6069 = vsel %vm6067, %v6022, %v6024
  %v6070 = vsel %vm6067, %v6024, %v6026
  %v6071 = vsel %vm6067, %v6026, %v6028
  %v6072 = vsel %vm6067, %v6028, %v6030
  %v6073 = vsel %vm6067, %v6030, %v6032
  %v6074 = vsel %vm6067, %v6032, %v6034
  %v6075 = vsel %vm6067, %v6036, %v6038
  %v6076 = vsel %vm6067, %v6038, %v6040
  %v6077 = vsel %vm6067, %v6040, %v6042
  %v6078 = vsel %vm6067, %v6042, %v6044
  %v6079 = vsel %vm6067, %v6044, %v6046
  %v6080 = vsel %vm6067, %v6046, %v6048
  %v6081 = vsel %vm6067, %v6048, %v6050
  %v6082 = vsel %vm6067, %v6052, %v6054
  %v6083 = vsel %vm6067, %v6054, %v6056
  %v6084 = vsel %vm6067, %v6056, %v6058
  %v6085 = vsel %vm6067, %v6058, %v6060
  %v6086 = vsel %vm6067, %v6060, %v6062
  %v6087 = vsel %vm6067, %v6062, %v6064
  %v6088 = vsel %vm6067, %v6064, %v6066
  %v6113 = vsel %vm6067, %v6034, 0.0
  %v6114 = vsel %vm6067, %v6050, 0.0
  %v6115 = vsel %vm6067, %v6066, 0.0
  %s6116 = scalar_lea.vmem %s7, 5
  %v6117 = vld [vmem:[%s6116] ss:$8 sm:$0xf]
  %v6118 = vld [vmem:[%s6116] ss:$8 sm:$0xf0]
  %v6119 = vor.u32 %v6117, %v6118
  %v6121 = vlaneseq
  %v6122 = vshrl.u32 %v6121, 7
  %v6123 = vsub.s32 0, %v6122
  %v6124 = vrot.slane %v6119, %v6123
  %v6125 = vlaneseq
  %v6126 = vshrl.u32 %v6125, 7
  %v6127 = vsub.s32 1, %v6126
  %v6128 = vrot.slane %v6119, %v6127
  %v6129 = vlaneseq
  %v6130 = vshrl.u32 %v6129, 7
  %v6131 = vsub.s32 2, %v6130
  %v6132 = vrot.slane %v6119, %v6131
  %v6133 = vlaneseq
  %v6134 = vshrl.u32 %v6133, 7
  %v6135 = vsub.s32 3, %v6134
  %v6136 = vrot.slane %v6119, %v6135
  %v6137 = vlaneseq
  %v6138 = vshrl.u32 %v6137, 7
  %v6139 = vsub.s32 4, %v6138
  %v6140 = vrot.slane %v6119, %v6139
  %v6141 = vlaneseq
  %v6142 = vshrl.u32 %v6141, 7
  %v6143 = vsub.s32 5, %v6142
  %v6144 = vrot.slane %v6119, %v6143
  %v6145 = vlaneseq
  %v6146 = vshrl.u32 %v6145, 7
  %v6147 = vsub.s32 6, %v6146
  %v6148 = vrot.slane %v6119, %v6147
  %v6149 = vlaneseq
  %v6150 = vshrl.u32 %v6149, 7
  %v6151 = vsub.s32 7, %v6150
  %v6152 = vrot.slane %v6119, %v6151
  %v6161 = vadd.f32 %v6068, %v6124
  %v6162 = vadd.f32 %v6069, %v6128
  %v6163 = vadd.f32 %v6070, %v6132
  %v6164 = vadd.f32 %v6071, %v6136
  %v6165 = vadd.f32 %v6072, %v6140
  %v6166 = vadd.f32 %v6073, %v6144
  %v6167 = vadd.f32 %v6074, %v6148
  %v6168 = vadd.f32 %v6113, %v6152
  %v6169 = vadd.f32 %v6075, %v6124
  %v6170 = vadd.f32 %v6076, %v6128
  %v6171 = vadd.f32 %v6077, %v6132
  %v6172 = vadd.f32 %v6078, %v6136
  %v6173 = vadd.f32 %v6079, %v6140
  %v6174 = vadd.f32 %v6080, %v6144
  %v6175 = vadd.f32 %v6081, %v6148
  %v6176 = vadd.f32 %v6114, %v6152
  %v6177 = vadd.f32 %v6082, %v6124
  %v6178 = vadd.f32 %v6083, %v6128
  %v6179 = vadd.f32 %v6084, %v6132
  %v6180 = vadd.f32 %v6085, %v6136
  %v6181 = vadd.f32 %v6086, %v6140
  %v6182 = vadd.f32 %v6087, %v6144
  %v6183 = vadd.f32 %v6088, %v6148
  %v6184 = vadd.f32 %v6115, %v6152
  %v6185 = vmax.f32 %v5995, %v6161
  %v6186 = vmax.f32 %v5996, %v6162
  %v6187 = vmax.f32 %v5997, %v6163
  %v6188 = vmax.f32 %v5998, %v6164
  %v6189 = vmax.f32 %v5999, %v6165
  %v6190 = vmax.f32 %v6000, %v6166
  %v6191 = vmax.f32 %v6001, %v6167
  %v6192 = vmax.f32 %v6002, %v6168
  %v6193 = vmax.f32 %v6003, %v6169
  %v6194 = vmax.f32 %v6004, %v6170
  %v6195 = vmax.f32 %v6005, %v6171
  %v6196 = vmax.f32 %v6006, %v6172
  %v6197 = vmax.f32 %v6007, %v6173
  %v6198 = vmax.f32 %v6008, %v6174
  %v6199 = vmax.f32 %v6009, %v6175
  %v6200 = vmax.f32 %v6010, %v6176
  %v6201 = vmax.f32 %v6011, %v6177
  %v6202 = vmax.f32 %v6012, %v6178
  %v6203 = vmax.f32 %v6013, %v6179
  %v6204 = vmax.f32 %v6014, %v6180
  %v6205 = vmax.f32 %v6015, %v6181
  %v6206 = vmax.f32 %v6016, %v6182
  %v6207 = vmax.f32 %v6017, %v6183
  %v6208 = vmax.f32 %v6018, %v6184
  %6209 = vrot.lane.b32.xlu0 %v1909, 125
  %v6210 = vpop.permute.xlu0 %6209
  %6211 = vrot.lane.b32.xlu0 %v1910, 125
  %v6212 = vpop.permute.xlu0 %6211
  %6213 = vrot.lane.b32.xlu0 %v1911, 125
  %v6214 = vpop.permute.xlu0 %6213
  %6215 = vrot.lane.b32.xlu0 %v1912, 125
  %v6216 = vpop.permute.xlu0 %6215
  %6217 = vrot.lane.b32.xlu0 %v1913, 125
  %v6218 = vpop.permute.xlu0 %6217
  %6219 = vrot.lane.b32.xlu0 %v1914, 125
  %v6220 = vpop.permute.xlu0 %6219
  %6221 = vrot.lane.b32.xlu0 %v1915, 125
  %v6222 = vpop.permute.xlu0 %6221
  %6223 = vrot.lane.b32.xlu0 %v1916, 125
  %v6224 = vpop.permute.xlu0 %6223
  %6225 = vrot.lane.b32.xlu0 %v1917, 125
  %v6226 = vpop.permute.xlu0 %6225
  %6227 = vrot.lane.b32.xlu0 %v1918, 125
  %v6228 = vpop.permute.xlu0 %6227
  %6229 = vrot.lane.b32.xlu0 %v1919, 125
  %v6230 = vpop.permute.xlu0 %6229
  %6231 = vrot.lane.b32.xlu0 %v1920, 125
  %v6232 = vpop.permute.xlu0 %6231
  %6233 = vrot.lane.b32.xlu0 %v1921, 125
  %v6234 = vpop.permute.xlu0 %6233
  %6235 = vrot.lane.b32.xlu0 %v1922, 125
  %v6236 = vpop.permute.xlu0 %6235
  %6237 = vrot.lane.b32.xlu0 %v1923, 125
  %v6238 = vpop.permute.xlu0 %6237
  %6239 = vrot.lane.b32.xlu0 %v1924, 125
  %v6240 = vpop.permute.xlu0 %6239
  %6241 = vrot.lane.b32.xlu0 %v1925, 125
  %v6242 = vpop.permute.xlu0 %6241
  %6243 = vrot.lane.b32.xlu0 %v1926, 125
  %v6244 = vpop.permute.xlu0 %6243
  %6245 = vrot.lane.b32.xlu0 %v1927, 125
  %v6246 = vpop.permute.xlu0 %6245
  %6247 = vrot.lane.b32.xlu0 %v1928, 125
  %v6248 = vpop.permute.xlu0 %6247
  %6249 = vrot.lane.b32.xlu0 %v1929, 125
  %v6250 = vpop.permute.xlu0 %6249
  %6251 = vrot.lane.b32.xlu0 %v1930, 125
  %v6252 = vpop.permute.xlu0 %6251
  %6253 = vrot.lane.b32.xlu0 %v1931, 125
  %v6254 = vpop.permute.xlu0 %6253
  %6255 = vrot.lane.b32.xlu0 %v1932, 125
  %v6256 = vpop.permute.xlu0 %6255
  %vm6257 = vcmask 1022976
  %v6258 = vsel %vm6257, %v6210, %v6212
  %v6259 = vsel %vm6257, %v6212, %v6214
  %v6260 = vsel %vm6257, %v6214, %v6216
  %v6261 = vsel %vm6257, %v6216, %v6218
  %v6262 = vsel %vm6257, %v6218, %v6220
  %v6263 = vsel %vm6257, %v6220, %v6222
  %v6264 = vsel %vm6257, %v6222, %v6224
  %v6265 = vsel %vm6257, %v6226, %v6228
  %v6266 = vsel %vm6257, %v6228, %v6230
  %v6267 = vsel %vm6257, %v6230, %v6232
  %v6268 = vsel %vm6257, %v6232, %v6234
  %v6269 = vsel %vm6257, %v6234, %v6236
  %v6270 = vsel %vm6257, %v6236, %v6238
  %v6271 = vsel %vm6257, %v6238, %v6240
  %v6272 = vsel %vm6257, %v6242, %v6244
  %v6273 = vsel %vm6257, %v6244, %v6246
  %v6274 = vsel %vm6257, %v6246, %v6248
  %v6275 = vsel %vm6257, %v6248, %v6250
  %v6276 = vsel %vm6257, %v6250, %v6252
  %v6277 = vsel %vm6257, %v6252, %v6254
  %v6278 = vsel %vm6257, %v6254, %v6256
  %v6303 = vsel %vm6257, %v6224, 0.0
  %v6304 = vsel %vm6257, %v6240, 0.0
  %v6305 = vsel %vm6257, %v6256, 0.0
  %s6306 = scalar_lea.vmem %s7, 6
  %v6307 = vld [vmem:[%s6306] ss:$8 sm:$0xf]
  %v6308 = vld [vmem:[%s6306] ss:$8 sm:$0xf0]
  %v6309 = vor.u32 %v6307, %v6308
  %v6311 = vlaneseq
  %v6312 = vshrl.u32 %v6311, 7
  %v6313 = vsub.s32 0, %v6312
  %v6314 = vrot.slane %v6309, %v6313
  %v6315 = vlaneseq
  %v6316 = vshrl.u32 %v6315, 7
  %v6317 = vsub.s32 1, %v6316
  %v6318 = vrot.slane %v6309, %v6317
  %v6319 = vlaneseq
  %v6320 = vshrl.u32 %v6319, 7
  %v6321 = vsub.s32 2, %v6320
  %v6322 = vrot.slane %v6309, %v6321
  %v6323 = vlaneseq
  %v6324 = vshrl.u32 %v6323, 7
  %v6325 = vsub.s32 3, %v6324
  %v6326 = vrot.slane %v6309, %v6325
  %v6327 = vlaneseq
  %v6328 = vshrl.u32 %v6327, 7
  %v6329 = vsub.s32 4, %v6328
  %v6330 = vrot.slane %v6309, %v6329
  %v6331 = vlaneseq
  %v6332 = vshrl.u32 %v6331, 7
  %v6333 = vsub.s32 5, %v6332
  %v6334 = vrot.slane %v6309, %v6333
  %v6335 = vlaneseq
  %v6336 = vshrl.u32 %v6335, 7
  %v6337 = vsub.s32 6, %v6336
  %v6338 = vrot.slane %v6309, %v6337
  %v6339 = vlaneseq
  %v6340 = vshrl.u32 %v6339, 7
  %v6341 = vsub.s32 7, %v6340
  %v6342 = vrot.slane %v6309, %v6341
  %v6351 = vadd.f32 %v6258, %v6314
  %v6352 = vadd.f32 %v6259, %v6318
  %v6353 = vadd.f32 %v6260, %v6322
  %v6354 = vadd.f32 %v6261, %v6326
  %v6355 = vadd.f32 %v6262, %v6330
  %v6356 = vadd.f32 %v6263, %v6334
  %v6357 = vadd.f32 %v6264, %v6338
  %v6358 = vadd.f32 %v6303, %v6342
  %v6359 = vadd.f32 %v6265, %v6314
  %v6360 = vadd.f32 %v6266, %v6318
  %v6361 = vadd.f32 %v6267, %v6322
  %v6362 = vadd.f32 %v6268, %v6326
  %v6363 = vadd.f32 %v6269, %v6330
  %v6364 = vadd.f32 %v6270, %v6334
  %v6365 = vadd.f32 %v6271, %v6338
  %v6366 = vadd.f32 %v6304, %v6342
  %v6367 = vadd.f32 %v6272, %v6314
  %v6368 = vadd.f32 %v6273, %v6318
  %v6369 = vadd.f32 %v6274, %v6322
  %v6370 = vadd.f32 %v6275, %v6326
  %v6371 = vadd.f32 %v6276, %v6330
  %v6372 = vadd.f32 %v6277, %v6334
  %v6373 = vadd.f32 %v6278, %v6338
  %v6374 = vadd.f32 %v6305, %v6342
  %v6375 = vmax.f32 %v6185, %v6351
  %v6376 = vmax.f32 %v6186, %v6352
  %v6377 = vmax.f32 %v6187, %v6353
  %v6378 = vmax.f32 %v6188, %v6354
  %v6379 = vmax.f32 %v6189, %v6355
  %v6380 = vmax.f32 %v6190, %v6356
  %v6381 = vmax.f32 %v6191, %v6357
  %v6382 = vmax.f32 %v6192, %v6358
  %v6383 = vmax.f32 %v6193, %v6359
  %v6384 = vmax.f32 %v6194, %v6360
  %v6385 = vmax.f32 %v6195, %v6361
  %v6386 = vmax.f32 %v6196, %v6362
  %v6387 = vmax.f32 %v6197, %v6363
  %v6388 = vmax.f32 %v6198, %v6364
  %v6389 = vmax.f32 %v6199, %v6365
  %v6390 = vmax.f32 %v6200, %v6366
  %v6391 = vmax.f32 %v6201, %v6367
  %v6392 = vmax.f32 %v6202, %v6368
  %v6393 = vmax.f32 %v6203, %v6369
  %v6394 = vmax.f32 %v6204, %v6370
  %v6395 = vmax.f32 %v6205, %v6371
  %v6396 = vmax.f32 %v6206, %v6372
  %v6397 = vmax.f32 %v6207, %v6373
  %v6398 = vmax.f32 %v6208, %v6374
  %6399 = vrot.lane.b32.xlu0 %v1909, 124
  %v6400 = vpop.permute.xlu0 %6399
  %6401 = vrot.lane.b32.xlu0 %v1910, 124
  %v6402 = vpop.permute.xlu0 %6401
  %6403 = vrot.lane.b32.xlu0 %v1911, 124
  %v6404 = vpop.permute.xlu0 %6403
  %6405 = vrot.lane.b32.xlu0 %v1912, 124
  %v6406 = vpop.permute.xlu0 %6405
  %6407 = vrot.lane.b32.xlu0 %v1913, 124
  %v6408 = vpop.permute.xlu0 %6407
  %6409 = vrot.lane.b32.xlu0 %v1914, 124
  %v6410 = vpop.permute.xlu0 %6409
  %6411 = vrot.lane.b32.xlu0 %v1915, 124
  %v6412 = vpop.permute.xlu0 %6411
  %6413 = vrot.lane.b32.xlu0 %v1916, 124
  %v6414 = vpop.permute.xlu0 %6413
  %6415 = vrot.lane.b32.xlu0 %v1917, 124
  %v6416 = vpop.permute.xlu0 %6415
  %6417 = vrot.lane.b32.xlu0 %v1918, 124
  %v6418 = vpop.permute.xlu0 %6417
  %6419 = vrot.lane.b32.xlu0 %v1919, 124
  %v6420 = vpop.permute.xlu0 %6419
  %6421 = vrot.lane.b32.xlu0 %v1920, 124
  %v6422 = vpop.permute.xlu0 %6421
  %6423 = vrot.lane.b32.xlu0 %v1921, 124
  %v6424 = vpop.permute.xlu0 %6423
  %6425 = vrot.lane.b32.xlu0 %v1922, 124
  %v6426 = vpop.permute.xlu0 %6425
  %6427 = vrot.lane.b32.xlu0 %v1923, 124
  %v6428 = vpop.permute.xlu0 %6427
  %6429 = vrot.lane.b32.xlu0 %v1924, 124
  %v6430 = vpop.permute.xlu0 %6429
  %6431 = vrot.lane.b32.xlu0 %v1925, 124
  %v6432 = vpop.permute.xlu0 %6431
  %6433 = vrot.lane.b32.xlu0 %v1926, 124
  %v6434 = vpop.permute.xlu0 %6433
  %6435 = vrot.lane.b32.xlu0 %v1927, 124
  %v6436 = vpop.permute.xlu0 %6435
  %6437 = vrot.lane.b32.xlu0 %v1928, 124
  %v6438 = vpop.permute.xlu0 %6437
  %6439 = vrot.lane.b32.xlu0 %v1929, 124
  %v6440 = vpop.permute.xlu0 %6439
  %6441 = vrot.lane.b32.xlu0 %v1930, 124
  %v6442 = vpop.permute.xlu0 %6441
  %6443 = vrot.lane.b32.xlu0 %v1931, 124
  %v6444 = vpop.permute.xlu0 %6443
  %6445 = vrot.lane.b32.xlu0 %v1932, 124
  %v6446 = vpop.permute.xlu0 %6445
  %vm6447 = vcmask 1014784
  %v6448 = vsel %vm6447, %v6400, %v6402
  %v6449 = vsel %vm6447, %v6402, %v6404
  %v6450 = vsel %vm6447, %v6404, %v6406
  %v6451 = vsel %vm6447, %v6406, %v6408
  %v6452 = vsel %vm6447, %v6408, %v6410
  %v6453 = vsel %vm6447, %v6410, %v6412
  %v6454 = vsel %vm6447, %v6412, %v6414
  %v6455 = vsel %vm6447, %v6416, %v6418
  %v6456 = vsel %vm6447, %v6418, %v6420
  %v6457 = vsel %vm6447, %v6420, %v6422
  %v6458 = vsel %vm6447, %v6422, %v6424
  %v6459 = vsel %vm6447, %v6424, %v6426
  %v6460 = vsel %vm6447, %v6426, %v6428
  %v6461 = vsel %vm6447, %v6428, %v6430
  %v6462 = vsel %vm6447, %v6432, %v6434
  %v6463 = vsel %vm6447, %v6434, %v6436
  %v6464 = vsel %vm6447, %v6436, %v6438
  %v6465 = vsel %vm6447, %v6438, %v6440
  %v6466 = vsel %vm6447, %v6440, %v6442
  %v6467 = vsel %vm6447, %v6442, %v6444
  %v6468 = vsel %vm6447, %v6444, %v6446
  %v6493 = vsel %vm6447, %v6414, 0.0
  %v6494 = vsel %vm6447, %v6430, 0.0
  %v6495 = vsel %vm6447, %v6446, 0.0
  %s6496 = scalar_lea.vmem %s7, 7
  %v6497 = vld [vmem:[%s6496] ss:$8 sm:$0xf]
  %v6498 = vld [vmem:[%s6496] ss:$8 sm:$0xf0]
  %v6499 = vor.u32 %v6497, %v6498
  %v6501 = vlaneseq
  %v6502 = vshrl.u32 %v6501, 7
  %v6503 = vsub.s32 0, %v6502
  %v6504 = vrot.slane %v6499, %v6503
  %v6505 = vlaneseq
  %v6506 = vshrl.u32 %v6505, 7
  %v6507 = vsub.s32 1, %v6506
  %v6508 = vrot.slane %v6499, %v6507
  %v6509 = vlaneseq
  %v6510 = vshrl.u32 %v6509, 7
  %v6511 = vsub.s32 2, %v6510
  %v6512 = vrot.slane %v6499, %v6511
  %v6513 = vlaneseq
  %v6514 = vshrl.u32 %v6513, 7
  %v6515 = vsub.s32 3, %v6514
  %v6516 = vrot.slane %v6499, %v6515
  %v6517 = vlaneseq
  %v6518 = vshrl.u32 %v6517, 7
  %v6519 = vsub.s32 4, %v6518
  %v6520 = vrot.slane %v6499, %v6519
  %v6521 = vlaneseq
  %v6522 = vshrl.u32 %v6521, 7
  %v6523 = vsub.s32 5, %v6522
  %v6524 = vrot.slane %v6499, %v6523
  %v6525 = vlaneseq
  %v6526 = vshrl.u32 %v6525, 7
  %v6527 = vsub.s32 6, %v6526
  %v6528 = vrot.slane %v6499, %v6527
  %v6529 = vlaneseq
  %v6530 = vshrl.u32 %v6529, 7
  %v6531 = vsub.s32 7, %v6530
  %v6532 = vrot.slane %v6499, %v6531
  %v6541 = vadd.f32 %v6448, %v6504
  %v6542 = vadd.f32 %v6449, %v6508
  %v6543 = vadd.f32 %v6450, %v6512
  %v6544 = vadd.f32 %v6451, %v6516
  %v6545 = vadd.f32 %v6452, %v6520
  %v6546 = vadd.f32 %v6453, %v6524
  %v6547 = vadd.f32 %v6454, %v6528
  %v6548 = vadd.f32 %v6493, %v6532
  %v6549 = vadd.f32 %v6455, %v6504
  %v6550 = vadd.f32 %v6456, %v6508
  %v6551 = vadd.f32 %v6457, %v6512
  %v6552 = vadd.f32 %v6458, %v6516
  %v6553 = vadd.f32 %v6459, %v6520
  %v6554 = vadd.f32 %v6460, %v6524
  %v6555 = vadd.f32 %v6461, %v6528
  %v6556 = vadd.f32 %v6494, %v6532
  %v6557 = vadd.f32 %v6462, %v6504
  %v6558 = vadd.f32 %v6463, %v6508
  %v6559 = vadd.f32 %v6464, %v6512
  %v6560 = vadd.f32 %v6465, %v6516
  %v6561 = vadd.f32 %v6466, %v6520
  %v6562 = vadd.f32 %v6467, %v6524
  %v6563 = vadd.f32 %v6468, %v6528
  %v6564 = vadd.f32 %v6495, %v6532
  %v6565 = vmax.f32 %v6375, %v6541
  %v6566 = vmax.f32 %v6376, %v6542
  %v6567 = vmax.f32 %v6377, %v6543
  %v6568 = vmax.f32 %v6378, %v6544
  %v6569 = vmax.f32 %v6379, %v6545
  %v6570 = vmax.f32 %v6380, %v6546
  %v6571 = vmax.f32 %v6381, %v6547
  %v6572 = vmax.f32 %v6382, %v6548
  %v6573 = vmax.f32 %v6383, %v6549
  %v6574 = vmax.f32 %v6384, %v6550
  %v6575 = vmax.f32 %v6385, %v6551
  %v6576 = vmax.f32 %v6386, %v6552
  %v6577 = vmax.f32 %v6387, %v6553
  %v6578 = vmax.f32 %v6388, %v6554
  %v6579 = vmax.f32 %v6389, %v6555
  %v6580 = vmax.f32 %v6390, %v6556
  %v6581 = vmax.f32 %v6391, %v6557
  %v6582 = vmax.f32 %v6392, %v6558
  %v6583 = vmax.f32 %v6393, %v6559
  %v6584 = vmax.f32 %v6394, %v6560
  %v6585 = vmax.f32 %v6395, %v6561
  %v6586 = vmax.f32 %v6396, %v6562
  %v6587 = vmax.f32 %v6397, %v6563
  %v6588 = vmax.f32 %v6398, %v6564
  %6613 = vrot.lane.b32.xlu0 %v6565, 96
  %v6614 = vpop.permute.xlu0 %6613
  %6615 = vrot.lane.b32.xlu0 %v6566, 96
  %v6616 = vpop.permute.xlu0 %6615
  %6617 = vrot.lane.b32.xlu0 %v6567, 96
  %v6618 = vpop.permute.xlu0 %6617
  %6619 = vrot.lane.b32.xlu0 %v6568, 96
  %v6620 = vpop.permute.xlu0 %6619
  %6621 = vrot.lane.b32.xlu0 %v6569, 96
  %v6622 = vpop.permute.xlu0 %6621
  %6623 = vrot.lane.b32.xlu0 %v6570, 96
  %v6624 = vpop.permute.xlu0 %6623
  %6625 = vrot.lane.b32.xlu0 %v6571, 96
  %v6626 = vpop.permute.xlu0 %6625
  %6627 = vrot.lane.b32.xlu0 %v6572, 96
  %v6628 = vpop.permute.xlu0 %6627
  %6629 = vrot.lane.b32.xlu0 %v6573, 96
  %v6630 = vpop.permute.xlu0 %6629
  %6631 = vrot.lane.b32.xlu0 %v6574, 96
  %v6632 = vpop.permute.xlu0 %6631
  %6633 = vrot.lane.b32.xlu0 %v6575, 96
  %v6634 = vpop.permute.xlu0 %6633
  %6635 = vrot.lane.b32.xlu0 %v6576, 96
  %v6636 = vpop.permute.xlu0 %6635
  %6637 = vrot.lane.b32.xlu0 %v6577, 96
  %v6638 = vpop.permute.xlu0 %6637
  %6639 = vrot.lane.b32.xlu0 %v6578, 96
  %v6640 = vpop.permute.xlu0 %6639
  %6641 = vrot.lane.b32.xlu0 %v6579, 96
  %v6642 = vpop.permute.xlu0 %6641
  %6643 = vrot.lane.b32.xlu0 %v6580, 96
  %v6644 = vpop.permute.xlu0 %6643
  %6645 = vrot.lane.b32.xlu0 %v6581, 96
  %v6646 = vpop.permute.xlu0 %6645
  %6647 = vrot.lane.b32.xlu0 %v6582, 96
  %v6648 = vpop.permute.xlu0 %6647
  %6649 = vrot.lane.b32.xlu0 %v6583, 96
  %v6650 = vpop.permute.xlu0 %6649
  %6651 = vrot.lane.b32.xlu0 %v6584, 96
  %v6652 = vpop.permute.xlu0 %6651
  %6653 = vrot.lane.b32.xlu0 %v6585, 96
  %v6654 = vpop.permute.xlu0 %6653
  %6655 = vrot.lane.b32.xlu0 %v6586, 96
  %v6656 = vpop.permute.xlu0 %6655
  %6657 = vrot.lane.b32.xlu0 %v6587, 96
  %v6658 = vpop.permute.xlu0 %6657
  %6659 = vrot.lane.b32.xlu0 %v6588, 96
  %v6660 = vpop.permute.xlu0 %6659
  %v6661 = vsel %vm1029, %v6614, %v6616
  %v6662 = vsel %vm1029, %v6616, %v6618
  %v6663 = vsel %vm1029, %v6618, %v6620
  %v6664 = vsel %vm1029, %v6620, %v6622
  %v6665 = vsel %vm1029, %v6622, %v6624
  %v6666 = vsel %vm1029, %v6624, %v6626
  %v6667 = vsel %vm1029, %v6626, %v6628
  %v6668 = vsel %vm1029, %v6630, %v6632
  %v6669 = vsel %vm1029, %v6632, %v6634
  %v6670 = vsel %vm1029, %v6634, %v6636
  %v6671 = vsel %vm1029, %v6636, %v6638
  %v6672 = vsel %vm1029, %v6638, %v6640
  %v6673 = vsel %vm1029, %v6640, %v6642
  %v6674 = vsel %vm1029, %v6642, %v6644
  %v6675 = vsel %vm1029, %v6646, %v6648
  %v6676 = vsel %vm1029, %v6648, %v6650
  %v6677 = vsel %vm1029, %v6650, %v6652
  %v6678 = vsel %vm1029, %v6652, %v6654
  %v6679 = vsel %vm1029, %v6654, %v6656
  %v6680 = vsel %vm1029, %v6656, %v6658
  %v6681 = vsel %vm1029, %v6658, %v6660
  %v6706 = vsel %vm1029, 0.0, %v6614
  %v6707 = vsel %vm1029, 0.0, %v6630
  %v6708 = vsel %vm1029, 0.0, %v6646
  %s6709 = scalar_lea.vmem %s7, 64
  %v6710 = vld [vmem:[%s6709] ss:$8 sm:$0xf]
  %v6711 = vld [vmem:[%s6709] ss:$8 sm:$0xf0]
  %v6712 = vor.u32 %v6710, %v6711
  %v6714 = vlaneseq
  %v6715 = vshrl.u32 %v6714, 7
  %v6716 = vsub.s32 0, %v6715
  %v6717 = vrot.slane %v6712, %v6716
  %v6718 = vlaneseq
  %v6719 = vshrl.u32 %v6718, 7
  %v6720 = vsub.s32 1, %v6719
  %v6721 = vrot.slane %v6712, %v6720
  %v6722 = vlaneseq
  %v6723 = vshrl.u32 %v6722, 7
  %v6724 = vsub.s32 2, %v6723
  %v6725 = vrot.slane %v6712, %v6724
  %v6726 = vlaneseq
  %v6727 = vshrl.u32 %v6726, 7
  %v6728 = vsub.s32 3, %v6727
  %v6729 = vrot.slane %v6712, %v6728
  %v6730 = vlaneseq
  %v6731 = vshrl.u32 %v6730, 7
  %v6732 = vsub.s32 4, %v6731
  %v6733 = vrot.slane %v6712, %v6732
  %v6734 = vlaneseq
  %v6735 = vshrl.u32 %v6734, 7
  %v6736 = vsub.s32 5, %v6735
  %v6737 = vrot.slane %v6712, %v6736
  %v6738 = vlaneseq
  %v6739 = vshrl.u32 %v6738, 7
  %v6740 = vsub.s32 6, %v6739
  %v6741 = vrot.slane %v6712, %v6740
  %v6742 = vlaneseq
  %v6743 = vshrl.u32 %v6742, 7
  %v6744 = vsub.s32 7, %v6743
  %v6745 = vrot.slane %v6712, %v6744
  %v6754 = vadd.f32 %v6706, %v6717
  %v6755 = vadd.f32 %v6661, %v6721
  %v6756 = vadd.f32 %v6662, %v6725
  %v6757 = vadd.f32 %v6663, %v6729
  %v6758 = vadd.f32 %v6664, %v6733
  %v6759 = vadd.f32 %v6665, %v6737
  %v6760 = vadd.f32 %v6666, %v6741
  %v6761 = vadd.f32 %v6667, %v6745
  %v6762 = vadd.f32 %v6707, %v6717
  %v6763 = vadd.f32 %v6668, %v6721
  %v6764 = vadd.f32 %v6669, %v6725
  %v6765 = vadd.f32 %v6670, %v6729
  %v6766 = vadd.f32 %v6671, %v6733
  %v6767 = vadd.f32 %v6672, %v6737
  %v6768 = vadd.f32 %v6673, %v6741
  %v6769 = vadd.f32 %v6674, %v6745
  %v6770 = vadd.f32 %v6708, %v6717
  %v6771 = vadd.f32 %v6675, %v6721
  %v6772 = vadd.f32 %v6676, %v6725
  %v6773 = vadd.f32 %v6677, %v6729
  %v6774 = vadd.f32 %v6678, %v6733
  %v6775 = vadd.f32 %v6679, %v6737
  %v6776 = vadd.f32 %v6680, %v6741
  %v6777 = vadd.f32 %v6681, %v6745
  %6778 = vrot.lane.b32.xlu0 %v6565, 64
  %v6779 = vpop.permute.xlu0 %6778
  %6780 = vrot.lane.b32.xlu0 %v6566, 64
  %v6781 = vpop.permute.xlu0 %6780
  %6782 = vrot.lane.b32.xlu0 %v6567, 64
  %v6783 = vpop.permute.xlu0 %6782
  %6784 = vrot.lane.b32.xlu0 %v6568, 64
  %v6785 = vpop.permute.xlu0 %6784
  %6786 = vrot.lane.b32.xlu0 %v6569, 64
  %v6787 = vpop.permute.xlu0 %6786
  %6788 = vrot.lane.b32.xlu0 %v6570, 64
  %v6789 = vpop.permute.xlu0 %6788
  %6790 = vrot.lane.b32.xlu0 %v6571, 64
  %v6791 = vpop.permute.xlu0 %6790
  %6792 = vrot.lane.b32.xlu0 %v6572, 64
  %v6793 = vpop.permute.xlu0 %6792
  %6794 = vrot.lane.b32.xlu0 %v6573, 64
  %v6795 = vpop.permute.xlu0 %6794
  %6796 = vrot.lane.b32.xlu0 %v6574, 64
  %v6797 = vpop.permute.xlu0 %6796
  %6798 = vrot.lane.b32.xlu0 %v6575, 64
  %v6799 = vpop.permute.xlu0 %6798
  %6800 = vrot.lane.b32.xlu0 %v6576, 64
  %v6801 = vpop.permute.xlu0 %6800
  %6802 = vrot.lane.b32.xlu0 %v6577, 64
  %v6803 = vpop.permute.xlu0 %6802
  %6804 = vrot.lane.b32.xlu0 %v6578, 64
  %v6805 = vpop.permute.xlu0 %6804
  %6806 = vrot.lane.b32.xlu0 %v6579, 64
  %v6807 = vpop.permute.xlu0 %6806
  %6808 = vrot.lane.b32.xlu0 %v6580, 64
  %v6809 = vpop.permute.xlu0 %6808
  %6810 = vrot.lane.b32.xlu0 %v6581, 64
  %v6811 = vpop.permute.xlu0 %6810
  %6812 = vrot.lane.b32.xlu0 %v6582, 64
  %v6813 = vpop.permute.xlu0 %6812
  %6814 = vrot.lane.b32.xlu0 %v6583, 64
  %v6815 = vpop.permute.xlu0 %6814
  %6816 = vrot.lane.b32.xlu0 %v6584, 64
  %v6817 = vpop.permute.xlu0 %6816
  %6818 = vrot.lane.b32.xlu0 %v6585, 64
  %v6819 = vpop.permute.xlu0 %6818
  %6820 = vrot.lane.b32.xlu0 %v6586, 64
  %v6821 = vpop.permute.xlu0 %6820
  %6822 = vrot.lane.b32.xlu0 %v6587, 64
  %v6823 = vpop.permute.xlu0 %6822
  %6824 = vrot.lane.b32.xlu0 %v6588, 64
  %v6825 = vpop.permute.xlu0 %6824
  %vm6826 = vcmask 523264
  %v6827 = vsel %vm6826, %v6779, %v6781
  %v6828 = vsel %vm6826, %v6781, %v6783
  %v6829 = vsel %vm6826, %v6783, %v6785
  %v6830 = vsel %vm6826, %v6785, %v6787
  %v6831 = vsel %vm6826, %v6787, %v6789
  %v6832 = vsel %vm6826, %v6789, %v6791
  %v6833 = vsel %vm6826, %v6791, %v6793
  %v6834 = vsel %vm6826, %v6795, %v6797
  %v6835 = vsel %vm6826, %v6797, %v6799
  %v6836 = vsel %vm6826, %v6799, %v6801
  %v6837 = vsel %vm6826, %v6801, %v6803
  %v6838 = vsel %vm6826, %v6803, %v6805
  %v6839 = vsel %vm6826, %v6805, %v6807
  %v6840 = vsel %vm6826, %v6807, %v6809
  %v6841 = vsel %vm6826, %v6811, %v6813
  %v6842 = vsel %vm6826, %v6813, %v6815
  %v6843 = vsel %vm6826, %v6815, %v6817
  %v6844 = vsel %vm6826, %v6817, %v6819
  %v6845 = vsel %vm6826, %v6819, %v6821
  %v6846 = vsel %vm6826, %v6821, %v6823
  %v6847 = vsel %vm6826, %v6823, %v6825
  %v6872 = vsel %vm6826, 0.0, %v6779
  %v6873 = vsel %vm6826, 0.0, %v6795
  %v6874 = vsel %vm6826, 0.0, %v6811
  %s6875 = scalar_lea.vmem %s7, 65
  %v6876 = vld [vmem:[%s6875] ss:$8 sm:$0xf]
  %v6877 = vld [vmem:[%s6875] ss:$8 sm:$0xf0]
  %v6878 = vor.u32 %v6876, %v6877
  %v6880 = vlaneseq
  %v6881 = vshrl.u32 %v6880, 7
  %v6882 = vsub.s32 0, %v6881
  %v6883 = vrot.slane %v6878, %v6882
  %v6884 = vlaneseq
  %v6885 = vshrl.u32 %v6884, 7
  %v6886 = vsub.s32 1, %v6885
  %v6887 = vrot.slane %v6878, %v6886
  %v6888 = vlaneseq
  %v6889 = vshrl.u32 %v6888, 7
  %v6890 = vsub.s32 2, %v6889
  %v6891 = vrot.slane %v6878, %v6890
  %v6892 = vlaneseq
  %v6893 = vshrl.u32 %v6892, 7
  %v6894 = vsub.s32 3, %v6893
  %v6895 = vrot.slane %v6878, %v6894
  %v6896 = vlaneseq
  %v6897 = vshrl.u32 %v6896, 7
  %v6898 = vsub.s32 4, %v6897
  %v6899 = vrot.slane %v6878, %v6898
  %v6900 = vlaneseq
  %v6901 = vshrl.u32 %v6900, 7
  %v6902 = vsub.s32 5, %v6901
  %v6903 = vrot.slane %v6878, %v6902
  %v6904 = vlaneseq
  %v6905 = vshrl.u32 %v6904, 7
  %v6906 = vsub.s32 6, %v6905
  %v6907 = vrot.slane %v6878, %v6906
  %v6908 = vlaneseq
  %v6909 = vshrl.u32 %v6908, 7
  %v6910 = vsub.s32 7, %v6909
  %v6911 = vrot.slane %v6878, %v6910
  %v6920 = vadd.f32 %v6872, %v6883
  %v6921 = vadd.f32 %v6827, %v6887
  %v6922 = vadd.f32 %v6828, %v6891
  %v6923 = vadd.f32 %v6829, %v6895
  %v6924 = vadd.f32 %v6830, %v6899
  %v6925 = vadd.f32 %v6831, %v6903
  %v6926 = vadd.f32 %v6832, %v6907
  %v6927 = vadd.f32 %v6833, %v6911
  %v6928 = vadd.f32 %v6873, %v6883
  %v6929 = vadd.f32 %v6834, %v6887
  %v6930 = vadd.f32 %v6835, %v6891
  %v6931 = vadd.f32 %v6836, %v6895
  %v6932 = vadd.f32 %v6837, %v6899
  %v6933 = vadd.f32 %v6838, %v6903
  %v6934 = vadd.f32 %v6839, %v6907
  %v6935 = vadd.f32 %v6840, %v6911
  %v6936 = vadd.f32 %v6874, %v6883
  %v6937 = vadd.f32 %v6841, %v6887
  %v6938 = vadd.f32 %v6842, %v6891
  %v6939 = vadd.f32 %v6843, %v6895
  %v6940 = vadd.f32 %v6844, %v6899
  %v6941 = vadd.f32 %v6845, %v6903
  %v6942 = vadd.f32 %v6846, %v6907
  %v6943 = vadd.f32 %v6847, %v6911
  %v6944 = vmax.f32 %v6754, %v6920
  %v6945 = vmax.f32 %v6755, %v6921
  %v6946 = vmax.f32 %v6756, %v6922
  %v6947 = vmax.f32 %v6757, %v6923
  %v6948 = vmax.f32 %v6758, %v6924
  %v6949 = vmax.f32 %v6759, %v6925
  %v6950 = vmax.f32 %v6760, %v6926
  %v6951 = vmax.f32 %v6761, %v6927
  %v6952 = vmax.f32 %v6762, %v6928
  %v6953 = vmax.f32 %v6763, %v6929
  %v6954 = vmax.f32 %v6764, %v6930
  %v6955 = vmax.f32 %v6765, %v6931
  %v6956 = vmax.f32 %v6766, %v6932
  %v6957 = vmax.f32 %v6767, %v6933
  %v6958 = vmax.f32 %v6768, %v6934
  %v6959 = vmax.f32 %v6769, %v6935
  %v6960 = vmax.f32 %v6770, %v6936
  %v6961 = vmax.f32 %v6771, %v6937
  %v6962 = vmax.f32 %v6772, %v6938
  %v6963 = vmax.f32 %v6773, %v6939
  %v6964 = vmax.f32 %v6774, %v6940
  %v6965 = vmax.f32 %v6775, %v6941
  %v6966 = vmax.f32 %v6776, %v6942
  %v6967 = vmax.f32 %v6777, %v6943
  %6968 = vrot.lane.b32.xlu0 %v6565, 32
  %v6969 = vpop.permute.xlu0 %6968
  %6970 = vrot.lane.b32.xlu0 %v6566, 32
  %v6971 = vpop.permute.xlu0 %6970
  %6972 = vrot.lane.b32.xlu0 %v6567, 32
  %v6973 = vpop.permute.xlu0 %6972
  %6974 = vrot.lane.b32.xlu0 %v6568, 32
  %v6975 = vpop.permute.xlu0 %6974
  %6976 = vrot.lane.b32.xlu0 %v6569, 32
  %v6977 = vpop.permute.xlu0 %6976
  %6978 = vrot.lane.b32.xlu0 %v6570, 32
  %v6979 = vpop.permute.xlu0 %6978
  %6980 = vrot.lane.b32.xlu0 %v6571, 32
  %v6981 = vpop.permute.xlu0 %6980
  %6982 = vrot.lane.b32.xlu0 %v6572, 32
  %v6983 = vpop.permute.xlu0 %6982
  %6984 = vrot.lane.b32.xlu0 %v6573, 32
  %v6985 = vpop.permute.xlu0 %6984
  %6986 = vrot.lane.b32.xlu0 %v6574, 32
  %v6987 = vpop.permute.xlu0 %6986
  %6988 = vrot.lane.b32.xlu0 %v6575, 32
  %v6989 = vpop.permute.xlu0 %6988
  %6990 = vrot.lane.b32.xlu0 %v6576, 32
  %v6991 = vpop.permute.xlu0 %6990
  %6992 = vrot.lane.b32.xlu0 %v6577, 32
  %v6993 = vpop.permute.xlu0 %6992
  %6994 = vrot.lane.b32.xlu0 %v6578, 32
  %v6995 = vpop.permute.xlu0 %6994
  %6996 = vrot.lane.b32.xlu0 %v6579, 32
  %v6997 = vpop.permute.xlu0 %6996
  %6998 = vrot.lane.b32.xlu0 %v6580, 32
  %v6999 = vpop.permute.xlu0 %6998
  %7000 = vrot.lane.b32.xlu0 %v6581, 32
  %v7001 = vpop.permute.xlu0 %7000
  %7002 = vrot.lane.b32.xlu0 %v6582, 32
  %v7003 = vpop.permute.xlu0 %7002
  %7004 = vrot.lane.b32.xlu0 %v6583, 32
  %v7005 = vpop.permute.xlu0 %7004
  %7006 = vrot.lane.b32.xlu0 %v6584, 32
  %v7007 = vpop.permute.xlu0 %7006
  %7008 = vrot.lane.b32.xlu0 %v6585, 32
  %v7009 = vpop.permute.xlu0 %7008
  %7010 = vrot.lane.b32.xlu0 %v6586, 32
  %v7011 = vpop.permute.xlu0 %7010
  %7012 = vrot.lane.b32.xlu0 %v6587, 32
  %v7013 = vpop.permute.xlu0 %7012
  %7014 = vrot.lane.b32.xlu0 %v6588, 32
  %v7015 = vpop.permute.xlu0 %7014
  %v7016 = vsel %vm552, %v6969, %v6971
  %v7017 = vsel %vm552, %v6971, %v6973
  %v7018 = vsel %vm552, %v6973, %v6975
  %v7019 = vsel %vm552, %v6975, %v6977
  %v7020 = vsel %vm552, %v6977, %v6979
  %v7021 = vsel %vm552, %v6979, %v6981
  %v7022 = vsel %vm552, %v6981, %v6983
  %v7023 = vsel %vm552, %v6985, %v6987
  %v7024 = vsel %vm552, %v6987, %v6989
  %v7025 = vsel %vm552, %v6989, %v6991
  %v7026 = vsel %vm552, %v6991, %v6993
  %v7027 = vsel %vm552, %v6993, %v6995
  %v7028 = vsel %vm552, %v6995, %v6997
  %v7029 = vsel %vm552, %v6997, %v6999
  %v7030 = vsel %vm552, %v7001, %v7003
  %v7031 = vsel %vm552, %v7003, %v7005
  %v7032 = vsel %vm552, %v7005, %v7007
  %v7033 = vsel %vm552, %v7007, %v7009
  %v7034 = vsel %vm552, %v7009, %v7011
  %v7035 = vsel %vm552, %v7011, %v7013
  %v7036 = vsel %vm552, %v7013, %v7015
  %v7061 = vsel %vm552, 0.0, %v6969
  %v7062 = vsel %vm552, 0.0, %v6985
  %v7063 = vsel %vm552, 0.0, %v7001
  %s7064 = scalar_lea.vmem %s7, 66
  %v7065 = vld [vmem:[%s7064] ss:$8 sm:$0xf]
  %v7066 = vld [vmem:[%s7064] ss:$8 sm:$0xf0]
  %v7067 = vor.u32 %v7065, %v7066
  %v7069 = vlaneseq
  %v7070 = vshrl.u32 %v7069, 7
  %v7071 = vsub.s32 0, %v7070
  %v7072 = vrot.slane %v7067, %v7071
  %v7073 = vlaneseq
  %v7074 = vshrl.u32 %v7073, 7
  %v7075 = vsub.s32 1, %v7074
  %v7076 = vrot.slane %v7067, %v7075
  %v7077 = vlaneseq
  %v7078 = vshrl.u32 %v7077, 7
  %v7079 = vsub.s32 2, %v7078
  %v7080 = vrot.slane %v7067, %v7079
  %v7081 = vlaneseq
  %v7082 = vshrl.u32 %v7081, 7
  %v7083 = vsub.s32 3, %v7082
  %v7084 = vrot.slane %v7067, %v7083
  %v7085 = vlaneseq
  %v7086 = vshrl.u32 %v7085, 7
  %v7087 = vsub.s32 4, %v7086
  %v7088 = vrot.slane %v7067, %v7087
  %v7089 = vlaneseq
  %v7090 = vshrl.u32 %v7089, 7
  %v7091 = vsub.s32 5, %v7090
  %v7092 = vrot.slane %v7067, %v7091
  %v7093 = vlaneseq
  %v7094 = vshrl.u32 %v7093, 7
  %v7095 = vsub.s32 6, %v7094
  %v7096 = vrot.slane %v7067, %v7095
  %v7097 = vlaneseq
  %v7098 = vshrl.u32 %v7097, 7
  %v7099 = vsub.s32 7, %v7098
  %v7100 = vrot.slane %v7067, %v7099
  %v7109 = vadd.f32 %v7061, %v7072
  %v7110 = vadd.f32 %v7016, %v7076
  %v7111 = vadd.f32 %v7017, %v7080
  %v7112 = vadd.f32 %v7018, %v7084
  %v7113 = vadd.f32 %v7019, %v7088
  %v7114 = vadd.f32 %v7020, %v7092
  %v7115 = vadd.f32 %v7021, %v7096
  %v7116 = vadd.f32 %v7022, %v7100
  %v7117 = vadd.f32 %v7062, %v7072
  %v7118 = vadd.f32 %v7023, %v7076
  %v7119 = vadd.f32 %v7024, %v7080
  %v7120 = vadd.f32 %v7025, %v7084
  %v7121 = vadd.f32 %v7026, %v7088
  %v7122 = vadd.f32 %v7027, %v7092
  %v7123 = vadd.f32 %v7028, %v7096
  %v7124 = vadd.f32 %v7029, %v7100
  %v7125 = vadd.f32 %v7063, %v7072
  %v7126 = vadd.f32 %v7030, %v7076
  %v7127 = vadd.f32 %v7031, %v7080
  %v7128 = vadd.f32 %v7032, %v7084
  %v7129 = vadd.f32 %v7033, %v7088
  %v7130 = vadd.f32 %v7034, %v7092
  %v7131 = vadd.f32 %v7035, %v7096
  %v7132 = vadd.f32 %v7036, %v7100
  %v7133 = vmax.f32 %v6944, %v7109
  %v7134 = vmax.f32 %v6945, %v7110
  %v7135 = vmax.f32 %v6946, %v7111
  %v7136 = vmax.f32 %v6947, %v7112
  %v7137 = vmax.f32 %v6948, %v7113
  %v7138 = vmax.f32 %v6949, %v7114
  %v7139 = vmax.f32 %v6950, %v7115
  %v7140 = vmax.f32 %v6951, %v7116
  %v7141 = vmax.f32 %v6952, %v7117
  %v7142 = vmax.f32 %v6953, %v7118
  %v7143 = vmax.f32 %v6954, %v7119
  %v7144 = vmax.f32 %v6955, %v7120
  %v7145 = vmax.f32 %v6956, %v7121
  %v7146 = vmax.f32 %v6957, %v7122
  %v7147 = vmax.f32 %v6958, %v7123
  %v7148 = vmax.f32 %v6959, %v7124
  %v7149 = vmax.f32 %v6960, %v7125
  %v7150 = vmax.f32 %v6961, %v7126
  %v7151 = vmax.f32 %v6962, %v7127
  %v7152 = vmax.f32 %v6963, %v7128
  %v7153 = vmax.f32 %v6964, %v7129
  %v7154 = vmax.f32 %v6965, %v7130
  %v7155 = vmax.f32 %v6966, %v7131
  %v7156 = vmax.f32 %v6967, %v7132
  %s7157 = scalar_lea.vmem %s7, 67
  %v7158 = vld [vmem:[%s7157] ss:$8 sm:$0xf]
  %v7159 = vld [vmem:[%s7157] ss:$8 sm:$0xf0]
  %v7160 = vor.u32 %v7158, %v7159
  %v7162 = vlaneseq
  %v7163 = vshrl.u32 %v7162, 7
  %v7164 = vsub.s32 0, %v7163
  %v7165 = vrot.slane %v7160, %v7164
  %v7166 = vlaneseq
  %v7167 = vshrl.u32 %v7166, 7
  %v7168 = vsub.s32 1, %v7167
  %v7169 = vrot.slane %v7160, %v7168
  %v7170 = vlaneseq
  %v7171 = vshrl.u32 %v7170, 7
  %v7172 = vsub.s32 2, %v7171
  %v7173 = vrot.slane %v7160, %v7172
  %v7174 = vlaneseq
  %v7175 = vshrl.u32 %v7174, 7
  %v7176 = vsub.s32 3, %v7175
  %v7177 = vrot.slane %v7160, %v7176
  %v7178 = vlaneseq
  %v7179 = vshrl.u32 %v7178, 7
  %v7180 = vsub.s32 4, %v7179
  %v7181 = vrot.slane %v7160, %v7180
  %v7182 = vlaneseq
  %v7183 = vshrl.u32 %v7182, 7
  %v7184 = vsub.s32 5, %v7183
  %v7185 = vrot.slane %v7160, %v7184
  %v7186 = vlaneseq
  %v7187 = vshrl.u32 %v7186, 7
  %v7188 = vsub.s32 6, %v7187
  %v7189 = vrot.slane %v7160, %v7188
  %v7190 = vlaneseq
  %v7191 = vshrl.u32 %v7190, 7
  %v7192 = vsub.s32 7, %v7191
  %v7193 = vrot.slane %v7160, %v7192
  %v7202 = vadd.f32 %v6565, %v7165
  %v7203 = vadd.f32 %v6566, %v7169
  %v7204 = vadd.f32 %v6567, %v7173
  %v7205 = vadd.f32 %v6568, %v7177
  %v7206 = vadd.f32 %v6569, %v7181
  %v7207 = vadd.f32 %v6570, %v7185
  %v7208 = vadd.f32 %v6571, %v7189
  %v7209 = vadd.f32 %v6572, %v7193
  %v7210 = vadd.f32 %v6573, %v7165
  %v7211 = vadd.f32 %v6574, %v7169
  %v7212 = vadd.f32 %v6575, %v7173
  %v7213 = vadd.f32 %v6576, %v7177
  %v7214 = vadd.f32 %v6577, %v7181
  %v7215 = vadd.f32 %v6578, %v7185
  %v7216 = vadd.f32 %v6579, %v7189
  %v7217 = vadd.f32 %v6580, %v7193
  %v7218 = vadd.f32 %v6581, %v7165
  %v7219 = vadd.f32 %v6582, %v7169
  %v7220 = vadd.f32 %v6583, %v7173
  %v7221 = vadd.f32 %v6584, %v7177
  %v7222 = vadd.f32 %v6585, %v7181
  %v7223 = vadd.f32 %v6586, %v7185
  %v7224 = vadd.f32 %v6587, %v7189
  %v7225 = vadd.f32 %v6588, %v7193
  %v7226 = vmax.f32 %v7133, %v7202
  %v7227 = vmax.f32 %v7134, %v7203
  %v7228 = vmax.f32 %v7135, %v7204
  %v7229 = vmax.f32 %v7136, %v7205
  %v7230 = vmax.f32 %v7137, %v7206
  %v7231 = vmax.f32 %v7138, %v7207
  %v7232 = vmax.f32 %v7139, %v7208
  %v7233 = vmax.f32 %v7140, %v7209
  %v7234 = vmax.f32 %v7141, %v7210
  %v7235 = vmax.f32 %v7142, %v7211
  %v7236 = vmax.f32 %v7143, %v7212
  %v7237 = vmax.f32 %v7144, %v7213
  %v7238 = vmax.f32 %v7145, %v7214
  %v7239 = vmax.f32 %v7146, %v7215
  %v7240 = vmax.f32 %v7147, %v7216
  %v7241 = vmax.f32 %v7148, %v7217
  %v7242 = vmax.f32 %v7149, %v7218
  %v7243 = vmax.f32 %v7150, %v7219
  %v7244 = vmax.f32 %v7151, %v7220
  %v7245 = vmax.f32 %v7152, %v7221
  %v7246 = vmax.f32 %v7153, %v7222
  %v7247 = vmax.f32 %v7154, %v7223
  %v7248 = vmax.f32 %v7155, %v7224
  %v7249 = vmax.f32 %v7156, %v7225
  %v7253 = vsel %vm1029, %v6628, 0.0
  %v7254 = vsel %vm1029, %v6644, 0.0
  %v7255 = vsel %vm1029, %v6660, 0.0
  %s7256 = scalar_lea.vmem %s7, 68
  %v7257 = vld [vmem:[%s7256] ss:$8 sm:$0xf]
  %v7258 = vld [vmem:[%s7256] ss:$8 sm:$0xf0]
  %v7259 = vor.u32 %v7257, %v7258
  %v7261 = vlaneseq
  %v7262 = vshrl.u32 %v7261, 7
  %v7263 = vsub.s32 0, %v7262
  %v7264 = vrot.slane %v7259, %v7263
  %v7265 = vlaneseq
  %v7266 = vshrl.u32 %v7265, 7
  %v7267 = vsub.s32 1, %v7266
  %v7268 = vrot.slane %v7259, %v7267
  %v7269 = vlaneseq
  %v7270 = vshrl.u32 %v7269, 7
  %v7271 = vsub.s32 2, %v7270
  %v7272 = vrot.slane %v7259, %v7271
  %v7273 = vlaneseq
  %v7274 = vshrl.u32 %v7273, 7
  %v7275 = vsub.s32 3, %v7274
  %v7276 = vrot.slane %v7259, %v7275
  %v7277 = vlaneseq
  %v7278 = vshrl.u32 %v7277, 7
  %v7279 = vsub.s32 4, %v7278
  %v7280 = vrot.slane %v7259, %v7279
  %v7281 = vlaneseq
  %v7282 = vshrl.u32 %v7281, 7
  %v7283 = vsub.s32 5, %v7282
  %v7284 = vrot.slane %v7259, %v7283
  %v7285 = vlaneseq
  %v7286 = vshrl.u32 %v7285, 7
  %v7287 = vsub.s32 6, %v7286
  %v7288 = vrot.slane %v7259, %v7287
  %v7289 = vlaneseq
  %v7290 = vshrl.u32 %v7289, 7
  %v7291 = vsub.s32 7, %v7290
  %v7292 = vrot.slane %v7259, %v7291
  %v7301 = vadd.f32 %v6661, %v7264
  %v7302 = vadd.f32 %v6662, %v7268
  %v7303 = vadd.f32 %v6663, %v7272
  %v7304 = vadd.f32 %v6664, %v7276
  %v7305 = vadd.f32 %v6665, %v7280
  %v7306 = vadd.f32 %v6666, %v7284
  %v7307 = vadd.f32 %v6667, %v7288
  %v7308 = vadd.f32 %v7253, %v7292
  %v7309 = vadd.f32 %v6668, %v7264
  %v7310 = vadd.f32 %v6669, %v7268
  %v7311 = vadd.f32 %v6670, %v7272
  %v7312 = vadd.f32 %v6671, %v7276
  %v7313 = vadd.f32 %v6672, %v7280
  %v7314 = vadd.f32 %v6673, %v7284
  %v7315 = vadd.f32 %v6674, %v7288
  %v7316 = vadd.f32 %v7254, %v7292
  %v7317 = vadd.f32 %v6675, %v7264
  %v7318 = vadd.f32 %v6676, %v7268
  %v7319 = vadd.f32 %v6677, %v7272
  %v7320 = vadd.f32 %v6678, %v7276
  %v7321 = vadd.f32 %v6679, %v7280
  %v7322 = vadd.f32 %v6680, %v7284
  %v7323 = vadd.f32 %v6681, %v7288
  %v7324 = vadd.f32 %v7255, %v7292
  %v7325 = vmax.f32 %v7226, %v7301
  %v7326 = vmax.f32 %v7227, %v7302
  %v7327 = vmax.f32 %v7228, %v7303
  %v7328 = vmax.f32 %v7229, %v7304
  %v7329 = vmax.f32 %v7230, %v7305
  %v7330 = vmax.f32 %v7231, %v7306
  %v7331 = vmax.f32 %v7232, %v7307
  %v7332 = vmax.f32 %v7233, %v7308
  %v7333 = vmax.f32 %v7234, %v7309
  %v7334 = vmax.f32 %v7235, %v7310
  %v7335 = vmax.f32 %v7236, %v7311
  %v7336 = vmax.f32 %v7237, %v7312
  %v7337 = vmax.f32 %v7238, %v7313
  %v7338 = vmax.f32 %v7239, %v7314
  %v7339 = vmax.f32 %v7240, %v7315
  %v7340 = vmax.f32 %v7241, %v7316
  %v7341 = vmax.f32 %v7242, %v7317
  %v7342 = vmax.f32 %v7243, %v7318
  %v7343 = vmax.f32 %v7244, %v7319
  %v7344 = vmax.f32 %v7245, %v7320
  %v7345 = vmax.f32 %v7246, %v7321
  %v7346 = vmax.f32 %v7247, %v7322
  %v7347 = vmax.f32 %v7248, %v7323
  %v7348 = vmax.f32 %v7249, %v7324
  %v7352 = vsel %vm6826, %v6793, 0.0
  %v7353 = vsel %vm6826, %v6809, 0.0
  %v7354 = vsel %vm6826, %v6825, 0.0
  %s7355 = scalar_lea.vmem %s7, 69
  %v7356 = vld [vmem:[%s7355] ss:$8 sm:$0xf]
  %v7357 = vld [vmem:[%s7355] ss:$8 sm:$0xf0]
  %v7358 = vor.u32 %v7356, %v7357
  %v7360 = vlaneseq
  %v7361 = vshrl.u32 %v7360, 7
  %v7362 = vsub.s32 0, %v7361
  %v7363 = vrot.slane %v7358, %v7362
  %v7364 = vlaneseq
  %v7365 = vshrl.u32 %v7364, 7
  %v7366 = vsub.s32 1, %v7365
  %v7367 = vrot.slane %v7358, %v7366
  %v7368 = vlaneseq
  %v7369 = vshrl.u32 %v7368, 7
  %v7370 = vsub.s32 2, %v7369
  %v7371 = vrot.slane %v7358, %v7370
  %v7372 = vlaneseq
  %v7373 = vshrl.u32 %v7372, 7
  %v7374 = vsub.s32 3, %v7373
  %v7375 = vrot.slane %v7358, %v7374
  %v7376 = vlaneseq
  %v7377 = vshrl.u32 %v7376, 7
  %v7378 = vsub.s32 4, %v7377
  %v7379 = vrot.slane %v7358, %v7378
  %v7380 = vlaneseq
  %v7381 = vshrl.u32 %v7380, 7
  %v7382 = vsub.s32 5, %v7381
  %v7383 = vrot.slane %v7358, %v7382
  %v7384 = vlaneseq
  %v7385 = vshrl.u32 %v7384, 7
  %v7386 = vsub.s32 6, %v7385
  %v7387 = vrot.slane %v7358, %v7386
  %v7388 = vlaneseq
  %v7389 = vshrl.u32 %v7388, 7
  %v7390 = vsub.s32 7, %v7389
  %v7391 = vrot.slane %v7358, %v7390
  %v7400 = vadd.f32 %v6827, %v7363
  %v7401 = vadd.f32 %v6828, %v7367
  %v7402 = vadd.f32 %v6829, %v7371
  %v7403 = vadd.f32 %v6830, %v7375
  %v7404 = vadd.f32 %v6831, %v7379
  %v7405 = vadd.f32 %v6832, %v7383
  %v7406 = vadd.f32 %v6833, %v7387
  %v7407 = vadd.f32 %v7352, %v7391
  %v7408 = vadd.f32 %v6834, %v7363
  %v7409 = vadd.f32 %v6835, %v7367
  %v7410 = vadd.f32 %v6836, %v7371
  %v7411 = vadd.f32 %v6837, %v7375
  %v7412 = vadd.f32 %v6838, %v7379
  %v7413 = vadd.f32 %v6839, %v7383
  %v7414 = vadd.f32 %v6840, %v7387
  %v7415 = vadd.f32 %v7353, %v7391
  %v7416 = vadd.f32 %v6841, %v7363
  %v7417 = vadd.f32 %v6842, %v7367
  %v7418 = vadd.f32 %v6843, %v7371
  %v7419 = vadd.f32 %v6844, %v7375
  %v7420 = vadd.f32 %v6845, %v7379
  %v7421 = vadd.f32 %v6846, %v7383
  %v7422 = vadd.f32 %v6847, %v7387
  %v7423 = vadd.f32 %v7354, %v7391
  %v7424 = vmax.f32 %v7325, %v7400
  %v7425 = vmax.f32 %v7326, %v7401
  %v7426 = vmax.f32 %v7327, %v7402
  %v7427 = vmax.f32 %v7328, %v7403
  %v7428 = vmax.f32 %v7329, %v7404
  %v7429 = vmax.f32 %v7330, %v7405
  %v7430 = vmax.f32 %v7331, %v7406
  %v7431 = vmax.f32 %v7332, %v7407
  %v7432 = vmax.f32 %v7333, %v7408
  %v7433 = vmax.f32 %v7334, %v7409
  %v7434 = vmax.f32 %v7335, %v7410
  %v7435 = vmax.f32 %v7336, %v7411
  %v7436 = vmax.f32 %v7337, %v7412
  %v7437 = vmax.f32 %v7338, %v7413
  %v7438 = vmax.f32 %v7339, %v7414
  %v7439 = vmax.f32 %v7340, %v7415
  %v7440 = vmax.f32 %v7341, %v7416
  %v7441 = vmax.f32 %v7342, %v7417
  %v7442 = vmax.f32 %v7343, %v7418
  %v7443 = vmax.f32 %v7344, %v7419
  %v7444 = vmax.f32 %v7345, %v7420
  %v7445 = vmax.f32 %v7346, %v7421
  %v7446 = vmax.f32 %v7347, %v7422
  %v7447 = vmax.f32 %v7348, %v7423
  %v7451 = vsel %vm552, %v6983, 0.0
  %v7452 = vsel %vm552, %v6999, 0.0
  %v7453 = vsel %vm552, %v7015, 0.0
  %s7454 = scalar_lea.vmem %s7, 70
  %v7455 = vld [vmem:[%s7454] ss:$8 sm:$0xf]
  %v7456 = vld [vmem:[%s7454] ss:$8 sm:$0xf0]
  %v7457 = vor.u32 %v7455, %v7456
  %v7459 = vlaneseq
  %v7460 = vshrl.u32 %v7459, 7
  %v7461 = vsub.s32 0, %v7460
  %v7462 = vrot.slane %v7457, %v7461
  %v7463 = vlaneseq
  %v7464 = vshrl.u32 %v7463, 7
  %v7465 = vsub.s32 1, %v7464
  %v7466 = vrot.slane %v7457, %v7465
  %v7467 = vlaneseq
  %v7468 = vshrl.u32 %v7467, 7
  %v7469 = vsub.s32 2, %v7468
  %v7470 = vrot.slane %v7457, %v7469
  %v7471 = vlaneseq
  %v7472 = vshrl.u32 %v7471, 7
  %v7473 = vsub.s32 3, %v7472
  %v7474 = vrot.slane %v7457, %v7473
  %v7475 = vlaneseq
  %v7476 = vshrl.u32 %v7475, 7
  %v7477 = vsub.s32 4, %v7476
  %v7478 = vrot.slane %v7457, %v7477
  %v7479 = vlaneseq
  %v7480 = vshrl.u32 %v7479, 7
  %v7481 = vsub.s32 5, %v7480
  %v7482 = vrot.slane %v7457, %v7481
  %v7483 = vlaneseq
  %v7484 = vshrl.u32 %v7483, 7
  %v7485 = vsub.s32 6, %v7484
  %v7486 = vrot.slane %v7457, %v7485
  %v7487 = vlaneseq
  %v7488 = vshrl.u32 %v7487, 7
  %v7489 = vsub.s32 7, %v7488
  %v7490 = vrot.slane %v7457, %v7489
  %v7499 = vadd.f32 %v7016, %v7462
  %v7500 = vadd.f32 %v7017, %v7466
  %v7501 = vadd.f32 %v7018, %v7470
  %v7502 = vadd.f32 %v7019, %v7474
  %v7503 = vadd.f32 %v7020, %v7478
  %v7504 = vadd.f32 %v7021, %v7482
  %v7505 = vadd.f32 %v7022, %v7486
  %v7506 = vadd.f32 %v7451, %v7490
  %v7507 = vadd.f32 %v7023, %v7462
  %v7508 = vadd.f32 %v7024, %v7466
  %v7509 = vadd.f32 %v7025, %v7470
  %v7510 = vadd.f32 %v7026, %v7474
  %v7511 = vadd.f32 %v7027, %v7478
  %v7512 = vadd.f32 %v7028, %v7482
  %v7513 = vadd.f32 %v7029, %v7486
  %v7514 = vadd.f32 %v7452, %v7490
  %v7515 = vadd.f32 %v7030, %v7462
  %v7516 = vadd.f32 %v7031, %v7466
  %v7517 = vadd.f32 %v7032, %v7470
  %v7518 = vadd.f32 %v7033, %v7474
  %v7519 = vadd.f32 %v7034, %v7478
  %v7520 = vadd.f32 %v7035, %v7482
  %v7521 = vadd.f32 %v7036, %v7486
  %v7522 = vadd.f32 %v7453, %v7490
  %v7523 = vmax.f32 %v7424, %v7499
  %v7524 = vmax.f32 %v7425, %v7500
  %v7525 = vmax.f32 %v7426, %v7501
  %v7526 = vmax.f32 %v7427, %v7502
  %v7527 = vmax.f32 %v7428, %v7503
  %v7528 = vmax.f32 %v7429, %v7504
  %v7529 = vmax.f32 %v7430, %v7505
  %v7530 = vmax.f32 %v7431, %v7506
  %v7531 = vmax.f32 %v7432, %v7507
  %v7532 = vmax.f32 %v7433, %v7508
  %v7533 = vmax.f32 %v7434, %v7509
  %v7534 = vmax.f32 %v7435, %v7510
  %v7535 = vmax.f32 %v7436, %v7511
  %v7536 = vmax.f32 %v7437, %v7512
  %v7537 = vmax.f32 %v7438, %v7513
  %v7538 = vmax.f32 %v7439, %v7514
  %v7539 = vmax.f32 %v7440, %v7515
  %v7540 = vmax.f32 %v7441, %v7516
  %v7541 = vmax.f32 %v7442, %v7517
  %v7542 = vmax.f32 %v7443, %v7518
  %v7543 = vmax.f32 %v7444, %v7519
  %v7544 = vmax.f32 %v7445, %v7520
  %v7545 = vmax.f32 %v7446, %v7521
  %v7546 = vmax.f32 %v7447, %v7522
  %s7547 = scalar_lea.vmem %s7, 71
  %v7548 = vld [vmem:[%s7547] ss:$8 sm:$0xf]
  %v7549 = vld [vmem:[%s7547] ss:$8 sm:$0xf0]
  %v7550 = vor.u32 %v7548, %v7549
  %v7552 = vlaneseq
  %v7553 = vshrl.u32 %v7552, 7
  %v7554 = vsub.s32 0, %v7553
  %v7555 = vrot.slane %v7550, %v7554
  %v7556 = vlaneseq
  %v7557 = vshrl.u32 %v7556, 7
  %v7558 = vsub.s32 1, %v7557
  %v7559 = vrot.slane %v7550, %v7558
  %v7560 = vlaneseq
  %v7561 = vshrl.u32 %v7560, 7
  %v7562 = vsub.s32 2, %v7561
  %v7563 = vrot.slane %v7550, %v7562
  %v7564 = vlaneseq
  %v7565 = vshrl.u32 %v7564, 7
  %v7566 = vsub.s32 3, %v7565
  %v7567 = vrot.slane %v7550, %v7566
  %v7568 = vlaneseq
  %v7569 = vshrl.u32 %v7568, 7
  %v7570 = vsub.s32 4, %v7569
  %v7571 = vrot.slane %v7550, %v7570
  %v7572 = vlaneseq
  %v7573 = vshrl.u32 %v7572, 7
  %v7574 = vsub.s32 5, %v7573
  %v7575 = vrot.slane %v7550, %v7574
  %v7576 = vlaneseq
  %v7577 = vshrl.u32 %v7576, 7
  %v7578 = vsub.s32 6, %v7577
  %v7579 = vrot.slane %v7550, %v7578
  %v7580 = vlaneseq
  %v7581 = vshrl.u32 %v7580, 7
  %v7582 = vsub.s32 7, %v7581
  %v7583 = vrot.slane %v7550, %v7582
  %v7592 = vadd.f32 %v6566, %v7555
  %v7593 = vadd.f32 %v6567, %v7559
  %v7594 = vadd.f32 %v6568, %v7563
  %v7595 = vadd.f32 %v6569, %v7567
  %v7596 = vadd.f32 %v6570, %v7571
  %v7597 = vadd.f32 %v6571, %v7575
  %v7598 = vadd.f32 %v6572, %v7579
  %v7599 = vadd.f32 %v7583, 0.0
  %v7600 = vadd.f32 %v6574, %v7555
  %v7601 = vadd.f32 %v6575, %v7559
  %v7602 = vadd.f32 %v6576, %v7563
  %v7603 = vadd.f32 %v6577, %v7567
  %v7604 = vadd.f32 %v6578, %v7571
  %v7605 = vadd.f32 %v6579, %v7575
  %v7606 = vadd.f32 %v6580, %v7579
  %v7607 = vadd.f32 %v6582, %v7555
  %v7608 = vadd.f32 %v6583, %v7559
  %v7609 = vadd.f32 %v6584, %v7563
  %v7610 = vadd.f32 %v6585, %v7567
  %v7611 = vadd.f32 %v6586, %v7571
  %v7612 = vadd.f32 %v6587, %v7575
  %v7613 = vadd.f32 %v6588, %v7579
  %v7614 = vmax.f32 %v7523, %v7592
  %v7615 = vmax.f32 %v7524, %v7593
  %v7616 = vmax.f32 %v7525, %v7594
  %v7617 = vmax.f32 %v7526, %v7595
  %v7618 = vmax.f32 %v7527, %v7596
  %v7619 = vmax.f32 %v7528, %v7597
  %v7620 = vmax.f32 %v7529, %v7598
  %v7621 = vmax.f32 %v7530, %v7599
  %v7622 = vmax.f32 %v7531, %v7600
  %v7623 = vmax.f32 %v7532, %v7601
  %v7624 = vmax.f32 %v7533, %v7602
  %v7625 = vmax.f32 %v7534, %v7603
  %v7626 = vmax.f32 %v7535, %v7604
  %v7627 = vmax.f32 %v7536, %v7605
  %v7628 = vmax.f32 %v7537, %v7606
  %v7629 = vmax.f32 %v7538, %v7599
  %v7630 = vmax.f32 %v7539, %v7607
  %v7631 = vmax.f32 %v7540, %v7608
  %v7632 = vmax.f32 %v7541, %v7609
  %v7633 = vmax.f32 %v7542, %v7610
  %v7634 = vmax.f32 %v7543, %v7611
  %v7635 = vmax.f32 %v7544, %v7612
  %v7636 = vmax.f32 %v7545, %v7613
  %v7637 = vmax.f32 %v7546, %v7599
  %7638 = vmatprep.subr.mxu0 %v3392
  %7639 = vmatpush1.msra.mxu0 %v3391
  %7640 = vmatprep.subr.mxu0 %v3394
  %7641 = vmatpush1.msra.mxu0 %v3393
  %7642 = vmatprep.subr.mxu0 %v3396
  %7643 = vmatpush1.msra.mxu0 %v3395
  %7644 = vmatprep.subr.mxu0 %v3398
  %7645 = vmatpush1.msra.mxu0 %v3397
  %7646 = vmatprep.subr.mxu0 %v3400
  %7647 = vmatpush1.msra.mxu0 %v3399
  %7648 = vmatprep.subr.mxu0 %v3402
  %7649 = vmatpush1.msra.mxu0 %v3401
  %7650 = vmatprep.subr.mxu0 %v3404
  %7651 = vmatpush1.msra.mxu0 %v3403
  %7652 = vmatprep.subr.mxu0 %v3406
  %7653 = vmatpush1.msra.mxu0 %v3405
  %7654 = vmatprep.subr.mxu0 %v3408
  %7655 = vmatpush1.msra.mxu0 %v3407
  %7656 = vmatprep.subr.mxu0 %v3410
  %7657 = vmatpush1.msra.mxu0 %v3409
  %7658 = vmatprep.subr.mxu0 %v3412
  %7659 = vmatpush1.msra.mxu0 %v3411
  %7660 = vmatprep.subr.mxu0 %v3414
  %7661 = vmatpush1.msra.mxu0 %v3413
  %7662 = vmatprep.subr.mxu0 %v3416
  %7663 = vmatpush1.msra.mxu0 %v3415
  %7664 = vmatprep.subr.mxu0 %v3418
  %7665 = vmatpush1.msra.mxu0 %v3417
  %7666 = vmatprep.subr.mxu0 %v3420
  %7667 = vmatpush1.msra.mxu0 %v3419
  %7668 = vmatprep.subr.mxu0 %v3422
  %7669 = vmatpush1.msra.mxu0 %v3421
  %7670 = vmatprep.subr.mxu0 %v3424
  %7671 = vmatpush1.msra.mxu0 %v3423
  %7672 = vmatprep.subr.mxu0 %v3426
  %7673 = vmatpush1.msra.mxu0 %v3425
  %7674 = vmatprep.subr.mxu0 %v3428
  %7675 = vmatpush1.msra.mxu0 %v3427
  %7676 = vmatprep.subr.mxu0 %v3430
  %7677 = vmatpush1.msra.mxu0 %v3429
  %7678 = vmatprep.subr.mxu0 %v3432
  %7679 = vmatpush1.msra.mxu0 %v3431
  %7680 = vmatprep.subr.mxu0 %v3434
  %7681 = vmatpush1.msra.mxu0 %v3433
  %7682 = vmatprep.subr.mxu0 %v3436
  %7683 = vmatpush1.msra.mxu0 %v3435
  %7684 = vmatprep.subr.mxu0 %v3438
  %7685 = vmatpush1.msra.mxu0 %v3437
  %7686 = vmatprep.subr.mxu0 %v3440
  %7687 = vmatpush1.msra.mxu0 %v3439
  %7688 = vmatprep.subr.mxu0 %v3442
  %7689 = vmatpush1.msra.mxu0 %v3441
  %7690 = vmatprep.subr.mxu0 %v3444
  %7691 = vmatpush1.msra.mxu0 %v3443
  %7692 = vmatprep.subr.mxu0 %v3446
  %7693 = vmatpush1.msra.mxu0 %v3445
  %7694 = vmatprep.subr.mxu0 %v3448
  %7695 = vmatpush1.msra.mxu0 %v3447
  %7696 = vmatprep.subr.mxu0 %v3450
  %7697 = vmatpush1.msra.mxu0 %v3449
  %7698 = vmatprep.subr.mxu0 %v3452
  %7699 = vmatpush1.msra.mxu0 %v3451
  %7700 = vmatprep.subr.mxu0 %v3454
  %7701 = vmatpush1.msra.mxu0 %v3453
  %7702 = vmatprep.mubr.f32.mxu0 %v7615
  %7703 = vmatmul.mubr.f32.gmra.mrb[0].mxu0 %v7614
  %v7704 = vpop.f32.mrb[0].mxu0
  %v7705 = vadd.f32 0.0, %v7704
  %v7706 = vpop.f32.mrb[0].mxu0
  %v7707 = vadd.f32 0.0, %v7706
  %7708 = vmatprep.mubr.f32.mxu0 %v7623
  %7709 = vmatmul.mubr.f32.gmra.mrb[0].mxu0 %v7622
  %v7710 = vpop.f32.mrb[0].mxu0
  %v7711 = vadd.f32 0.0, %v7710
  %v7712 = vpop.f32.mrb[0].mxu0
  %v7713 = vadd.f32 0.0, %v7712
  %7714 = vmatprep.mubr.f32.mxu0 %v7631
  %7715 = vmatmul.mubr.f32.gmra.mrb[0].mxu0 %v7630
  %v7716 = vpop.f32.mrb[0].mxu0
  %v7717 = vadd.f32 0.0, %v7716
  %v7718 = vpop.f32.mrb[0].mxu0
  %v7719 = vadd.f32 0.0, %v7718
  %7720 = vdwg.mxu0
  %7721 = vmatprep.subr.mxu0 %v3456
  %7722 = vmatpush1.msra.mxu0 %v3455
  %7723 = vmatprep.subr.mxu0 %v3458
  %7724 = vmatpush1.msra.mxu0 %v3457
  %7725 = vmatprep.subr.mxu0 %v3460
  %7726 = vmatpush1.msra.mxu0 %v3459
  %7727 = vmatprep.subr.mxu0 %v3462
  %7728 = vmatpush1.msra.mxu0 %v3461
  %7729 = vmatprep.subr.mxu0 %v3464
  %7730 = vmatpush1.msra.mxu0 %v3463
  %7731 = vmatprep.subr.mxu0 %v3466
  %7732 = vmatpush1.msra.mxu0 %v3465
  %7733 = vmatprep.subr.mxu0 %v3468
  %7734 = vmatpush1.msra.mxu0 %v3467
  %7735 = vmatprep.subr.mxu0 %v3470
  %7736 = vmatpush1.msra.mxu0 %v3469
  %7737 = vmatprep.subr.mxu0 %v3472
  %7738 = vmatpush1.msra.mxu0 %v3471
  %7739 = vmatprep.subr.mxu0 %v3474
  %7740 = vmatpush1.msra.mxu0 %v3473
  %7741 = vmatprep.subr.mxu0 %v3476
  %7742 = vmatpush1.msra.mxu0 %v3475
  %7743 = vmatprep.subr.mxu0 %v3478
  %7744 = vmatpush1.msra.mxu0 %v3477
  %7745 = vmatprep.subr.mxu0 %v3480
  %7746 = vmatpush1.msra.mxu0 %v3479
  %7747 = vmatprep.subr.mxu0 %v3482
  %7748 = vmatpush1.msra.mxu0 %v3481
  %7749 = vmatprep.subr.mxu0 %v3484
  %7750 = vmatpush1.msra.mxu0 %v3483
  %7751 = vmatprep.subr.mxu0 %v3486
  %7752 = vmatpush1.msra.mxu0 %v3485
  %7753 = vmatprep.subr.mxu0 %v3488
  %7754 = vmatpush1.msra.mxu0 %v3487
  %7755 = vmatprep.subr.mxu0 %v3490
  %7756 = vmatpush1.msra.mxu0 %v3489
  %7757 = vmatprep.subr.mxu0 %v3492
  %7758 = vmatpush1.msra.mxu0 %v3491
  %7759 = vmatprep.subr.mxu0 %v3494
  %7760 = vmatpush1.msra.mxu0 %v3493
  %7761 = vmatprep.subr.mxu0 %v3496
  %7762 = vmatpush1.msra.mxu0 %v3495
  %7763 = vmatprep.subr.mxu0 %v3498
  %7764 = vmatpush1.msra.mxu0 %v3497
  %7765 = vmatprep.subr.mxu0 %v3500
  %7766 = vmatpush1.msra.mxu0 %v3499
  %7767 = vmatprep.subr.mxu0 %v3502
  %7768 = vmatpush1.msra.mxu0 %v3501
  %7769 = vmatprep.subr.mxu0 %v3504
  %7770 = vmatpush1.msra.mxu0 %v3503
  %7771 = vmatprep.subr.mxu0 %v3506
  %7772 = vmatpush1.msra.mxu0 %v3505
  %7773 = vmatprep.subr.mxu0 %v3508
  %7774 = vmatpush1.msra.mxu0 %v3507
  %7775 = vmatprep.subr.mxu0 %v3510
  %7776 = vmatpush1.msra.mxu0 %v3509
  %7777 = vmatprep.subr.mxu0 %v3512
  %7778 = vmatpush1.msra.mxu0 %v3511
  %7779 = vmatprep.subr.mxu0 %v3514
  %7780 = vmatpush1.msra.mxu0 %v3513
  %7781 = vmatprep.subr.mxu0 %v3516
  %7782 = vmatpush1.msra.mxu0 %v3515
  %7783 = vmatprep.subr.mxu0 %v3518
  %7784 = vmatpush1.msra.mxu0 %v3517
  %7785 = vmatprep.mubr.f32.mxu0 %v7617
  %7786 = vmatmul.mubr.f32.gmra.mrb[0].mxu0 %v7616
  %v7787 = vpop.f32.mrb[0].mxu0
  %v7788 = vadd.f32 %v7705, %v7787
  %v7789 = vpop.f32.mrb[0].mxu0
  %v7790 = vadd.f32 %v7707, %v7789
  %7791 = vmatprep.mubr.f32.mxu0 %v7625
  %7792 = vmatmul.mubr.f32.gmra.mrb[0].mxu0 %v7624
  %v7793 = vpop.f32.mrb[0].mxu0
  %v7794 = vadd.f32 %v7711, %v7793
  %v7795 = vpop.f32.mrb[0].mxu0
  %v7796 = vadd.f32 %v7713, %v7795
  %7797 = vmatprep.mubr.f32.mxu0 %v7633
  %7798 = vmatmul.mubr.f32.gmra.mrb[0].mxu0 %v7632
  %v7799 = vpop.f32.mrb[0].mxu0
  %v7800 = vadd.f32 %v7717, %v7799
  %v7801 = vpop.f32.mrb[0].mxu0
  %v7802 = vadd.f32 %v7719, %v7801
  %7803 = vdwg.mxu0
  %7804 = vmatprep.subr.mxu0 %v3520
  %7805 = vmatpush1.msra.mxu0 %v3519
  %7806 = vmatprep.subr.mxu0 %v3522
  %7807 = vmatpush1.msra.mxu0 %v3521
  %7808 = vmatprep.subr.mxu0 %v3524
  %7809 = vmatpush1.msra.mxu0 %v3523
  %7810 = vmatprep.subr.mxu0 %v3526
  %7811 = vmatpush1.msra.mxu0 %v3525
  %7812 = vmatprep.subr.mxu0 %v3528
  %7813 = vmatpush1.msra.mxu0 %v3527
  %7814 = vmatprep.subr.mxu0 %v3530
  %7815 = vmatpush1.msra.mxu0 %v3529
  %7816 = vmatprep.subr.mxu0 %v3532
  %7817 = vmatpush1.msra.mxu0 %v3531
  %7818 = vmatprep.subr.mxu0 %v3534
  %7819 = vmatpush1.msra.mxu0 %v3533
  %7820 = vmatprep.subr.mxu0 %v3536
  %7821 = vmatpush1.msra.mxu0 %v3535
  %7822 = vmatprep.subr.mxu0 %v3538
  %7823 = vmatpush1.msra.mxu0 %v3537
  %7824 = vmatprep.subr.mxu0 %v3540
  %7825 = vmatpush1.msra.mxu0 %v3539
  %7826 = vmatprep.subr.mxu0 %v3542
  %7827 = vmatpush1.msra.mxu0 %v3541
  %7828 = vmatprep.subr.mxu0 %v3544
  %7829 = vmatpush1.msra.mxu0 %v3543
  %7830 = vmatprep.subr.mxu0 %v3546
  %7831 = vmatpush1.msra.mxu0 %v3545
  %7832 = vmatprep.subr.mxu0 %v3548
  %7833 = vmatpush1.msra.mxu0 %v3547
  %7834 = vmatprep.subr.mxu0 %v3550
  %7835 = vmatpush1.msra.mxu0 %v3549
  %7836 = vmatprep.subr.mxu0 %v3552
  %7837 = vmatpush1.msra.mxu0 %v3551
  %7838 = vmatprep.subr.mxu0 %v3554
  %7839 = vmatpush1.msra.mxu0 %v3553
  %7840 = vmatprep.subr.mxu0 %v3556
  %7841 = vmatpush1.msra.mxu0 %v3555
  %7842 = vmatprep.subr.mxu0 %v3558
  %7843 = vmatpush1.msra.mxu0 %v3557
  %7844 = vmatprep.subr.mxu0 %v3560
  %7845 = vmatpush1.msra.mxu0 %v3559
  %7846 = vmatprep.subr.mxu0 %v3562
  %7847 = vmatpush1.msra.mxu0 %v3561
  %7848 = vmatprep.subr.mxu0 %v3564
  %7849 = vmatpush1.msra.mxu0 %v3563
  %7850 = vmatprep.subr.mxu0 %v3566
  %7851 = vmatpush1.msra.mxu0 %v3565
  %7852 = vmatprep.subr.mxu0 %v3568
  %7853 = vmatpush1.msra.mxu0 %v3567
  %7854 = vmatprep.subr.mxu0 %v3570
  %7855 = vmatpush1.msra.mxu0 %v3569
  %7856 = vmatprep.subr.mxu0 %v3572
  %7857 = vmatpush1.msra.mxu0 %v3571
  %7858 = vmatprep.subr.mxu0 %v3574
  %7859 = vmatpush1.msra.mxu0 %v3573
  %7860 = vmatprep.subr.mxu0 %v3576
  %7861 = vmatpush1.msra.mxu0 %v3575
  %7862 = vmatprep.subr.mxu0 %v3578
  %7863 = vmatpush1.msra.mxu0 %v3577
  %7864 = vmatprep.subr.mxu0 %v3580
  %7865 = vmatpush1.msra.mxu0 %v3579
  %7866 = vmatprep.subr.mxu0 %v3582
  %7867 = vmatpush1.msra.mxu0 %v3581
  %7868 = vmatprep.mubr.f32.mxu0 %v7619
  %7869 = vmatmul.mubr.f32.gmra.mrb[0].mxu0 %v7618
  %v7870 = vpop.f32.mrb[0].mxu0
  %v7871 = vadd.f32 %v7788, %v7870
  %v7872 = vpop.f32.mrb[0].mxu0
  %v7873 = vadd.f32 %v7790, %v7872
  %7874 = vmatprep.mubr.f32.mxu0 %v7627
  %7875 = vmatmul.mubr.f32.gmra.mrb[0].mxu0 %v7626
  %v7876 = vpop.f32.mrb[0].mxu0
  %v7877 = vadd.f32 %v7794, %v7876
  %v7878 = vpop.f32.mrb[0].mxu0
  %v7879 = vadd.f32 %v7796, %v7878
  %7880 = vmatprep.mubr.f32.mxu0 %v7635
  %7881 = vmatmul.mubr.f32.gmra.mrb[0].mxu0 %v7634
  %v7882 = vpop.f32.mrb[0].mxu0
  %v7883 = vadd.f32 %v7800, %v7882
  %v7884 = vpop.f32.mrb[0].mxu0
  %v7885 = vadd.f32 %v7802, %v7884
  %7886 = vdwg.mxu0
  %7887 = vmatprep.subr.mxu0 %v3584
  %7888 = vmatpush1.msra.mxu0 %v3583
  %7889 = vmatprep.subr.mxu0 %v3586
  %7890 = vmatpush1.msra.mxu0 %v3585
  %7891 = vmatprep.subr.mxu0 %v3588
  %7892 = vmatpush1.msra.mxu0 %v3587
  %7893 = vmatprep.subr.mxu0 %v3590
  %7894 = vmatpush1.msra.mxu0 %v3589
  %7895 = vmatprep.subr.mxu0 %v3592
  %7896 = vmatpush1.msra.mxu0 %v3591
  %7897 = vmatprep.subr.mxu0 %v3594
  %7898 = vmatpush1.msra.mxu0 %v3593
  %7899 = vmatprep.subr.mxu0 %v3596
  %7900 = vmatpush1.msra.mxu0 %v3595
  %7901 = vmatprep.subr.mxu0 %v3598
  %7902 = vmatpush1.msra.mxu0 %v3597
  %7903 = vmatprep.subr.mxu0 %v3600
  %7904 = vmatpush1.msra.mxu0 %v3599
  %7905 = vmatprep.subr.mxu0 %v3602
  %7906 = vmatpush1.msra.mxu0 %v3601
  %7907 = vmatprep.subr.mxu0 %v3604
  %7908 = vmatpush1.msra.mxu0 %v3603
  %7909 = vmatprep.subr.mxu0 %v3606
  %7910 = vmatpush1.msra.mxu0 %v3605
  %7911 = vmatprep.subr.mxu0 %v3608
  %7912 = vmatpush1.msra.mxu0 %v3607
  %7913 = vmatprep.subr.mxu0 %v3610
  %7914 = vmatpush1.msra.mxu0 %v3609
  %7915 = vmatprep.subr.mxu0 %v3612
  %7916 = vmatpush1.msra.mxu0 %v3611
  %7917 = vmatprep.subr.mxu0 %v3614
  %7918 = vmatpush1.msra.mxu0 %v3613
  %7919 = vmatprep.subr.mxu0 %v3616
  %7920 = vmatpush1.msra.mxu0 %v3615
  %7921 = vmatprep.subr.mxu0 %v3618
  %7922 = vmatpush1.msra.mxu0 %v3617
  %7923 = vmatprep.subr.mxu0 %v3620
  %7924 = vmatpush1.msra.mxu0 %v3619
  %7925 = vmatprep.subr.mxu0 %v3622
  %7926 = vmatpush1.msra.mxu0 %v3621
  %7927 = vmatprep.subr.mxu0 %v3624
  %7928 = vmatpush1.msra.mxu0 %v3623
  %7929 = vmatprep.subr.mxu0 %v3626
  %7930 = vmatpush1.msra.mxu0 %v3625
  %7931 = vmatprep.subr.mxu0 %v3628
  %7932 = vmatpush1.msra.mxu0 %v3627
  %7933 = vmatprep.subr.mxu0 %v3630
  %7934 = vmatpush1.msra.mxu0 %v3629
  %7935 = vmatprep.subr.mxu0 %v3632
  %7936 = vmatpush1.msra.mxu0 %v3631
  %7937 = vmatprep.subr.mxu0 %v3634
  %7938 = vmatpush1.msra.mxu0 %v3633
  %7939 = vmatprep.subr.mxu0 %v3636
  %7940 = vmatpush1.msra.mxu0 %v3635
  %7941 = vmatprep.subr.mxu0 %v3638
  %7942 = vmatpush1.msra.mxu0 %v3637
  %7943 = vmatprep.subr.mxu0 %v3640
  %7944 = vmatpush1.msra.mxu0 %v3639
  %7945 = vmatprep.subr.mxu0 %v3642
  %7946 = vmatpush1.msra.mxu0 %v3641
  %7947 = vmatprep.subr.mxu0 %v3644
  %7948 = vmatpush1.msra.mxu0 %v3643
  %7949 = vmatprep.subr.mxu0 %v3646
  %7950 = vmatpush1.msra.mxu0 %v3645
  %7951 = vmatprep.mubr.f32.mxu0 %v7621
  %7952 = vmatmul.mubr.f32.gmra.mrb[0].mxu0 %v7620
  %v7953 = vpop.f32.mrb[0].mxu0
  %v7954 = vadd.f32 %v7871, %v7953
  %v7955 = vpop.f32.mrb[0].mxu0
  %v7956 = vadd.f32 %v7873, %v7955
  %7957 = vmatprep.mubr.f32.mxu0 %v7629
  %7958 = vmatmul.mubr.f32.gmra.mrb[0].mxu0 %v7628
  %v7959 = vpop.f32.mrb[0].mxu0
  %v7960 = vadd.f32 %v7877, %v7959
  %v7961 = vpop.f32.mrb[0].mxu0
  %v7962 = vadd.f32 %v7879, %v7961
  %7963 = vmatprep.mubr.f32.mxu0 %v7637
  %7964 = vmatmul.mubr.f32.gmra.mrb[0].mxu0 %v7636
  %v7965 = vpop.f32.mrb[0].mxu0
  %v7966 = vadd.f32 %v7883, %v7965
  %v7967 = vpop.f32.mrb[0].mxu0
  %v7968 = vadd.f32 %v7885, %v7967
  %7969 = vdwg.mxu0
  %v7970 = vld [vmem:[%s1 + $0x60] sm:$0xff]
  %v7971 = vld [vmem:[%s1 + $0x68] sm:$0xff]
  %v7972 = vld [vmem:[%s1 + $0x70] sm:$0xff]
  %v7973 = vld [vmem:[%s1 + $0x78] sm:$0xff]
  %v7974 = vld [vmem:[%s1 + $0x80] sm:$0xff]
  %v7975 = vld [vmem:[%s1 + $0x88] sm:$0xff]
  %v7977 = vsel %vm4016, %v7973, 0
  %v7980 = vsel %vm4016, %v7974, 0
  %v7983 = vsel %vm4016, %v7975, 0
  %v7986 = vsel %vm4020, %v5383, 0
  %v7989 = vsel %vm4020, %v5384, 0
  %7991 = vmatprep.subr.mxu0 %v5380
  %7992 = vmatpush1.msra.mxu0 %v5379
  %7993 = vmatprep.subr.mxu0 %v5382
  %7994 = vmatpush1.msra.mxu0 %v5381
  %7995 = vmatprep.subr.mxu0 %v7989
  %7996 = vmatpush1.msra.mxu0 %v7986
  %7997 = vmatprep.subr.mxu0 0.0
  %7998 = vmatpush1.msra.mxu0 0.0
  %7999 = vmatprep.subr.mxu0 0.0
  %8000 = vmatpush1.msra.mxu0 0.0
  %8001 = vmatprep.subr.mxu0 0.0
  %8002 = vmatpush1.msra.mxu0 0.0
  %8003 = vmatprep.subr.mxu0 0.0
  %8004 = vmatpush1.msra.mxu0 0.0
  %8005 = vmatprep.subr.mxu0 0.0
  %8006 = vmatpush1.msra.mxu0 0.0
  %8007 = vmatprep.subr.mxu0 0.0
  %8008 = vmatpush1.msra.mxu0 0.0
  %8009 = vmatprep.subr.mxu0 0.0
  %8010 = vmatpush1.msra.mxu0 0.0
  %8011 = vmatprep.subr.mxu0 0.0
  %8012 = vmatpush1.msra.mxu0 0.0
  %8013 = vmatprep.subr.mxu0 0.0
  %8014 = vmatpush1.msra.mxu0 0.0
  %8015 = vmatprep.subr.mxu0 0.0
  %8016 = vmatpush1.msra.mxu0 0.0
  %8017 = vmatprep.subr.mxu0 0.0
  %8018 = vmatpush1.msra.mxu0 0.0
  %8019 = vmatprep.subr.mxu0 0.0
  %8020 = vmatpush1.msra.mxu0 0.0
  %8021 = vmatprep.subr.mxu0 0.0
  %8022 = vmatpush1.msra.mxu0 0.0
  %8023 = vmatprep.subr.mxu0 0.0
  %8024 = vmatpush1.msra.mxu0 0.0
  %8025 = vmatprep.subr.mxu0 0.0
  %8026 = vmatpush1.msra.mxu0 0.0
  %8027 = vmatprep.subr.mxu0 0.0
  %8028 = vmatpush1.msra.mxu0 0.0
  %8029 = vmatprep.subr.mxu0 0.0
  %8030 = vmatpush1.msra.mxu0 0.0
  %8031 = vmatprep.subr.mxu0 0.0
  %8032 = vmatpush1.msra.mxu0 0.0
  %8033 = vmatprep.subr.mxu0 0.0
  %8034 = vmatpush1.msra.mxu0 0.0
  %8035 = vmatprep.subr.mxu0 0.0
  %8036 = vmatpush1.msra.mxu0 0.0
  %8037 = vmatprep.subr.mxu0 0.0
  %8038 = vmatpush1.msra.mxu0 0.0
  %8039 = vmatprep.subr.mxu0 0.0
  %8040 = vmatpush1.msra.mxu0 0.0
  %8041 = vmatprep.subr.mxu0 0.0
  %8042 = vmatpush1.msra.mxu0 0.0
  %8043 = vmatprep.subr.mxu0 0.0
  %8044 = vmatpush1.msra.mxu0 0.0
  %8045 = vmatprep.subr.mxu0 0.0
  %8046 = vmatpush1.msra.mxu0 0.0
  %8047 = vmatprep.subr.mxu0 0.0
  %8048 = vmatpush1.msra.mxu0 0.0
  %8049 = vmatprep.subr.mxu0 0.0
  %8050 = vmatpush1.msra.mxu0 0.0
  %8051 = vmatprep.subr.mxu0 0.0
  %8052 = vmatpush1.msra.mxu0 0.0
  %8053 = vmatprep.subr.mxu0 0.0
  %8054 = vmatpush1.msra.mxu0 0.0
  %8055 = vmatprep.mubr.f32.mxu0 0.0
  %8056 = vmatmul.mubr.f32.gmra.mrb[0].mxu0 %v7977
  %v8057 = vpop.f32.mrb[0].mxu0
  %v8058 = vadd.f32 0.0, %v8057
  %v8059 = vpop.f32.mrb[0].mxu0
  %v8060 = vadd.f32 0.0, %v8059
  %8061 = vmatprep.mubr.f32.mxu0 0.0
  %8062 = vmatmul.mubr.f32.gmra.mrb[0].mxu0 %v7980
  %v8063 = vpop.f32.mrb[0].mxu0
  %v8064 = vadd.f32 0.0, %v8063
  %v8065 = vpop.f32.mrb[0].mxu0
  %v8066 = vadd.f32 0.0, %v8065
  %8067 = vmatprep.mubr.f32.mxu0 0.0
  %8068 = vmatmul.mubr.f32.gmra.mrb[0].mxu0 %v7983
  %v8069 = vpop.f32.mrb[0].mxu0
  %v8070 = vadd.f32 0.0, %v8069
  %v8071 = vpop.f32.mrb[0].mxu0
  %v8072 = vadd.f32 0.0, %v8071
  %8073 = vdwg.mxu0
  %v8075 = vsel %vm4016, %v7970, 0
  %v8078 = vsel %vm4016, %v7971, 0
  %v8081 = vsel %vm4016, %v7972, 0
  %v8084 = vsel %vm4020, %v7966, 0
  %v8087 = vsel %vm4020, %v7968, 0
  %8089 = vmatprep.subr.mxu0 %v7956
  %8090 = vmatpush1.msra.mxu0 %v7954
  %8091 = vmatprep.subr.mxu0 %v7962
  %8092 = vmatpush1.msra.mxu0 %v7960
  %8093 = vmatprep.subr.mxu0 %v8087
  %8094 = vmatpush1.msra.mxu0 %v8084
  %8095 = vmatprep.subr.mxu0 0.0
  %8096 = vmatpush1.msra.mxu0 0.0
  %8097 = vmatprep.subr.mxu0 0.0
  %8098 = vmatpush1.msra.mxu0 0.0
  %8099 = vmatprep.subr.mxu0 0.0
  %8100 = vmatpush1.msra.mxu0 0.0
  %8101 = vmatprep.subr.mxu0 0.0
  %8102 = vmatpush1.msra.mxu0 0.0
  %8103 = vmatprep.subr.mxu0 0.0
  %8104 = vmatpush1.msra.mxu0 0.0
  %8105 = vmatprep.subr.mxu0 0.0
  %8106 = vmatpush1.msra.mxu0 0.0
  %8107 = vmatprep.subr.mxu0 0.0
  %8108 = vmatpush1.msra.mxu0 0.0
  %8109 = vmatprep.subr.mxu0 0.0
  %8110 = vmatpush1.msra.mxu0 0.0
  %8111 = vmatprep.subr.mxu0 0.0
  %8112 = vmatpush1.msra.mxu0 0.0
  %8113 = vmatprep.subr.mxu0 0.0
  %8114 = vmatpush1.msra.mxu0 0.0
  %8115 = vmatprep.subr.mxu0 0.0
  %8116 = vmatpush1.msra.mxu0 0.0
  %8117 = vmatprep.subr.mxu0 0.0
  %8118 = vmatpush1.msra.mxu0 0.0
  %8119 = vmatprep.subr.mxu0 0.0
  %8120 = vmatpush1.msra.mxu0 0.0
  %8121 = vmatprep.subr.mxu0 0.0
  %8122 = vmatpush1.msra.mxu0 0.0
  %8123 = vmatprep.subr.mxu0 0.0
  %8124 = vmatpush1.msra.mxu0 0.0
  %8125 = vmatprep.subr.mxu0 0.0
  %8126 = vmatpush1.msra.mxu0 0.0
  %8127 = vmatprep.subr.mxu0 0.0
  %8128 = vmatpush1.msra.mxu0 0.0
  %8129 = vmatprep.subr.mxu0 0.0
  %8130 = vmatpush1.msra.mxu0 0.0
  %8131 = vmatprep.subr.mxu0 0.0
  %8132 = vmatpush1.msra.mxu0 0.0
  %8133 = vmatprep.subr.mxu0 0.0
  %8134 = vmatpush1.msra.mxu0 0.0
  %8135 = vmatprep.subr.mxu0 0.0
  %8136 = vmatpush1.msra.mxu0 0.0
  %8137 = vmatprep.subr.mxu0 0.0
  %8138 = vmatpush1.msra.mxu0 0.0
  %8139 = vmatprep.subr.mxu0 0.0
  %8140 = vmatpush1.msra.mxu0 0.0
  %8141 = vmatprep.subr.mxu0 0.0
  %8142 = vmatpush1.msra.mxu0 0.0
  %8143 = vmatprep.subr.mxu0 0.0
  %8144 = vmatpush1.msra.mxu0 0.0
  %8145 = vmatprep.subr.mxu0 0.0
  %8146 = vmatpush1.msra.mxu0 0.0
  %8147 = vmatprep.subr.mxu0 0.0
  %8148 = vmatpush1.msra.mxu0 0.0
  %8149 = vmatprep.subr.mxu0 0.0
  %8150 = vmatpush1.msra.mxu0 0.0
  %8151 = vmatprep.subr.mxu0 0.0
  %8152 = vmatpush1.msra.mxu0 0.0
  %8153 = vmatprep.mubr.f32.mxu0 0.0
  %8154 = vmatmul.mubr.f32.gmra.mrb[0].mxu0 %v8075
  %v8155 = vpop.f32.mrb[0].mxu0
  %v8156 = vadd.f32 %v8058, %v8155
  %v8157 = vpop.f32.mrb[0].mxu0
  %v8158 = vadd.f32 %v8060, %v8157
  %8159 = vmatprep.mubr.f32.mxu0 0.0
  %8160 = vmatmul.mubr.f32.gmra.mrb[0].mxu0 %v8078
  %v8161 = vpop.f32.mrb[0].mxu0
  %v8162 = vadd.f32 %v8064, %v8161
  %v8163 = vpop.f32.mrb[0].mxu0
  %v8164 = vadd.f32 %v8066, %v8163
  %8165 = vmatprep.mubr.f32.mxu0 0.0
  %8166 = vmatmul.mubr.f32.gmra.mrb[0].mxu0 %v8081
  %v8167 = vpop.f32.mrb[0].mxu0
  %v8168 = vadd.f32 %v8070, %v8167
  %v8169 = vpop.f32.mrb[0].mxu0
  %v8170 = vadd.f32 %v8072, %v8169
  %8171 = vdwg.mxu0
  %v8172 = vld [vmem:[%s3 + $0x9e] sm:$0xff]
  %v8173 = vld [vmem:[%s3 + $0xa6] sm:$0xff]
  %v8174 = vld [vmem:[%s3 + $0xae] sm:$0xff]
  %8176 = vset.pattern.permute.xlu0 0
  %8177 = vperm.xlu0 %8176, %v8172
  %v8178 = vpop.permute.xlu0 %8177
  %8181 = vset.pattern.permute.xlu0 0
  %8182 = vperm.xlu0 %8181, %v8173
  %v8183 = vpop.permute.xlu0 %8182
  %8186 = vset.pattern.permute.xlu0 0
  %8187 = vperm.xlu0 %8186, %v8174
  %v8188 = vpop.permute.xlu0 %8187
  %v8190 = vadd.f32 %v8156, %v8178
  %v8191 = vadd.f32 %v8158, %v8178
  %v8192 = vadd.f32 %v8162, %v8183
  %v8193 = vadd.f32 %v8164, %v8183
  %v8194 = vadd.f32 %v8168, %v8188
  %v8195 = vadd.f32 %v8170, %v8188
  %v8196 = vmul.f32 %v8190, 0.1
  %v8197 = vmul.f32 %v8191, 0.1
  %v8198 = vmul.f32 %v8192, 0.1
  %v8199 = vmul.f32 %v8193, 0.1
  %v8200 = vmul.f32 %v8194, 0.1
  %v8201 = vmul.f32 %v8195, 0.1
  %v8202 = vmax.f32 %v8190, %v8196
  %v8203 = vmax.f32 %v8191, %v8197
  %v8204 = vmax.f32 %v8192, %v8198
  %v8205 = vmax.f32 %v8193, %v8199
  %v8206 = vmax.f32 %v8194, %v8200
  %v8207 = vmax.f32 %v8195, %v8201
  %v8208 = vld [vmem:[%s2 + $0x3e] sm:$0xff]
  %v8209 = vld [vmem:[%s2 + $0x46] sm:$0xff]
  %v8210 = vld [vmem:[%s2 + $0x4e] sm:$0xff]
  %8212 = vset.pattern.permute.xlu0 4
  %8213 = vperm.xlu0 %8212, %v8208
  %v8214 = vpop.permute.xlu0 %8213
  %8217 = vset.pattern.permute.xlu0 4
  %8218 = vperm.xlu0 %8217, %v8209
  %v8219 = vpop.permute.xlu0 %8218
  %8222 = vset.pattern.permute.xlu0 4
  %8223 = vperm.xlu0 %8222, %v8210
  %v8224 = vpop.permute.xlu0 %8223
  %v8226 = vmul.f32 %v8214, %v8202
  %v8227 = vmul.f32 %v8214, %v8203
  %v8228 = vmul.f32 %v8219, %v8204
  %v8229 = vmul.f32 %v8219, %v8205
  %v8230 = vmul.f32 %v8224, %v8206
  %v8231 = vmul.f32 %v8224, %v8207
  %8238 = vrot.lane.b32.xlu0 %v8202, 17
  %v8239 = vpop.permute.xlu0 %8238
  %8240 = vrot.lane.b32.xlu0 %v8203, 17
  %v8241 = vpop.permute.xlu0 %8240
  %8242 = vrot.lane.b32.xlu0 %v8204, 17
  %v8243 = vpop.permute.xlu0 %8242
  %8244 = vrot.lane.b32.xlu0 %v8205, 17
  %v8245 = vpop.permute.xlu0 %8244
  %8246 = vrot.lane.b32.xlu0 %v8206, 17
  %v8247 = vpop.permute.xlu0 %8246
  %8248 = vrot.lane.b32.xlu0 %v8207, 17
  %v8249 = vpop.permute.xlu0 %8248
  %v8250 = vsel %vm4341, %v8239, %v8241
  %v8251 = vsel %vm4341, %v8243, %v8245
  %v8252 = vsel %vm4341, %v8247, %v8249
  %v8259 = vsel %vm4341, 0.0, %v8239
  %v8260 = vsel %vm4341, 0.0, %v8243
  %v8261 = vsel %vm4341, 0.0, %v8247
  %v8262 = vmul.f32 %v8259, %v4367
  %v8263 = vmul.f32 %v8250, %v4371
  %v8264 = vmul.f32 %v8260, %v4367
  %v8265 = vmul.f32 %v8251, %v4371
  %v8266 = vmul.f32 %v8261, %v4367
  %v8267 = vmul.f32 %v8252, %v4371
  %8268 = vset.pattern.permute.xlu0 0
  %8269 = vperm.xlu0 %8268, %v8208
  %v8270 = vpop.permute.xlu0 %8269
  %8272 = vset.pattern.permute.xlu0 0
  %8273 = vperm.xlu0 %8272, %v8209
  %v8274 = vpop.permute.xlu0 %8273
  %8276 = vset.pattern.permute.xlu0 0
  %8277 = vperm.xlu0 %8276, %v8210
  %v8278 = vpop.permute.xlu0 %8277
  %v8280 = vmul.f32 %v8270, %v8262
  %v8281 = vmul.f32 %v8270, %v8263
  %v8282 = vmul.f32 %v8274, %v8264
  %v8283 = vmul.f32 %v8274, %v8265
  %v8284 = vmul.f32 %v8278, %v8266
  %v8285 = vmul.f32 %v8278, %v8267
  %v8286 = vadd.f32 %v8226, %v8280
  %v8287 = vadd.f32 %v8227, %v8281
  %v8288 = vadd.f32 %v8228, %v8282
  %v8289 = vadd.f32 %v8229, %v8283
  %v8290 = vadd.f32 %v8230, %v8284
  %v8291 = vadd.f32 %v8231, %v8285
  %8292 = vrot.lane.b32.xlu0 %v8202, 16
  %v8293 = vpop.permute.xlu0 %8292
  %8294 = vrot.lane.b32.xlu0 %v8203, 16
  %v8295 = vpop.permute.xlu0 %8294
  %8296 = vrot.lane.b32.xlu0 %v8204, 16
  %v8297 = vpop.permute.xlu0 %8296
  %8298 = vrot.lane.b32.xlu0 %v8205, 16
  %v8299 = vpop.permute.xlu0 %8298
  %8300 = vrot.lane.b32.xlu0 %v8206, 16
  %v8301 = vpop.permute.xlu0 %8300
  %8302 = vrot.lane.b32.xlu0 %v8207, 16
  %v8303 = vpop.permute.xlu0 %8302
  %v8304 = vsel %vm4444, %v8293, %v8295
  %v8305 = vsel %vm4444, %v8297, %v8299
  %v8306 = vsel %vm4444, %v8301, %v8303
  %v8313 = vsel %vm4444, 0.0, %v8293
  %v8314 = vsel %vm4444, 0.0, %v8297
  %v8315 = vsel %vm4444, 0.0, %v8301
  %8316 = vset.pattern.permute.xlu0 1
  %8317 = vperm.xlu0 %8316, %v8208
  %v8318 = vpop.permute.xlu0 %8317
  %8320 = vset.pattern.permute.xlu0 1
  %8321 = vperm.xlu0 %8320, %v8209
  %v8322 = vpop.permute.xlu0 %8321
  %8324 = vset.pattern.permute.xlu0 1
  %8325 = vperm.xlu0 %8324, %v8210
  %v8326 = vpop.permute.xlu0 %8325
  %v8328 = vmul.f32 %v8318, %v8313
  %v8329 = vmul.f32 %v8318, %v8304
  %v8330 = vmul.f32 %v8322, %v8314
  %v8331 = vmul.f32 %v8322, %v8305
  %v8332 = vmul.f32 %v8326, %v8315
  %v8333 = vmul.f32 %v8326, %v8306
  %v8334 = vadd.f32 %v8286, %v8328
  %v8335 = vadd.f32 %v8287, %v8329
  %v8336 = vadd.f32 %v8288, %v8330
  %v8337 = vadd.f32 %v8289, %v8331
  %v8338 = vadd.f32 %v8290, %v8332
  %v8339 = vadd.f32 %v8291, %v8333
  %8340 = vrot.lane.b32.xlu0 %v8202, 15
  %v8341 = vpop.permute.xlu0 %8340
  %8342 = vrot.lane.b32.xlu0 %v8203, 15
  %v8343 = vpop.permute.xlu0 %8342
  %8344 = vrot.lane.b32.xlu0 %v8204, 15
  %v8345 = vpop.permute.xlu0 %8344
  %8346 = vrot.lane.b32.xlu0 %v8205, 15
  %v8347 = vpop.permute.xlu0 %8346
  %8348 = vrot.lane.b32.xlu0 %v8206, 15
  %v8349 = vpop.permute.xlu0 %8348
  %8350 = vrot.lane.b32.xlu0 %v8207, 15
  %v8351 = vpop.permute.xlu0 %8350
  %v8352 = vsel %vm4525, %v8341, %v8343
  %v8353 = vsel %vm4525, %v8345, %v8347
  %v8354 = vsel %vm4525, %v8349, %v8351
  %v8361 = vsel %vm4525, 0.0, %v8341
  %v8362 = vsel %vm4525, 0.0, %v8345
  %v8363 = vsel %vm4525, 0.0, %v8349
  %v8364 = vmul.f32 %v8361, %v4552
  %v8365 = vmul.f32 %v8352, %v4556
  %v8366 = vmul.f32 %v8362, %v4552
  %v8367 = vmul.f32 %v8353, %v4556
  %v8368 = vmul.f32 %v8363, %v4552
  %v8369 = vmul.f32 %v8354, %v4556
  %8370 = vset.pattern.permute.xlu0 2
  %8371 = vperm.xlu0 %8370, %v8208
  %v8372 = vpop.permute.xlu0 %8371
  %8374 = vset.pattern.permute.xlu0 2
  %8375 = vperm.xlu0 %8374, %v8209
  %v8376 = vpop.permute.xlu0 %8375
  %8378 = vset.pattern.permute.xlu0 2
  %8379 = vperm.xlu0 %8378, %v8210
  %v8380 = vpop.permute.xlu0 %8379
  %v8382 = vmul.f32 %v8372, %v8364
  %v8383 = vmul.f32 %v8372, %v8365
  %v8384 = vmul.f32 %v8376, %v8366
  %v8385 = vmul.f32 %v8376, %v8367
  %v8386 = vmul.f32 %v8380, %v8368
  %v8387 = vmul.f32 %v8380, %v8369
  %v8388 = vadd.f32 %v8334, %v8382
  %v8389 = vadd.f32 %v8335, %v8383
  %v8390 = vadd.f32 %v8336, %v8384
  %v8391 = vadd.f32 %v8337, %v8385
  %v8392 = vadd.f32 %v8338, %v8386
  %v8393 = vadd.f32 %v8339, %v8387
  %8394 = vrot.lane.b32.xlu0 %v8202, 1
  %v8395 = vpop.permute.xlu0 %8394
  %8396 = vrot.lane.b32.xlu0 %v8203, 1
  %v8397 = vpop.permute.xlu0 %8396
  %8398 = vrot.lane.b32.xlu0 %v8204, 1
  %v8399 = vpop.permute.xlu0 %8398
  %8400 = vrot.lane.b32.xlu0 %v8205, 1
  %v8401 = vpop.permute.xlu0 %8400
  %8402 = vrot.lane.b32.xlu0 %v8206, 1
  %v8403 = vpop.permute.xlu0 %8402
  %8404 = vrot.lane.b32.xlu0 %v8207, 1
  %v8405 = vpop.permute.xlu0 %8404
  %v8406 = vsel %vm711, %v8395, %v8397
  %v8407 = vsel %vm711, %v8399, %v8401
  %v8408 = vsel %vm711, %v8403, %v8405
  %v8415 = vsel %vm711, 0.0, %v8395
  %v8416 = vsel %vm711, 0.0, %v8399
  %v8417 = vsel %vm711, 0.0, %v8403
  %v8418 = vmul.f32 %v8415, %v4655
  %v8419 = vmul.f32 %v8406, %v4659
  %v8420 = vmul.f32 %v8416, %v4655
  %v8421 = vmul.f32 %v8407, %v4659
  %v8422 = vmul.f32 %v8417, %v4655
  %v8423 = vmul.f32 %v8408, %v4659
  %8424 = vset.pattern.permute.xlu0 3
  %8425 = vperm.xlu0 %8424, %v8208
  %v8426 = vpop.permute.xlu0 %8425
  %8428 = vset.pattern.permute.xlu0 3
  %8429 = vperm.xlu0 %8428, %v8209
  %v8430 = vpop.permute.xlu0 %8429
  %8432 = vset.pattern.permute.xlu0 3
  %8433 = vperm.xlu0 %8432, %v8210
  %v8434 = vpop.permute.xlu0 %8433
  %v8436 = vmul.f32 %v8426, %v8418
  %v8437 = vmul.f32 %v8426, %v8419
  %v8438 = vmul.f32 %v8430, %v8420
  %v8439 = vmul.f32 %v8430, %v8421
  %v8440 = vmul.f32 %v8434, %v8422
  %v8441 = vmul.f32 %v8434, %v8423
  %v8442 = vadd.f32 %v8388, %v8436
  %v8443 = vadd.f32 %v8389, %v8437
  %v8444 = vadd.f32 %v8390, %v8438
  %v8445 = vadd.f32 %v8391, %v8439
  %v8446 = vadd.f32 %v8392, %v8440
  %v8447 = vadd.f32 %v8393, %v8441
  %8448 = vrot.lane.b32.xlu0 %v8202, 127
  %v8449 = vpop.permute.xlu0 %8448
  %8450 = vrot.lane.b32.xlu0 %v8203, 127
  %v8451 = vpop.permute.xlu0 %8450
  %8452 = vrot.lane.b32.xlu0 %v8204, 127
  %v8453 = vpop.permute.xlu0 %8452
  %8454 = vrot.lane.b32.xlu0 %v8205, 127
  %v8455 = vpop.permute.xlu0 %8454
  %8456 = vrot.lane.b32.xlu0 %v8206, 127
  %v8457 = vpop.permute.xlu0 %8456
  %8458 = vrot.lane.b32.xlu0 %v8207, 127
  %v8459 = vpop.permute.xlu0 %8458
  %v8460 = vsel %vm817, %v8449, %v8451
  %v8461 = vsel %vm817, %v8453, %v8455
  %v8462 = vsel %vm817, %v8457, %v8459
  %v8469 = vsel %vm817, %v8451, 0.0
  %v8470 = vsel %vm817, %v8455, 0.0
  %v8471 = vsel %vm817, %v8459, 0.0
  %v8472 = vmul.f32 %v8460, %v4758
  %v8473 = vmul.f32 %v8469, %v4762
  %v8474 = vmul.f32 %v8461, %v4758
  %v8475 = vmul.f32 %v8470, %v4762
  %v8476 = vmul.f32 %v8462, %v4758
  %v8477 = vmul.f32 %v8471, %v4762
  %8478 = vset.pattern.permute.xlu0 5
  %8479 = vperm.xlu0 %8478, %v8208
  %v8480 = vpop.permute.xlu0 %8479
  %8482 = vset.pattern.permute.xlu0 5
  %8483 = vperm.xlu0 %8482, %v8209
  %v8484 = vpop.permute.xlu0 %8483
  %8486 = vset.pattern.permute.xlu0 5
  %8487 = vperm.xlu0 %8486, %v8210
  %v8488 = vpop.permute.xlu0 %8487
  %v8490 = vmul.f32 %v8480, %v8472
  %v8491 = vmul.f32 %v8480, %v8473
  %v8492 = vmul.f32 %v8484, %v8474
  %v8493 = vmul.f32 %v8484, %v8475
  %v8494 = vmul.f32 %v8488, %v8476
  %v8495 = vmul.f32 %v8488, %v8477
  %v8496 = vadd.f32 %v8442, %v8490
  %v8497 = vadd.f32 %v8443, %v8491
  %v8498 = vadd.f32 %v8444, %v8492
  %v8499 = vadd.f32 %v8445, %v8493
  %v8500 = vadd.f32 %v8446, %v8494
  %v8501 = vadd.f32 %v8447, %v8495
  %8502 = vrot.lane.b32.xlu0 %v8202, 113
  %v8503 = vpop.permute.xlu0 %8502
  %8504 = vrot.lane.b32.xlu0 %v8203, 113
  %v8505 = vpop.permute.xlu0 %8504
  %8506 = vrot.lane.b32.xlu0 %v8204, 113
  %v8507 = vpop.permute.xlu0 %8506
  %8508 = vrot.lane.b32.xlu0 %v8205, 113
  %v8509 = vpop.permute.xlu0 %8508
  %8510 = vrot.lane.b32.xlu0 %v8206, 113
  %v8511 = vpop.permute.xlu0 %8510
  %8512 = vrot.lane.b32.xlu0 %v8207, 113
  %v8513 = vpop.permute.xlu0 %8512
  %v8514 = vsel %vm4835, %v8503, %v8505
  %v8515 = vsel %vm4835, %v8507, %v8509
  %v8516 = vsel %vm4835, %v8511, %v8513
  %v8523 = vsel %vm4835, %v8505, 0.0
  %v8524 = vsel %vm4835, %v8509, 0.0
  %v8525 = vsel %vm4835, %v8513, 0.0
  %v8526 = vmul.f32 %v8514, %v4862
  %v8527 = vmul.f32 %v8523, %v4866
  %v8528 = vmul.f32 %v8515, %v4862
  %v8529 = vmul.f32 %v8524, %v4866
  %v8530 = vmul.f32 %v8516, %v4862
  %v8531 = vmul.f32 %v8525, %v4866
  %8532 = vset.pattern.permute.xlu0 6
  %8533 = vperm.xlu0 %8532, %v8208
  %v8534 = vpop.permute.xlu0 %8533
  %8536 = vset.pattern.permute.xlu0 6
  %8537 = vperm.xlu0 %8536, %v8209
  %v8538 = vpop.permute.xlu0 %8537
  %8540 = vset.pattern.permute.xlu0 6
  %8541 = vperm.xlu0 %8540, %v8210
  %v8542 = vpop.permute.xlu0 %8541
  %v8544 = vmul.f32 %v8534, %v8526
  %v8545 = vmul.f32 %v8534, %v8527
  %v8546 = vmul.f32 %v8538, %v8528
  %v8547 = vmul.f32 %v8538, %v8529
  %v8548 = vmul.f32 %v8542, %v8530
  %v8549 = vmul.f32 %v8542, %v8531
  %v8550 = vadd.f32 %v8496, %v8544
  %v8551 = vadd.f32 %v8497, %v8545
  %v8552 = vadd.f32 %v8498, %v8546
  %v8553 = vadd.f32 %v8499, %v8547
  %v8554 = vadd.f32 %v8500, %v8548
  %v8555 = vadd.f32 %v8501, %v8549
  %8556 = vrot.lane.b32.xlu0 %v8202, 112
  %v8557 = vpop.permute.xlu0 %8556
  %8558 = vrot.lane.b32.xlu0 %v8203, 112
  %v8559 = vpop.permute.xlu0 %8558
  %8560 = vrot.lane.b32.xlu0 %v8204, 112
  %v8561 = vpop.permute.xlu0 %8560
  %8562 = vrot.lane.b32.xlu0 %v8205, 112
  %v8563 = vpop.permute.xlu0 %8562
  %8564 = vrot.lane.b32.xlu0 %v8206, 112
  %v8565 = vpop.permute.xlu0 %8564
  %8566 = vrot.lane.b32.xlu0 %v8207, 112
  %v8567 = vpop.permute.xlu0 %8566
  %v8568 = vsel %vm4939, %v8557, %v8559
  %v8569 = vsel %vm4939, %v8561, %v8563
  %v8570 = vsel %vm4939, %v8565, %v8567
  %v8577 = vsel %vm4939, %v8559, 0.0
  %v8578 = vsel %vm4939, %v8563, 0.0
  %v8579 = vsel %vm4939, %v8567, 0.0
  %8580 = vset.pattern.permute.xlu0 7
  %8581 = vperm.xlu0 %8580, %v8208
  %v8582 = vpop.permute.xlu0 %8581
  %8584 = vset.pattern.permute.xlu0 7
  %8585 = vperm.xlu0 %8584, %v8209
  %v8586 = vpop.permute.xlu0 %8585
  %8588 = vset.pattern.permute.xlu0 7
  %8589 = vperm.xlu0 %8588, %v8210
  %v8590 = vpop.permute.xlu0 %8589
  %v8592 = vmul.f32 %v8582, %v8568
  %v8593 = vmul.f32 %v8582, %v8577
  %v8594 = vmul.f32 %v8586, %v8569
  %v8595 = vmul.f32 %v8586, %v8578
  %v8596 = vmul.f32 %v8590, %v8570
  %v8597 = vmul.f32 %v8590, %v8579
  %v8598 = vadd.f32 %v8550, %v8592
  %v8599 = vadd.f32 %v8551, %v8593
  %v8600 = vadd.f32 %v8552, %v8594
  %v8601 = vadd.f32 %v8553, %v8595
  %v8602 = vadd.f32 %v8554, %v8596
  %v8603 = vadd.f32 %v8555, %v8597
  %8604 = vrot.lane.b32.xlu0 %v8202, 111
  %v8605 = vpop.permute.xlu0 %8604
  %8606 = vrot.lane.b32.xlu0 %v8203, 111
  %v8607 = vpop.permute.xlu0 %8606
  %8608 = vrot.lane.b32.xlu0 %v8204, 111
  %v8609 = vpop.permute.xlu0 %8608
  %8610 = vrot.lane.b32.xlu0 %v8205, 111
  %v8611 = vpop.permute.xlu0 %8610
  %8612 = vrot.lane.b32.xlu0 %v8206, 111
  %v8613 = vpop.permute.xlu0 %8612
  %8614 = vrot.lane.b32.xlu0 %v8207, 111
  %v8615 = vpop.permute.xlu0 %8614
  %v8616 = vsel %vm5020, %v8605, %v8607
  %v8617 = vsel %vm5020, %v8609, %v8611
  %v8618 = vsel %vm5020, %v8613, %v8615
  %v8625 = vsel %vm5020, %v8607, 0.0
  %v8626 = vsel %vm5020, %v8611, 0.0
  %v8627 = vsel %vm5020, %v8615, 0.0
  %v8628 = vmul.f32 %v8616, %v5047
  %v8629 = vmul.f32 %v8625, %v5051
  %v8630 = vmul.f32 %v8617, %v5047
  %v8631 = vmul.f32 %v8626, %v5051
  %v8632 = vmul.f32 %v8618, %v5047
  %v8633 = vmul.f32 %v8627, %v5051
  %8634 = vset.pattern.permute.xlu0 8
  %8635 = vperm.xlu0 %8634, %v8208
  %v8636 = vpop.permute.xlu0 %8635
  %8638 = vset.pattern.permute.xlu0 8
  %8639 = vperm.xlu0 %8638, %v8209
  %v8640 = vpop.permute.xlu0 %8639
  %8642 = vset.pattern.permute.xlu0 8
  %8643 = vperm.xlu0 %8642, %v8210
  %v8644 = vpop.permute.xlu0 %8643
  %v8646 = vmul.f32 %v8636, %v8628
  %v8647 = vmul.f32 %v8636, %v8629
  %v8648 = vmul.f32 %v8640, %v8630
  %v8649 = vmul.f32 %v8640, %v8631
  %v8650 = vmul.f32 %v8644, %v8632
  %v8651 = vmul.f32 %v8644, %v8633
  %v8652 = vadd.f32 %v8598, %v8646
  %v8653 = vadd.f32 %v8599, %v8647
  %v8654 = vadd.f32 %v8600, %v8648
  %v8655 = vadd.f32 %v8601, %v8649
  %v8656 = vadd.f32 %v8602, %v8650
  %v8657 = vadd.f32 %v8603, %v8651
  %v8658 = vld [vmem:[%s10] sm:$0xff]
  %v8659 = vld [vmem:[%s10 + $0x8] sm:$0xff]
  %v8660 = vld [vmem:[%s10 + $0x10] sm:$0xff]
  %v8661 = vld [vmem:[%s10 + $0x18] sm:$0xff]
  %v8662 = vld [vmem:[%s10 + $0x20] sm:$0xff]
  %v8663 = vld [vmem:[%s10 + $0x28] sm:$0xff]
  %v8664 = vld [vmem:[%s10 + $0x30] sm:$0xff]
  %v8665 = vld [vmem:[%s10 + $0x38] sm:$0xff]
  %v8666 = vld [vmem:[%s10 + $0x40] sm:$0xff]
  %v8667 = vld [vmem:[%s10 + $0x48] sm:$0xff]
  %v8668 = vld [vmem:[%s10 + $0x50] sm:$0xff]
  %v8669 = vld [vmem:[%s10 + $0x58] sm:$0xff]
  %v8670 = vld [vmem:[%s10 + $0x60] sm:$0xff]
  %v8671 = vld [vmem:[%s10 + $0x68] sm:$0xff]
  %v8672 = vld [vmem:[%s10 + $0x70] sm:$0xff]
  %v8673 = vld [vmem:[%s10 + $0x78] sm:$0xff]
  %v8674 = vld [vmem:[%s10 + $0x80] sm:$0xff]
  %v8675 = vld [vmem:[%s10 + $0x88] sm:$0xff]
  %v8676 = vld [vmem:[%s10 + $0x90] sm:$0xff]
  %v8677 = vld [vmem:[%s10 + $0x98] sm:$0xff]
  %v8678 = vld [vmem:[%s10 + $0xa0] sm:$0xff]
  %v8679 = vld [vmem:[%s10 + $0xa8] sm:$0xff]
  %v8680 = vld [vmem:[%s10 + $0xb0] sm:$0xff]
  %v8681 = vld [vmem:[%s10 + $0xb8] sm:$0xff]
  %v8682 = vld [vmem:[%s10 + $0xc0] sm:$0xff]
  %v8683 = vld [vmem:[%s10 + $0xc8] sm:$0xff]
  %v8684 = vld [vmem:[%s10 + $0xd0] sm:$0xff]
  %v8685 = vld [vmem:[%s10 + $0xd8] sm:$0xff]
  %v8686 = vld [vmem:[%s10 + $0xe0] sm:$0xff]
  %v8687 = vld [vmem:[%s10 + $0xe8] sm:$0xff]
  %v8688 = vld [vmem:[%s10 + $0xf0] sm:$0xff]
  %v8689 = vld [vmem:[%s10 + $0xf8] sm:$0xff]
  %v8690 = vld [vmem:[%s3 + $0xb6] sm:$0xff]
  %v8691 = vld [vmem:[%s3 + $0xbe] sm:$0xff]
  %v8692 = vld [vmem:[%s3 + $0xc6] sm:$0xff]
  %8694 = vset.pattern.permute.xlu0 0
  %8695 = vperm.xlu0 %8694, %v8690
  %v8696 = vpop.permute.xlu0 %8695
  %8699 = vset.pattern.permute.xlu0 0
  %8700 = vperm.xlu0 %8699, %v8691
  %v8701 = vpop.permute.xlu0 %8700
  %8704 = vset.pattern.permute.xlu0 0
  %8705 = vperm.xlu0 %8704, %v8692
  %v8706 = vpop.permute.xlu0 %8705
  %8708 = vmatprep.subr.mxu0 0.0
  %8709 = vmatpush1.msra.mxu0 %v8658
  %8710 = vmatprep.subr.mxu0 0.0
  %8711 = vmatpush1.msra.mxu0 %v8659
  %8712 = vmatprep.subr.mxu0 0.0
  %8713 = vmatpush1.msra.mxu0 %v8660
  %8714 = vmatprep.subr.mxu0 0.0
  %8715 = vmatpush1.msra.mxu0 %v8661
  %8716 = vmatprep.subr.mxu0 0.0
  %8717 = vmatpush1.msra.mxu0 %v8662
  %8718 = vmatprep.subr.mxu0 0.0
  %8719 = vmatpush1.msra.mxu0 %v8663
  %8720 = vmatprep.subr.mxu0 0.0
  %8721 = vmatpush1.msra.mxu0 %v8664
  %8722 = vmatprep.subr.mxu0 0.0
  %8723 = vmatpush1.msra.mxu0 %v8665
  %8724 = vmatprep.subr.mxu0 0.0
  %8725 = vmatpush1.msra.mxu0 %v8666
  %8726 = vmatprep.subr.mxu0 0.0
  %8727 = vmatpush1.msra.mxu0 %v8667
  %8728 = vmatprep.subr.mxu0 0.0
  %8729 = vmatpush1.msra.mxu0 %v8668
  %8730 = vmatprep.subr.mxu0 0.0
  %8731 = vmatpush1.msra.mxu0 %v8669
  %8732 = vmatprep.subr.mxu0 0.0
  %8733 = vmatpush1.msra.mxu0 %v8670
  %8734 = vmatprep.subr.mxu0 0.0
  %8735 = vmatpush1.msra.mxu0 %v8671
  %8736 = vmatprep.subr.mxu0 0.0
  %8737 = vmatpush1.msra.mxu0 %v8672
  %8738 = vmatprep.subr.mxu0 0.0
  %8739 = vmatpush1.msra.mxu0 %v8673
  %8740 = vmatprep.subr.mxu0 0.0
  %8741 = vmatpush1.msra.mxu0 %v8674
  %8742 = vmatprep.subr.mxu0 0.0
  %8743 = vmatpush1.msra.mxu0 %v8675
  %8744 = vmatprep.subr.mxu0 0.0
  %8745 = vmatpush1.msra.mxu0 %v8676
  %8746 = vmatprep.subr.mxu0 0.0
  %8747 = vmatpush1.msra.mxu0 %v8677
  %8748 = vmatprep.subr.mxu0 0.0
  %8749 = vmatpush1.msra.mxu0 %v8678
  %8750 = vmatprep.subr.mxu0 0.0
  %8751 = vmatpush1.msra.mxu0 %v8679
  %8752 = vmatprep.subr.mxu0 0.0
  %8753 = vmatpush1.msra.mxu0 %v8680
  %8754 = vmatprep.subr.mxu0 0.0
  %8755 = vmatpush1.msra.mxu0 %v8681
  %8756 = vmatprep.subr.mxu0 0.0
  %8757 = vmatpush1.msra.mxu0 %v8682
  %8758 = vmatprep.subr.mxu0 0.0
  %8759 = vmatpush1.msra.mxu0 %v8683
  %8760 = vmatprep.subr.mxu0 0.0
  %8761 = vmatpush1.msra.mxu0 %v8684
  %8762 = vmatprep.subr.mxu0 0.0
  %8763 = vmatpush1.msra.mxu0 %v8685
  %8764 = vmatprep.subr.mxu0 0.0
  %8765 = vmatpush1.msra.mxu0 %v8686
  %8766 = vmatprep.subr.mxu0 0.0
  %8767 = vmatpush1.msra.mxu0 %v8687
  %8768 = vmatprep.subr.mxu0 0.0
  %8769 = vmatpush1.msra.mxu0 %v8688
  %8770 = vmatprep.subr.mxu0 0.0
  %8771 = vmatpush1.msra.mxu0 %v8689
  %8772 = vmatprep.mubr.f32.mxu0 %v8653
  %8773 = vmatmul.mubr.f32.gmra.mrb[0].mxu0 %v8652
  %v8774 = vpop.f32.mrb[0].mxu0
  %v8775 = vadd.f32 %v8696, %v8774
  %v8776 = vpop.f32.mrb[0].mxu0
  %8777 = vmatprep.mubr.f32.mxu0 %v8655
  %8778 = vmatmul.mubr.f32.gmra.mrb[0].mxu0 %v8654
  %v8779 = vpop.f32.mrb[0].mxu0
  %v8780 = vadd.f32 %v8701, %v8779
  %v8781 = vpop.f32.mrb[0].mxu0
  %8782 = vmatprep.mubr.f32.mxu0 %v8657
  %8783 = vmatmul.mubr.f32.gmra.mrb[0].mxu0 %v8656
  %v8784 = vpop.f32.mrb[0].mxu0
  %v8785 = vadd.f32 %v8706, %v8784
  %v8786 = vpop.f32.mrb[0].mxu0
  %8787 = vdwg.mxu0
  %v8788 = vmul.f32 %v8775, 0.1
  %v8789 = vmul.f32 %v8780, 0.1
  %v8790 = vmul.f32 %v8785, 0.1
  %v8791 = vmax.f32 %v8775, %v8788
  %v8792 = vmax.f32 %v8780, %v8789
  %v8793 = vmax.f32 %v8785, %v8790
  %v8794 = vld [vmem:[%s1 + $0x90] sm:$0xff]
  %v8795 = vld [vmem:[%s3 + $0xce] sm:$0xff]
  %8797 = vset.pattern.permute.xlu0 0
  %8798 = vperm.xlu0 %8797, %v8795
  %v8799 = vpop.permute.xlu0 %8798
  %vm8801 = vcmask 195584
  %v8803 = vsel %vm8801, %v8794, 0
  %8805 = vmatprep.subr.mxu0 0.0
  %8806 = vmatpush1.msra.mxu0 %v8791
  %8807 = vmatprep.subr.mxu0 0.0
  %8808 = vmatpush1.msra.mxu0 %v8792
  %8809 = vmatprep.subr.mxu0 0.0
  %8810 = vmatpush1.msra.mxu0 %v8793
  %8811 = vmatprep.subr.mxu0 0.0
  %8812 = vmatpush1.msra.mxu0 0.0
  %8813 = vmatprep.subr.mxu0 0.0
  %8814 = vmatpush1.msra.mxu0 0.0
  %8815 = vmatprep.subr.mxu0 0.0
  %8816 = vmatpush1.msra.mxu0 0.0
  %8817 = vmatprep.subr.mxu0 0.0
  %8818 = vmatpush1.msra.mxu0 0.0
  %8819 = vmatprep.subr.mxu0 0.0
  %8820 = vmatpush1.msra.mxu0 0.0
  %8821 = vmatprep.subr.mxu0 0.0
  %8822 = vmatpush1.msra.mxu0 0.0
  %8823 = vmatprep.subr.mxu0 0.0
  %8824 = vmatpush1.msra.mxu0 0.0
  %8825 = vmatprep.subr.mxu0 0.0
  %8826 = vmatpush1.msra.mxu0 0.0
  %8827 = vmatprep.subr.mxu0 0.0
  %8828 = vmatpush1.msra.mxu0 0.0
  %8829 = vmatprep.subr.mxu0 0.0
  %8830 = vmatpush1.msra.mxu0 0.0
  %8831 = vmatprep.subr.mxu0 0.0
  %8832 = vmatpush1.msra.mxu0 0.0
  %8833 = vmatprep.subr.mxu0 0.0
  %8834 = vmatpush1.msra.mxu0 0.0
  %8835 = vmatprep.subr.mxu0 0.0
  %8836 = vmatpush1.msra.mxu0 0.0
  %8837 = vmatprep.subr.mxu0 0.0
  %8838 = vmatpush1.msra.mxu0 0.0
  %8839 = vmatprep.subr.mxu0 0.0
  %8840 = vmatpush1.msra.mxu0 0.0
  %8841 = vmatprep.subr.mxu0 0.0
  %8842 = vmatpush1.msra.mxu0 0.0
  %8843 = vmatprep.subr.mxu0 0.0
  %8844 = vmatpush1.msra.mxu0 0.0
  %8845 = vmatprep.subr.mxu0 0.0
  %8846 = vmatpush1.msra.mxu0 0.0
  %8847 = vmatprep.subr.mxu0 0.0
  %8848 = vmatpush1.msra.mxu0 0.0
  %8849 = vmatprep.subr.mxu0 0.0
  %8850 = vmatpush1.msra.mxu0 0.0
  %8851 = vmatprep.subr.mxu0 0.0
  %8852 = vmatpush1.msra.mxu0 0.0
  %8853 = vmatprep.subr.mxu0 0.0
  %8854 = vmatpush1.msra.mxu0 0.0
  %8855 = vmatprep.subr.mxu0 0.0
  %8856 = vmatpush1.msra.mxu0 0.0
  %8857 = vmatprep.subr.mxu0 0.0
  %8858 = vmatpush1.msra.mxu0 0.0
  %8859 = vmatprep.subr.mxu0 0.0
  %8860 = vmatpush1.msra.mxu0 0.0
  %8861 = vmatprep.subr.mxu0 0.0
  %8862 = vmatpush1.msra.mxu0 0.0
  %8863 = vmatprep.subr.mxu0 0.0
  %8864 = vmatpush1.msra.mxu0 0.0
  %8865 = vmatprep.subr.mxu0 0.0
  %8866 = vmatpush1.msra.mxu0 0.0
  %8867 = vmatprep.subr.mxu0 0.0
  %8868 = vmatpush1.msra.mxu0 0.0
  %8869 = vmatprep.mubr.f32.mxu0 0.0
  %8870 = vmatmul.mubr.f32.gmra.mrb[0].mxu0 %v8803
  %v8871 = vpop.f32.mrb[0].mxu0
  %v8872 = vadd.f32 %v8799, %v8871
  %v8873 = vpop.f32.mrb[0].mxu0
  %8874 = vdwg.mxu0
  %v8875 = vld [vmem:[%s1 + $0x98] sm:$0xff]
  %v8876 = vld [vmem:[%s1 + $0xa0] sm:$0xff]
  %v8877 = vld [vmem:[%s1 + $0xa8] sm:$0xff]
  %v8878 = vld [vmem:[%s1 + $0xb0] sm:$0xff]
  %v8879 = vld [vmem:[%s1 + $0xb8] sm:$0xff]
  %v8880 = vld [vmem:[%s3 + $0xd6] sm:$0xff]
  %v8881 = vld [vmem:[%s3 + $0xde] sm:$0xff]
  %v8882 = vld [vmem:[%s3 + $0xe6] sm:$0xff]
  %v8883 = vld [vmem:[%s3 + $0xee] sm:$0xff]
  %v8884 = vld [vmem:[%s3 + $0xf6] sm:$0xff]
  %8886 = vset.pattern.permute.xlu0 0
  %8887 = vperm.xlu0 %8886, %v8880
  %v8888 = vpop.permute.xlu0 %8887
  %8891 = vset.pattern.permute.xlu0 0
  %8892 = vperm.xlu0 %8891, %v8881
  %v8893 = vpop.permute.xlu0 %8892
  %8896 = vset.pattern.permute.xlu0 0
  %8897 = vperm.xlu0 %8896, %v8882
  %v8898 = vpop.permute.xlu0 %8897
  %8901 = vset.pattern.permute.xlu0 0
  %8902 = vperm.xlu0 %8901, %v8883
  %v8903 = vpop.permute.xlu0 %8902
  %8906 = vset.pattern.permute.xlu0 0
  %8907 = vperm.xlu0 %8906, %v8884
  %v8908 = vpop.permute.xlu0 %8907
  %v8911 = vsel %vm1209, %v8875, 0
  %v8914 = vsel %vm1209, %v8876, 0
  %v8917 = vsel %vm1209, %v8877, 0
  %v8920 = vsel %vm1209, %v8878, 0
  %v8923 = vsel %vm1209, %v8879, 0
  %8925 = vmatprep.subr.mxu0 0.0
  %8926 = vmatpush1.msra.mxu0 %v8872
  %8927 = vmatprep.subr.mxu0 0.0
  %8928 = vmatpush1.msra.mxu0 0.0
  %8929 = vmatprep.subr.mxu0 0.0
  %8930 = vmatpush1.msra.mxu0 0.0
  %8931 = vmatprep.subr.mxu0 0.0
  %8932 = vmatpush1.msra.mxu0 0.0
  %8933 = vmatprep.subr.mxu0 0.0
  %8934 = vmatpush1.msra.mxu0 0.0
  %8935 = vmatprep.subr.mxu0 0.0
  %8936 = vmatpush1.msra.mxu0 0.0
  %8937 = vmatprep.subr.mxu0 0.0
  %8938 = vmatpush1.msra.mxu0 0.0
  %8939 = vmatprep.subr.mxu0 0.0
  %8940 = vmatpush1.msra.mxu0 0.0
  %8941 = vmatprep.subr.mxu0 0.0
  %8942 = vmatpush1.msra.mxu0 0.0
  %8943 = vmatprep.subr.mxu0 0.0
  %8944 = vmatpush1.msra.mxu0 0.0
  %8945 = vmatprep.subr.mxu0 0.0
  %8946 = vmatpush1.msra.mxu0 0.0
  %8947 = vmatprep.subr.mxu0 0.0
  %8948 = vmatpush1.msra.mxu0 0.0
  %8949 = vmatprep.subr.mxu0 0.0
  %8950 = vmatpush1.msra.mxu0 0.0
  %8951 = vmatprep.subr.mxu0 0.0
  %8952 = vmatpush1.msra.mxu0 0.0
  %8953 = vmatprep.subr.mxu0 0.0
  %8954 = vmatpush1.msra.mxu0 0.0
  %8955 = vmatprep.subr.mxu0 0.0
  %8956 = vmatpush1.msra.mxu0 0.0
  %8957 = vmatprep.subr.mxu0 0.0
  %8958 = vmatpush1.msra.mxu0 0.0
  %8959 = vmatprep.subr.mxu0 0.0
  %8960 = vmatpush1.msra.mxu0 0.0
  %8961 = vmatprep.subr.mxu0 0.0
  %8962 = vmatpush1.msra.mxu0 0.0
  %8963 = vmatprep.subr.mxu0 0.0
  %8964 = vmatpush1.msra.mxu0 0.0
  %8965 = vmatprep.subr.mxu0 0.0
  %8966 = vmatpush1.msra.mxu0 0.0
  %8967 = vmatprep.subr.mxu0 0.0
  %8968 = vmatpush1.msra.mxu0 0.0
  %8969 = vmatprep.subr.mxu0 0.0
  %8970 = vmatpush1.msra.mxu0 0.0
  %8971 = vmatprep.subr.mxu0 0.0
  %8972 = vmatpush1.msra.mxu0 0.0
  %8973 = vmatprep.subr.mxu0 0.0
  %8974 = vmatpush1.msra.mxu0 0.0
  %8975 = vmatprep.subr.mxu0 0.0
  %8976 = vmatpush1.msra.mxu0 0.0
  %8977 = vmatprep.subr.mxu0 0.0
  %8978 = vmatpush1.msra.mxu0 0.0
  %8979 = vmatprep.subr.mxu0 0.0
  %8980 = vmatpush1.msra.mxu0 0.0
  %8981 = vmatprep.subr.mxu0 0.0
  %8982 = vmatpush1.msra.mxu0 0.0
  %8983 = vmatprep.subr.mxu0 0.0
  %8984 = vmatpush1.msra.mxu0 0.0
  %8985 = vmatprep.subr.mxu0 0.0
  %8986 = vmatpush1.msra.mxu0 0.0
  %8987 = vmatprep.subr.mxu0 0.0
  %8988 = vmatpush1.msra.mxu0 0.0
  %8989 = vmatprep.mubr.f32.mxu0 0.0
  %8990 = vmatmul.mubr.f32.gmra.mrb[0].mxu0 %v8911
  %v8991 = vpop.f32.mrb[0].mxu0
  %v8992 = vadd.f32 %v8888, %v8991
  %v8993 = vpop.f32.mrb[0].mxu0
  %8994 = vmatprep.mubr.f32.mxu0 0.0
  %8995 = vmatmul.mubr.f32.gmra.mrb[0].mxu0 %v8914
  %v8996 = vpop.f32.mrb[0].mxu0
  %v8997 = vadd.f32 %v8893, %v8996
  %v8998 = vpop.f32.mrb[0].mxu0
  %8999 = vmatprep.mubr.f32.mxu0 0.0
  %9000 = vmatmul.mubr.f32.gmra.mrb[0].mxu0 %v8917
  %v9001 = vpop.f32.mrb[0].mxu0
  %v9002 = vadd.f32 %v8898, %v9001
  %v9003 = vpop.f32.mrb[0].mxu0
  %9004 = vmatprep.mubr.f32.mxu0 0.0
  %9005 = vmatmul.mubr.f32.gmra.mrb[0].mxu0 %v8920
  %v9006 = vpop.f32.mrb[0].mxu0
  %v9007 = vadd.f32 %v8903, %v9006
  %v9008 = vpop.f32.mrb[0].mxu0
  %9009 = vmatprep.mubr.f32.mxu0 0.0
  %9010 = vmatmul.mubr.f32.gmra.mrb[0].mxu0 %v8923
  %v9011 = vpop.f32.mrb[0].mxu0
  %v9012 = vadd.f32 %v8908, %v9011
  %v9013 = vpop.f32.mrb[0].mxu0
  %9014 = vdwg.mxu0
  %v9015 = vmul.f32 %v8992, 0.1
  %v9016 = vmul.f32 %v8997, 0.1
  %v9017 = vmul.f32 %v9002, 0.1
  %v9018 = vmul.f32 %v9007, 0.1
  %v9019 = vmul.f32 %v9012, 0.1
  %v9020 = vmax.f32 %v8992, %v9015
  %v9021 = vmax.f32 %v8997, %v9016
  %v9022 = vmax.f32 %v9002, %v9017
  %v9023 = vmax.f32 %v9007, %v9018
  %v9024 = vmax.f32 %v9012, %v9019
  %v9025 = vld [vmem:[%s2 + $0x56] sm:$0xff]
  %v9026 = vld [vmem:[%s2 + $0x5e] sm:$0xff]
  %v9027 = vld [vmem:[%s2 + $0x66] sm:$0xff]
  %v9028 = vld [vmem:[%s2 + $0x6e] sm:$0xff]
  %v9029 = vld [vmem:[%s2 + $0x76] sm:$0xff]
  %9031 = vset.pattern.permute.xlu0 4
  %9032 = vperm.xlu0 %9031, %v9025
  %v9033 = vpop.permute.xlu0 %9032
  %9036 = vset.pattern.permute.xlu0 4
  %9037 = vperm.xlu0 %9036, %v9026
  %v9038 = vpop.permute.xlu0 %9037
  %9041 = vset.pattern.permute.xlu0 4
  %9042 = vperm.xlu0 %9041, %v9027
  %v9043 = vpop.permute.xlu0 %9042
  %9046 = vset.pattern.permute.xlu0 4
  %9047 = vperm.xlu0 %9046, %v9028
  %v9048 = vpop.permute.xlu0 %9047
  %9051 = vset.pattern.permute.xlu0 4
  %9052 = vperm.xlu0 %9051, %v9029
  %v9053 = vpop.permute.xlu0 %9052
  %v9055 = vmul.f32 %v9033, %v9020
  %v9056 = vmul.f32 %v9038, %v9021
  %v9057 = vmul.f32 %v9043, %v9022
  %v9058 = vmul.f32 %v9048, %v9023
  %v9059 = vmul.f32 %v9053, %v9024
  %9065 = vrot.lane.b32.xlu0 %v9020, 9
  %v9066 = vpop.permute.xlu0 %9065
  %9067 = vrot.lane.b32.xlu0 %v9021, 9
  %v9068 = vpop.permute.xlu0 %9067
  %9069 = vrot.lane.b32.xlu0 %v9022, 9
  %v9070 = vpop.permute.xlu0 %9069
  %9071 = vrot.lane.b32.xlu0 %v9023, 9
  %v9072 = vpop.permute.xlu0 %9071
  %9073 = vrot.lane.b32.xlu0 %v9024, 9
  %v9074 = vpop.permute.xlu0 %9073
  %vm9080 = vcmask 72704
  %v9081 = vsel %vm9080, 0.0, %v9066
  %v9082 = vsel %vm9080, 0.0, %v9068
  %v9083 = vsel %vm9080, 0.0, %v9070
  %v9084 = vsel %vm9080, 0.0, %v9072
  %v9085 = vsel %vm9080, 0.0, %v9074
  %v9086 = vld [vmem:[%s6] sm:$0x1]
  %v9087 = vlaneseq
  %v9088 = vshrl.u32 %v9087, 7
  %v9089 = vsub.s32 0, %v9088
  %v9090 = vrot.slane %v9086, %v9089
  %v9091 = vmul.f32 %v9081, %v9090
  %v9092 = vmul.f32 %v9082, %v9090
  %v9093 = vmul.f32 %v9083, %v9090
  %v9094 = vmul.f32 %v9084, %v9090
  %v9095 = vmul.f32 %v9085, %v9090
  %9096 = vset.pattern.permute.xlu0 0
  %9097 = vperm.xlu0 %9096, %v9025
  %v9098 = vpop.permute.xlu0 %9097
  %9100 = vset.pattern.permute.xlu0 0
  %9101 = vperm.xlu0 %9100, %v9026
  %v9102 = vpop.permute.xlu0 %9101
  %9104 = vset.pattern.permute.xlu0 0
  %9105 = vperm.xlu0 %9104, %v9027
  %v9106 = vpop.permute.xlu0 %9105
  %9108 = vset.pattern.permute.xlu0 0
  %9109 = vperm.xlu0 %9108, %v9028
  %v9110 = vpop.permute.xlu0 %9109
  %9112 = vset.pattern.permute.xlu0 0
  %9113 = vperm.xlu0 %9112, %v9029
  %v9114 = vpop.permute.xlu0 %9113
  %v9116 = vmul.f32 %v9098, %v9091
  %v9117 = vmul.f32 %v9102, %v9092
  %v9118 = vmul.f32 %v9106, %v9093
  %v9119 = vmul.f32 %v9110, %v9094
  %v9120 = vmul.f32 %v9114, %v9095
  %v9121 = vadd.f32 %v9055, %v9116
  %v9122 = vadd.f32 %v9056, %v9117
  %v9123 = vadd.f32 %v9057, %v9118
  %v9124 = vadd.f32 %v9058, %v9119
  %v9125 = vadd.f32 %v9059, %v9120
  %9126 = vrot.lane.b32.xlu0 %v9020, 8
  %v9127 = vpop.permute.xlu0 %9126
  %9128 = vrot.lane.b32.xlu0 %v9021, 8
  %v9129 = vpop.permute.xlu0 %9128
  %9130 = vrot.lane.b32.xlu0 %v9022, 8
  %v9131 = vpop.permute.xlu0 %9130
  %9132 = vrot.lane.b32.xlu0 %v9023, 8
  %v9133 = vpop.permute.xlu0 %9132
  %9134 = vrot.lane.b32.xlu0 %v9024, 8
  %v9135 = vpop.permute.xlu0 %9134
  %v9141 = vsel %vm1209, 0.0, %v9127
  %v9142 = vsel %vm1209, 0.0, %v9129
  %v9143 = vsel %vm1209, 0.0, %v9131
  %v9144 = vsel %vm1209, 0.0, %v9133
  %v9145 = vsel %vm1209, 0.0, %v9135
  %9146 = vset.pattern.permute.xlu0 1
  %9147 = vperm.xlu0 %9146, %v9025
  %v9148 = vpop.permute.xlu0 %9147
  %9150 = vset.pattern.permute.xlu0 1
  %9151 = vperm.xlu0 %9150, %v9026
  %v9152 = vpop.permute.xlu0 %9151
  %9154 = vset.pattern.permute.xlu0 1
  %9155 = vperm.xlu0 %9154, %v9027
  %v9156 = vpop.permute.xlu0 %9155
  %9158 = vset.pattern.permute.xlu0 1
  %9159 = vperm.xlu0 %9158, %v9028
  %v9160 = vpop.permute.xlu0 %9159
  %9162 = vset.pattern.permute.xlu0 1
  %9163 = vperm.xlu0 %9162, %v9029
  %v9164 = vpop.permute.xlu0 %9163
  %v9166 = vmul.f32 %v9148, %v9141
  %v9167 = vmul.f32 %v9152, %v9142
  %v9168 = vmul.f32 %v9156, %v9143
  %v9169 = vmul.f32 %v9160, %v9144
  %v9170 = vmul.f32 %v9164, %v9145
  %v9171 = vadd.f32 %v9121, %v9166
  %v9172 = vadd.f32 %v9122, %v9167
  %v9173 = vadd.f32 %v9123, %v9168
  %v9174 = vadd.f32 %v9124, %v9169
  %v9175 = vadd.f32 %v9125, %v9170
  %9176 = vrot.lane.b32.xlu0 %v9020, 7
  %v9177 = vpop.permute.xlu0 %9176
  %9178 = vrot.lane.b32.xlu0 %v9021, 7
  %v9179 = vpop.permute.xlu0 %9178
  %9180 = vrot.lane.b32.xlu0 %v9022, 7
  %v9181 = vpop.permute.xlu0 %9180
  %9182 = vrot.lane.b32.xlu0 %v9023, 7
  %v9183 = vpop.permute.xlu0 %9182
  %9184 = vrot.lane.b32.xlu0 %v9024, 7
  %v9185 = vpop.permute.xlu0 %9184
  %vm9191 = vcmask 56320
  %v9192 = vsel %vm9191, 0.0, %v9177
  %v9193 = vsel %vm9191, 0.0, %v9179
  %v9194 = vsel %vm9191, 0.0, %v9181
  %v9195 = vsel %vm9191, 0.0, %v9183
  %v9196 = vsel %vm9191, 0.0, %v9185
  %v9197 = vld [vmem:[%s6 + $0x2] sm:$0x1]
  %v9198 = vlaneseq
  %v9199 = vshrl.u32 %v9198, 7
  %v9200 = vsub.s32 0, %v9199
  %v9201 = vrot.slane %v9197, %v9200
  %v9202 = vmul.f32 %v9192, %v9201
  %v9203 = vmul.f32 %v9193, %v9201
  %v9204 = vmul.f32 %v9194, %v9201
  %v9205 = vmul.f32 %v9195, %v9201
  %v9206 = vmul.f32 %v9196, %v9201
  %9207 = vset.pattern.permute.xlu0 2
  %9208 = vperm.xlu0 %9207, %v9025
  %v9209 = vpop.permute.xlu0 %9208
  %9211 = vset.pattern.permute.xlu0 2
  %9212 = vperm.xlu0 %9211, %v9026
  %v9213 = vpop.permute.xlu0 %9212
  %9215 = vset.pattern.permute.xlu0 2
  %9216 = vperm.xlu0 %9215, %v9027
  %v9217 = vpop.permute.xlu0 %9216
  %9219 = vset.pattern.permute.xlu0 2
  %9220 = vperm.xlu0 %9219, %v9028
  %v9221 = vpop.permute.xlu0 %9220
  %9223 = vset.pattern.permute.xlu0 2
  %9224 = vperm.xlu0 %9223, %v9029
  %v9225 = vpop.permute.xlu0 %9224
  %v9227 = vmul.f32 %v9209, %v9202
  %v9228 = vmul.f32 %v9213, %v9203
  %v9229 = vmul.f32 %v9217, %v9204
  %v9230 = vmul.f32 %v9221, %v9205
  %v9231 = vmul.f32 %v9225, %v9206
  %v9232 = vadd.f32 %v9171, %v9227
  %v9233 = vadd.f32 %v9172, %v9228
  %v9234 = vadd.f32 %v9173, %v9229
  %v9235 = vadd.f32 %v9174, %v9230
  %v9236 = vadd.f32 %v9175, %v9231
  %9237 = vrot.lane.b32.xlu0 %v9020, 1
  %v9238 = vpop.permute.xlu0 %9237
  %9239 = vrot.lane.b32.xlu0 %v9021, 1
  %v9240 = vpop.permute.xlu0 %9239
  %9241 = vrot.lane.b32.xlu0 %v9022, 1
  %v9242 = vpop.permute.xlu0 %9241
  %9243 = vrot.lane.b32.xlu0 %v9023, 1
  %v9244 = vpop.permute.xlu0 %9243
  %9245 = vrot.lane.b32.xlu0 %v9024, 1
  %v9246 = vpop.permute.xlu0 %9245
  %v9252 = vsel %vm711, 0.0, %v9238
  %v9253 = vsel %vm711, 0.0, %v9240
  %v9254 = vsel %vm711, 0.0, %v9242
  %v9255 = vsel %vm711, 0.0, %v9244
  %v9256 = vsel %vm711, 0.0, %v9246
  %v9257 = vld [vmem:[%s6 + $0x3] sm:$0x1]
  %v9258 = vlaneseq
  %v9259 = vshrl.u32 %v9258, 7
  %v9260 = vsub.s32 0, %v9259
  %v9261 = vrot.slane %v9257, %v9260
  %v9262 = vmul.f32 %v9252, %v9261
  %v9263 = vmul.f32 %v9253, %v9261
  %v9264 = vmul.f32 %v9254, %v9261
  %v9265 = vmul.f32 %v9255, %v9261
  %v9266 = vmul.f32 %v9256, %v9261
  %9267 = vset.pattern.permute.xlu0 3
  %9268 = vperm.xlu0 %9267, %v9025
  %v9269 = vpop.permute.xlu0 %9268
  %9271 = vset.pattern.permute.xlu0 3
  %9272 = vperm.xlu0 %9271, %v9026
  %v9273 = vpop.permute.xlu0 %9272
  %9275 = vset.pattern.permute.xlu0 3
  %9276 = vperm.xlu0 %9275, %v9027
  %v9277 = vpop.permute.xlu0 %9276
  %9279 = vset.pattern.permute.xlu0 3
  %9280 = vperm.xlu0 %9279, %v9028
  %v9281 = vpop.permute.xlu0 %9280
  %9283 = vset.pattern.permute.xlu0 3
  %9284 = vperm.xlu0 %9283, %v9029
  %v9285 = vpop.permute.xlu0 %9284
  %v9287 = vmul.f32 %v9269, %v9262
  %v9288 = vmul.f32 %v9273, %v9263
  %v9289 = vmul.f32 %v9277, %v9264
  %v9290 = vmul.f32 %v9281, %v9265
  %v9291 = vmul.f32 %v9285, %v9266
  %v9292 = vadd.f32 %v9232, %v9287
  %v9293 = vadd.f32 %v9233, %v9288
  %v9294 = vadd.f32 %v9234, %v9289
  %v9295 = vadd.f32 %v9235, %v9290
  %v9296 = vadd.f32 %v9236, %v9291
  %9297 = vrot.lane.b32.xlu0 %v9020, 127
  %v9298 = vpop.permute.xlu0 %9297
  %9299 = vrot.lane.b32.xlu0 %v9021, 127
  %v9300 = vpop.permute.xlu0 %9299
  %9301 = vrot.lane.b32.xlu0 %v9022, 127
  %v9302 = vpop.permute.xlu0 %9301
  %9303 = vrot.lane.b32.xlu0 %v9023, 127
  %v9304 = vpop.permute.xlu0 %9303
  %9305 = vrot.lane.b32.xlu0 %v9024, 127
  %v9306 = vpop.permute.xlu0 %9305
  %vm9312 = vcmask 515072
  %v9313 = vsel %vm9312, %v9298, 0.0
  %v9314 = vsel %vm9312, %v9300, 0.0
  %v9315 = vsel %vm9312, %v9302, 0.0
  %v9316 = vsel %vm9312, %v9304, 0.0
  %v9317 = vsel %vm9312, %v9306, 0.0
  %v9318 = vld [vmem:[%s6 + $0x5] sm:$0x1]
  %v9319 = vlaneseq
  %v9320 = vshrl.u32 %v9319, 7
  %v9321 = vsub.s32 0, %v9320
  %v9322 = vrot.slane %v9318, %v9321
  %v9323 = vmul.f32 %v9313, %v9322
  %v9324 = vmul.f32 %v9314, %v9322
  %v9325 = vmul.f32 %v9315, %v9322
  %v9326 = vmul.f32 %v9316, %v9322
  %v9327 = vmul.f32 %v9317, %v9322
  %9328 = vset.pattern.permute.xlu0 5
  %9329 = vperm.xlu0 %9328, %v9025
  %v9330 = vpop.permute.xlu0 %9329
  %9332 = vset.pattern.permute.xlu0 5
  %9333 = vperm.xlu0 %9332, %v9026
  %v9334 = vpop.permute.xlu0 %9333
  %9336 = vset.pattern.permute.xlu0 5
  %9337 = vperm.xlu0 %9336, %v9027
  %v9338 = vpop.permute.xlu0 %9337
  %9340 = vset.pattern.permute.xlu0 5
  %9341 = vperm.xlu0 %9340, %v9028
  %v9342 = vpop.permute.xlu0 %9341
  %9344 = vset.pattern.permute.xlu0 5
  %9345 = vperm.xlu0 %9344, %v9029
  %v9346 = vpop.permute.xlu0 %9345
  %v9348 = vmul.f32 %v9330, %v9323
  %v9349 = vmul.f32 %v9334, %v9324
  %v9350 = vmul.f32 %v9338, %v9325
  %v9351 = vmul.f32 %v9342, %v9326
  %v9352 = vmul.f32 %v9346, %v9327
  %v9353 = vadd.f32 %v9292, %v9348
  %v9354 = vadd.f32 %v9293, %v9349
  %v9355 = vadd.f32 %v9294, %v9350
  %v9356 = vadd.f32 %v9295, %v9351
  %v9357 = vadd.f32 %v9296, %v9352
  %9358 = vrot.lane.b32.xlu0 %v9020, 121
  %v9359 = vpop.permute.xlu0 %9358
  %9360 = vrot.lane.b32.xlu0 %v9021, 121
  %v9361 = vpop.permute.xlu0 %9360
  %9362 = vrot.lane.b32.xlu0 %v9022, 121
  %v9363 = vpop.permute.xlu0 %9362
  %9364 = vrot.lane.b32.xlu0 %v9023, 121
  %v9365 = vpop.permute.xlu0 %9364
  %9366 = vrot.lane.b32.xlu0 %v9024, 121
  %v9367 = vpop.permute.xlu0 %9366
  %vm9373 = vcmask 465920
  %v9374 = vsel %vm9373, %v9359, 0.0
  %v9375 = vsel %vm9373, %v9361, 0.0
  %v9376 = vsel %vm9373, %v9363, 0.0
  %v9377 = vsel %vm9373, %v9365, 0.0
  %v9378 = vsel %vm9373, %v9367, 0.0
  %v9379 = vld [vmem:[%s6 + $0x6] sm:$0x1]
  %v9380 = vlaneseq
  %v9381 = vshrl.u32 %v9380, 7
  %v9382 = vsub.s32 0, %v9381
  %v9383 = vrot.slane %v9379, %v9382
  %v9384 = vmul.f32 %v9374, %v9383
  %v9385 = vmul.f32 %v9375, %v9383
  %v9386 = vmul.f32 %v9376, %v9383
  %v9387 = vmul.f32 %v9377, %v9383
  %v9388 = vmul.f32 %v9378, %v9383
  %9389 = vset.pattern.permute.xlu0 6
  %9390 = vperm.xlu0 %9389, %v9025
  %v9391 = vpop.permute.xlu0 %9390
  %9393 = vset.pattern.permute.xlu0 6
  %9394 = vperm.xlu0 %9393, %v9026
  %v9395 = vpop.permute.xlu0 %9394
  %9397 = vset.pattern.permute.xlu0 6
  %9398 = vperm.xlu0 %9397, %v9027
  %v9399 = vpop.permute.xlu0 %9398
  %9401 = vset.pattern.permute.xlu0 6
  %9402 = vperm.xlu0 %9401, %v9028
  %v9403 = vpop.permute.xlu0 %9402
  %9405 = vset.pattern.permute.xlu0 6
  %9406 = vperm.xlu0 %9405, %v9029
  %v9407 = vpop.permute.xlu0 %9406
  %v9409 = vmul.f32 %v9391, %v9384
  %v9410 = vmul.f32 %v9395, %v9385
  %v9411 = vmul.f32 %v9399, %v9386
  %v9412 = vmul.f32 %v9403, %v9387
  %v9413 = vmul.f32 %v9407, %v9388
  %v9414 = vadd.f32 %v9353, %v9409
  %v9415 = vadd.f32 %v9354, %v9410
  %v9416 = vadd.f32 %v9355, %v9411
  %v9417 = vadd.f32 %v9356, %v9412
  %v9418 = vadd.f32 %v9357, %v9413
  %9419 = vrot.lane.b32.xlu0 %v9020, 120
  %v9420 = vpop.permute.xlu0 %9419
  %9421 = vrot.lane.b32.xlu0 %v9021, 120
  %v9422 = vpop.permute.xlu0 %9421
  %9423 = vrot.lane.b32.xlu0 %v9022, 120
  %v9424 = vpop.permute.xlu0 %9423
  %9425 = vrot.lane.b32.xlu0 %v9023, 120
  %v9426 = vpop.permute.xlu0 %9425
  %9427 = vrot.lane.b32.xlu0 %v9024, 120
  %v9428 = vpop.permute.xlu0 %9427
  %vm9434 = vcmask 457728
  %v9435 = vsel %vm9434, %v9420, 0.0
  %v9436 = vsel %vm9434, %v9422, 0.0
  %v9437 = vsel %vm9434, %v9424, 0.0
  %v9438 = vsel %vm9434, %v9426, 0.0
  %v9439 = vsel %vm9434, %v9428, 0.0
  %9440 = vset.pattern.permute.xlu0 7
  %9441 = vperm.xlu0 %9440, %v9025
  %v9442 = vpop.permute.xlu0 %9441
  %9444 = vset.pattern.permute.xlu0 7
  %9445 = vperm.xlu0 %9444, %v9026
  %v9446 = vpop.permute.xlu0 %9445
  %9448 = vset.pattern.permute.xlu0 7
  %9449 = vperm.xlu0 %9448, %v9027
  %v9450 = vpop.permute.xlu0 %9449
  %9452 = vset.pattern.permute.xlu0 7
  %9453 = vperm.xlu0 %9452, %v9028
  %v9454 = vpop.permute.xlu0 %9453
  %9456 = vset.pattern.permute.xlu0 7
  %9457 = vperm.xlu0 %9456, %v9029
  %v9458 = vpop.permute.xlu0 %9457
  %v9460 = vmul.f32 %v9442, %v9435
  %v9461 = vmul.f32 %v9446, %v9436
  %v9462 = vmul.f32 %v9450, %v9437
  %v9463 = vmul.f32 %v9454, %v9438
  %v9464 = vmul.f32 %v9458, %v9439
  %v9465 = vadd.f32 %v9414, %v9460
  %v9466 = vadd.f32 %v9415, %v9461
  %v9467 = vadd.f32 %v9416, %v9462
  %v9468 = vadd.f32 %v9417, %v9463
  %v9469 = vadd.f32 %v9418, %v9464
  %9470 = vrot.lane.b32.xlu0 %v9020, 119
  %v9471 = vpop.permute.xlu0 %9470
  %9472 = vrot.lane.b32.xlu0 %v9021, 119
  %v9473 = vpop.permute.xlu0 %9472
  %9474 = vrot.lane.b32.xlu0 %v9022, 119
  %v9475 = vpop.permute.xlu0 %9474
  %9476 = vrot.lane.b32.xlu0 %v9023, 119
  %v9477 = vpop.permute.xlu0 %9476
  %9478 = vrot.lane.b32.xlu0 %v9024, 119
  %v9479 = vpop.permute.xlu0 %9478
  %vm9485 = vcmask 449536
  %v9486 = vsel %vm9485, %v9471, 0.0
  %v9487 = vsel %vm9485, %v9473, 0.0
  %v9488 = vsel %vm9485, %v9475, 0.0
  %v9489 = vsel %vm9485, %v9477, 0.0
  %v9490 = vsel %vm9485, %v9479, 0.0
  %v9491 = vld [vmem:[%s6 + $0x8] sm:$0x1]
  %v9492 = vlaneseq
  %v9493 = vshrl.u32 %v9492, 7
  %v9494 = vsub.s32 0, %v9493
  %v9495 = vrot.slane %v9491, %v9494
  %v9496 = vmul.f32 %v9486, %v9495
  %v9497 = vmul.f32 %v9487, %v9495
  %v9498 = vmul.f32 %v9488, %v9495
  %v9499 = vmul.f32 %v9489, %v9495
  %v9500 = vmul.f32 %v9490, %v9495
  %9501 = vset.pattern.permute.xlu0 8
  %9502 = vperm.xlu0 %9501, %v9025
  %v9503 = vpop.permute.xlu0 %9502
  %9505 = vset.pattern.permute.xlu0 8
  %9506 = vperm.xlu0 %9505, %v9026
  %v9507 = vpop.permute.xlu0 %9506
  %9509 = vset.pattern.permute.xlu0 8
  %9510 = vperm.xlu0 %9509, %v9027
  %v9511 = vpop.permute.xlu0 %9510
  %9513 = vset.pattern.permute.xlu0 8
  %9514 = vperm.xlu0 %9513, %v9028
  %v9515 = vpop.permute.xlu0 %9514
  %9517 = vset.pattern.permute.xlu0 8
  %9518 = vperm.xlu0 %9517, %v9029
  %v9519 = vpop.permute.xlu0 %9518
  %v9521 = vmul.f32 %v9503, %v9496
  %v9522 = vmul.f32 %v9507, %v9497
  %v9523 = vmul.f32 %v9511, %v9498
  %v9524 = vmul.f32 %v9515, %v9499
  %v9525 = vmul.f32 %v9519, %v9500
  %v9526 = vadd.f32 %v9465, %v9521
  %v9527 = vadd.f32 %v9466, %v9522
  %v9528 = vadd.f32 %v9467, %v9523
  %v9529 = vadd.f32 %v9468, %v9524
  %v9530 = vadd.f32 %v9469, %v9525
  %v9531 = vld [vmem:[%s3 + $0xfe] sm:$0xff]
  %v9532 = vld [vmem:[%s3 + $0x106] sm:$0xff]
  %v9533 = vld [vmem:[%s3 + $0x10e] sm:$0xff]
  %v9534 = vld [vmem:[%s3 + $0x116] sm:$0xff]
  %v9535 = vld [vmem:[%s3 + $0x11e] sm:$0xff]
  %9537 = vset.pattern.permute.xlu0 0
  %9538 = vperm.xlu0 %9537, %v9531
  %v9539 = vpop.permute.xlu0 %9538
  %9542 = vset.pattern.permute.xlu0 0
  %9543 = vperm.xlu0 %9542, %v9532
  %v9544 = vpop.permute.xlu0 %9543
  %9547 = vset.pattern.permute.xlu0 0
  %9548 = vperm.xlu0 %9547, %v9533
  %v9549 = vpop.permute.xlu0 %9548
  %9552 = vset.pattern.permute.xlu0 0
  %9553 = vperm.xlu0 %9552, %v9534
  %v9554 = vpop.permute.xlu0 %9553
  %9557 = vset.pattern.permute.xlu0 0
  %9558 = vperm.xlu0 %9557, %v9535
  %v9559 = vpop.permute.xlu0 %9558
  %v9561 = vadd.f32 %v9526, %v9539
  %v9562 = vadd.f32 %v9527, %v9544
  %v9563 = vadd.f32 %v9528, %v9549
  %v9564 = vadd.f32 %v9529, %v9554
  %v9565 = vadd.f32 %v9530, %v9559
  %v9566 = vmul.f32 %v9561, 0.1
  %v9567 = vmul.f32 %v9562, 0.1
  %v9568 = vmul.f32 %v9563, 0.1
  %v9569 = vmul.f32 %v9564, 0.1
  %v9570 = vmul.f32 %v9565, 0.1
  %v9571 = vmax.f32 %v9561, %v9566
  %v9572 = vmax.f32 %v9562, %v9567
  %v9573 = vmax.f32 %v9563, %v9568
  %v9574 = vmax.f32 %v9564, %v9569
  %v9575 = vmax.f32 %v9565, %v9570
  %v9576 = vld [vmem:[%s1 + $0xc0] sm:$0xff]
  %v9577 = vld [vmem:[%s3 + $0x126] sm:$0xff]
  %9579 = vset.pattern.permute.xlu0 0
  %9580 = vperm.xlu0 %9579, %v9577
  %v9581 = vpop.permute.xlu0 %9580
  %vm9583 = vcmask 326656
  %v9585 = vsel %vm9583, %v9576, 0
  %9587 = vmatprep.subr.mxu0 0.0
  %9588 = vmatpush1.msra.mxu0 %v9571
  %9589 = vmatprep.subr.mxu0 0.0
  %9590 = vmatpush1.msra.mxu0 %v9572
  %9591 = vmatprep.subr.mxu0 0.0
  %9592 = vmatpush1.msra.mxu0 %v9573
  %9593 = vmatprep.subr.mxu0 0.0
  %9594 = vmatpush1.msra.mxu0 %v9574
  %9595 = vmatprep.subr.mxu0 0.0
  %9596 = vmatpush1.msra.mxu0 %v9575
  %9597 = vmatprep.subr.mxu0 0.0
  %9598 = vmatpush1.msra.mxu0 0.0
  %9599 = vmatprep.subr.mxu0 0.0
  %9600 = vmatpush1.msra.mxu0 0.0
  %9601 = vmatprep.subr.mxu0 0.0
  %9602 = vmatpush1.msra.mxu0 0.0
  %9603 = vmatprep.subr.mxu0 0.0
  %9604 = vmatpush1.msra.mxu0 0.0
  %9605 = vmatprep.subr.mxu0 0.0
  %9606 = vmatpush1.msra.mxu0 0.0
  %9607 = vmatprep.subr.mxu0 0.0
  %9608 = vmatpush1.msra.mxu0 0.0
  %9609 = vmatprep.subr.mxu0 0.0
  %9610 = vmatpush1.msra.mxu0 0.0
  %9611 = vmatprep.subr.mxu0 0.0
  %9612 = vmatpush1.msra.mxu0 0.0
  %9613 = vmatprep.subr.mxu0 0.0
  %9614 = vmatpush1.msra.mxu0 0.0
  %9615 = vmatprep.subr.mxu0 0.0
  %9616 = vmatpush1.msra.mxu0 0.0
  %9617 = vmatprep.subr.mxu0 0.0
  %9618 = vmatpush1.msra.mxu0 0.0
  %9619 = vmatprep.subr.mxu0 0.0
  %9620 = vmatpush1.msra.mxu0 0.0
  %9621 = vmatprep.subr.mxu0 0.0
  %9622 = vmatpush1.msra.mxu0 0.0
  %9623 = vmatprep.subr.mxu0 0.0
  %9624 = vmatpush1.msra.mxu0 0.0
  %9625 = vmatprep.subr.mxu0 0.0
  %9626 = vmatpush1.msra.mxu0 0.0
  %9627 = vmatprep.subr.mxu0 0.0
  %9628 = vmatpush1.msra.mxu0 0.0
  %9629 = vmatprep.subr.mxu0 0.0
  %9630 = vmatpush1.msra.mxu0 0.0
  %9631 = vmatprep.subr.mxu0 0.0
  %9632 = vmatpush1.msra.mxu0 0.0
  %9633 = vmatprep.subr.mxu0 0.0
  %9634 = vmatpush1.msra.mxu0 0.0
  %9635 = vmatprep.subr.mxu0 0.0
  %9636 = vmatpush1.msra.mxu0 0.0
  %9637 = vmatprep.subr.mxu0 0.0
  %9638 = vmatpush1.msra.mxu0 0.0
  %9639 = vmatprep.subr.mxu0 0.0
  %9640 = vmatpush1.msra.mxu0 0.0
  %9641 = vmatprep.subr.mxu0 0.0
  %9642 = vmatpush1.msra.mxu0 0.0
  %9643 = vmatprep.subr.mxu0 0.0
  %9644 = vmatpush1.msra.mxu0 0.0
  %9645 = vmatprep.subr.mxu0 0.0
  %9646 = vmatpush1.msra.mxu0 0.0
  %9647 = vmatprep.subr.mxu0 0.0
  %9648 = vmatpush1.msra.mxu0 0.0
  %9649 = vmatprep.subr.mxu0 0.0
  %9650 = vmatpush1.msra.mxu0 0.0
  %9651 = vmatprep.mubr.f32.mxu0 0.0
  %9652 = vmatmul.mubr.f32.gmra.mrb[0].mxu0 %v9585
  %v9653 = vpop.f32.mrb[0].mxu0
  %v9654 = vadd.f32 %v9581, %v9653
  %v9655 = vpop.f32.mrb[0].mxu0
  %9656 = vdwg.mxu0
  %v9657 = vadd.f32 %v9654, %v8872
  %v9658 = vld [vmem:[%s1 + $0xc8] sm:$0xff]
  %v9659 = vld [vmem:[%s1 + $0xd0] sm:$0xff]
  %v9660 = vld [vmem:[%s1 + $0xd8] sm:$0xff]
  %v9661 = vld [vmem:[%s1 + $0xe0] sm:$0xff]
  %v9662 = vld [vmem:[%s1 + $0xe8] sm:$0xff]
  %v9663 = vld [vmem:[%s3 + $0x12e] sm:$0xff]
  %v9664 = vld [vmem:[%s3 + $0x136] sm:$0xff]
  %v9665 = vld [vmem:[%s3 + $0x13e] sm:$0xff]
  %v9666 = vld [vmem:[%s3 + $0x146] sm:$0xff]
  %v9667 = vld [vmem:[%s3 + $0x14e] sm:$0xff]
  %9669 = vset.pattern.permute.xlu0 0
  %9670 = vperm.xlu0 %9669, %v9663
  %v9671 = vpop.permute.xlu0 %9670
  %9674 = vset.pattern.permute.xlu0 0
  %9675 = vperm.xlu0 %9674, %v9664
  %v9676 = vpop.permute.xlu0 %9675
  %9679 = vset.pattern.permute.xlu0 0
  %9680 = vperm.xlu0 %9679, %v9665
  %v9681 = vpop.permute.xlu0 %9680
  %9684 = vset.pattern.permute.xlu0 0
  %9685 = vperm.xlu0 %9684, %v9666
  %v9686 = vpop.permute.xlu0 %9685
  %9689 = vset.pattern.permute.xlu0 0
  %9690 = vperm.xlu0 %9689, %v9667
  %v9691 = vpop.permute.xlu0 %9690
  %v9694 = vsel %vm1209, %v9658, 0
  %v9697 = vsel %vm1209, %v9659, 0
  %v9700 = vsel %vm1209, %v9660, 0
  %v9703 = vsel %vm1209, %v9661, 0
  %v9706 = vsel %vm1209, %v9662, 0
  %9708 = vmatprep.subr.mxu0 0.0
  %9709 = vmatpush1.msra.mxu0 %v9657
  %9710 = vmatprep.subr.mxu0 0.0
  %9711 = vmatpush1.msra.mxu0 0.0
  %9712 = vmatprep.subr.mxu0 0.0
  %9713 = vmatpush1.msra.mxu0 0.0
  %9714 = vmatprep.subr.mxu0 0.0
  %9715 = vmatpush1.msra.mxu0 0.0
  %9716 = vmatprep.subr.mxu0 0.0
  %9717 = vmatpush1.msra.mxu0 0.0
  %9718 = vmatprep.subr.mxu0 0.0
  %9719 = vmatpush1.msra.mxu0 0.0
  %9720 = vmatprep.subr.mxu0 0.0
  %9721 = vmatpush1.msra.mxu0 0.0
  %9722 = vmatprep.subr.mxu0 0.0
  %9723 = vmatpush1.msra.mxu0 0.0
  %9724 = vmatprep.subr.mxu0 0.0
  %9725 = vmatpush1.msra.mxu0 0.0
  %9726 = vmatprep.subr.mxu0 0.0
  %9727 = vmatpush1.msra.mxu0 0.0
  %9728 = vmatprep.subr.mxu0 0.0
  %9729 = vmatpush1.msra.mxu0 0.0
  %9730 = vmatprep.subr.mxu0 0.0
  %9731 = vmatpush1.msra.mxu0 0.0
  %9732 = vmatprep.subr.mxu0 0.0
  %9733 = vmatpush1.msra.mxu0 0.0
  %9734 = vmatprep.subr.mxu0 0.0
  %9735 = vmatpush1.msra.mxu0 0.0
  %9736 = vmatprep.subr.mxu0 0.0
  %9737 = vmatpush1.msra.mxu0 0.0
  %9738 = vmatprep.subr.mxu0 0.0
  %9739 = vmatpush1.msra.mxu0 0.0
  %9740 = vmatprep.subr.mxu0 0.0
  %9741 = vmatpush1.msra.mxu0 0.0
  %9742 = vmatprep.subr.mxu0 0.0
  %9743 = vmatpush1.msra.mxu0 0.0
  %9744 = vmatprep.subr.mxu0 0.0
  %9745 = vmatpush1.msra.mxu0 0.0
  %9746 = vmatprep.subr.mxu0 0.0
  %9747 = vmatpush1.msra.mxu0 0.0
  %9748 = vmatprep.subr.mxu0 0.0
  %9749 = vmatpush1.msra.mxu0 0.0
  %9750 = vmatprep.subr.mxu0 0.0
  %9751 = vmatpush1.msra.mxu0 0.0
  %9752 = vmatprep.subr.mxu0 0.0
  %9753 = vmatpush1.msra.mxu0 0.0
  %9754 = vmatprep.subr.mxu0 0.0
  %9755 = vmatpush1.msra.mxu0 0.0
  %9756 = vmatprep.subr.mxu0 0.0
  %9757 = vmatpush1.msra.mxu0 0.0
  %9758 = vmatprep.subr.mxu0 0.0
  %9759 = vmatpush1.msra.mxu0 0.0
  %9760 = vmatprep.subr.mxu0 0.0
  %9761 = vmatpush1.msra.mxu0 0.0
  %9762 = vmatprep.subr.mxu0 0.0
  %9763 = vmatpush1.msra.mxu0 0.0
  %9764 = vmatprep.subr.mxu0 0.0
  %9765 = vmatpush1.msra.mxu0 0.0
  %9766 = vmatprep.subr.mxu0 0.0
  %9767 = vmatpush1.msra.mxu0 0.0
  %9768 = vmatprep.subr.mxu0 0.0
  %9769 = vmatpush1.msra.mxu0 0.0
  %9770 = vmatprep.subr.mxu0 0.0
  %9771 = vmatpush1.msra.mxu0 0.0
  %9772 = vmatprep.mubr.f32.mxu0 0.0
  %9773 = vmatmul.mubr.f32.gmra.mrb[0].mxu0 %v9694
  %v9774 = vpop.f32.mrb[0].mxu0
  %v9775 = vadd.f32 %v9671, %v9774
  %v9776 = vpop.f32.mrb[0].mxu0
  %9777 = vmatprep.mubr.f32.mxu0 0.0
  %9778 = vmatmul.mubr.f32.gmra.mrb[0].mxu0 %v9697
  %v9779 = vpop.f32.mrb[0].mxu0
  %v9780 = vadd.f32 %v9676, %v9779
  %v9781 = vpop.f32.mrb[0].mxu0
  %9782 = vmatprep.mubr.f32.mxu0 0.0
  %9783 = vmatmul.mubr.f32.gmra.mrb[0].mxu0 %v9700
  %v9784 = vpop.f32.mrb[0].mxu0
  %v9785 = vadd.f32 %v9681, %v9784
  %v9786 = vpop.f32.mrb[0].mxu0
  %9787 = vmatprep.mubr.f32.mxu0 0.0
  %9788 = vmatmul.mubr.f32.gmra.mrb[0].mxu0 %v9703
  %v9789 = vpop.f32.mrb[0].mxu0
  %v9790 = vadd.f32 %v9686, %v9789
  %v9791 = vpop.f32.mrb[0].mxu0
  %9792 = vmatprep.mubr.f32.mxu0 0.0
  %9793 = vmatmul.mubr.f32.gmra.mrb[0].mxu0 %v9706
  %v9794 = vpop.f32.mrb[0].mxu0
  %v9795 = vadd.f32 %v9691, %v9794
  %v9796 = vpop.f32.mrb[0].mxu0
  %9797 = vdwg.mxu0
  %v9798 = vmul.f32 %v9775, 0.1
  %v9799 = vmul.f32 %v9780, 0.1
  %v9800 = vmul.f32 %v9785, 0.1
  %v9801 = vmul.f32 %v9790, 0.1
  %v9802 = vmul.f32 %v9795, 0.1
  %v9803 = vmax.f32 %v9775, %v9798
  %v9804 = vmax.f32 %v9780, %v9799
  %v9805 = vmax.f32 %v9785, %v9800
  %v9806 = vmax.f32 %v9790, %v9801
  %v9807 = vmax.f32 %v9795, %v9802
  %v9808 = vld [vmem:[%s2 + $0x7e] sm:$0xff]
  %v9809 = vld [vmem:[%s2 + $0x86] sm:$0xff]
  %v9810 = vld [vmem:[%s2 + $0x8e] sm:$0xff]
  %v9811 = vld [vmem:[%s2 + $0x96] sm:$0xff]
  %v9812 = vld [vmem:[%s2 + $0x9e] sm:$0xff]
  %9814 = vset.pattern.permute.xlu0 4
  %9815 = vperm.xlu0 %9814, %v9808
  %v9816 = vpop.permute.xlu0 %9815
  %9819 = vset.pattern.permute.xlu0 4
  %9820 = vperm.xlu0 %9819, %v9809
  %v9821 = vpop.permute.xlu0 %9820
  %9824 = vset.pattern.permute.xlu0 4
  %9825 = vperm.xlu0 %9824, %v9810
  %v9826 = vpop.permute.xlu0 %9825
  %9829 = vset.pattern.permute.xlu0 4
  %9830 = vperm.xlu0 %9829, %v9811
  %v9831 = vpop.permute.xlu0 %9830
  %9834 = vset.pattern.permute.xlu0 4
  %9835 = vperm.xlu0 %9834, %v9812
  %v9836 = vpop.permute.xlu0 %9835
  %v9838 = vmul.f32 %v9816, %v9803
  %v9839 = vmul.f32 %v9821, %v9804
  %v9840 = vmul.f32 %v9826, %v9805
  %v9841 = vmul.f32 %v9831, %v9806
  %v9842 = vmul.f32 %v9836, %v9807
  %9848 = vrot.lane.b32.xlu0 %v9803, 9
  %v9849 = vpop.permute.xlu0 %9848
  %9850 = vrot.lane.b32.xlu0 %v9804, 9
  %v9851 = vpop.permute.xlu0 %9850
  %9852 = vrot.lane.b32.xlu0 %v9805, 9
  %v9853 = vpop.permute.xlu0 %9852
  %9854 = vrot.lane.b32.xlu0 %v9806, 9
  %v9855 = vpop.permute.xlu0 %9854
  %9856 = vrot.lane.b32.xlu0 %v9807, 9
  %v9857 = vpop.permute.xlu0 %9856
  %v9863 = vsel %vm9080, 0.0, %v9849
  %v9864 = vsel %vm9080, 0.0, %v9851
  %v9865 = vsel %vm9080, 0.0, %v9853
  %v9866 = vsel %vm9080, 0.0, %v9855
  %v9867 = vsel %vm9080, 0.0, %v9857
  %v9868 = vmul.f32 %v9863, %v9090
  %v9869 = vmul.f32 %v9864, %v9090
  %v9870 = vmul.f32 %v9865, %v9090
  %v9871 = vmul.f32 %v9866, %v9090
  %v9872 = vmul.f32 %v9867, %v9090
  %9873 = vset.pattern.permute.xlu0 0
  %9874 = vperm.xlu0 %9873, %v9808
  %v9875 = vpop.permute.xlu0 %9874
  %9877 = vset.pattern.permute.xlu0 0
  %9878 = vperm.xlu0 %9877, %v9809
  %v9879 = vpop.permute.xlu0 %9878
  %9881 = vset.pattern.permute.xlu0 0
  %9882 = vperm.xlu0 %9881, %v9810
  %v9883 = vpop.permute.xlu0 %9882
  %9885 = vset.pattern.permute.xlu0 0
  %9886 = vperm.xlu0 %9885, %v9811
  %v9887 = vpop.permute.xlu0 %9886
  %9889 = vset.pattern.permute.xlu0 0
  %9890 = vperm.xlu0 %9889, %v9812
  %v9891 = vpop.permute.xlu0 %9890
  %v9893 = vmul.f32 %v9875, %v9868
  %v9894 = vmul.f32 %v9879, %v9869
  %v9895 = vmul.f32 %v9883, %v9870
  %v9896 = vmul.f32 %v9887, %v9871
  %v9897 = vmul.f32 %v9891, %v9872
  %v9898 = vadd.f32 %v9838, %v9893
  %v9899 = vadd.f32 %v9839, %v9894
  %v9900 = vadd.f32 %v9840, %v9895
  %v9901 = vadd.f32 %v9841, %v9896
  %v9902 = vadd.f32 %v9842, %v9897
  %9903 = vrot.lane.b32.xlu0 %v9803, 8
  %v9904 = vpop.permute.xlu0 %9903
  %9905 = vrot.lane.b32.xlu0 %v9804, 8
  %v9906 = vpop.permute.xlu0 %9905
  %9907 = vrot.lane.b32.xlu0 %v9805, 8
  %v9908 = vpop.permute.xlu0 %9907
  %9909 = vrot.lane.b32.xlu0 %v9806, 8
  %v9910 = vpop.permute.xlu0 %9909
  %9911 = vrot.lane.b32.xlu0 %v9807, 8
  %v9912 = vpop.permute.xlu0 %9911
  %v9918 = vsel %vm1209, 0.0, %v9904
  %v9919 = vsel %vm1209, 0.0, %v9906
  %v9920 = vsel %vm1209, 0.0, %v9908
  %v9921 = vsel %vm1209, 0.0, %v9910
  %v9922 = vsel %vm1209, 0.0, %v9912
  %9923 = vset.pattern.permute.xlu0 1
  %9924 = vperm.xlu0 %9923, %v9808
  %v9925 = vpop.permute.xlu0 %9924
  %9927 = vset.pattern.permute.xlu0 1
  %9928 = vperm.xlu0 %9927, %v9809
  %v9929 = vpop.permute.xlu0 %9928
  %9931 = vset.pattern.permute.xlu0 1
  %9932 = vperm.xlu0 %9931, %v9810
  %v9933 = vpop.permute.xlu0 %9932
  %9935 = vset.pattern.permute.xlu0 1
  %9936 = vperm.xlu0 %9935, %v9811
  %v9937 = vpop.permute.xlu0 %9936
  %9939 = vset.pattern.permute.xlu0 1
  %9940 = vperm.xlu0 %9939, %v9812
  %v9941 = vpop.permute.xlu0 %9940
  %v9943 = vmul.f32 %v9925, %v9918
  %v9944 = vmul.f32 %v9929, %v9919
  %v9945 = vmul.f32 %v9933, %v9920
  %v9946 = vmul.f32 %v9937, %v9921
  %v9947 = vmul.f32 %v9941, %v9922
  %v9948 = vadd.f32 %v9898, %v9943
  %v9949 = vadd.f32 %v9899, %v9944
  %v9950 = vadd.f32 %v9900, %v9945
  %v9951 = vadd.f32 %v9901, %v9946
  %v9952 = vadd.f32 %v9902, %v9947
  %9953 = vrot.lane.b32.xlu0 %v9803, 7
  %v9954 = vpop.permute.xlu0 %9953
  %9955 = vrot.lane.b32.xlu0 %v9804, 7
  %v9956 = vpop.permute.xlu0 %9955
  %9957 = vrot.lane.b32.xlu0 %v9805, 7
  %v9958 = vpop.permute.xlu0 %9957
  %9959 = vrot.lane.b32.xlu0 %v9806, 7
  %v9960 = vpop.permute.xlu0 %9959
  %9961 = vrot.lane.b32.xlu0 %v9807, 7
  %v9962 = vpop.permute.xlu0 %9961
  %v9968 = vsel %vm9191, 0.0, %v9954
  %v9969 = vsel %vm9191, 0.0, %v9956
  %v9970 = vsel %vm9191, 0.0, %v9958
  %v9971 = vsel %vm9191, 0.0, %v9960
  %v9972 = vsel %vm9191, 0.0, %v9962
  %v9973 = vmul.f32 %v9968, %v9201
  %v9974 = vmul.f32 %v9969, %v9201
  %v9975 = vmul.f32 %v9970, %v9201
  %v9976 = vmul.f32 %v9971, %v9201
  %v9977 = vmul.f32 %v9972, %v9201
  %9978 = vset.pattern.permute.xlu0 2
  %9979 = vperm.xlu0 %9978, %v9808
  %v9980 = vpop.permute.xlu0 %9979
  %9982 = vset.pattern.permute.xlu0 2
  %9983 = vperm.xlu0 %9982, %v9809
  %v9984 = vpop.permute.xlu0 %9983
  %9986 = vset.pattern.permute.xlu0 2
  %9987 = vperm.xlu0 %9986, %v9810
  %v9988 = vpop.permute.xlu0 %9987
  %9990 = vset.pattern.permute.xlu0 2
  %9991 = vperm.xlu0 %9990, %v9811
  %v9992 = vpop.permute.xlu0 %9991
  %9994 = vset.pattern.permute.xlu0 2
  %9995 = vperm.xlu0 %9994, %v9812
  %v9996 = vpop.permute.xlu0 %9995
  %v9998 = vmul.f32 %v9980, %v9973
  %v9999 = vmul.f32 %v9984, %v9974
  %v10000 = vmul.f32 %v9988, %v9975
  %v10001 = vmul.f32 %v9992, %v9976
  %v10002 = vmul.f32 %v9996, %v9977
  %v10003 = vadd.f32 %v9948, %v9998
  %v10004 = vadd.f32 %v9949, %v9999
  %v10005 = vadd.f32 %v9950, %v10000
  %v10006 = vadd.f32 %v9951, %v10001
  %v10007 = vadd.f32 %v9952, %v10002
  %10008 = vrot.lane.b32.xlu0 %v9803, 1
  %v10009 = vpop.permute.xlu0 %10008
  %10010 = vrot.lane.b32.xlu0 %v9804, 1
  %v10011 = vpop.permute.xlu0 %10010
  %10012 = vrot.lane.b32.xlu0 %v9805, 1
  %v10013 = vpop.permute.xlu0 %10012
  %10014 = vrot.lane.b32.xlu0 %v9806, 1
  %v10015 = vpop.permute.xlu0 %10014
  %10016 = vrot.lane.b32.xlu0 %v9807, 1
  %v10017 = vpop.permute.xlu0 %10016
  %v10023 = vsel %vm711, 0.0, %v10009
  %v10024 = vsel %vm711, 0.0, %v10011
  %v10025 = vsel %vm711, 0.0, %v10013
  %v10026 = vsel %vm711, 0.0, %v10015
  %v10027 = vsel %vm711, 0.0, %v10017
  %v10028 = vmul.f32 %v10023, %v9261
  %v10029 = vmul.f32 %v10024, %v9261
  %v10030 = vmul.f32 %v10025, %v9261
  %v10031 = vmul.f32 %v10026, %v9261
  %v10032 = vmul.f32 %v10027, %v9261
  %10033 = vset.pattern.permute.xlu0 3
  %10034 = vperm.xlu0 %10033, %v9808
  %v10035 = vpop.permute.xlu0 %10034
  %10037 = vset.pattern.permute.xlu0 3
  %10038 = vperm.xlu0 %10037, %v9809
  %v10039 = vpop.permute.xlu0 %10038
  %10041 = vset.pattern.permute.xlu0 3
  %10042 = vperm.xlu0 %10041, %v9810
  %v10043 = vpop.permute.xlu0 %10042
  %10045 = vset.pattern.permute.xlu0 3
  %10046 = vperm.xlu0 %10045, %v9811
  %v10047 = vpop.permute.xlu0 %10046
  %10049 = vset.pattern.permute.xlu0 3
  %10050 = vperm.xlu0 %10049, %v9812
  %v10051 = vpop.permute.xlu0 %10050
  %v10053 = vmul.f32 %v10035, %v10028
  %v10054 = vmul.f32 %v10039, %v10029
  %v10055 = vmul.f32 %v10043, %v10030
  %v10056 = vmul.f32 %v10047, %v10031
  %v10057 = vmul.f32 %v10051, %v10032
  %v10058 = vadd.f32 %v10003, %v10053
  %v10059 = vadd.f32 %v10004, %v10054
  %v10060 = vadd.f32 %v10005, %v10055
  %v10061 = vadd.f32 %v10006, %v10056
  %v10062 = vadd.f32 %v10007, %v10057
  %10063 = vrot.lane.b32.xlu0 %v9803, 127
  %v10064 = vpop.permute.xlu0 %10063
  %10065 = vrot.lane.b32.xlu0 %v9804, 127
  %v10066 = vpop.permute.xlu0 %10065
  %10067 = vrot.lane.b32.xlu0 %v9805, 127
  %v10068 = vpop.permute.xlu0 %10067
  %10069 = vrot.lane.b32.xlu0 %v9806, 127
  %v10070 = vpop.permute.xlu0 %10069
  %10071 = vrot.lane.b32.xlu0 %v9807, 127
  %v10072 = vpop.permute.xlu0 %10071
  %v10078 = vsel %vm9312, %v10064, 0.0
  %v10079 = vsel %vm9312, %v10066, 0.0
  %v10080 = vsel %vm9312, %v10068, 0.0
  %v10081 = vsel %vm9312, %v10070, 0.0
  %v10082 = vsel %vm9312, %v10072, 0.0
  %v10083 = vmul.f32 %v10078, %v9322
  %v10084 = vmul.f32 %v10079, %v9322
  %v10085 = vmul.f32 %v10080, %v9322
  %v10086 = vmul.f32 %v10081, %v9322
  %v10087 = vmul.f32 %v10082, %v9322
  %10088 = vset.pattern.permute.xlu0 5
  %10089 = vperm.xlu0 %10088, %v9808
  %v10090 = vpop.permute.xlu0 %10089
  %10092 = vset.pattern.permute.xlu0 5
  %10093 = vperm.xlu0 %10092, %v9809
  %v10094 = vpop.permute.xlu0 %10093
  %10096 = vset.pattern.permute.xlu0 5
  %10097 = vperm.xlu0 %10096, %v9810
  %v10098 = vpop.permute.xlu0 %10097
  %10100 = vset.pattern.permute.xlu0 5
  %10101 = vperm.xlu0 %10100, %v9811
  %v10102 = vpop.permute.xlu0 %10101
  %10104 = vset.pattern.permute.xlu0 5
  %10105 = vperm.xlu0 %10104, %v9812
  %v10106 = vpop.permute.xlu0 %10105
  %v10108 = vmul.f32 %v10090, %v10083
  %v10109 = vmul.f32 %v10094, %v10084
  %v10110 = vmul.f32 %v10098, %v10085
  %v10111 = vmul.f32 %v10102, %v10086
  %v10112 = vmul.f32 %v10106, %v10087
  %v10113 = vadd.f32 %v10058, %v10108
  %v10114 = vadd.f32 %v10059, %v10109
  %v10115 = vadd.f32 %v10060, %v10110
  %v10116 = vadd.f32 %v10061, %v10111
  %v10117 = vadd.f32 %v10062, %v10112
  %10118 = vrot.lane.b32.xlu0 %v9803, 121
  %v10119 = vpop.permute.xlu0 %10118
  %10120 = vrot.lane.b32.xlu0 %v9804, 121
  %v10121 = vpop.permute.xlu0 %10120
  %10122 = vrot.lane.b32.xlu0 %v9805, 121
  %v10123 = vpop.permute.xlu0 %10122
  %10124 = vrot.lane.b32.xlu0 %v9806, 121
  %v10125 = vpop.permute.xlu0 %10124
  %10126 = vrot.lane.b32.xlu0 %v9807, 121
  %v10127 = vpop.permute.xlu0 %10126
  %v10133 = vsel %vm9373, %v10119, 0.0
  %v10134 = vsel %vm9373, %v10121, 0.0
  %v10135 = vsel %vm9373, %v10123, 0.0
  %v10136 = vsel %vm9373, %v10125, 0.0
  %v10137 = vsel %vm9373, %v10127, 0.0
  %v10138 = vmul.f32 %v10133, %v9383
  %v10139 = vmul.f32 %v10134, %v9383
  %v10140 = vmul.f32 %v10135, %v9383
  %v10141 = vmul.f32 %v10136, %v9383
  %v10142 = vmul.f32 %v10137, %v9383
  %10143 = vset.pattern.permute.xlu0 6
  %10144 = vperm.xlu0 %10143, %v9808
  %v10145 = vpop.permute.xlu0 %10144
  %10147 = vset.pattern.permute.xlu0 6
  %10148 = vperm.xlu0 %10147, %v9809
  %v10149 = vpop.permute.xlu0 %10148
  %10151 = vset.pattern.permute.xlu0 6
  %10152 = vperm.xlu0 %10151, %v9810
  %v10153 = vpop.permute.xlu0 %10152
  %10155 = vset.pattern.permute.xlu0 6
  %10156 = vperm.xlu0 %10155, %v9811
  %v10157 = vpop.permute.xlu0 %10156
  %10159 = vset.pattern.permute.xlu0 6
  %10160 = vperm.xlu0 %10159, %v9812
  %v10161 = vpop.permute.xlu0 %10160
  %v10163 = vmul.f32 %v10145, %v10138
  %v10164 = vmul.f32 %v10149, %v10139
  %v10165 = vmul.f32 %v10153, %v10140
  %v10166 = vmul.f32 %v10157, %v10141
  %v10167 = vmul.f32 %v10161, %v10142
  %v10168 = vadd.f32 %v10113, %v10163
  %v10169 = vadd.f32 %v10114, %v10164
  %v10170 = vadd.f32 %v10115, %v10165
  %v10171 = vadd.f32 %v10116, %v10166
  %v10172 = vadd.f32 %v10117, %v10167
  %10173 = vrot.lane.b32.xlu0 %v9803, 120
  %v10174 = vpop.permute.xlu0 %10173
  %10175 = vrot.lane.b32.xlu0 %v9804, 120
  %v10176 = vpop.permute.xlu0 %10175
  %10177 = vrot.lane.b32.xlu0 %v9805, 120
  %v10178 = vpop.permute.xlu0 %10177
  %10179 = vrot.lane.b32.xlu0 %v9806, 120
  %v10180 = vpop.permute.xlu0 %10179
  %10181 = vrot.lane.b32.xlu0 %v9807, 120
  %v10182 = vpop.permute.xlu0 %10181
  %v10188 = vsel %vm9434, %v10174, 0.0
  %v10189 = vsel %vm9434, %v10176, 0.0
  %v10190 = vsel %vm9434, %v10178, 0.0
  %v10191 = vsel %vm9434, %v10180, 0.0
  %v10192 = vsel %vm9434, %v10182, 0.0
  %10193 = vset.pattern.permute.xlu0 7
  %10194 = vperm.xlu0 %10193, %v9808
  %v10195 = vpop.permute.xlu0 %10194
  %10197 = vset.pattern.permute.xlu0 7
  %10198 = vperm.xlu0 %10197, %v9809
  %v10199 = vpop.permute.xlu0 %10198
  %10201 = vset.pattern.permute.xlu0 7
  %10202 = vperm.xlu0 %10201, %v9810
  %v10203 = vpop.permute.xlu0 %10202
  %10205 = vset.pattern.permute.xlu0 7
  %10206 = vperm.xlu0 %10205, %v9811
  %v10207 = vpop.permute.xlu0 %10206
  %10209 = vset.pattern.permute.xlu0 7
  %10210 = vperm.xlu0 %10209, %v9812
  %v10211 = vpop.permute.xlu0 %10210
  %v10213 = vmul.f32 %v10195, %v10188
  %v10214 = vmul.f32 %v10199, %v10189
  %v10215 = vmul.f32 %v10203, %v10190
  %v10216 = vmul.f32 %v10207, %v10191
  %v10217 = vmul.f32 %v10211, %v10192
  %v10218 = vadd.f32 %v10168, %v10213
  %v10219 = vadd.f32 %v10169, %v10214
  %v10220 = vadd.f32 %v10170, %v10215
  %v10221 = vadd.f32 %v10171, %v10216
  %v10222 = vadd.f32 %v10172, %v10217
  %10223 = vrot.lane.b32.xlu0 %v9803, 119
  %v10224 = vpop.permute.xlu0 %10223
  %10225 = vrot.lane.b32.xlu0 %v9804, 119
  %v10226 = vpop.permute.xlu0 %10225
  %10227 = vrot.lane.b32.xlu0 %v9805, 119
  %v10228 = vpop.permute.xlu0 %10227
  %10229 = vrot.lane.b32.xlu0 %v9806, 119
  %v10230 = vpop.permute.xlu0 %10229
  %10231 = vrot.lane.b32.xlu0 %v9807, 119
  %v10232 = vpop.permute.xlu0 %10231
  %v10238 = vsel %vm9485, %v10224, 0.0
  %v10239 = vsel %vm9485, %v10226, 0.0
  %v10240 = vsel %vm9485, %v10228, 0.0
  %v10241 = vsel %vm9485, %v10230, 0.0
  %v10242 = vsel %vm9485, %v10232, 0.0
  %v10243 = vmul.f32 %v10238, %v9495
  %v10244 = vmul.f32 %v10239, %v9495
  %v10245 = vmul.f32 %v10240, %v9495
  %v10246 = vmul.f32 %v10241, %v9495
  %v10247 = vmul.f32 %v10242, %v9495
  %10248 = vset.pattern.permute.xlu0 8
  %10249 = vperm.xlu0 %10248, %v9808
  %v10250 = vpop.permute.xlu0 %10249
  %10252 = vset.pattern.permute.xlu0 8
  %10253 = vperm.xlu0 %10252, %v9809
  %v10254 = vpop.permute.xlu0 %10253
  %10256 = vset.pattern.permute.xlu0 8
  %10257 = vperm.xlu0 %10256, %v9810
  %v10258 = vpop.permute.xlu0 %10257
  %10260 = vset.pattern.permute.xlu0 8
  %10261 = vperm.xlu0 %10260, %v9811
  %v10262 = vpop.permute.xlu0 %10261
  %10264 = vset.pattern.permute.xlu0 8
  %10265 = vperm.xlu0 %10264, %v9812
  %v10266 = vpop.permute.xlu0 %10265
  %v10268 = vmul.f32 %v10250, %v10243
  %v10269 = vmul.f32 %v10254, %v10244
  %v10270 = vmul.f32 %v10258, %v10245
  %v10271 = vmul.f32 %v10262, %v10246
  %v10272 = vmul.f32 %v10266, %v10247
  %v10273 = vadd.f32 %v10218, %v10268
  %v10274 = vadd.f32 %v10219, %v10269
  %v10275 = vadd.f32 %v10220, %v10270
  %v10276 = vadd.f32 %v10221, %v10271
  %v10277 = vadd.f32 %v10222, %v10272
  %v10278 = vld [vmem:[%s3 + $0x156] sm:$0xff]
  %v10279 = vld [vmem:[%s3 + $0x15e] sm:$0xff]
  %v10280 = vld [vmem:[%s3 + $0x166] sm:$0xff]
  %v10281 = vld [vmem:[%s3 + $0x16e] sm:$0xff]
  %v10282 = vld [vmem:[%s3 + $0x176] sm:$0xff]
  %10284 = vset.pattern.permute.xlu0 0
  %10285 = vperm.xlu0 %10284, %v10278
  %v10286 = vpop.permute.xlu0 %10285
  %10289 = vset.pattern.permute.xlu0 0
  %10290 = vperm.xlu0 %10289, %v10279
  %v10291 = vpop.permute.xlu0 %10290
  %10294 = vset.pattern.permute.xlu0 0
  %10295 = vperm.xlu0 %10294, %v10280
  %v10296 = vpop.permute.xlu0 %10295
  %10299 = vset.pattern.permute.xlu0 0
  %10300 = vperm.xlu0 %10299, %v10281
  %v10301 = vpop.permute.xlu0 %10300
  %10304 = vset.pattern.permute.xlu0 0
  %10305 = vperm.xlu0 %10304, %v10282
  %v10306 = vpop.permute.xlu0 %10305
  %v10308 = vadd.f32 %v10273, %v10286
  %v10309 = vadd.f32 %v10274, %v10291
  %v10310 = vadd.f32 %v10275, %v10296
  %v10311 = vadd.f32 %v10276, %v10301
  %v10312 = vadd.f32 %v10277, %v10306
  %v10313 = vmul.f32 %v10308, 0.1
  %v10314 = vmul.f32 %v10309, 0.1
  %v10315 = vmul.f32 %v10310, 0.1
  %v10316 = vmul.f32 %v10311, 0.1
  %v10317 = vmul.f32 %v10312, 0.1
  %v10318 = vmax.f32 %v10308, %v10313
  %v10319 = vmax.f32 %v10309, %v10314
  %v10320 = vmax.f32 %v10310, %v10315
  %v10321 = vmax.f32 %v10311, %v10316
  %v10322 = vmax.f32 %v10312, %v10317
  %v10323 = vld [vmem:[%s1 + $0xf0] sm:$0xff]
  %v10324 = vld [vmem:[%s3 + $0x17e] sm:$0xff]
  %10326 = vset.pattern.permute.xlu0 0
  %10327 = vperm.xlu0 %10326, %v10324
  %v10328 = vpop.permute.xlu0 %10327
  %v10331 = vsel %vm9583, %v10323, 0
  %10333 = vmatprep.subr.mxu0 0.0
  %10334 = vmatpush1.msra.mxu0 %v10318
  %10335 = vmatprep.subr.mxu0 0.0
  %10336 = vmatpush1.msra.mxu0 %v10319
  %10337 = vmatprep.subr.mxu0 0.0
  %10338 = vmatpush1.msra.mxu0 %v10320
  %10339 = vmatprep.subr.mxu0 0.0
  %10340 = vmatpush1.msra.mxu0 %v10321
  %10341 = vmatprep.subr.mxu0 0.0
  %10342 = vmatpush1.msra.mxu0 %v10322
  %10343 = vmatprep.subr.mxu0 0.0
  %10344 = vmatpush1.msra.mxu0 0.0
  %10345 = vmatprep.subr.mxu0 0.0
  %10346 = vmatpush1.msra.mxu0 0.0
  %10347 = vmatprep.subr.mxu0 0.0
  %10348 = vmatpush1.msra.mxu0 0.0
  %10349 = vmatprep.subr.mxu0 0.0
  %10350 = vmatpush1.msra.mxu0 0.0
  %10351 = vmatprep.subr.mxu0 0.0
  %10352 = vmatpush1.msra.mxu0 0.0
  %10353 = vmatprep.subr.mxu0 0.0
  %10354 = vmatpush1.msra.mxu0 0.0
  %10355 = vmatprep.subr.mxu0 0.0
  %10356 = vmatpush1.msra.mxu0 0.0
  %10357 = vmatprep.subr.mxu0 0.0
  %10358 = vmatpush1.msra.mxu0 0.0
  %10359 = vmatprep.subr.mxu0 0.0
  %10360 = vmatpush1.msra.mxu0 0.0
  %10361 = vmatprep.subr.mxu0 0.0
  %10362 = vmatpush1.msra.mxu0 0.0
  %10363 = vmatprep.subr.mxu0 0.0
  %10364 = vmatpush1.msra.mxu0 0.0
  %10365 = vmatprep.subr.mxu0 0.0
  %10366 = vmatpush1.msra.mxu0 0.0
  %10367 = vmatprep.subr.mxu0 0.0
  %10368 = vmatpush1.msra.mxu0 0.0
  %10369 = vmatprep.subr.mxu0 0.0
  %10370 = vmatpush1.msra.mxu0 0.0
  %10371 = vmatprep.subr.mxu0 0.0
  %10372 = vmatpush1.msra.mxu0 0.0
  %10373 = vmatprep.subr.mxu0 0.0
  %10374 = vmatpush1.msra.mxu0 0.0
  %10375 = vmatprep.subr.mxu0 0.0
  %10376 = vmatpush1.msra.mxu0 0.0
  %10377 = vmatprep.subr.mxu0 0.0
  %10378 = vmatpush1.msra.mxu0 0.0
  %10379 = vmatprep.subr.mxu0 0.0
  %10380 = vmatpush1.msra.mxu0 0.0
  %10381 = vmatprep.subr.mxu0 0.0
  %10382 = vmatpush1.msra.mxu0 0.0
  %10383 = vmatprep.subr.mxu0 0.0
  %10384 = vmatpush1.msra.mxu0 0.0
  %10385 = vmatprep.subr.mxu0 0.0
  %10386 = vmatpush1.msra.mxu0 0.0
  %10387 = vmatprep.subr.mxu0 0.0
  %10388 = vmatpush1.msra.mxu0 0.0
  %10389 = vmatprep.subr.mxu0 0.0
  %10390 = vmatpush1.msra.mxu0 0.0
  %10391 = vmatprep.subr.mxu0 0.0
  %10392 = vmatpush1.msra.mxu0 0.0
  %10393 = vmatprep.subr.mxu0 0.0
  %10394 = vmatpush1.msra.mxu0 0.0
  %10395 = vmatprep.subr.mxu0 0.0
  %10396 = vmatpush1.msra.mxu0 0.0
  %10397 = vmatprep.mubr.f32.mxu0 0.0
  %10398 = vmatmul.mubr.f32.gmra.mrb[0].mxu0 %v10331
  %v10399 = vpop.f32.mrb[0].mxu0
  %v10400 = vadd.f32 %v10328, %v10399
  %v10401 = vpop.f32.mrb[0].mxu0
  %10402 = vdwg.mxu0
  %v10403 = vadd.f32 %v10400, %v9657
  %v10404 = vld [vmem:[%s1 + $0xf8] sm:$0xff]
  %v10405 = vld [vmem:[%s1 + $0x100] sm:$0xff]
  %v10406 = vld [vmem:[%s1 + $0x108] sm:$0xff]
  %v10407 = vld [vmem:[%s3 + $0x186] sm:$0xff]
  %v10408 = vld [vmem:[%s3 + $0x18e] sm:$0xff]
  %v10409 = vld [vmem:[%s3 + $0x196] sm:$0xff]
  %10411 = vset.pattern.permute.xlu0 0
  %10412 = vperm.xlu0 %10411, %v10407
  %v10413 = vpop.permute.xlu0 %10412
  %10416 = vset.pattern.permute.xlu0 0
  %10417 = vperm.xlu0 %10416, %v10408
  %v10418 = vpop.permute.xlu0 %10417
  %10421 = vset.pattern.permute.xlu0 0
  %10422 = vperm.xlu0 %10421, %v10409
  %v10423 = vpop.permute.xlu0 %10422
  %v10426 = vsel %vm1209, %v10404, 0
  %v10429 = vsel %vm1209, %v10405, 0
  %v10432 = vsel %vm1209, %v10406, 0
  %10434 = vmatprep.subr.mxu0 0.0
  %10435 = vmatpush1.msra.mxu0 %v10403
  %10436 = vmatprep.subr.mxu0 0.0
  %10437 = vmatpush1.msra.mxu0 0.0
  %10438 = vmatprep.subr.mxu0 0.0
  %10439 = vmatpush1.msra.mxu0 0.0
  %10440 = vmatprep.subr.mxu0 0.0
  %10441 = vmatpush1.msra.mxu0 0.0
  %10442 = vmatprep.subr.mxu0 0.0
  %10443 = vmatpush1.msra.mxu0 0.0
  %10444 = vmatprep.subr.mxu0 0.0
  %10445 = vmatpush1.msra.mxu0 0.0
  %10446 = vmatprep.subr.mxu0 0.0
  %10447 = vmatpush1.msra.mxu0 0.0
  %10448 = vmatprep.subr.mxu0 0.0
  %10449 = vmatpush1.msra.mxu0 0.0
  %10450 = vmatprep.subr.mxu0 0.0
  %10451 = vmatpush1.msra.mxu0 0.0
  %10452 = vmatprep.subr.mxu0 0.0
  %10453 = vmatpush1.msra.mxu0 0.0
  %10454 = vmatprep.subr.mxu0 0.0
  %10455 = vmatpush1.msra.mxu0 0.0
  %10456 = vmatprep.subr.mxu0 0.0
  %10457 = vmatpush1.msra.mxu0 0.0
  %10458 = vmatprep.subr.mxu0 0.0
  %10459 = vmatpush1.msra.mxu0 0.0
  %10460 = vmatprep.subr.mxu0 0.0
  %10461 = vmatpush1.msra.mxu0 0.0
  %10462 = vmatprep.subr.mxu0 0.0
  %10463 = vmatpush1.msra.mxu0 0.0
  %10464 = vmatprep.subr.mxu0 0.0
  %10465 = vmatpush1.msra.mxu0 0.0
  %10466 = vmatprep.subr.mxu0 0.0
  %10467 = vmatpush1.msra.mxu0 0.0
  %10468 = vmatprep.subr.mxu0 0.0
  %10469 = vmatpush1.msra.mxu0 0.0
  %10470 = vmatprep.subr.mxu0 0.0
  %10471 = vmatpush1.msra.mxu0 0.0
  %10472 = vmatprep.subr.mxu0 0.0
  %10473 = vmatpush1.msra.mxu0 0.0
  %10474 = vmatprep.subr.mxu0 0.0
  %10475 = vmatpush1.msra.mxu0 0.0
  %10476 = vmatprep.subr.mxu0 0.0
  %10477 = vmatpush1.msra.mxu0 0.0
  %10478 = vmatprep.subr.mxu0 0.0
  %10479 = vmatpush1.msra.mxu0 0.0
  %10480 = vmatprep.subr.mxu0 0.0
  %10481 = vmatpush1.msra.mxu0 0.0
  %10482 = vmatprep.subr.mxu0 0.0
  %10483 = vmatpush1.msra.mxu0 0.0
  %10484 = vmatprep.subr.mxu0 0.0
  %10485 = vmatpush1.msra.mxu0 0.0
  %10486 = vmatprep.subr.mxu0 0.0
  %10487 = vmatpush1.msra.mxu0 0.0
  %10488 = vmatprep.subr.mxu0 0.0
  %10489 = vmatpush1.msra.mxu0 0.0
  %10490 = vmatprep.subr.mxu0 0.0
  %10491 = vmatpush1.msra.mxu0 0.0
  %10492 = vmatprep.subr.mxu0 0.0
  %10493 = vmatpush1.msra.mxu0 0.0
  %10494 = vmatprep.subr.mxu0 0.0
  %10495 = vmatpush1.msra.mxu0 0.0
  %10496 = vmatprep.subr.mxu0 0.0
  %10497 = vmatpush1.msra.mxu0 0.0
  %10498 = vmatprep.mubr.f32.mxu0 0.0
  %10499 = vmatmul.mubr.f32.gmra.mrb[0].mxu0 %v10426
  %v10500 = vpop.f32.mrb[0].mxu0
  %v10501 = vadd.f32 %v10413, %v10500
  %v10502 = vpop.f32.mrb[0].mxu0
  %10503 = vmatprep.mubr.f32.mxu0 0.0
  %10504 = vmatmul.mubr.f32.gmra.mrb[0].mxu0 %v10429
  %v10505 = vpop.f32.mrb[0].mxu0
  %v10506 = vadd.f32 %v10418, %v10505
  %v10507 = vpop.f32.mrb[0].mxu0
  %10508 = vmatprep.mubr.f32.mxu0 0.0
  %10509 = vmatmul.mubr.f32.gmra.mrb[0].mxu0 %v10432
  %v10510 = vpop.f32.mrb[0].mxu0
  %v10511 = vadd.f32 %v10423, %v10510
  %v10512 = vpop.f32.mrb[0].mxu0
  %10513 = vdwg.mxu0
  %v10514 = vmul.f32 %v10501, 0.1
  %v10515 = vmul.f32 %v10506, 0.1
  %v10516 = vmul.f32 %v10511, 0.1
  %v10517 = vmax.f32 %v10501, %v10514
  %v10518 = vmax.f32 %v10506, %v10515
  %v10519 = vmax.f32 %v10511, %v10516
  %v10520 = vld [vmem:[%s8] ss:$8 sm:$0x3]
  %v10522 = vlaneseq
  %v10523 = vshrl.u32 %v10522, 7
  %v10524 = vsub.s32 0, %v10523
  %v10525 = vrot.slane %v10520, %v10524
  %v10526 = vlaneseq
  %v10527 = vshrl.u32 %v10526, 7
  %v10528 = vsub.s32 1, %v10527
  %v10529 = vrot.slane %v10520, %v10528
  %v10532 = vadd.f32 %v8415, %v10525
  %v10533 = vadd.f32 %v8406, %v10529
  %v10534 = vadd.f32 %v8416, %v10525
  %v10535 = vadd.f32 %v8407, %v10529
  %v10536 = vadd.f32 %v8417, %v10525
  %v10537 = vadd.f32 %v8408, %v10529
  %s10538 = scalar_lea.vmem %s8, 1
  %v10539 = vld [vmem:[%s10538] ss:$8 sm:$0x3]
  %v10541 = vlaneseq
  %v10542 = vshrl.u32 %v10541, 7
  %v10543 = vsub.s32 0, %v10542
  %v10544 = vrot.slane %v10539, %v10543
  %v10545 = vlaneseq
  %v10546 = vshrl.u32 %v10545, 7
  %v10547 = vsub.s32 1, %v10546
  %v10548 = vrot.slane %v10539, %v10547
  %v10551 = vadd.f32 %v8202, %v10544
  %v10552 = vadd.f32 %v8203, %v10548
  %v10553 = vadd.f32 %v8204, %v10544
  %v10554 = vadd.f32 %v8205, %v10548
  %v10555 = vadd.f32 %v8206, %v10544
  %v10556 = vadd.f32 %v8207, %v10548
  %v10557 = vmax.f32 %v10532, %v10551
  %v10558 = vmax.f32 %v10533, %v10552
  %v10559 = vmax.f32 %v10534, %v10553
  %v10560 = vmax.f32 %v10535, %v10554
  %v10561 = vmax.f32 %v10536, %v10555
  %v10562 = vmax.f32 %v10537, %v10556
  %s10563 = scalar_lea.vmem %s8, 2
  %v10564 = vld [vmem:[%s10563] ss:$8 sm:$0x3]
  %v10566 = vlaneseq
  %v10567 = vshrl.u32 %v10566, 7
  %v10568 = vsub.s32 0, %v10567
  %v10569 = vrot.slane %v10564, %v10568
  %v10570 = vlaneseq
  %v10571 = vshrl.u32 %v10570, 7
  %v10572 = vsub.s32 1, %v10571
  %v10573 = vrot.slane %v10564, %v10572
  %v10576 = vadd.f32 %v8460, %v10569
  %v10577 = vadd.f32 %v8469, %v10573
  %v10578 = vadd.f32 %v8461, %v10569
  %v10579 = vadd.f32 %v8470, %v10573
  %v10580 = vadd.f32 %v8462, %v10569
  %v10581 = vadd.f32 %v8471, %v10573
  %v10582 = vmax.f32 %v10557, %v10576
  %v10583 = vmax.f32 %v10558, %v10577
  %v10584 = vmax.f32 %v10559, %v10578
  %v10585 = vmax.f32 %v10560, %v10579
  %v10586 = vmax.f32 %v10561, %v10580
  %v10587 = vmax.f32 %v10562, %v10581
  %10588 = vrot.lane.b32.xlu0 %v8202, 126
  %v10589 = vpop.permute.xlu0 %10588
  %10590 = vrot.lane.b32.xlu0 %v8203, 126
  %v10591 = vpop.permute.xlu0 %10590
  %10592 = vrot.lane.b32.xlu0 %v8204, 126
  %v10593 = vpop.permute.xlu0 %10592
  %10594 = vrot.lane.b32.xlu0 %v8205, 126
  %v10595 = vpop.permute.xlu0 %10594
  %10596 = vrot.lane.b32.xlu0 %v8206, 126
  %v10597 = vpop.permute.xlu0 %10596
  %10598 = vrot.lane.b32.xlu0 %v8207, 126
  %v10599 = vpop.permute.xlu0 %10598
  %v10600 = vsel %vm6067, %v10589, %v10591
  %v10601 = vsel %vm6067, %v10593, %v10595
  %v10602 = vsel %vm6067, %v10597, %v10599
  %v10609 = vsel %vm6067, %v10591, 0.0
  %v10610 = vsel %vm6067, %v10595, 0.0
  %v10611 = vsel %vm6067, %v10599, 0.0
  %s10612 = scalar_lea.vmem %s8, 3
  %v10613 = vld [vmem:[%s10612] ss:$8 sm:$0x3]
  %v10615 = vlaneseq
  %v10616 = vshrl.u32 %v10615, 7
  %v10617 = vsub.s32 0, %v10616
  %v10618 = vrot.slane %v10613, %v10617
  %v10619 = vlaneseq
  %v10620 = vshrl.u32 %v10619, 7
  %v10621 = vsub.s32 1, %v10620
  %v10622 = vrot.slane %v10613, %v10621
  %v10625 = vadd.f32 %v10600, %v10618
  %v10626 = vadd.f32 %v10609, %v10622
  %v10627 = vadd.f32 %v10601, %v10618
  %v10628 = vadd.f32 %v10610, %v10622
  %v10629 = vadd.f32 %v10602, %v10618
  %v10630 = vadd.f32 %v10611, %v10622
  %v10631 = vmax.f32 %v10582, %v10625
  %v10632 = vmax.f32 %v10583, %v10626
  %v10633 = vmax.f32 %v10584, %v10627
  %v10634 = vmax.f32 %v10585, %v10628
  %v10635 = vmax.f32 %v10586, %v10629
  %v10636 = vmax.f32 %v10587, %v10630
  %10643 = vrot.lane.b32.xlu0 %v10631, 16
  %v10644 = vpop.permute.xlu0 %10643
  %10645 = vrot.lane.b32.xlu0 %v10632, 16
  %v10646 = vpop.permute.xlu0 %10645
  %10647 = vrot.lane.b32.xlu0 %v10633, 16
  %v10648 = vpop.permute.xlu0 %10647
  %10649 = vrot.lane.b32.xlu0 %v10634, 16
  %v10650 = vpop.permute.xlu0 %10649
  %10651 = vrot.lane.b32.xlu0 %v10635, 16
  %v10652 = vpop.permute.xlu0 %10651
  %10653 = vrot.lane.b32.xlu0 %v10636, 16
  %v10654 = vpop.permute.xlu0 %10653
  %v10655 = vsel %vm4444, %v10644, %v10646
  %v10656 = vsel %vm4444, %v10648, %v10650
  %v10657 = vsel %vm4444, %v10652, %v10654
  %v10664 = vsel %vm4444, 0.0, %v10644
  %v10665 = vsel %vm4444, 0.0, %v10648
  %v10666 = vsel %vm4444, 0.0, %v10652
  %s10667 = scalar_lea.vmem %s8, 4
  %v10668 = vld [vmem:[%s10667] ss:$8 sm:$0x3]
  %v10670 = vlaneseq
  %v10671 = vshrl.u32 %v10670, 7
  %v10672 = vsub.s32 0, %v10671
  %v10673 = vrot.slane %v10668, %v10672
  %v10674 = vlaneseq
  %v10675 = vshrl.u32 %v10674, 7
  %v10676 = vsub.s32 1, %v10675
  %v10677 = vrot.slane %v10668, %v10676
  %v10680 = vadd.f32 %v10664, %v10673
  %v10681 = vadd.f32 %v10655, %v10677
  %v10682 = vadd.f32 %v10665, %v10673
  %v10683 = vadd.f32 %v10656, %v10677
  %v10684 = vadd.f32 %v10666, %v10673
  %v10685 = vadd.f32 %v10657, %v10677
  %s10686 = scalar_lea.vmem %s8, 5
  %v10687 = vld [vmem:[%s10686] ss:$8 sm:$0x3]
  %v10689 = vlaneseq
  %v10690 = vshrl.u32 %v10689, 7
  %v10691 = vsub.s32 0, %v10690
  %v10692 = vrot.slane %v10687, %v10691
  %v10693 = vlaneseq
  %v10694 = vshrl.u32 %v10693, 7
  %v10695 = vsub.s32 1, %v10694
  %v10696 = vrot.slane %v10687, %v10695
  %v10699 = vadd.f32 %v10631, %v10692
  %v10700 = vadd.f32 %v10632, %v10696
  %v10701 = vadd.f32 %v10633, %v10692
  %v10702 = vadd.f32 %v10634, %v10696
  %v10703 = vadd.f32 %v10635, %v10692
  %v10704 = vadd.f32 %v10636, %v10696
  %v10705 = vmax.f32 %v10680, %v10699
  %v10706 = vmax.f32 %v10681, %v10700
  %v10707 = vmax.f32 %v10682, %v10701
  %v10708 = vmax.f32 %v10683, %v10702
  %v10709 = vmax.f32 %v10684, %v10703
  %v10710 = vmax.f32 %v10685, %v10704
  %10711 = vrot.lane.b32.xlu0 %v10631, 112
  %v10712 = vpop.permute.xlu0 %10711
  %10713 = vrot.lane.b32.xlu0 %v10632, 112
  %v10714 = vpop.permute.xlu0 %10713
  %10715 = vrot.lane.b32.xlu0 %v10633, 112
  %v10716 = vpop.permute.xlu0 %10715
  %10717 = vrot.lane.b32.xlu0 %v10634, 112
  %v10718 = vpop.permute.xlu0 %10717
  %10719 = vrot.lane.b32.xlu0 %v10635, 112
  %v10720 = vpop.permute.xlu0 %10719
  %10721 = vrot.lane.b32.xlu0 %v10636, 112
  %v10722 = vpop.permute.xlu0 %10721
  %v10723 = vsel %vm4939, %v10712, %v10714
  %v10724 = vsel %vm4939, %v10716, %v10718
  %v10725 = vsel %vm4939, %v10720, %v10722
  %v10732 = vsel %vm4939, %v10714, 0.0
  %v10733 = vsel %vm4939, %v10718, 0.0
  %v10734 = vsel %vm4939, %v10722, 0.0
  %s10735 = scalar_lea.vmem %s8, 6
  %v10736 = vld [vmem:[%s10735] ss:$8 sm:$0x3]
  %v10738 = vlaneseq
  %v10739 = vshrl.u32 %v10738, 7
  %v10740 = vsub.s32 0, %v10739
  %v10741 = vrot.slane %v10736, %v10740
  %v10742 = vlaneseq
  %v10743 = vshrl.u32 %v10742, 7
  %v10744 = vsub.s32 1, %v10743
  %v10745 = vrot.slane %v10736, %v10744
  %v10748 = vadd.f32 %v10723, %v10741
  %v10749 = vadd.f32 %v10732, %v10745
  %v10750 = vadd.f32 %v10724, %v10741
  %v10751 = vadd.f32 %v10733, %v10745
  %v10752 = vadd.f32 %v10725, %v10741
  %v10753 = vadd.f32 %v10734, %v10745
  %v10754 = vmax.f32 %v10705, %v10748
  %v10755 = vmax.f32 %v10706, %v10749
  %v10756 = vmax.f32 %v10707, %v10750
  %v10757 = vmax.f32 %v10708, %v10751
  %v10758 = vmax.f32 %v10709, %v10752
  %v10759 = vmax.f32 %v10710, %v10753
  %10760 = vrot.lane.b32.xlu0 %v10631, 96
  %v10761 = vpop.permute.xlu0 %10760
  %10762 = vrot.lane.b32.xlu0 %v10632, 96
  %v10763 = vpop.permute.xlu0 %10762
  %10764 = vrot.lane.b32.xlu0 %v10633, 96
  %v10765 = vpop.permute.xlu0 %10764
  %10766 = vrot.lane.b32.xlu0 %v10634, 96
  %v10767 = vpop.permute.xlu0 %10766
  %10768 = vrot.lane.b32.xlu0 %v10635, 96
  %v10769 = vpop.permute.xlu0 %10768
  %10770 = vrot.lane.b32.xlu0 %v10636, 96
  %v10771 = vpop.permute.xlu0 %10770
  %v10772 = vsel %vm1029, %v10761, %v10763
  %v10773 = vsel %vm1029, %v10765, %v10767
  %v10774 = vsel %vm1029, %v10769, %v10771
  %v10781 = vsel %vm1029, %v10763, 0.0
  %v10782 = vsel %vm1029, %v10767, 0.0
  %v10783 = vsel %vm1029, %v10771, 0.0
  %s10784 = scalar_lea.vmem %s8, 7
  %v10785 = vld [vmem:[%s10784] ss:$8 sm:$0x3]
  %v10787 = vlaneseq
  %v10788 = vshrl.u32 %v10787, 7
  %v10789 = vsub.s32 0, %v10788
  %v10790 = vrot.slane %v10785, %v10789
  %v10791 = vlaneseq
  %v10792 = vshrl.u32 %v10791, 7
  %v10793 = vsub.s32 1, %v10792
  %v10794 = vrot.slane %v10785, %v10793
  %v10797 = vadd.f32 %v10772, %v10790
  %v10798 = vadd.f32 %v10781, %v10794
  %v10799 = vadd.f32 %v10773, %v10790
  %v10800 = vadd.f32 %v10782, %v10794
  %v10801 = vadd.f32 %v10774, %v10790
  %v10802 = vadd.f32 %v10783, %v10794
  %v10803 = vmax.f32 %v10754, %v10797
  %v10804 = vmax.f32 %v10755, %v10798
  %v10805 = vmax.f32 %v10756, %v10799
  %v10806 = vmax.f32 %v10757, %v10800
  %v10807 = vmax.f32 %v10758, %v10801
  %v10808 = vmax.f32 %v10759, %v10802
  %10809 = vmatprep.subr.mxu0 0.0
  %10810 = vmatpush1.msra.mxu0 %v8658
  %10811 = vmatprep.subr.mxu0 0.0
  %10812 = vmatpush1.msra.mxu0 %v8659
  %10813 = vmatprep.subr.mxu0 0.0
  %10814 = vmatpush1.msra.mxu0 %v8660
  %10815 = vmatprep.subr.mxu0 0.0
  %10816 = vmatpush1.msra.mxu0 %v8661
  %10817 = vmatprep.subr.mxu0 0.0
  %10818 = vmatpush1.msra.mxu0 %v8662
  %10819 = vmatprep.subr.mxu0 0.0
  %10820 = vmatpush1.msra.mxu0 %v8663
  %10821 = vmatprep.subr.mxu0 0.0
  %10822 = vmatpush1.msra.mxu0 %v8664
  %10823 = vmatprep.subr.mxu0 0.0
  %10824 = vmatpush1.msra.mxu0 %v8665
  %10825 = vmatprep.subr.mxu0 0.0
  %10826 = vmatpush1.msra.mxu0 %v8666
  %10827 = vmatprep.subr.mxu0 0.0
  %10828 = vmatpush1.msra.mxu0 %v8667
  %10829 = vmatprep.subr.mxu0 0.0
  %10830 = vmatpush1.msra.mxu0 %v8668
  %10831 = vmatprep.subr.mxu0 0.0
  %10832 = vmatpush1.msra.mxu0 %v8669
  %10833 = vmatprep.subr.mxu0 0.0
  %10834 = vmatpush1.msra.mxu0 %v8670
  %10835 = vmatprep.subr.mxu0 0.0
  %10836 = vmatpush1.msra.mxu0 %v8671
  %10837 = vmatprep.subr.mxu0 0.0
  %10838 = vmatpush1.msra.mxu0 %v8672
  %10839 = vmatprep.subr.mxu0 0.0
  %10840 = vmatpush1.msra.mxu0 %v8673
  %10841 = vmatprep.subr.mxu0 0.0
  %10842 = vmatpush1.msra.mxu0 %v8674
  %10843 = vmatprep.subr.mxu0 0.0
  %10844 = vmatpush1.msra.mxu0 %v8675
  %10845 = vmatprep.subr.mxu0 0.0
  %10846 = vmatpush1.msra.mxu0 %v8676
  %10847 = vmatprep.subr.mxu0 0.0
  %10848 = vmatpush1.msra.mxu0 %v8677
  %10849 = vmatprep.subr.mxu0 0.0
  %10850 = vmatpush1.msra.mxu0 %v8678
  %10851 = vmatprep.subr.mxu0 0.0
  %10852 = vmatpush1.msra.mxu0 %v8679
  %10853 = vmatprep.subr.mxu0 0.0
  %10854 = vmatpush1.msra.mxu0 %v8680
  %10855 = vmatprep.subr.mxu0 0.0
  %10856 = vmatpush1.msra.mxu0 %v8681
  %10857 = vmatprep.subr.mxu0 0.0
  %10858 = vmatpush1.msra.mxu0 %v8682
  %10859 = vmatprep.subr.mxu0 0.0
  %10860 = vmatpush1.msra.mxu0 %v8683
  %10861 = vmatprep.subr.mxu0 0.0
  %10862 = vmatpush1.msra.mxu0 %v8684
  %10863 = vmatprep.subr.mxu0 0.0
  %10864 = vmatpush1.msra.mxu0 %v8685
  %10865 = vmatprep.subr.mxu0 0.0
  %10866 = vmatpush1.msra.mxu0 %v8686
  %10867 = vmatprep.subr.mxu0 0.0
  %10868 = vmatpush1.msra.mxu0 %v8687
  %10869 = vmatprep.subr.mxu0 0.0
  %10870 = vmatpush1.msra.mxu0 %v8688
  %10871 = vmatprep.subr.mxu0 0.0
  %10872 = vmatpush1.msra.mxu0 %v8689
  %10873 = vmatprep.mubr.f32.mxu0 %v10804
  %10874 = vmatmul.mubr.f32.gmra.mrb[0].mxu0 %v10803
  %v10875 = vpop.f32.mrb[0].mxu0
  %v10876 = vadd.f32 0.0, %v10875
  %v10877 = vpop.f32.mrb[0].mxu0
  %10878 = vmatprep.mubr.f32.mxu0 %v10806
  %10879 = vmatmul.mubr.f32.gmra.mrb[0].mxu0 %v10805
  %v10880 = vpop.f32.mrb[0].mxu0
  %v10881 = vadd.f32 0.0, %v10880
  %v10882 = vpop.f32.mrb[0].mxu0
  %10883 = vmatprep.mubr.f32.mxu0 %v10808
  %10884 = vmatmul.mubr.f32.gmra.mrb[0].mxu0 %v10807
  %v10885 = vpop.f32.mrb[0].mxu0
  %v10886 = vadd.f32 0.0, %v10885
  %v10887 = vpop.f32.mrb[0].mxu0
  %10888 = vdwg.mxu0
  %v10889 = vld [vmem:[%s1 + $0x110] sm:$0xff]
  %v10890 = vld [vmem:[%s1 + $0x118] sm:$0xff]
  %v10891 = vld [vmem:[%s1 + $0x120] sm:$0xff]
  %v10892 = vld [vmem:[%s1 + $0x128] sm:$0xff]
  %v10893 = vld [vmem:[%s1 + $0x130] sm:$0xff]
  %v10894 = vld [vmem:[%s1 + $0x138] sm:$0xff]
  %v10895 = vld [vmem:[%s1 + $0x140] sm:$0xff]
  %v10896 = vld [vmem:[%s1 + $0x148] sm:$0xff]
  %v10897 = vld [vmem:[%s1 + $0x150] sm:$0xff]
  %v10898 = vld [vmem:[%s1 + $0x158] sm:$0xff]
  %v10900 = vsel %vm8801, %v10894, 0
  %v10903 = vsel %vm8801, %v10895, 0
  %v10906 = vsel %vm8801, %v10896, 0
  %v10909 = vsel %vm8801, %v10897, 0
  %v10912 = vsel %vm8801, %v10898, 0
  %10914 = vmatprep.subr.mxu0 0.0
  %10915 = vmatpush1.msra.mxu0 %v10517
  %10916 = vmatprep.subr.mxu0 0.0
  %10917 = vmatpush1.msra.mxu0 %v10518
  %10918 = vmatprep.subr.mxu0 0.0
  %10919 = vmatpush1.msra.mxu0 %v10519
  %10920 = vmatprep.subr.mxu0 0.0
  %10921 = vmatpush1.msra.mxu0 0.0
  %10922 = vmatprep.subr.mxu0 0.0
  %10923 = vmatpush1.msra.mxu0 0.0
  %10924 = vmatprep.subr.mxu0 0.0
  %10925 = vmatpush1.msra.mxu0 0.0
  %10926 = vmatprep.subr.mxu0 0.0
  %10927 = vmatpush1.msra.mxu0 0.0
  %10928 = vmatprep.subr.mxu0 0.0
  %10929 = vmatpush1.msra.mxu0 0.0
  %10930 = vmatprep.subr.mxu0 0.0
  %10931 = vmatpush1.msra.mxu0 0.0
  %10932 = vmatprep.subr.mxu0 0.0
  %10933 = vmatpush1.msra.mxu0 0.0
  %10934 = vmatprep.subr.mxu0 0.0
  %10935 = vmatpush1.msra.mxu0 0.0
  %10936 = vmatprep.subr.mxu0 0.0
  %10937 = vmatpush1.msra.mxu0 0.0
  %10938 = vmatprep.subr.mxu0 0.0
  %10939 = vmatpush1.msra.mxu0 0.0
  %10940 = vmatprep.subr.mxu0 0.0
  %10941 = vmatpush1.msra.mxu0 0.0
  %10942 = vmatprep.subr.mxu0 0.0
  %10943 = vmatpush1.msra.mxu0 0.0
  %10944 = vmatprep.subr.mxu0 0.0
  %10945 = vmatpush1.msra.mxu0 0.0
  %10946 = vmatprep.subr.mxu0 0.0
  %10947 = vmatpush1.msra.mxu0 0.0
  %10948 = vmatprep.subr.mxu0 0.0
  %10949 = vmatpush1.msra.mxu0 0.0
  %10950 = vmatprep.subr.mxu0 0.0
  %10951 = vmatpush1.msra.mxu0 0.0
  %10952 = vmatprep.subr.mxu0 0.0
  %10953 = vmatpush1.msra.mxu0 0.0
  %10954 = vmatprep.subr.mxu0 0.0
  %10955 = vmatpush1.msra.mxu0 0.0
  %10956 = vmatprep.subr.mxu0 0.0
  %10957 = vmatpush1.msra.mxu0 0.0
  %10958 = vmatprep.subr.mxu0 0.0
  %10959 = vmatpush1.msra.mxu0 0.0
  %10960 = vmatprep.subr.mxu0 0.0
  %10961 = vmatpush1.msra.mxu0 0.0
  %10962 = vmatprep.subr.mxu0 0.0
  %10963 = vmatpush1.msra.mxu0 0.0
  %10964 = vmatprep.subr.mxu0 0.0
  %10965 = vmatpush1.msra.mxu0 0.0
  %10966 = vmatprep.subr.mxu0 0.0
  %10967 = vmatpush1.msra.mxu0 0.0
  %10968 = vmatprep.subr.mxu0 0.0
  %10969 = vmatpush1.msra.mxu0 0.0
  %10970 = vmatprep.subr.mxu0 0.0
  %10971 = vmatpush1.msra.mxu0 0.0
  %10972 = vmatprep.subr.mxu0 0.0
  %10973 = vmatpush1.msra.mxu0 0.0
  %10974 = vmatprep.subr.mxu0 0.0
  %10975 = vmatpush1.msra.mxu0 0.0
  %10976 = vmatprep.subr.mxu0 0.0
  %10977 = vmatpush1.msra.mxu0 0.0
  %10978 = vmatprep.mubr.f32.mxu0 0.0
  %10979 = vmatmul.mubr.f32.gmra.mrb[0].mxu0 %v10900
  %v10980 = vpop.f32.mrb[0].mxu0
  %v10981 = vadd.f32 0.0, %v10980
  %v10982 = vpop.f32.mrb[0].mxu0
  %10983 = vmatprep.mubr.f32.mxu0 0.0
  %10984 = vmatmul.mubr.f32.gmra.mrb[0].mxu0 %v10903
  %v10985 = vpop.f32.mrb[0].mxu0
  %v10986 = vadd.f32 0.0, %v10985
  %v10987 = vpop.f32.mrb[0].mxu0
  %10988 = vmatprep.mubr.f32.mxu0 0.0
  %10989 = vmatmul.mubr.f32.gmra.mrb[0].mxu0 %v10906
  %v10990 = vpop.f32.mrb[0].mxu0
  %v10991 = vadd.f32 0.0, %v10990
  %v10992 = vpop.f32.mrb[0].mxu0
  %10993 = vmatprep.mubr.f32.mxu0 0.0
  %10994 = vmatmul.mubr.f32.gmra.mrb[0].mxu0 %v10909
  %v10995 = vpop.f32.mrb[0].mxu0
  %v10996 = vadd.f32 0.0, %v10995
  %v10997 = vpop.f32.mrb[0].mxu0
  %10998 = vmatprep.mubr.f32.mxu0 0.0
  %10999 = vmatmul.mubr.f32.gmra.mrb[0].mxu0 %v10912
  %v11000 = vpop.f32.mrb[0].mxu0
  %v11001 = vadd.f32 0.0, %v11000
  %v11002 = vpop.f32.mrb[0].mxu0
  %11003 = vdwg.mxu0
  %v11005 = vsel %vm8801, %v10889, 0
  %v11008 = vsel %vm8801, %v10890, 0
  %v11011 = vsel %vm8801, %v10891, 0
  %v11014 = vsel %vm8801, %v10892, 0
  %v11017 = vsel %vm8801, %v10893, 0
  %11019 = vmatprep.subr.mxu0 0.0
  %11020 = vmatpush1.msra.mxu0 %v10876
  %11021 = vmatprep.subr.mxu0 0.0
  %11022 = vmatpush1.msra.mxu0 %v10881
  %11023 = vmatprep.subr.mxu0 0.0
  %11024 = vmatpush1.msra.mxu0 %v10886
  %11025 = vmatprep.subr.mxu0 0.0
  %11026 = vmatpush1.msra.mxu0 0.0
  %11027 = vmatprep.subr.mxu0 0.0
  %11028 = vmatpush1.msra.mxu0 0.0
  %11029 = vmatprep.subr.mxu0 0.0
  %11030 = vmatpush1.msra.mxu0 0.0
  %11031 = vmatprep.subr.mxu0 0.0
  %11032 = vmatpush1.msra.mxu0 0.0
  %11033 = vmatprep.subr.mxu0 0.0
  %11034 = vmatpush1.msra.mxu0 0.0
  %11035 = vmatprep.subr.mxu0 0.0
  %11036 = vmatpush1.msra.mxu0 0.0
  %11037 = vmatprep.subr.mxu0 0.0
  %11038 = vmatpush1.msra.mxu0 0.0
  %11039 = vmatprep.subr.mxu0 0.0
  %11040 = vmatpush1.msra.mxu0 0.0
  %11041 = vmatprep.subr.mxu0 0.0
  %11042 = vmatpush1.msra.mxu0 0.0
  %11043 = vmatprep.subr.mxu0 0.0
  %11044 = vmatpush1.msra.mxu0 0.0
  %11045 = vmatprep.subr.mxu0 0.0
  %11046 = vmatpush1.msra.mxu0 0.0
  %11047 = vmatprep.subr.mxu0 0.0
  %11048 = vmatpush1.msra.mxu0 0.0
  %11049 = vmatprep.subr.mxu0 0.0
  %11050 = vmatpush1.msra.mxu0 0.0
  %11051 = vmatprep.subr.mxu0 0.0
  %11052 = vmatpush1.msra.mxu0 0.0
  %11053 = vmatprep.subr.mxu0 0.0
  %11054 = vmatpush1.msra.mxu0 0.0
  %11055 = vmatprep.subr.mxu0 0.0
  %11056 = vmatpush1.msra.mxu0 0.0
  %11057 = vmatprep.subr.mxu0 0.0
  %11058 = vmatpush1.msra.mxu0 0.0
  %11059 = vmatprep.subr.mxu0 0.0
  %11060 = vmatpush1.msra.mxu0 0.0
  %11061 = vmatprep.subr.mxu0 0.0
  %11062 = vmatpush1.msra.mxu0 0.0
  %11063 = vmatprep.subr.mxu0 0.0
  %11064 = vmatpush1.msra.mxu0 0.0
  %11065 = vmatprep.subr.mxu0 0.0
  %11066 = vmatpush1.msra.mxu0 0.0
  %11067 = vmatprep.subr.mxu0 0.0
  %11068 = vmatpush1.msra.mxu0 0.0
  %11069 = vmatprep.subr.mxu0 0.0
  %11070 = vmatpush1.msra.mxu0 0.0
  %11071 = vmatprep.subr.mxu0 0.0
  %11072 = vmatpush1.msra.mxu0 0.0
  %11073 = vmatprep.subr.mxu0 0.0
  %11074 = vmatpush1.msra.mxu0 0.0
  %11075 = vmatprep.subr.mxu0 0.0
  %11076 = vmatpush1.msra.mxu0 0.0
  %11077 = vmatprep.subr.mxu0 0.0
  %11078 = vmatpush1.msra.mxu0 0.0
  %11079 = vmatprep.subr.mxu0 0.0
  %11080 = vmatpush1.msra.mxu0 0.0
  %11081 = vmatprep.subr.mxu0 0.0
  %11082 = vmatpush1.msra.mxu0 0.0
  %11083 = vmatprep.mubr.f32.mxu0 0.0
  %11084 = vmatmul.mubr.f32.gmra.mrb[0].mxu0 %v11005
  %v11085 = vpop.f32.mrb[0].mxu0
  %v11086 = vadd.f32 %v10981, %v11085
  %v11087 = vpop.f32.mrb[0].mxu0
  %11088 = vmatprep.mubr.f32.mxu0 0.0
  %11089 = vmatmul.mubr.f32.gmra.mrb[0].mxu0 %v11008
  %v11090 = vpop.f32.mrb[0].mxu0
  %v11091 = vadd.f32 %v10986, %v11090
  %v11092 = vpop.f32.mrb[0].mxu0
  %11093 = vmatprep.mubr.f32.mxu0 0.0
  %11094 = vmatmul.mubr.f32.gmra.mrb[0].mxu0 %v11011
  %v11095 = vpop.f32.mrb[0].mxu0
  %v11096 = vadd.f32 %v10991, %v11095
  %v11097 = vpop.f32.mrb[0].mxu0
  %11098 = vmatprep.mubr.f32.mxu0 0.0
  %11099 = vmatmul.mubr.f32.gmra.mrb[0].mxu0 %v11014
  %v11100 = vpop.f32.mrb[0].mxu0
  %v11101 = vadd.f32 %v10996, %v11100
  %v11102 = vpop.f32.mrb[0].mxu0
  %11103 = vmatprep.mubr.f32.mxu0 0.0
  %11104 = vmatmul.mubr.f32.gmra.mrb[0].mxu0 %v11017
  %v11105 = vpop.f32.mrb[0].mxu0
  %v11106 = vadd.f32 %v11001, %v11105
  %v11107 = vpop.f32.mrb[0].mxu0
  %11108 = vdwg.mxu0
  %v11109 = vld [vmem:[%s3 + $0x19e] sm:$0xff]
  %v11110 = vld [vmem:[%s3 + $0x1a6] sm:$0xff]
  %v11111 = vld [vmem:[%s3 + $0x1ae] sm:$0xff]
  %v11112 = vld [vmem:[%s3 + $0x1b6] sm:$0xff]
  %v11113 = vld [vmem:[%s3 + $0x1be] sm:$0xff]
  %11115 = vset.pattern.permute.xlu0 0
  %11116 = vperm.xlu0 %11115, %v11109
  %v11117 = vpop.permute.xlu0 %11116
  %11120 = vset.pattern.permute.xlu0 0
  %11121 = vperm.xlu0 %11120, %v11110
  %v11122 = vpop.permute.xlu0 %11121
  %11125 = vset.pattern.permute.xlu0 0
  %11126 = vperm.xlu0 %11125, %v11111
  %v11127 = vpop.permute.xlu0 %11126
  %11130 = vset.pattern.permute.xlu0 0
  %11131 = vperm.xlu0 %11130, %v11112
  %v11132 = vpop.permute.xlu0 %11131
  %11135 = vset.pattern.permute.xlu0 0
  %11136 = vperm.xlu0 %11135, %v11113
  %v11137 = vpop.permute.xlu0 %11136
  %v11139 = vadd.f32 %v11086, %v11117
  %v11140 = vadd.f32 %v11091, %v11122
  %v11141 = vadd.f32 %v11096, %v11127
  %v11142 = vadd.f32 %v11101, %v11132
  %v11143 = vadd.f32 %v11106, %v11137
  %v11144 = vmul.f32 %v11139, 0.1
  %v11145 = vmul.f32 %v11140, 0.1
  %v11146 = vmul.f32 %v11141, 0.1
  %v11147 = vmul.f32 %v11142, 0.1
  %v11148 = vmul.f32 %v11143, 0.1
  %v11149 = vmax.f32 %v11139, %v11144
  %v11150 = vmax.f32 %v11140, %v11145
  %v11151 = vmax.f32 %v11141, %v11146
  %v11152 = vmax.f32 %v11142, %v11147
  %v11153 = vmax.f32 %v11143, %v11148
  %v11154 = vld [vmem:[%s2 + $0xa6] sm:$0xff]
  %v11155 = vld [vmem:[%s2 + $0xae] sm:$0xff]
  %v11156 = vld [vmem:[%s2 + $0xb6] sm:$0xff]
  %v11157 = vld [vmem:[%s2 + $0xbe] sm:$0xff]
  %v11158 = vld [vmem:[%s2 + $0xc6] sm:$0xff]
  %11160 = vset.pattern.permute.xlu0 4
  %11161 = vperm.xlu0 %11160, %v11154
  %v11162 = vpop.permute.xlu0 %11161
  %11165 = vset.pattern.permute.xlu0 4
  %11166 = vperm.xlu0 %11165, %v11155
  %v11167 = vpop.permute.xlu0 %11166
  %11170 = vset.pattern.permute.xlu0 4
  %11171 = vperm.xlu0 %11170, %v11156
  %v11172 = vpop.permute.xlu0 %11171
  %11175 = vset.pattern.permute.xlu0 4
  %11176 = vperm.xlu0 %11175, %v11157
  %v11177 = vpop.permute.xlu0 %11176
  %11180 = vset.pattern.permute.xlu0 4
  %11181 = vperm.xlu0 %11180, %v11158
  %v11182 = vpop.permute.xlu0 %11181
  %v11184 = vmul.f32 %v11162, %v11149
  %v11185 = vmul.f32 %v11167, %v11150
  %v11186 = vmul.f32 %v11172, %v11151
  %v11187 = vmul.f32 %v11177, %v11152
  %v11188 = vmul.f32 %v11182, %v11153
  %11194 = vrot.lane.b32.xlu0 %v11149, 9
  %v11195 = vpop.permute.xlu0 %11194
  %11196 = vrot.lane.b32.xlu0 %v11150, 9
  %v11197 = vpop.permute.xlu0 %11196
  %11198 = vrot.lane.b32.xlu0 %v11151, 9
  %v11199 = vpop.permute.xlu0 %11198
  %11200 = vrot.lane.b32.xlu0 %v11152, 9
  %v11201 = vpop.permute.xlu0 %11200
  %11202 = vrot.lane.b32.xlu0 %v11153, 9
  %v11203 = vpop.permute.xlu0 %11202
  %v11209 = vsel %vm9080, 0.0, %v11195
  %v11210 = vsel %vm9080, 0.0, %v11197
  %v11211 = vsel %vm9080, 0.0, %v11199
  %v11212 = vsel %vm9080, 0.0, %v11201
  %v11213 = vsel %vm9080, 0.0, %v11203
  %v11214 = vmul.f32 %v11209, %v9090
  %v11215 = vmul.f32 %v11210, %v9090
  %v11216 = vmul.f32 %v11211, %v9090
  %v11217 = vmul.f32 %v11212, %v9090
  %v11218 = vmul.f32 %v11213, %v9090
  %11219 = vset.pattern.permute.xlu0 0
  %11220 = vperm.xlu0 %11219, %v11154
  %v11221 = vpop.permute.xlu0 %11220
  %11223 = vset.pattern.permute.xlu0 0
  %11224 = vperm.xlu0 %11223, %v11155
  %v11225 = vpop.permute.xlu0 %11224
  %11227 = vset.pattern.permute.xlu0 0
  %11228 = vperm.xlu0 %11227, %v11156
  %v11229 = vpop.permute.xlu0 %11228
  %11231 = vset.pattern.permute.xlu0 0
  %11232 = vperm.xlu0 %11231, %v11157
  %v11233 = vpop.permute.xlu0 %11232
  %11235 = vset.pattern.permute.xlu0 0
  %11236 = vperm.xlu0 %11235, %v11158
  %v11237 = vpop.permute.xlu0 %11236
  %v11239 = vmul.f32 %v11221, %v11214
  %v11240 = vmul.f32 %v11225, %v11215
  %v11241 = vmul.f32 %v11229, %v11216
  %v11242 = vmul.f32 %v11233, %v11217
  %v11243 = vmul.f32 %v11237, %v11218
  %v11244 = vadd.f32 %v11184, %v11239
  %v11245 = vadd.f32 %v11185, %v11240
  %v11246 = vadd.f32 %v11186, %v11241
  %v11247 = vadd.f32 %v11187, %v11242
  %v11248 = vadd.f32 %v11188, %v11243
  %11249 = vrot.lane.b32.xlu0 %v11149, 8
  %v11250 = vpop.permute.xlu0 %11249
  %11251 = vrot.lane.b32.xlu0 %v11150, 8
  %v11252 = vpop.permute.xlu0 %11251
  %11253 = vrot.lane.b32.xlu0 %v11151, 8
  %v11254 = vpop.permute.xlu0 %11253
  %11255 = vrot.lane.b32.xlu0 %v11152, 8
  %v11256 = vpop.permute.xlu0 %11255
  %11257 = vrot.lane.b32.xlu0 %v11153, 8
  %v11258 = vpop.permute.xlu0 %11257
  %v11264 = vsel %vm1209, 0.0, %v11250
  %v11265 = vsel %vm1209, 0.0, %v11252
  %v11266 = vsel %vm1209, 0.0, %v11254
  %v11267 = vsel %vm1209, 0.0, %v11256
  %v11268 = vsel %vm1209, 0.0, %v11258
  %11269 = vset.pattern.permute.xlu0 1
  %11270 = vperm.xlu0 %11269, %v11154
  %v11271 = vpop.permute.xlu0 %11270
  %11273 = vset.pattern.permute.xlu0 1
  %11274 = vperm.xlu0 %11273, %v11155
  %v11275 = vpop.permute.xlu0 %11274
  %11277 = vset.pattern.permute.xlu0 1
  %11278 = vperm.xlu0 %11277, %v11156
  %v11279 = vpop.permute.xlu0 %11278
  %11281 = vset.pattern.permute.xlu0 1
  %11282 = vperm.xlu0 %11281, %v11157
  %v11283 = vpop.permute.xlu0 %11282
  %11285 = vset.pattern.permute.xlu0 1
  %11286 = vperm.xlu0 %11285, %v11158
  %v11287 = vpop.permute.xlu0 %11286
  %v11289 = vmul.f32 %v11271, %v11264
  %v11290 = vmul.f32 %v11275, %v11265
  %v11291 = vmul.f32 %v11279, %v11266
  %v11292 = vmul.f32 %v11283, %v11267
  %v11293 = vmul.f32 %v11287, %v11268
  %v11294 = vadd.f32 %v11244, %v11289
  %v11295 = vadd.f32 %v11245, %v11290
  %v11296 = vadd.f32 %v11246, %v11291
  %v11297 = vadd.f32 %v11247, %v11292
  %v11298 = vadd.f32 %v11248, %v11293
  %11299 = vrot.lane.b32.xlu0 %v11149, 7
  %v11300 = vpop.permute.xlu0 %11299
  %11301 = vrot.lane.b32.xlu0 %v11150, 7
  %v11302 = vpop.permute.xlu0 %11301
  %11303 = vrot.lane.b32.xlu0 %v11151, 7
  %v11304 = vpop.permute.xlu0 %11303
  %11305 = vrot.lane.b32.xlu0 %v11152, 7
  %v11306 = vpop.permute.xlu0 %11305
  %11307 = vrot.lane.b32.xlu0 %v11153, 7
  %v11308 = vpop.permute.xlu0 %11307
  %v11314 = vsel %vm9191, 0.0, %v11300
  %v11315 = vsel %vm9191, 0.0, %v11302
  %v11316 = vsel %vm9191, 0.0, %v11304
  %v11317 = vsel %vm9191, 0.0, %v11306
  %v11318 = vsel %vm9191, 0.0, %v11308
  %v11319 = vmul.f32 %v11314, %v9201
  %v11320 = vmul.f32 %v11315, %v9201
  %v11321 = vmul.f32 %v11316, %v9201
  %v11322 = vmul.f32 %v11317, %v9201
  %v11323 = vmul.f32 %v11318, %v9201
  %11324 = vset.pattern.permute.xlu0 2
  %11325 = vperm.xlu0 %11324, %v11154
  %v11326 = vpop.permute.xlu0 %11325
  %11328 = vset.pattern.permute.xlu0 2
  %11329 = vperm.xlu0 %11328, %v11155
  %v11330 = vpop.permute.xlu0 %11329
  %11332 = vset.pattern.permute.xlu0 2
  %11333 = vperm.xlu0 %11332, %v11156
  %v11334 = vpop.permute.xlu0 %11333
  %11336 = vset.pattern.permute.xlu0 2
  %11337 = vperm.xlu0 %11336, %v11157
  %v11338 = vpop.permute.xlu0 %11337
  %11340 = vset.pattern.permute.xlu0 2
  %11341 = vperm.xlu0 %11340, %v11158
  %v11342 = vpop.permute.xlu0 %11341
  %v11344 = vmul.f32 %v11326, %v11319
  %v11345 = vmul.f32 %v11330, %v11320
  %v11346 = vmul.f32 %v11334, %v11321
  %v11347 = vmul.f32 %v11338, %v11322
  %v11348 = vmul.f32 %v11342, %v11323
  %v11349 = vadd.f32 %v11294, %v11344
  %v11350 = vadd.f32 %v11295, %v11345
  %v11351 = vadd.f32 %v11296, %v11346
  %v11352 = vadd.f32 %v11297, %v11347
  %v11353 = vadd.f32 %v11298, %v11348
  %11354 = vrot.lane.b32.xlu0 %v11149, 1
  %v11355 = vpop.permute.xlu0 %11354
  %11356 = vrot.lane.b32.xlu0 %v11150, 1
  %v11357 = vpop.permute.xlu0 %11356
  %11358 = vrot.lane.b32.xlu0 %v11151, 1
  %v11359 = vpop.permute.xlu0 %11358
  %11360 = vrot.lane.b32.xlu0 %v11152, 1
  %v11361 = vpop.permute.xlu0 %11360
  %11362 = vrot.lane.b32.xlu0 %v11153, 1
  %v11363 = vpop.permute.xlu0 %11362
  %v11369 = vsel %vm711, 0.0, %v11355
  %v11370 = vsel %vm711, 0.0, %v11357
  %v11371 = vsel %vm711, 0.0, %v11359
  %v11372 = vsel %vm711, 0.0, %v11361
  %v11373 = vsel %vm711, 0.0, %v11363
  %v11374 = vmul.f32 %v11369, %v9261
  %v11375 = vmul.f32 %v11370, %v9261
  %v11376 = vmul.f32 %v11371, %v9261
  %v11377 = vmul.f32 %v11372, %v9261
  %v11378 = vmul.f32 %v11373, %v9261
  %11379 = vset.pattern.permute.xlu0 3
  %11380 = vperm.xlu0 %11379, %v11154
  %v11381 = vpop.permute.xlu0 %11380
  %11383 = vset.pattern.permute.xlu0 3
  %11384 = vperm.xlu0 %11383, %v11155
  %v11385 = vpop.permute.xlu0 %11384
  %11387 = vset.pattern.permute.xlu0 3
  %11388 = vperm.xlu0 %11387, %v11156
  %v11389 = vpop.permute.xlu0 %11388
  %11391 = vset.pattern.permute.xlu0 3
  %11392 = vperm.xlu0 %11391, %v11157
  %v11393 = vpop.permute.xlu0 %11392
  %11395 = vset.pattern.permute.xlu0 3
  %11396 = vperm.xlu0 %11395, %v11158
  %v11397 = vpop.permute.xlu0 %11396
  %v11399 = vmul.f32 %v11381, %v11374
  %v11400 = vmul.f32 %v11385, %v11375
  %v11401 = vmul.f32 %v11389, %v11376
  %v11402 = vmul.f32 %v11393, %v11377
  %v11403 = vmul.f32 %v11397, %v11378
  %v11404 = vadd.f32 %v11349, %v11399
  %v11405 = vadd.f32 %v11350, %v11400
  %v11406 = vadd.f32 %v11351, %v11401
  %v11407 = vadd.f32 %v11352, %v11402
  %v11408 = vadd.f32 %v11353, %v11403
  %11409 = vrot.lane.b32.xlu0 %v11149, 127
  %v11410 = vpop.permute.xlu0 %11409
  %11411 = vrot.lane.b32.xlu0 %v11150, 127
  %v11412 = vpop.permute.xlu0 %11411
  %11413 = vrot.lane.b32.xlu0 %v11151, 127
  %v11414 = vpop.permute.xlu0 %11413
  %11415 = vrot.lane.b32.xlu0 %v11152, 127
  %v11416 = vpop.permute.xlu0 %11415
  %11417 = vrot.lane.b32.xlu0 %v11153, 127
  %v11418 = vpop.permute.xlu0 %11417
  %v11424 = vsel %vm9312, %v11410, 0.0
  %v11425 = vsel %vm9312, %v11412, 0.0
  %v11426 = vsel %vm9312, %v11414, 0.0
  %v11427 = vsel %vm9312, %v11416, 0.0
  %v11428 = vsel %vm9312, %v11418, 0.0
  %v11429 = vmul.f32 %v11424, %v9322
  %v11430 = vmul.f32 %v11425, %v9322
  %v11431 = vmul.f32 %v11426, %v9322
  %v11432 = vmul.f32 %v11427, %v9322
  %v11433 = vmul.f32 %v11428, %v9322
  %11434 = vset.pattern.permute.xlu0 5
  %11435 = vperm.xlu0 %11434, %v11154
  %v11436 = vpop.permute.xlu0 %11435
  %11438 = vset.pattern.permute.xlu0 5
  %11439 = vperm.xlu0 %11438, %v11155
  %v11440 = vpop.permute.xlu0 %11439
  %11442 = vset.pattern.permute.xlu0 5
  %11443 = vperm.xlu0 %11442, %v11156
  %v11444 = vpop.permute.xlu0 %11443
  %11446 = vset.pattern.permute.xlu0 5
  %11447 = vperm.xlu0 %11446, %v11157
  %v11448 = vpop.permute.xlu0 %11447
  %11450 = vset.pattern.permute.xlu0 5
  %11451 = vperm.xlu0 %11450, %v11158
  %v11452 = vpop.permute.xlu0 %11451
  %v11454 = vmul.f32 %v11436, %v11429
  %v11455 = vmul.f32 %v11440, %v11430
  %v11456 = vmul.f32 %v11444, %v11431
  %v11457 = vmul.f32 %v11448, %v11432
  %v11458 = vmul.f32 %v11452, %v11433
  %v11459 = vadd.f32 %v11404, %v11454
  %v11460 = vadd.f32 %v11405, %v11455
  %v11461 = vadd.f32 %v11406, %v11456
  %v11462 = vadd.f32 %v11407, %v11457
  %v11463 = vadd.f32 %v11408, %v11458
  %11464 = vrot.lane.b32.xlu0 %v11149, 121
  %v11465 = vpop.permute.xlu0 %11464
  %11466 = vrot.lane.b32.xlu0 %v11150, 121
  %v11467 = vpop.permute.xlu0 %11466
  %11468 = vrot.lane.b32.xlu0 %v11151, 121
  %v11469 = vpop.permute.xlu0 %11468
  %11470 = vrot.lane.b32.xlu0 %v11152, 121
  %v11471 = vpop.permute.xlu0 %11470
  %11472 = vrot.lane.b32.xlu0 %v11153, 121
  %v11473 = vpop.permute.xlu0 %11472
  %v11479 = vsel %vm9373, %v11465, 0.0
  %v11480 = vsel %vm9373, %v11467, 0.0
  %v11481 = vsel %vm9373, %v11469, 0.0
  %v11482 = vsel %vm9373, %v11471, 0.0
  %v11483 = vsel %vm9373, %v11473, 0.0
  %v11484 = vmul.f32 %v11479, %v9383
  %v11485 = vmul.f32 %v11480, %v9383
  %v11486 = vmul.f32 %v11481, %v9383
  %v11487 = vmul.f32 %v11482, %v9383
  %v11488 = vmul.f32 %v11483, %v9383
  %11489 = vset.pattern.permute.xlu0 6
  %11490 = vperm.xlu0 %11489, %v11154
  %v11491 = vpop.permute.xlu0 %11490
  %11493 = vset.pattern.permute.xlu0 6
  %11494 = vperm.xlu0 %11493, %v11155
  %v11495 = vpop.permute.xlu0 %11494
  %11497 = vset.pattern.permute.xlu0 6
  %11498 = vperm.xlu0 %11497, %v11156
  %v11499 = vpop.permute.xlu0 %11498
  %11501 = vset.pattern.permute.xlu0 6
  %11502 = vperm.xlu0 %11501, %v11157
  %v11503 = vpop.permute.xlu0 %11502
  %11505 = vset.pattern.permute.xlu0 6
  %11506 = vperm.xlu0 %11505, %v11158
  %v11507 = vpop.permute.xlu0 %11506
  %v11509 = vmul.f32 %v11491, %v11484
  %v11510 = vmul.f32 %v11495, %v11485
  %v11511 = vmul.f32 %v11499, %v11486
  %v11512 = vmul.f32 %v11503, %v11487
  %v11513 = vmul.f32 %v11507, %v11488
  %v11514 = vadd.f32 %v11459, %v11509
  %v11515 = vadd.f32 %v11460, %v11510
  %v11516 = vadd.f32 %v11461, %v11511
  %v11517 = vadd.f32 %v11462, %v11512
  %v11518 = vadd.f32 %v11463, %v11513
  %11519 = vrot.lane.b32.xlu0 %v11149, 120
  %v11520 = vpop.permute.xlu0 %11519
  %11521 = vrot.lane.b32.xlu0 %v11150, 120
  %v11522 = vpop.permute.xlu0 %11521
  %11523 = vrot.lane.b32.xlu0 %v11151, 120
  %v11524 = vpop.permute.xlu0 %11523
  %11525 = vrot.lane.b32.xlu0 %v11152, 120
  %v11526 = vpop.permute.xlu0 %11525
  %11527 = vrot.lane.b32.xlu0 %v11153, 120
  %v11528 = vpop.permute.xlu0 %11527
  %v11534 = vsel %vm9434, %v11520, 0.0
  %v11535 = vsel %vm9434, %v11522, 0.0
  %v11536 = vsel %vm9434, %v11524, 0.0
  %v11537 = vsel %vm9434, %v11526, 0.0
  %v11538 = vsel %vm9434, %v11528, 0.0
  %11539 = vset.pattern.permute.xlu0 7
  %11540 = vperm.xlu0 %11539, %v11154
  %v11541 = vpop.permute.xlu0 %11540
  %11543 = vset.pattern.permute.xlu0 7
  %11544 = vperm.xlu0 %11543, %v11155
  %v11545 = vpop.permute.xlu0 %11544
  %11547 = vset.pattern.permute.xlu0 7
  %11548 = vperm.xlu0 %11547, %v11156
  %v11549 = vpop.permute.xlu0 %11548
  %11551 = vset.pattern.permute.xlu0 7
  %11552 = vperm.xlu0 %11551, %v11157
  %v11553 = vpop.permute.xlu0 %11552
  %11555 = vset.pattern.permute.xlu0 7
  %11556 = vperm.xlu0 %11555, %v11158
  %v11557 = vpop.permute.xlu0 %11556
  %v11559 = vmul.f32 %v11541, %v11534
  %v11560 = vmul.f32 %v11545, %v11535
  %v11561 = vmul.f32 %v11549, %v11536
  %v11562 = vmul.f32 %v11553, %v11537
  %v11563 = vmul.f32 %v11557, %v11538
  %v11564 = vadd.f32 %v11514, %v11559
  %v11565 = vadd.f32 %v11515, %v11560
  %v11566 = vadd.f32 %v11516, %v11561
  %v11567 = vadd.f32 %v11517, %v11562
  %v11568 = vadd.f32 %v11518, %v11563
  %11569 = vrot.lane.b32.xlu0 %v11149, 119
  %v11570 = vpop.permute.xlu0 %11569
  %11571 = vrot.lane.b32.xlu0 %v11150, 119
  %v11572 = vpop.permute.xlu0 %11571
  %11573 = vrot.lane.b32.xlu0 %v11151, 119
  %v11574 = vpop.permute.xlu0 %11573
  %11575 = vrot.lane.b32.xlu0 %v11152, 119
  %v11576 = vpop.permute.xlu0 %11575
  %11577 = vrot.lane.b32.xlu0 %v11153, 119
  %v11578 = vpop.permute.xlu0 %11577
  %v11584 = vsel %vm9485, %v11570, 0.0
  %v11585 = vsel %vm9485, %v11572, 0.0
  %v11586 = vsel %vm9485, %v11574, 0.0
  %v11587 = vsel %vm9485, %v11576, 0.0
  %v11588 = vsel %vm9485, %v11578, 0.0
  %v11589 = vmul.f32 %v11584, %v9495
  %v11590 = vmul.f32 %v11585, %v9495
  %v11591 = vmul.f32 %v11586, %v9495
  %v11592 = vmul.f32 %v11587, %v9495
  %v11593 = vmul.f32 %v11588, %v9495
  %11594 = vset.pattern.permute.xlu0 8
  %11595 = vperm.xlu0 %11594, %v11154
  %v11596 = vpop.permute.xlu0 %11595
  %11598 = vset.pattern.permute.xlu0 8
  %11599 = vperm.xlu0 %11598, %v11155
  %v11600 = vpop.permute.xlu0 %11599
  %11602 = vset.pattern.permute.xlu0 8
  %11603 = vperm.xlu0 %11602, %v11156
  %v11604 = vpop.permute.xlu0 %11603
  %11606 = vset.pattern.permute.xlu0 8
  %11607 = vperm.xlu0 %11606, %v11157
  %v11608 = vpop.permute.xlu0 %11607
  %11610 = vset.pattern.permute.xlu0 8
  %11611 = vperm.xlu0 %11610, %v11158
  %v11612 = vpop.permute.xlu0 %11611
  %v11614 = vmul.f32 %v11596, %v11589
  %v11615 = vmul.f32 %v11600, %v11590
  %v11616 = vmul.f32 %v11604, %v11591
  %v11617 = vmul.f32 %v11608, %v11592
  %v11618 = vmul.f32 %v11612, %v11593
  %v11619 = vadd.f32 %v11564, %v11614
  %v11620 = vadd.f32 %v11565, %v11615
  %v11621 = vadd.f32 %v11566, %v11616
  %v11622 = vadd.f32 %v11567, %v11617
  %v11623 = vadd.f32 %v11568, %v11618
  %v11624 = vld [vmem:[%s3 + $0x1c6] sm:$0xff]
  %v11625 = vld [vmem:[%s3 + $0x1ce] sm:$0xff]
  %v11626 = vld [vmem:[%s3 + $0x1d6] sm:$0xff]
  %v11627 = vld [vmem:[%s3 + $0x1de] sm:$0xff]
  %v11628 = vld [vmem:[%s3 + $0x1e6] sm:$0xff]
  %11630 = vset.pattern.permute.xlu0 0
  %11631 = vperm.xlu0 %11630, %v11624
  %v11632 = vpop.permute.xlu0 %11631
  %11635 = vset.pattern.permute.xlu0 0
  %11636 = vperm.xlu0 %11635, %v11625
  %v11637 = vpop.permute.xlu0 %11636
  %11640 = vset.pattern.permute.xlu0 0
  %11641 = vperm.xlu0 %11640, %v11626
  %v11642 = vpop.permute.xlu0 %11641
  %11645 = vset.pattern.permute.xlu0 0
  %11646 = vperm.xlu0 %11645, %v11627
  %v11647 = vpop.permute.xlu0 %11646
  %11650 = vset.pattern.permute.xlu0 0
  %11651 = vperm.xlu0 %11650, %v11628
  %v11652 = vpop.permute.xlu0 %11651
  %v11654 = vadd.f32 %v11619, %v11632
  %v11655 = vadd.f32 %v11620, %v11637
  %v11656 = vadd.f32 %v11621, %v11642
  %v11657 = vadd.f32 %v11622, %v11647
  %v11658 = vadd.f32 %v11623, %v11652
  %v11659 = vmul.f32 %v11654, 0.1
  %v11660 = vmul.f32 %v11655, 0.1
  %v11661 = vmul.f32 %v11656, 0.1
  %v11662 = vmul.f32 %v11657, 0.1
  %v11663 = vmul.f32 %v11658, 0.1
  %v11664 = vmax.f32 %v11654, %v11659
  %v11665 = vmax.f32 %v11655, %v11660
  %v11666 = vmax.f32 %v11656, %v11661
  %v11667 = vmax.f32 %v11657, %v11662
  %v11668 = vmax.f32 %v11658, %v11663
  %v11669 = vld [vmem:[%s1 + $0x160] sm:$0xff]
  %v11670 = vld [vmem:[%s1 + $0x168] sm:$0xff]
  %v11671 = vld [vmem:[%s1 + $0x170] sm:$0xff]
  %v11672 = vld [vmem:[%s1 + $0x178] sm:$0xff]
  %v11673 = vld [vmem:[%s3 + $0x1ee] sm:$0xff]
  %v11674 = vld [vmem:[%s3 + $0x1f6] sm:$0xff]
  %v11675 = vld [vmem:[%s3 + $0x1fe] sm:$0xff]
  %v11676 = vld [vmem:[%s3 + $0x206] sm:$0xff]
  %11678 = vset.pattern.permute.xlu0 0
  %11679 = vperm.xlu0 %11678, %v11673
  %v11680 = vpop.permute.xlu0 %11679
  %11683 = vset.pattern.permute.xlu0 0
  %11684 = vperm.xlu0 %11683, %v11674
  %v11685 = vpop.permute.xlu0 %11684
  %11688 = vset.pattern.permute.xlu0 0
  %11689 = vperm.xlu0 %11688, %v11675
  %v11690 = vpop.permute.xlu0 %11689
  %11693 = vset.pattern.permute.xlu0 0
  %11694 = vperm.xlu0 %11693, %v11676
  %v11695 = vpop.permute.xlu0 %11694
  %v11698 = vsel %vm9583, %v11669, 0
  %v11701 = vsel %vm9583, %v11670, 0
  %v11704 = vsel %vm9583, %v11671, 0
  %v11707 = vsel %vm9583, %v11672, 0
  %11709 = vmatprep.subr.mxu0 0.0
  %11710 = vmatpush1.msra.mxu0 %v11664
  %11711 = vmatprep.subr.mxu0 0.0
  %11712 = vmatpush1.msra.mxu0 %v11665
  %11713 = vmatprep.subr.mxu0 0.0
  %11714 = vmatpush1.msra.mxu0 %v11666
  %11715 = vmatprep.subr.mxu0 0.0
  %11716 = vmatpush1.msra.mxu0 %v11667
  %11717 = vmatprep.subr.mxu0 0.0
  %11718 = vmatpush1.msra.mxu0 %v11668
  %11719 = vmatprep.subr.mxu0 0.0
  %11720 = vmatpush1.msra.mxu0 0.0
  %11721 = vmatprep.subr.mxu0 0.0
  %11722 = vmatpush1.msra.mxu0 0.0
  %11723 = vmatprep.subr.mxu0 0.0
  %11724 = vmatpush1.msra.mxu0 0.0
  %11725 = vmatprep.subr.mxu0 0.0
  %11726 = vmatpush1.msra.mxu0 0.0
  %11727 = vmatprep.subr.mxu0 0.0
  %11728 = vmatpush1.msra.mxu0 0.0
  %11729 = vmatprep.subr.mxu0 0.0
  %11730 = vmatpush1.msra.mxu0 0.0
  %11731 = vmatprep.subr.mxu0 0.0
  %11732 = vmatpush1.msra.mxu0 0.0
  %11733 = vmatprep.subr.mxu0 0.0
  %11734 = vmatpush1.msra.mxu0 0.0
  %11735 = vmatprep.subr.mxu0 0.0
  %11736 = vmatpush1.msra.mxu0 0.0
  %11737 = vmatprep.subr.mxu0 0.0
  %11738 = vmatpush1.msra.mxu0 0.0
  %11739 = vmatprep.subr.mxu0 0.0
  %11740 = vmatpush1.msra.mxu0 0.0
  %11741 = vmatprep.subr.mxu0 0.0
  %11742 = vmatpush1.msra.mxu0 0.0
  %11743 = vmatprep.subr.mxu0 0.0
  %11744 = vmatpush1.msra.mxu0 0.0
  %11745 = vmatprep.subr.mxu0 0.0
  %11746 = vmatpush1.msra.mxu0 0.0
  %11747 = vmatprep.subr.mxu0 0.0
  %11748 = vmatpush1.msra.mxu0 0.0
  %11749 = vmatprep.subr.mxu0 0.0
  %11750 = vmatpush1.msra.mxu0 0.0
  %11751 = vmatprep.subr.mxu0 0.0
  %11752 = vmatpush1.msra.mxu0 0.0
  %11753 = vmatprep.subr.mxu0 0.0
  %11754 = vmatpush1.msra.mxu0 0.0
  %11755 = vmatprep.subr.mxu0 0.0
  %11756 = vmatpush1.msra.mxu0 0.0
  %11757 = vmatprep.subr.mxu0 0.0
  %11758 = vmatpush1.msra.mxu0 0.0
  %11759 = vmatprep.subr.mxu0 0.0
  %11760 = vmatpush1.msra.mxu0 0.0
  %11761 = vmatprep.subr.mxu0 0.0
  %11762 = vmatpush1.msra.mxu0 0.0
  %11763 = vmatprep.subr.mxu0 0.0
  %11764 = vmatpush1.msra.mxu0 0.0
  %11765 = vmatprep.subr.mxu0 0.0
  %11766 = vmatpush1.msra.mxu0 0.0
  %11767 = vmatprep.subr.mxu0 0.0
  %11768 = vmatpush1.msra.mxu0 0.0
  %11769 = vmatprep.subr.mxu0 0.0
  %11770 = vmatpush1.msra.mxu0 0.0
  %11771 = vmatprep.subr.mxu0 0.0
  %11772 = vmatpush1.msra.mxu0 0.0
  %11773 = vmatprep.mubr.f32.mxu0 0.0
  %11774 = vmatmul.mubr.f32.gmra.mrb[0].mxu0 %v11698
  %v11775 = vpop.f32.mrb[0].mxu0
  %v11776 = vadd.f32 %v11680, %v11775
  %v11777 = vpop.f32.mrb[0].mxu0
  %11778 = vmatprep.mubr.f32.mxu0 0.0
  %11779 = vmatmul.mubr.f32.gmra.mrb[0].mxu0 %v11701
  %v11780 = vpop.f32.mrb[0].mxu0
  %v11781 = vadd.f32 %v11685, %v11780
  %v11782 = vpop.f32.mrb[0].mxu0
  %11783 = vmatprep.mubr.f32.mxu0 0.0
  %11784 = vmatmul.mubr.f32.gmra.mrb[0].mxu0 %v11704
  %v11785 = vpop.f32.mrb[0].mxu0
  %v11786 = vadd.f32 %v11690, %v11785
  %v11787 = vpop.f32.mrb[0].mxu0
  %11788 = vmatprep.mubr.f32.mxu0 0.0
  %11789 = vmatmul.mubr.f32.gmra.mrb[0].mxu0 %v11707
  %v11790 = vpop.f32.mrb[0].mxu0
  %v11791 = vadd.f32 %v11695, %v11790
  %v11792 = vpop.f32.mrb[0].mxu0
  %11793 = vdwg.mxu0
  %v11794 = vmul.f32 %v11776, 0.1
  %v11795 = vmul.f32 %v11781, 0.1
  %v11796 = vmul.f32 %v11786, 0.1
  %v11797 = vmul.f32 %v11791, 0.1
  %v11798 = vmax.f32 %v11776, %v11794
  %v11799 = vmax.f32 %v11781, %v11795
  %v11800 = vmax.f32 %v11786, %v11796
  %v11801 = vmax.f32 %v11791, %v11797
  %v11802 = vld [vmem:[%s1 + $0x180] sm:$0xff]
  %v11803 = vld [vmem:[%s1 + $0x188] sm:$0xff]
  %v11804 = vld [vmem:[%s1 + $0x190] sm:$0x3]
  %v11805 = vld [vmem:[%s3 + $0x20e] sm:$0xff]
  %v11806 = vld [vmem:[%s3 + $0x216] sm:$0xff]
  %v11807 = vld [vmem:[%s3 + $0x21e] sm:$0x3]
  %11809 = vset.pattern.permute.xlu0 0
  %11810 = vperm.xlu0 %11809, %v11805
  %v11811 = vpop.permute.xlu0 %11810
  %11814 = vset.pattern.permute.xlu0 0
  %11815 = vperm.xlu0 %11814, %v11806
  %v11816 = vpop.permute.xlu0 %11815
  %11819 = vset.pattern.permute.xlu0 0
  %11820 = vperm.xlu0 %11819, %v11807
  %v11821 = vpop.permute.xlu0 %11820
  %v11824 = vsel %vm552, %v11802, 0
  %v11827 = vsel %vm552, %v11803, 0
  %v11830 = vsel %vm552, %v11804, 0
  %11832 = vmatprep.subr.mxu0 0.0
  %11833 = vmatpush1.msra.mxu0 %v11798
  %11834 = vmatprep.subr.mxu0 0.0
  %11835 = vmatpush1.msra.mxu0 %v11799
  %11836 = vmatprep.subr.mxu0 0.0
  %11837 = vmatpush1.msra.mxu0 %v11800
  %11838 = vmatprep.subr.mxu0 0.0
  %11839 = vmatpush1.msra.mxu0 %v11801
  %11840 = vmatprep.subr.mxu0 0.0
  %11841 = vmatpush1.msra.mxu0 0.0
  %11842 = vmatprep.subr.mxu0 0.0
  %11843 = vmatpush1.msra.mxu0 0.0
  %11844 = vmatprep.subr.mxu0 0.0
  %11845 = vmatpush1.msra.mxu0 0.0
  %11846 = vmatprep.subr.mxu0 0.0
  %11847 = vmatpush1.msra.mxu0 0.0
  %11848 = vmatprep.subr.mxu0 0.0
  %11849 = vmatpush1.msra.mxu0 0.0
  %11850 = vmatprep.subr.mxu0 0.0
  %11851 = vmatpush1.msra.mxu0 0.0
  %11852 = vmatprep.subr.mxu0 0.0
  %11853 = vmatpush1.msra.mxu0 0.0
  %11854 = vmatprep.subr.mxu0 0.0
  %11855 = vmatpush1.msra.mxu0 0.0
  %11856 = vmatprep.subr.mxu0 0.0
  %11857 = vmatpush1.msra.mxu0 0.0
  %11858 = vmatprep.subr.mxu0 0.0
  %11859 = vmatpush1.msra.mxu0 0.0
  %11860 = vmatprep.subr.mxu0 0.0
  %11861 = vmatpush1.msra.mxu0 0.0
  %11862 = vmatprep.subr.mxu0 0.0
  %11863 = vmatpush1.msra.mxu0 0.0
  %11864 = vmatprep.subr.mxu0 0.0
  %11865 = vmatpush1.msra.mxu0 0.0
  %11866 = vmatprep.subr.mxu0 0.0
  %11867 = vmatpush1.msra.mxu0 0.0
  %11868 = vmatprep.subr.mxu0 0.0
  %11869 = vmatpush1.msra.mxu0 0.0
  %11870 = vmatprep.subr.mxu0 0.0
  %11871 = vmatpush1.msra.mxu0 0.0
  %11872 = vmatprep.subr.mxu0 0.0
  %11873 = vmatpush1.msra.mxu0 0.0
  %11874 = vmatprep.subr.mxu0 0.0
  %11875 = vmatpush1.msra.mxu0 0.0
  %11876 = vmatprep.subr.mxu0 0.0
  %11877 = vmatpush1.msra.mxu0 0.0
  %11878 = vmatprep.subr.mxu0 0.0
  %11879 = vmatpush1.msra.mxu0 0.0
  %11880 = vmatprep.subr.mxu0 0.0
  %11881 = vmatpush1.msra.mxu0 0.0
  %11882 = vmatprep.subr.mxu0 0.0
  %11883 = vmatpush1.msra.mxu0 0.0
  %11884 = vmatprep.subr.mxu0 0.0
  %11885 = vmatpush1.msra.mxu0 0.0
  %11886 = vmatprep.subr.mxu0 0.0
  %11887 = vmatpush1.msra.mxu0 0.0
  %11888 = vmatprep.subr.mxu0 0.0
  %11889 = vmatpush1.msra.mxu0 0.0
  %11890 = vmatprep.subr.mxu0 0.0
  %11891 = vmatpush1.msra.mxu0 0.0
  %11892 = vmatprep.subr.mxu0 0.0
  %11893 = vmatpush1.msra.mxu0 0.0
  %11894 = vmatprep.subr.mxu0 0.0
  %11895 = vmatpush1.msra.mxu0 0.0
  %11896 = vmatprep.mubr.f32.mxu0 0.0
  %11897 = vmatmul.mubr.f32.gmra.mrb[0].mxu0 %v11824
  %v11898 = vpop.f32.mrb[0].mxu0
  %v11899 = vadd.f32 %v11811, %v11898
  %v11900 = vpop.f32.mrb[0].mxu0
  %11901 = vmatprep.mubr.f32.mxu0 0.0
  %11902 = vmatmul.mubr.f32.gmra.mrb[0].mxu0 %v11827
  %v11903 = vpop.f32.mrb[0].mxu0
  %v11904 = vadd.f32 %v11816, %v11903
  %v11905 = vpop.f32.mrb[0].mxu0
  %11906 = vmatprep.mubr.f32.mxu0 0.0
  %11907 = vmatmul.mubr.f32.gmra.mrb[0].mxu0 %v11830
  %v11908 = vpop.f32.mrb[0].mxu0
  %v11909 = vadd.f32 %v11821, %v11908
  %v11910 = vpop.f32.mrb[0].mxu0
  %11911 = vdwg.mxu0
  %v11912 = vsub.f32 0.0, %v11899
  %v11913 = vsub.f32 0.0, %v11904
  %v11914 = vsub.f32 0.0, %v11909
  %v11915 = vmul.f32 %v11912, 1.442695
  %v11916 = vpow.pop %v11915
  %v11917 = vmul.f32 %v11913, 1.442695
  %v11918 = vpow.pop %v11917
  %v11919 = vmul.f32 %v11914, 1.442695
  %v11920 = vpow.pop %v11919
  %v11921 = vadd.f32 %v11916, 1.0
  %v11922 = vadd.f32 %v11918, 1.0
  %v11923 = vadd.f32 %v11920, 1.0
  %v11924 = vrcp.pop %v11921
  %v11925 = vmul.f32 1.0, %v11924
  %v11926 = vrcp.pop %v11922
  %v11927 = vmul.f32 1.0, %v11926
  %v11928 = vrcp.pop %v11923
  %v11929 = vmul.f32 1.0, %v11928
  %v11930 = vld [vmem:[%s3 + $0x244] sm:$0xff]
  %v11931 = vld [vmem:[%s3 + $0x24c] sm:$0xff]
  %v11932 = vld [vmem:[%s3 + $0x254] sm:$0x3]
  %vm11933 = vcmp.gt.f32.partialorder %v11930, 0.0
  %vm11934 = vcmp.gt.f32.partialorder %v11931, 0.0
  %vm11935 = vcmp.gt.f32.partialorder %v11932, 0.0
  %v11936 = vsel %vm11933, 1, 0
  %v11937 = vsel %vm11934, 1, 0
  %v11938 = vsel %vm11935, 1, 0
  %11939 = vset.pattern.permute.xlu0 0
  %11940 = vperm.xlu0 %11939, %v11936
  %v11941 = vpop.permute.xlu0 %11940
  %11942 = vset.pattern.permute.xlu0 0
  %11943 = vperm.xlu0 %11942, %v11937
  %v11944 = vpop.permute.xlu0 %11943
  %11945 = vset.pattern.permute.xlu0 0
  %11946 = vperm.xlu0 %11945, %v11938
  %v11947 = vpop.permute.xlu0 %11946
  %vm11948 = vcmp.eq.s32.totalorder %v11941, 1
  %vm11949 = vcmp.eq.s32.totalorder %v11944, 1
  %vm11950 = vcmp.eq.s32.totalorder %v11947, 1
  %v11951 = vsel %vm11948, %v11899, 0.0
  %v11952 = vsel %vm11949, %v11904, 0.0
  %v11953 = vsel %vm11950, %v11909, 0.0
  %v11954 = vmul.f32 %v11951, 1.442695
  %v11955 = vpow.pop %v11954
  %v11956 = vmul.f32 %v11952, 1.442695
  %v11957 = vpow.pop %v11956
  %v11958 = vmul.f32 %v11953, 1.442695
  %v11959 = vpow.pop %v11958
  %v11960 = vld [vmem:[%s3 + $0x232] sm:$0xff]
  %v11961 = vld [vmem:[%s3 + $0x23a] sm:$0xff]
  %v11962 = vld [vmem:[%s3 + $0x242] sm:$0x3]
  %v11963 = vld [vmem:[%s11] sm:$0xff]
  %v11964 = vld [vmem:[%s11 + $0x8] sm:$0xff]
  %v11965 = vld [vmem:[%s11 + $0x10] sm:$0x3]
  %v11966 = vadd.f32 %v11925, %v11963
  %v11967 = vadd.f32 %v11927, %v11964
  %v11968 = vadd.f32 %v11929, %v11965
  %11970 = vset.pattern.permute.xlu0 0
  %11971 = vperm.xlu0 %11970, %v11960
  %v11972 = vpop.permute.xlu0 %11971
  %11975 = vset.pattern.permute.xlu0 0
  %11976 = vperm.xlu0 %11975, %v11961
  %v11977 = vpop.permute.xlu0 %11976
  %11980 = vset.pattern.permute.xlu0 0
  %11981 = vperm.xlu0 %11980, %v11962
  %v11982 = vpop.permute.xlu0 %11981
  %v11984 = vmul.f32 %v11972, %v11966
  %v11985 = vmul.f32 %v11977, %v11967
  %v11986 = vmul.f32 %v11982, %v11968
  %v11987 = vmul.f32 %v11984, 8.0
  %v11988 = vmul.f32 %v11985, 8.0
  %v11989 = vmul.f32 %v11986, 8.0
  %11991 = vset.pattern.permute.xlu0 0
  %11992 = vperm.xlu0 %11991, %v11930
  %v11993 = vpop.permute.xlu0 %11992
  %11996 = vset.pattern.permute.xlu0 0
  %11997 = vperm.xlu0 %11996, %v11931
  %v11998 = vpop.permute.xlu0 %11997
  %12001 = vset.pattern.permute.xlu0 0
  %12002 = vperm.xlu0 %12001, %v11932
  %v12003 = vpop.permute.xlu0 %12002
  %v12005 = vmul.f32 %v11993, %v11955
  %v12006 = vmul.f32 %v11998, %v11957
  %v12007 = vmul.f32 %v12003, %v11959
  %v12008 = vld [vmem:[%s3 + $0x220] sm:$0xff]
  %v12009 = vld [vmem:[%s3 + $0x228] sm:$0xff]
  %v12010 = vld [vmem:[%s3 + $0x230] sm:$0x3]
  %12012 = vset.pattern.permute.xlu0 0
  %12013 = vperm.xlu0 %12012, %v12008
  %v12014 = vpop.permute.xlu0 %12013
  %12017 = vset.pattern.permute.xlu0 0
  %12018 = vperm.xlu0 %12017, %v12009
  %v12019 = vpop.permute.xlu0 %12018
  %12022 = vset.pattern.permute.xlu0 0
  %12023 = vperm.xlu0 %12022, %v12010
  %v12024 = vpop.permute.xlu0 %12023
  %v12026 = vmul.f32 %v12005, %v12014
  %v12027 = vmul.f32 %v12006, %v12019
  %v12028 = vmul.f32 %v12007, %v12024
  %v12029 = vadd.f32 %v11987, %v12026
  %v12030 = vadd.f32 %v11988, %v12027
  %v12031 = vadd.f32 %v11989, %v12028
  %v12032 = vld [vmem:[%s3 + $0x256] sm:$0xff]
  %v12033 = vld [vmem:[%s3 + $0x25e] sm:$0xff]
  %v12034 = vld [vmem:[%s3 + $0x266] sm:$0x3]
  %12036 = vset.pattern.permute.xlu0 0
  %12037 = vperm.xlu0 %12036, %v12032
  %v12038 = vpop.permute.xlu0 %12037
  %12041 = vset.pattern.permute.xlu0 0
  %12042 = vperm.xlu0 %12041, %v12033
  %v12043 = vpop.permute.xlu0 %12042
  %12046 = vset.pattern.permute.xlu0 0
  %12047 = vperm.xlu0 %12046, %v12034
  %v12048 = vpop.permute.xlu0 %12047
  %v12050 = vmul.f32 %v12038, %v11925
  %v12051 = vmul.f32 %v12043, %v11927
  %v12052 = vmul.f32 %v12048, %v11929
  %v12053 = vadd.f32 %v12029, %v12050
  %v12054 = vadd.f32 %v12030, %v12051
  %v12055 = vadd.f32 %v12031, %v12052
  %12056 = vst.msk [vmem:[%s12] sm:$0xff] %vm6826, %v12053
  %12057 = vst.msk [vmem:[%s12 + $0x8] sm:$0xff] %vm6826, %v12054
  %vm12058 = vcmask 517120
  %12059 = vst.msk [vmem:[%s12 + $0x10] sm:$0x3] %vm12058, %v12055
  // Predicated region
  $region50: #{yoloface_forward.1} parent=0 // pred_check
    _
  $region51: #{yoloface_forward.1} parent=0 // pred_check_branch
    %12061 = sbr.rel (0) target = $region53
  $region52: #{yoloface_forward.1} parent=0 // pred_region
    _
  $region53: #{yoloface_forward.1} parent=0 // pred_fallthru
    _
  // Predicated region
  $region54: #{yoloface_forward.1} parent=0 // pred_check
    _
  $region55: #{yoloface_forward.1} parent=0 // pred_check_branch
    %12063 = sbr.rel (0) target = $region57
  $region56: #{yoloface_forward.1} parent=0 // pred_region
    _
  $region57: #{yoloface_forward.1} parent=0 // pred_fallthru
    _

</llo_original>
